<compile_context>
chip_gen: v6e
topology: v6e:2x2x1
jax: 0.10.0
libtpu: 0.0.40
codegen_flags: <defaults>
</compile_context>

<pallas_src>
import jax
import jax.numpy as jnp
from jax.experimental import pallas as pl
from jax.experimental.pallas import tpu as pltpu


# ---------------------------------------------------------------------------
# Pallas kernels
# ---------------------------------------------------------------------------
def conv_relu_pool_kernel(xs_ref, w_ref, b_ref, o_ref):
    """Fused conv (im2col matmul) + bias + ReLU + 2x2 maxpool for a batch tile.

    xs_ref: (Bt, 4, N, K) bf16  parity-ordered im2col patches
                                (4 = members of each 2x2 pool window,
                                 N = pooled positions, K = KH*KW*Cin)
    w_ref : (K, Cout)     bf16  conv weights as a matmul operand (VMEM-resident)
    b_ref : (1, Cout)     f32   conv bias (VMEM-resident)
    o_ref : (Bt, N, Cout) f32   pooled + ReLU'd activations
    """
    Bt, P, N, K = xs_ref.shape
    # Single MXU matmul for the whole batch tile and all 4 pool parities:
    # one weight push, M = Bt*4*N rows, f32 accumulation.
    x = xs_ref[...].reshape(Bt * P * N, K)
    m = jnp.dot(x, w_ref[...], preferred_element_type=jnp.float32)
    m = m.reshape(Bt, P, N, m.shape[-1])
    # 2x2 max-pool == elementwise max over the 4 parity planes (VPU).
    pooled = jnp.maximum(jnp.maximum(m[:, 0], m[:, 1]),
                         jnp.maximum(m[:, 2], m[:, 3]))
    # relu(max_q(conv_q) + b) == maxpool(relu(conv + b)): monotone + per-channel b.
    o_ref[...] = jnp.maximum(pooled + b_ref[...], 0.0).astype(o_ref.dtype)


def linear_kernel(x_ref, w_ref, b_ref, o_ref):
    # x_ref: (Bt, F) bf16, w_ref: (F, Cout) bf16, b_ref: (1, Cout) f32
    o_ref[...] = (jnp.dot(x_ref[...], w_ref[...],
                          preferred_element_type=jnp.float32)
                  + b_ref[...]).astype(o_ref.dtype)


# ---------------------------------------------------------------------------
# Batch-tiling helpers
# ---------------------------------------------------------------------------
def _conv_batch_tile(B, cap=16):
    """Bt for the conv grid: >=2 grid steps when B>=2 (fills both v7x cores)."""
    bt = max(1, min(cap, -(-B // 2)))
    Bp = -(-B // bt) * bt
    return bt, Bp


def _linear_batch_tile(B, cap=128):
    """Bt for the linear grid: multiple of 8 (sublane-aligned 2-D blocks)."""
    bt = min(cap, -(-B // 8) * 8)
    Bp = -(-B // bt) * bt
    return bt, Bp


def _pad_batch(x, Bp):
    B = x.shape[0]
    if Bp == B:
        return x
    pad = [(0, Bp - B)] + [(0, 0)] * (x.ndim - 1)
    return jnp.pad(x, pad)


# ---------------------------------------------------------------------------
# Plain-JAX glue (layout only; no heavy compute)
# ---------------------------------------------------------------------------
def _im2col_pool_ordered(x_nhwc, kh_sz, kw_sz, pad):
    """Build (B, 4, N, K) parity-ordered im2col patches for a stride-1 'same'
    conv that is followed by a 2x2 max pool inside the kernel."""
    B, H, W, Cin = x_nhwc.shape
    xp = jnp.pad(x_nhwc, ((0, 0), (pad, pad), (pad, pad), (0, 0)))
    Ho, Wo = H, W                      # stride 1, padding 2, kernel 5 -> 'same'
    H2, W2 = Ho // 2, Wo // 2
    cols = []
    for kh in range(kh_sz):
        for kw in range(kw_sz):
            cols.append(xp[:, kh:kh + Ho, kw:kw + Wo, :])   # (B, Ho, Wo, Cin)
    patches = jnp.stack(cols, axis=3)                        # (B, Ho, Wo, T, Cin)
    K = kh_sz * kw_sz * Cin
    patches = patches.reshape(B, H2, 2, W2, 2, K)            # split h,w parity
    patches = patches.transpose(0, 2, 4, 1, 3, 5)            # (B, ph, pw, oh, ow, K)
    return patches.reshape(B, 4, H2 * W2, K)


def conv_relu_pool(x_nhwc, w, b, *, bt_cap=16):
    """Conv2d(k=5, stride=1, pad=2) + ReLU + MaxPool2d(2) via a Pallas kernel."""
    B = x_nhwc.shape[0]
    KH, KW, _, Cout = w.shape
    xs = _im2col_pool_ordered(x_nhwc.astype(jnp.bfloat16), KH, KW, pad=2)
    N, K = xs.shape[2], xs.shape[3]

    bt, Bp = _conv_batch_tile(B, bt_cap)
    xs = _pad_batch(xs, Bp)                                  # (Bp, 4, N, K) bf16
    wm = w.reshape(K, Cout).astype(jnp.bfloat16)
    bm = b.reshape(1, Cout).astype(jnp.float32)

    out = pl.pallas_call(
        conv_relu_pool_kernel,
        out_shape=jax.ShapeDtypeStruct((Bp, N, Cout), jnp.float32),
        grid=(Bp // bt,),
        in_specs=[
            pl.BlockSpec((bt, 4, N, K), lambda i: (i, 0, 0, 0)),
            pl.BlockSpec((K, Cout), lambda i: (0, 0)),       # resident weight
            pl.BlockSpec((1, Cout), lambda i: (0, 0)),       # resident bias
        ],
        out_specs=pl.BlockSpec((bt, N, Cout), lambda i: (i, 0, 0)),
        compiler_params=pltpu.CompilerParams(
            dimension_semantics=("parallel",)),
    )(xs, wm, bm)                                            # (Bp, N, Cout)
    return out[:B]


def linear(x, w, b, *, bt_cap=128):
    B, F = x.shape
    Cout = w.shape[1]
    bt, Bp = _linear_batch_tile(B, bt_cap)
    xb = _pad_batch(x.astype(jnp.bfloat16), Bp)              # (Bp, F) bf16
    wm = w.astype(jnp.bfloat16)
    bm = b.reshape(1, Cout).astype(jnp.float32)

    out = pl.pallas_call(
        linear_kernel,
        out_shape=jax.ShapeDtypeStruct((Bp, Cout), jnp.float32),
        grid=(Bp // bt,),
        in_specs=[
            pl.BlockSpec((bt, F), lambda i: (i, 0)),
            pl.BlockSpec((F, Cout), lambda i: (0, 0)),       # resident weight
            pl.BlockSpec((1, Cout), lambda i: (0, 0)),       # resident bias
        ],
        out_specs=pl.BlockSpec((bt, Cout), lambda i: (i, 0)),
        compiler_params=pltpu.CompilerParams(
            dimension_semantics=("parallel",)),
    )(xb, wm, bm)
    return out[:B]


# ---------------------------------------------------------------------------
# LeNet forward (mirrors the PyTorch module)
# ---------------------------------------------------------------------------
def lenet_forward(x_nchw, params):
    B = x_nchw.shape[0]
    x = jnp.transpose(x_nchw, (0, 2, 3, 1))                  # NCHW -> NHWC

    h1 = conv_relu_pool(x, params["w1"], params["b1"])       # (B, 14*14, 16)
    h1 = h1.reshape(B, 14, 14, 16)

    h2 = conv_relu_pool(h1, params["w2"], params["b2"])      # (B, 7*7, 32)
    h2 = h2.reshape(B, 7, 7, 32)

    # PyTorch x.view(B, -1) flattens NCHW, i.e. channel-major (C, H, W):
    feat = jnp.transpose(h2, (0, 3, 1, 2)).reshape(B, 32 * 7 * 7)

    logits = linear(feat, params["wf"], params["bf"])        # (B, 10)
    return logits, feat


def init_params(key):
    k1, k2, k3, k4, k5, k6 = jax.random.split(key, 6)
    return {
        # conv weights stored HWIO (KH, KW, Cin, Cout); deterministic synthetic init
        "w1": jax.random.normal(k1, (5, 5, 1, 16), jnp.float32) * 0.1,
        "b1": jax.random.normal(k2, (16,), jnp.float32) * 0.1,
        "w2": jax.random.normal(k3, (5, 5, 16, 32), jnp.float32) * 0.05,
        "b2": jax.random.normal(k4, (32,), jnp.float32) * 0.1,
        # linear stored as (in_features, out_features)
        "wf": jax.random.normal(k5, (32 * 7 * 7, 10), jnp.float32) * 0.02,
        "bf": jax.random.normal(k6, (10,), jnp.float32) * 0.1,
    }


if __name__ == "__main__":
    key = jax.random.PRNGKey(0)
    kx, kp = jax.random.split(key)
    # MNIST-style input (the 32*7*7 Linear layer fixes spatial size to 28x28).
    x = jax.random.normal(kx, (2, 1, 28, 28), jnp.float32)   # NCHW like PyTorch
    params = init_params(kp)

    logits, feat = jax.jit(lenet_forward)(x, params)
    jax.block_until_ready((logits, feat))

    assert logits.shape == (2, 10), logits.shape
    assert feat.shape == (2, 32 * 7 * 7), feat.shape
    assert logits.dtype == jnp.float32 and feat.dtype == jnp.float32
    assert bool(jnp.all(jnp.isfinite(logits))) and bool(jnp.all(jnp.isfinite(feat)))

    print("KERNEL_OK")
</pallas_src>

<mosaic_0001>
module attributes {stable_mosaic.version = 11 : i64} {
  func.func @conv_relu_pool_kernel(%arg0: i32, %arg1: memref<1x4x196x25xbf16, #tpu.memory_space<vmem>>, %arg2: memref<25x16xbf16, #tpu.memory_space<vmem>>, %arg3: memref<1x16xf32, #tpu.memory_space<vmem>>, %arg4: memref<1x196x16xf32, #tpu.memory_space<vmem>>) attributes {dimension_semantics = [#tpu.dimension_semantics<parallel>], iteration_bounds = array<i64: 2>, scalar_prefetch = 0 : i64, scratch_operands = 0 : i64, tpu.core_type = #tpu.core_type<tc>, window_params = [{transform_indices = @transform_0, window_bounds = array<i64: 1, 4, 196, 25>}, {pipeline_mode = #tpu.pipeline_mode<synchronous>, transform_indices = @transform_1, window_bounds = array<i64: 25, 16>}, {pipeline_mode = #tpu.pipeline_mode<synchronous>, transform_indices = @transform_2, window_bounds = array<i64: 1, 16>}, {transform_indices = @transform_3, window_bounds = array<i64: 1, 196, 16>}]} {
    %c0 = arith.constant 0 : index
    %c0_0 = arith.constant 0 : index
    %c0_1 = arith.constant 0 : index
    %c0_2 = arith.constant 0 : index
    %0 = vector.load %arg1[%c0, %c0_0, %c0_1, %c0_2] : memref<1x4x196x25xbf16, #tpu.memory_space<vmem>>, vector<1x4x196x25xbf16>
    %1 = vector.shape_cast %0 : vector<1x4x196x25xbf16> to vector<784x25xbf16>
    %c0_3 = arith.constant 0 : index
    %c0_4 = arith.constant 0 : index
    %2 = vector.load %arg2[%c0_3, %c0_4] : memref<25x16xbf16, #tpu.memory_space<vmem>>, vector<25x16xbf16>
    %cst = arith.constant dense<0.000000e+00> : vector<784x16xf32>
    %3 = tpu.matmul %1, %2, %cst {dimension_numbers = #tpu.dot_dimension_numbers<[1], [0], [0], [1], [0, 0, 1, 1], [], []>} : vector<784x25xbf16>, vector<25x16xbf16>, vector<784x16xf32> -> vector<784x16xf32>
    %4 = vector.shape_cast %3 : vector<784x16xf32> to vector<1x4x196x16xf32>
    %5 = vector.extract_strided_slice %4 {offsets = [0, 0, 0, 0], sizes = [1, 1, 196, 16], strides = [1, 1, 1, 1]} : vector<1x4x196x16xf32> to vector<1x1x196x16xf32>
    %6 = vector.shape_cast %5 : vector<1x1x196x16xf32> to vector<1x196x16xf32>
    %7 = vector.extract_strided_slice %4 {offsets = [0, 1, 0, 0], sizes = [1, 1, 196, 16], strides = [1, 1, 1, 1]} : vector<1x4x196x16xf32> to vector<1x1x196x16xf32>
    %8 = vector.shape_cast %7 : vector<1x1x196x16xf32> to vector<1x196x16xf32>
    %9 = arith.maximumf %6, %8 : vector<1x196x16xf32>
    %10 = vector.extract_strided_slice %4 {offsets = [0, 2, 0, 0], sizes = [1, 1, 196, 16], strides = [1, 1, 1, 1]} : vector<1x4x196x16xf32> to vector<1x1x196x16xf32>
    %11 = vector.shape_cast %10 : vector<1x1x196x16xf32> to vector<1x196x16xf32>
    %12 = vector.extract_strided_slice %4 {offsets = [0, 3, 0, 0], sizes = [1, 1, 196, 16], strides = [1, 1, 1, 1]} : vector<1x4x196x16xf32> to vector<1x1x196x16xf32>
    %13 = vector.shape_cast %12 : vector<1x1x196x16xf32> to vector<1x196x16xf32>
    %14 = arith.maximumf %11, %13 : vector<1x196x16xf32>
    %15 = arith.maximumf %9, %14 : vector<1x196x16xf32>
    %c0_5 = arith.constant 0 : index
    %c0_6 = arith.constant 0 : index
    %16 = vector.load %arg3[%c0_5, %c0_6] : memref<1x16xf32, #tpu.memory_space<vmem>>, vector<1x16xf32>
    %17 = vector.shape_cast %16 : vector<1x16xf32> to vector<1x1x16xf32>
    %18 = vector.broadcast %17 : vector<1x1x16xf32> to vector<1x196x16xf32>
    %19 = arith.addf %15, %18 : vector<1x196x16xf32>
    %cst_7 = arith.constant 0.000000e+00 : f32
    %20 = vector.broadcast %cst_7 : f32 to vector<1x196x16xf32>
    %21 = arith.maximumf %19, %20 : vector<1x196x16xf32>
    %c0_8 = arith.constant 0 : index
    %c0_9 = arith.constant 0 : index
    %c0_10 = arith.constant 0 : index
    %22 = vector.load %arg4[%c0_8, %c0_9, %c0_10] : memref<1x196x16xf32, #tpu.memory_space<vmem>>, vector<1x196x16xf32>
    tpu.vector_store %arg4[%c0_8, %c0_9, %c0_10], %21 {strides = array<i32>} : memref<1x196x16xf32, #tpu.memory_space<vmem>>, vector<1x196x16xf32>,
    return
  }
  func.func @transform_0(%arg0: i32) -> (i32, i32, i32, i32) {
    %c0_i32 = arith.constant 0 : i32
    %c0_i32_0 = arith.constant 0 : i32
    %c0_i32_1 = arith.constant 0 : i32
    %c0_i32_2 = arith.constant 0 : i32
    return %arg0, %c0_i32, %c0_i32_0, %c0_i32_1 : i32, i32, i32, i32
  }
  func.func @transform_1(%arg0: i32) -> (i32, i32) {
    %c0_i32 = arith.constant 0 : i32
    %c0_i32_0 = arith.constant 0 : i32
    %c0_i32_1 = arith.constant 0 : i32
    return %c0_i32, %c0_i32_0 : i32, i32
  }
  func.func @transform_2(%arg0: i32) -> (i32, i32) {
    %c0_i32 = arith.constant 0 : i32
    %c0_i32_0 = arith.constant 0 : i32
    %c0_i32_1 = arith.constant 0 : i32
    return %c0_i32, %c0_i32_0 : i32, i32
  }
  func.func @transform_3(%arg0: i32) -> (i32, i32, i32) {
    %c0_i32 = arith.constant 0 : i32
    %c0_i32_0 = arith.constant 0 : i32
    %c0_i32_1 = arith.constant 0 : i32
    return %arg0, %c0_i32, %c0_i32_0 : i32, i32, i32
  }
}

module attributes {stable_mosaic.version = 11 : i64} {
  func.func @conv_relu_pool_kernel(%arg0: i32, %arg1: memref<1x4x49x400xbf16, #tpu.memory_space<vmem>>, %arg2: memref<400x32xbf16, #tpu.memory_space<vmem>>, %arg3: memref<1x32xf32, #tpu.memory_space<vmem>>, %arg4: memref<1x49x32xf32, #tpu.memory_space<vmem>>) attributes {dimension_semantics = [#tpu.dimension_semantics<parallel>], iteration_bounds = array<i64: 2>, scalar_prefetch = 0 : i64, scratch_operands = 0 : i64, tpu.core_type = #tpu.core_type<tc>, window_params = [{transform_indices = @transform_0, window_bounds = array<i64: 1, 4, 49, 400>}, {pipeline_mode = #tpu.pipeline_mode<synchronous>, transform_indices = @transform_1, window_bounds = array<i64: 400, 32>}, {pipeline_mode = #tpu.pipeline_mode<synchronous>, transform_indices = @transform_2, window_bounds = array<i64: 1, 32>}, {transform_indices = @transform_3, window_bounds = array<i64: 1, 49, 32>}]} {
    %c0 = arith.constant 0 : index
    %c0_0 = arith.constant 0 : index
    %c0_1 = arith.constant 0 : index
    %c0_2 = arith.constant 0 : index
    %0 = vector.load %arg1[%c0, %c0_0, %c0_1, %c0_2] : memref<1x4x49x400xbf16, #tpu.memory_space<vmem>>, vector<1x4x49x400xbf16>
    %1 = vector.shape_cast %0 : vector<1x4x49x400xbf16> to vector<196x400xbf16>
    %c0_3 = arith.constant 0 : index
    %c0_4 = arith.constant 0 : index
    %2 = vector.load %arg2[%c0_3, %c0_4] : memref<400x32xbf16, #tpu.memory_space<vmem>>, vector<400x32xbf16>
    %cst = arith.constant dense<0.000000e+00> : vector<196x32xf32>
    %3 = tpu.matmul %1, %2, %cst {dimension_numbers = #tpu.dot_dimension_numbers<[1], [0], [0], [1], [0, 0, 1, 1], [], []>} : vector<196x400xbf16>, vector<400x32xbf16>, vector<196x32xf32> -> vector<196x32xf32>
    %4 = vector.shape_cast %3 : vector<196x32xf32> to vector<1x4x49x32xf32>
    %5 = vector.extract_strided_slice %4 {offsets = [0, 0, 0, 0], sizes = [1, 1, 49, 32], strides = [1, 1, 1, 1]} : vector<1x4x49x32xf32> to vector<1x1x49x32xf32>
    %6 = vector.shape_cast %5 : vector<1x1x49x32xf32> to vector<1x49x32xf32>
    %7 = vector.extract_strided_slice %4 {offsets = [0, 1, 0, 0], sizes = [1, 1, 49, 32], strides = [1, 1, 1, 1]} : vector<1x4x49x32xf32> to vector<1x1x49x32xf32>
    %8 = vector.shape_cast %7 : vector<1x1x49x32xf32> to vector<1x49x32xf32>
    %9 = arith.maximumf %6, %8 : vector<1x49x32xf32>
    %10 = vector.extract_strided_slice %4 {offsets = [0, 2, 0, 0], sizes = [1, 1, 49, 32], strides = [1, 1, 1, 1]} : vector<1x4x49x32xf32> to vector<1x1x49x32xf32>
    %11 = vector.shape_cast %10 : vector<1x1x49x32xf32> to vector<1x49x32xf32>
    %12 = vector.extract_strided_slice %4 {offsets = [0, 3, 0, 0], sizes = [1, 1, 49, 32], strides = [1, 1, 1, 1]} : vector<1x4x49x32xf32> to vector<1x1x49x32xf32>
    %13 = vector.shape_cast %12 : vector<1x1x49x32xf32> to vector<1x49x32xf32>
    %14 = arith.maximumf %11, %13 : vector<1x49x32xf32>
    %15 = arith.maximumf %9, %14 : vector<1x49x32xf32>
    %c0_5 = arith.constant 0 : index
    %c0_6 = arith.constant 0 : index
    %16 = vector.load %arg3[%c0_5, %c0_6] : memref<1x32xf32, #tpu.memory_space<vmem>>, vector<1x32xf32>
    %17 = vector.shape_cast %16 : vector<1x32xf32> to vector<1x1x32xf32>
    %18 = vector.broadcast %17 : vector<1x1x32xf32> to vector<1x49x32xf32>
    %19 = arith.addf %15, %18 : vector<1x49x32xf32>
    %cst_7 = arith.constant 0.000000e+00 : f32
    %20 = vector.broadcast %cst_7 : f32 to vector<1x49x32xf32>
    %21 = arith.maximumf %19, %20 : vector<1x49x32xf32>
    %c0_8 = arith.constant 0 : index
    %c0_9 = arith.constant 0 : index
    %c0_10 = arith.constant 0 : index
    %22 = vector.load %arg4[%c0_8, %c0_9, %c0_10] : memref<1x49x32xf32, #tpu.memory_space<vmem>>, vector<1x49x32xf32>
    tpu.vector_store %arg4[%c0_8, %c0_9, %c0_10], %21 {strides = array<i32>} : memref<1x49x32xf32, #tpu.memory_space<vmem>>, vector<1x49x32xf32>,
    return
  }
  func.func @transform_0(%arg0: i32) -> (i32, i32, i32, i32) {
    %c0_i32 = arith.constant 0 : i32
    %c0_i32_0 = arith.constant 0 : i32
    %c0_i32_1 = arith.constant 0 : i32
    %c0_i32_2 = arith.constant 0 : i32
    return %arg0, %c0_i32, %c0_i32_0, %c0_i32_1 : i32, i32, i32, i32
  }
  func.func @transform_1(%arg0: i32) -> (i32, i32) {
    %c0_i32 = arith.constant 0 : i32
    %c0_i32_0 = arith.constant 0 : i32
    %c0_i32_1 = arith.constant 0 : i32
    return %c0_i32, %c0_i32_0 : i32, i32
  }
  func.func @transform_2(%arg0: i32) -> (i32, i32) {
    %c0_i32 = arith.constant 0 : i32
    %c0_i32_0 = arith.constant 0 : i32
    %c0_i32_1 = arith.constant 0 : i32
    return %c0_i32, %c0_i32_0 : i32, i32
  }
  func.func @transform_3(%arg0: i32) -> (i32, i32, i32) {
    %c0_i32 = arith.constant 0 : i32
    %c0_i32_0 = arith.constant 0 : i32
    %c0_i32_1 = arith.constant 0 : i32
    return %arg0, %c0_i32, %c0_i32_0 : i32, i32, i32
  }
}

module attributes {stable_mosaic.version = 11 : i64} {
  func.func @linear_kernel(%arg0: i32, %arg1: memref<8x1568xbf16, #tpu.memory_space<vmem>>, %arg2: memref<1568x10xbf16, #tpu.memory_space<vmem>>, %arg3: memref<1x10xf32, #tpu.memory_space<vmem>>, %arg4: memref<8x10xf32, #tpu.memory_space<vmem>>) attributes {dimension_semantics = [#tpu.dimension_semantics<parallel>], iteration_bounds = array<i64: 1>, scalar_prefetch = 0 : i64, scratch_operands = 0 : i64, tpu.core_type = #tpu.core_type<tc>, window_params = [{transform_indices = @transform_0, window_bounds = array<i64: 8, 1568>}, {pipeline_mode = #tpu.pipeline_mode<synchronous>, transform_indices = @transform_1, window_bounds = array<i64: 1568, 10>}, {pipeline_mode = #tpu.pipeline_mode<synchronous>, transform_indices = @transform_2, window_bounds = array<i64: 1, 10>}, {transform_indices = @transform_3, window_bounds = array<i64: 8, 10>}]} {
    %c0 = arith.constant 0 : index
    %c0_0 = arith.constant 0 : index
    %0 = vector.load %arg1[%c0, %c0_0] : memref<8x1568xbf16, #tpu.memory_space<vmem>>, vector<8x1568xbf16>
    %c0_1 = arith.constant 0 : index
    %c0_2 = arith.constant 0 : index
    %1 = vector.load %arg2[%c0_1, %c0_2] : memref<1568x10xbf16, #tpu.memory_space<vmem>>, vector<1568x10xbf16>
    %cst = arith.constant dense<0.000000e+00> : vector<8x10xf32>
    %2 = tpu.matmul %0, %1, %cst {dimension_numbers = #tpu.dot_dimension_numbers<[1], [0], [0], [1], [0, 0, 1, 1], [], []>} : vector<8x1568xbf16>, vector<1568x10xbf16>, vector<8x10xf32> -> vector<8x10xf32>
    %c0_3 = arith.constant 0 : index
    %c0_4 = arith.constant 0 : index
    %3 = vector.load %arg3[%c0_3, %c0_4] : memref<1x10xf32, #tpu.memory_space<vmem>>, vector<1x10xf32>
    %4 = vector.broadcast %3 : vector<1x10xf32> to vector<8x10xf32>
    %5 = arith.addf %2, %4 : vector<8x10xf32>
    %c0_5 = arith.constant 0 : index
    %c0_6 = arith.constant 0 : index
    %6 = vector.load %arg4[%c0_5, %c0_6] : memref<8x10xf32, #tpu.memory_space<vmem>>, vector<8x10xf32>
    tpu.vector_store %arg4[%c0_5, %c0_6], %5 {strides = array<i32>} : memref<8x10xf32, #tpu.memory_space<vmem>>, vector<8x10xf32>,
    return
  }
  func.func @transform_0(%arg0: i32) -> (i32, i32) {
    %c0_i32 = arith.constant 0 : i32
    %c0_i32_0 = arith.constant 0 : i32
    return %arg0, %c0_i32 : i32, i32
  }
  func.func @transform_1(%arg0: i32) -> (i32, i32) {
    %c0_i32 = arith.constant 0 : i32
    %c0_i32_0 = arith.constant 0 : i32
    %c0_i32_1 = arith.constant 0 : i32
    return %c0_i32, %c0_i32_0 : i32, i32
  }
  func.func @transform_2(%arg0: i32) -> (i32, i32) {
    %c0_i32 = arith.constant 0 : i32
    %c0_i32_0 = arith.constant 0 : i32
    %c0_i32_1 = arith.constant 0 : i32
    return %c0_i32, %c0_i32_0 : i32, i32
  }
  func.func @transform_3(%arg0: i32) -> (i32, i32) {
    %c0_i32 = arith.constant 0 : i32
    %c0_i32_0 = arith.constant 0 : i32
    return %arg0, %c0_i32 : i32, i32
  }
}

</mosaic_0001>

<llo_original>
// kernel: lenet_forward.3
$region0: #{lenet_forward.3}
  #allocation0 [shape = 'u32[]', space=smem, size = 0x4, offset = 0x4, fixed_abs, tag = 'smem constant byte address 0x4 - core index']
  #allocation1 [shape = 'u32[144,128]{1,0:T(1,128)}', space=vmem, size = 0x12000, scoped, tag = 'internal scratch']
  %s0 = inlined_call_operand.vmem [shape: bf16[2,4,196,25], index: 0, kind: input, shape index: {}]
  %s1 = inlined_call_operand.vmem [shape: bf16[25,16], index: 1, kind: input, shape index: {}]
  %s2 = inlined_call_operand.vmem [shape: f32[1,16], index: 2, kind: input, shape index: {}]
  %s3 = inlined_call_operand.vmem [shape: f32[2,196,16], index: 3, kind: output, shape index: {}]
  %s4 = sld [smem:[#allocation0]]
  $region45: #{lenet_forward.3} parent=0
    _
  %s6 = ssub.s32 1, %s4
  %s7 = scalar_select 0, %s6, %s4
  loop: start=0, step=1, limit=4
  $region2: #{lenet_forward.3} parent=0 // loop_pre_header
    _
  $region3: #{lenet_forward.3} parent=0 // loop_header
    %s9 = sphi 0, %s13
    %p10 = scmp.ge.s32.totalorder %s9, 4
    %s19 = sphi 0, %s21
    %s22 = sphi 0, %s19
    %s23 = sphi 0, %s22
    %s39 = sphi 0, %s23
    %s43 = sphi 0, %s43
    %s45 = sphi 0, %s43
    %s46 = sphi 0, %s45
    %s60 = sphi 0, %s46
    %s64 = sphi 0, %s64
    %s66 = sphi 0, %s64
    %s67 = sphi 0, %s66
    %s81 = sphi 0, %s67
    %s87 = sphi 0, %s89
    %s90 = sphi 0, %s87
    %s91 = sphi 0, %s90
    %s107 = sphi 0, %s91
  $region4: #{lenet_forward.3} parent=0 // loop_header_branch
    %12 = sbr.rel (%p10) target = $region8
  $region5: #{lenet_forward.3} parent=0 // loop_body
    %s14 = ssub.s32 %s9, 1
    %s15 = ssub.s32 %s9, 2
    %s16 = sadd.s32 %s9, 1
    %s17 = ssub.s32 %s9, %s16
    %p18 = scmp.eq.s32.totalorder %s17, 0
    %s20 = sadd.s32 %s19, 1
    %s21 = scalar_select %p18, %s19, %s20
    %p24 = pneg %p18
    %p25 = scmp.eq.s32.totalorder %s9, 1
    %p26 = por %p24, %p25
    %p27 = scmp.ne.s32.totalorder %s19, %s22
    %p28 = scmp.eq.s32.totalorder %s9, 0
    %p29 = por %p27, %p28
    %p30 = scmp.ne.s32.totalorder %s19, %s22
    %p31 = scmp.eq.s32.totalorder %s14, 1
    %p32 = por %p30, %p31
    %p33 = scmp.ne.s32.totalorder %s22, %s23
    %p34 = scmp.eq.s32.totalorder %s14, 0
    %p35 = por %p33, %p34
    %p36 = scmp.ne.s32.totalorder %s22, %s23
    %p37 = scmp.eq.s32.totalorder %s15, 1
    %p38 = por %p36, %p37
    %p40 = scmp.ne.s32.totalorder %s23, %s39
    %p41 = scmp.eq.s32.totalorder %s15, 0
    %p42 = por %p40, %p41
    %s44 = sadd.s32 %s43, 1
    %p47 = scmp.eq.s32.totalorder %s9, 1
    %p48 = scmp.ne.s32.totalorder %s43, %s45
    %p49 = scmp.eq.s32.totalorder %s9, 0
    %p50 = por %p48, %p49
    %p51 = scmp.ne.s32.totalorder %s43, %s45
    %p52 = scmp.eq.s32.totalorder %s14, 1
    %p53 = por %p51, %p52
    %p54 = scmp.ne.s32.totalorder %s45, %s46
    %p55 = scmp.eq.s32.totalorder %s14, 0
    %p56 = por %p54, %p55
    %p57 = scmp.ne.s32.totalorder %s45, %s46
    %p58 = scmp.eq.s32.totalorder %s15, 1
    %p59 = por %p57, %p58
    %p61 = scmp.ne.s32.totalorder %s46, %s60
    %p62 = scmp.eq.s32.totalorder %s15, 0
    %p63 = por %p61, %p62
    %s65 = sadd.s32 %s64, 1
    %p68 = scmp.eq.s32.totalorder %s9, 1
    %p69 = scmp.ne.s32.totalorder %s64, %s66
    %p70 = scmp.eq.s32.totalorder %s9, 0
    %p71 = por %p69, %p70
    %p72 = scmp.ne.s32.totalorder %s64, %s66
    %p73 = scmp.eq.s32.totalorder %s14, 1
    %p74 = por %p72, %p73
    %p75 = scmp.ne.s32.totalorder %s66, %s67
    %p76 = scmp.eq.s32.totalorder %s14, 0
    %p77 = por %p75, %p76
    %p78 = scmp.ne.s32.totalorder %s66, %s67
    %p79 = scmp.eq.s32.totalorder %s15, 1
    %p80 = por %p78, %p79
    %p82 = scmp.ne.s32.totalorder %s67, %s81
    %p83 = scmp.eq.s32.totalorder %s15, 0
    %p84 = por %p82, %p83
    %s85 = ssub.s32 %s9, %s16
    %p86 = scmp.eq.s32.totalorder %s85, 0
    %s88 = sadd.s32 %s87, 1
    %s89 = scalar_select %p86, %s87, %s88
    %p92 = pneg %p86
    %p93 = scmp.eq.s32.totalorder %s9, 1
    %p94 = por %p92, %p93
    %p95 = scmp.ne.s32.totalorder %s87, %s90
    %p96 = scmp.eq.s32.totalorder %s9, 0
    %p97 = por %p95, %p96
    %p98 = scmp.ne.s32.totalorder %s87, %s90
    %p99 = scmp.eq.s32.totalorder %s14, 1
    %p100 = por %p98, %p99
    %p101 = scmp.ne.s32.totalorder %s90, %s91
    %p102 = scmp.eq.s32.totalorder %s14, 0
    %p103 = por %p101, %p102
    %p104 = scmp.ne.s32.totalorder %s90, %s91
    %p105 = scmp.eq.s32.totalorder %s15, 1
    %p106 = por %p104, %p105
    %p108 = scmp.ne.s32.totalorder %s91, %s107
    %p109 = scmp.eq.s32.totalorder %s15, 0
    %p110 = por %p108, %p109
    %p111 = scmp.le.s32.totalorder 1, %s9
    %p112 = scmp.lt.s32.totalorder %s9, 3
    %p113 = pnand %p111, %p112
    %p114 = pneg %p113
    // Predicated region
    $region9: #{lenet_forward.3} parent=5 // pred_check
      _
    $region10: #{lenet_forward.3} parent=5 // pred_check_branch
      %116 = sbr.rel (%p113) target = $region12
    $region11: #{lenet_forward.3} parent=5 // pred_region
      %s117 = ssub.s32 %s9, 1
      // Predicated region
      $region13: #{lenet_forward.3} parent=11 // pred_check
        %p118 = pneg %p56
      $region14: #{lenet_forward.3} parent=11 // pred_check_branch
        %120 = sbr.rel (%p118) target = $region16
      $region15: #{lenet_forward.3} parent=11 // pred_region
        _
      $region16: #{lenet_forward.3} parent=11 // pred_fallthru
        _
      // Predicated region
      $region17: #{lenet_forward.3} parent=11 // pred_check
        %p121 = pneg %p77
      $region18: #{lenet_forward.3} parent=11 // pred_check_branch
        %123 = sbr.rel (%p121) target = $region20
      $region19: #{lenet_forward.3} parent=11 // pred_region
        _
      $region20: #{lenet_forward.3} parent=11 // pred_fallthru
        _
    $region12: #{lenet_forward.3} parent=5 // pred_fallthru
      _
    %p124 = scmp.lt.s32.totalorder %s9, 2
    // Predicated region
    $region21: #{lenet_forward.3} parent=5 // pred_check
      %p125 = pneg %p124
    $region22: #{lenet_forward.3} parent=5 // pred_check_branch
      %127 = sbr.rel (%p125) target = $region24
    $region23: #{lenet_forward.3} parent=5 // pred_region
      // Predicated region
      $region25: #{lenet_forward.3} parent=23 // pred_check
        %p128 = pneg %p29
      $region26: #{lenet_forward.3} parent=23 // pred_check_branch
        %130 = sbr.rel (%p128) target = $region28
      $region27: #{lenet_forward.3} parent=23 // pred_region
        %p131 = scmp.lt.s32.totalorder %s9, 1
        %s132 = scalar_select %p131, %s9, 1
        %s133 = smul.addr %s132, 100
        %s134 = smul.addr %s133, 4
        %s135 = scalar_lea.vmem %s0, %s134
      $region28: #{lenet_forward.3} parent=23 // pred_fallthru
        _
    $region24: #{lenet_forward.3} parent=5 // pred_fallthru
      _
    %p136 = scmp.le.s32.totalorder 1, %s9
    %p137 = scmp.lt.s32.totalorder %s9, 3
    %p138 = pnand %p136, %p137
    %p139 = pneg %p138
    // Predicated region
    $region29: #{lenet_forward.3} parent=5 // pred_check
      _
    $region30: #{lenet_forward.3} parent=5 // pred_check_branch
      %141 = sbr.rel (%p138) target = $region32
    $region31: #{lenet_forward.3} parent=5 // pred_region
      %s142 = ssub.s32 %s9, 1
      %p143 = scmp.lt.s32.totalorder %s14, 1
      %s144 = scalar_select %p143, %s14, 1
      %s145 = smul.addr %s144, 100
      %s146 = smul.addr %s145, 4
      %s147 = scalar_lea.vmem %s0, %s146
      %p148 = pneg %p35
      %p149 = pneg %p32
      %p150 = pneg %p56
      %p151 = pneg %p53
      %p152 = pneg %p77
      %p153 = pneg %p74
      %p154 = pneg %p103
      %p155 = pneg %p100
      %p156 = scmp.lt.s32.totalorder %s14, 1
      %s157 = scalar_select %p156, %s14, 1
      %s158 = smul.addr %s157, 25
      %s159 = smul.addr %s158, 8
      %s160 = scalar_lea.vmem %s3, %s159
      %p161 = scmp.lt.s32.totalorder %s14, 1
      %s162 = scalar_select %p161, %s14, 1
      %s163 = smul.addr %s162, 100
      %s164 = smul.addr %s163, 4
      %s165 = scalar_lea.vmem %s0, %s164
      %p166 = scmp.lt.s32.totalorder %s14, 1
      %s167 = scalar_select %p166, %s14, 1
      %s168 = smul.addr %s167, 25
      %s169 = smul.addr %s168, 8
      %s170 = scalar_lea.vmem %s3, %s169
      %v172 = vld [vmem:[%s165] sm:$0xf]
      %v173 = vld [vmem:[%s165 + $0x4] sm:$0xf]
      %v174 = vld [vmem:[%s165 + $0x8] sm:$0xf]
      %v175 = vld [vmem:[%s165 + $0xc] sm:$0xf]
      %v176 = vld [vmem:[%s165 + $0x10] sm:$0xf]
      %v177 = vld [vmem:[%s165 + $0x14] sm:$0xf]
      %v178 = vld [vmem:[%s165 + $0x18] sm:$0xf]
      %v179 = vld [vmem:[%s165 + $0x1c] sm:$0xf]
      %v180 = vld [vmem:[%s165 + $0x20] sm:$0xf]
      %v181 = vld [vmem:[%s165 + $0x24] sm:$0xf]
      %v182 = vld [vmem:[%s165 + $0x28] sm:$0xf]
      %v183 = vld [vmem:[%s165 + $0x2c] sm:$0xf]
      %v184 = vld [vmem:[%s165 + $0x30] sm:$0xf]
      %v185 = vld [vmem:[%s165 + $0x34] sm:$0xf]
      %v186 = vld [vmem:[%s165 + $0x38] sm:$0xf]
      %v187 = vld [vmem:[%s165 + $0x3c] sm:$0xf]
      %v188 = vld [vmem:[%s165 + $0x40] sm:$0xf]
      %v189 = vld [vmem:[%s165 + $0x44] sm:$0xf]
      %v190 = vld [vmem:[%s165 + $0x48] sm:$0xf]
      %v191 = vld [vmem:[%s165 + $0x4c] sm:$0xf]
      %v192 = vld [vmem:[%s165 + $0x50] sm:$0xf]
      %v193 = vld [vmem:[%s165 + $0x54] sm:$0xf]
      %v194 = vld [vmem:[%s165 + $0x58] sm:$0xf]
      %v195 = vld [vmem:[%s165 + $0x5c] sm:$0xf]
      %v196 = vld [vmem:[%s165 + $0x60] sm:$0x3]
      %v197 = vld [vmem:[%s165 + $0x64] sm:$0xf]
      %v198 = vld [vmem:[%s165 + $0x68] sm:$0xf]
      %v199 = vld [vmem:[%s165 + $0x6c] sm:$0xf]
      %v200 = vld [vmem:[%s165 + $0x70] sm:$0xf]
      %v201 = vld [vmem:[%s165 + $0x74] sm:$0xf]
      %v202 = vld [vmem:[%s165 + $0x78] sm:$0xf]
      %v203 = vld [vmem:[%s165 + $0x7c] sm:$0xf]
      %v204 = vld [vmem:[%s165 + $0x80] sm:$0xf]
      %v205 = vld [vmem:[%s165 + $0x84] sm:$0xf]
      %v206 = vld [vmem:[%s165 + $0x88] sm:$0xf]
      %v207 = vld [vmem:[%s165 + $0x8c] sm:$0xf]
      %v208 = vld [vmem:[%s165 + $0x90] sm:$0xf]
      %v209 = vld [vmem:[%s165 + $0x94] sm:$0xf]
      %v210 = vld [vmem:[%s165 + $0x98] sm:$0xf]
      %v211 = vld [vmem:[%s165 + $0x9c] sm:$0xf]
      %v212 = vld [vmem:[%s165 + $0xa0] sm:$0xf]
      %v213 = vld [vmem:[%s165 + $0xa4] sm:$0xf]
      %v214 = vld [vmem:[%s165 + $0xa8] sm:$0xf]
      %v215 = vld [vmem:[%s165 + $0xac] sm:$0xf]
      %v216 = vld [vmem:[%s165 + $0xb0] sm:$0xf]
      %v217 = vld [vmem:[%s165 + $0xb4] sm:$0xf]
      %v218 = vld [vmem:[%s165 + $0xb8] sm:$0xf]
      %v219 = vld [vmem:[%s165 + $0xbc] sm:$0xf]
      %v220 = vld [vmem:[%s165 + $0xc0] sm:$0xf]
      %v221 = vld [vmem:[%s165 + $0xc4] sm:$0x3]
      %v222 = vld [vmem:[%s165 + $0xc8] sm:$0xf]
      %v223 = vld [vmem:[%s165 + $0xcc] sm:$0xf]
      %v224 = vld [vmem:[%s165 + $0xd0] sm:$0xf]
      %v225 = vld [vmem:[%s165 + $0xd4] sm:$0xf]
      %v226 = vld [vmem:[%s165 + $0xd8] sm:$0xf]
      %v227 = vld [vmem:[%s165 + $0xdc] sm:$0xf]
      %v228 = vld [vmem:[%s165 + $0xe0] sm:$0xf]
      %v229 = vld [vmem:[%s165 + $0xe4] sm:$0xf]
      %v230 = vld [vmem:[%s165 + $0xe8] sm:$0xf]
      %v231 = vld [vmem:[%s165 + $0xec] sm:$0xf]
      %v232 = vld [vmem:[%s165 + $0xf0] sm:$0xf]
      %v233 = vld [vmem:[%s165 + $0xf4] sm:$0xf]
      %v234 = vld [vmem:[%s165 + $0xf8] sm:$0xf]
      %v235 = vld [vmem:[%s165 + $0xfc] sm:$0xf]
      %v236 = vld [vmem:[%s165 + $0x100] sm:$0xf]
      %v237 = vld [vmem:[%s165 + $0x104] sm:$0xf]
      %v238 = vld [vmem:[%s165 + $0x108] sm:$0xf]
      %v239 = vld [vmem:[%s165 + $0x10c] sm:$0xf]
      %v240 = vld [vmem:[%s165 + $0x110] sm:$0xf]
      %v241 = vld [vmem:[%s165 + $0x114] sm:$0xf]
      %v242 = vld [vmem:[%s165 + $0x118] sm:$0xf]
      %v243 = vld [vmem:[%s165 + $0x11c] sm:$0xf]
      %v244 = vld [vmem:[%s165 + $0x120] sm:$0xf]
      %v245 = vld [vmem:[%s165 + $0x124] sm:$0xf]
      %v246 = vld [vmem:[%s165 + $0x128] sm:$0x3]
      %v247 = vld [vmem:[%s165 + $0x12c] sm:$0xf]
      %v248 = vld [vmem:[%s165 + $0x130] sm:$0xf]
      %v249 = vld [vmem:[%s165 + $0x134] sm:$0xf]
      %v250 = vld [vmem:[%s165 + $0x138] sm:$0xf]
      %v251 = vld [vmem:[%s165 + $0x13c] sm:$0xf]
      %v252 = vld [vmem:[%s165 + $0x140] sm:$0xf]
      %v253 = vld [vmem:[%s165 + $0x144] sm:$0xf]
      %v254 = vld [vmem:[%s165 + $0x148] sm:$0xf]
      %v255 = vld [vmem:[%s165 + $0x14c] sm:$0xf]
      %v256 = vld [vmem:[%s165 + $0x150] sm:$0xf]
      %v257 = vld [vmem:[%s165 + $0x154] sm:$0xf]
      %v258 = vld [vmem:[%s165 + $0x158] sm:$0xf]
      %v259 = vld [vmem:[%s165 + $0x15c] sm:$0xf]
      %v260 = vld [vmem:[%s165 + $0x160] sm:$0xf]
      %v261 = vld [vmem:[%s165 + $0x164] sm:$0xf]
      %v262 = vld [vmem:[%s165 + $0x168] sm:$0xf]
      %v263 = vld [vmem:[%s165 + $0x16c] sm:$0xf]
      %v264 = vld [vmem:[%s165 + $0x170] sm:$0xf]
      %v265 = vld [vmem:[%s165 + $0x174] sm:$0xf]
      %v266 = vld [vmem:[%s165 + $0x178] sm:$0xf]
      %v267 = vld [vmem:[%s165 + $0x17c] sm:$0xf]
      %v268 = vld [vmem:[%s165 + $0x180] sm:$0xf]
      %v269 = vld [vmem:[%s165 + $0x184] sm:$0xf]
      %v270 = vld [vmem:[%s165 + $0x188] sm:$0xf]
      %v271 = vld [vmem:[%s165 + $0x18c] sm:$0x3]
      %v373 = vunpack.c.l.s4 1983009808
      %v374 = vunpack.c.0.s8 %v373
      %v375 = vlaneseq
      %v376 = vshrl.u32 %v375, 7
      %v377 = vsub.s32 %v374, %v376
      %v378 = vrot.slane %v172, %v377
      %v379 = vcombine.high %v378, %v378
      %v381 = vunpack.c.l.s4 1983009808
      %v382 = vunpack.c.0.s8 %v381
      %v383 = vlaneseq
      %v384 = vshrl.u32 %v383, 7
      %v385 = vsub.s32 %v382, %v384
      %v386 = vrot.slane %v173, %v385
      %v387 = vcombine.high %v386, %v386
      %v389 = vunpack.c.l.s4 1983009808
      %v390 = vunpack.c.0.s8 %v389
      %v391 = vlaneseq
      %v392 = vshrl.u32 %v391, 7
      %v393 = vsub.s32 %v390, %v392
      %v394 = vrot.slane %v174, %v393
      %v395 = vcombine.high %v394, %v394
      %v397 = vunpack.c.l.s4 1983009808
      %v398 = vunpack.c.0.s8 %v397
      %v399 = vlaneseq
      %v400 = vshrl.u32 %v399, 7
      %v401 = vsub.s32 %v398, %v400
      %v402 = vrot.slane %v175, %v401
      %v403 = vcombine.high %v402, %v402
      %v405 = vunpack.c.l.s4 1983009808
      %v406 = vunpack.c.0.s8 %v405
      %v407 = vlaneseq
      %v408 = vshrl.u32 %v407, 7
      %v409 = vsub.s32 %v406, %v408
      %v410 = vrot.slane %v176, %v409
      %v411 = vcombine.high %v410, %v410
      %v413 = vunpack.c.l.s4 1983009808
      %v414 = vunpack.c.0.s8 %v413
      %v415 = vlaneseq
      %v416 = vshrl.u32 %v415, 7
      %v417 = vsub.s32 %v414, %v416
      %v418 = vrot.slane %v177, %v417
      %v419 = vcombine.high %v418, %v418
      %v421 = vunpack.c.l.s4 1983009808
      %v422 = vunpack.c.0.s8 %v421
      %v423 = vlaneseq
      %v424 = vshrl.u32 %v423, 7
      %v425 = vsub.s32 %v422, %v424
      %v426 = vrot.slane %v178, %v425
      %v427 = vcombine.high %v426, %v426
      %v429 = vunpack.c.l.s4 1983009808
      %v430 = vunpack.c.0.s8 %v429
      %v431 = vlaneseq
      %v432 = vshrl.u32 %v431, 7
      %v433 = vsub.s32 %v430, %v432
      %v434 = vrot.slane %v179, %v433
      %v435 = vcombine.high %v434, %v434
      %v437 = vunpack.c.l.s4 1983009808
      %v438 = vunpack.c.0.s8 %v437
      %v439 = vlaneseq
      %v440 = vshrl.u32 %v439, 7
      %v441 = vsub.s32 %v438, %v440
      %v442 = vrot.slane %v180, %v441
      %v443 = vcombine.high %v442, %v442
      %v445 = vunpack.c.l.s4 1983009808
      %v446 = vunpack.c.0.s8 %v445
      %v447 = vlaneseq
      %v448 = vshrl.u32 %v447, 7
      %v449 = vsub.s32 %v446, %v448
      %v450 = vrot.slane %v181, %v449
      %v451 = vcombine.high %v450, %v450
      %v453 = vunpack.c.l.s4 1983009808
      %v454 = vunpack.c.0.s8 %v453
      %v455 = vlaneseq
      %v456 = vshrl.u32 %v455, 7
      %v457 = vsub.s32 %v454, %v456
      %v458 = vrot.slane %v182, %v457
      %v459 = vcombine.high %v458, %v458
      %v461 = vunpack.c.l.s4 1983009808
      %v462 = vunpack.c.0.s8 %v461
      %v463 = vlaneseq
      %v464 = vshrl.u32 %v463, 7
      %v465 = vsub.s32 %v462, %v464
      %v466 = vrot.slane %v183, %v465
      %v467 = vcombine.high %v466, %v466
      %v469 = vunpack.c.l.s4 1983009808
      %v470 = vunpack.c.0.s8 %v469
      %v471 = vlaneseq
      %v472 = vshrl.u32 %v471, 7
      %v473 = vsub.s32 %v470, %v472
      %v474 = vrot.slane %v184, %v473
      %v475 = vcombine.high %v474, %v474
      %v477 = vunpack.c.l.s4 1983009808
      %v478 = vunpack.c.0.s8 %v477
      %v479 = vlaneseq
      %v480 = vshrl.u32 %v479, 7
      %v481 = vsub.s32 %v478, %v480
      %v482 = vrot.slane %v185, %v481
      %v483 = vcombine.high %v482, %v482
      %v485 = vunpack.c.l.s4 1983009808
      %v486 = vunpack.c.0.s8 %v485
      %v487 = vlaneseq
      %v488 = vshrl.u32 %v487, 7
      %v489 = vsub.s32 %v486, %v488
      %v490 = vrot.slane %v186, %v489
      %v491 = vcombine.high %v490, %v490
      %v493 = vunpack.c.l.s4 1983009808
      %v494 = vunpack.c.0.s8 %v493
      %v495 = vlaneseq
      %v496 = vshrl.u32 %v495, 7
      %v497 = vsub.s32 %v494, %v496
      %v498 = vrot.slane %v187, %v497
      %v499 = vcombine.high %v498, %v498
      %v501 = vunpack.c.l.s4 1983009808
      %v502 = vunpack.c.0.s8 %v501
      %v503 = vlaneseq
      %v504 = vshrl.u32 %v503, 7
      %v505 = vsub.s32 %v502, %v504
      %v506 = vrot.slane %v188, %v505
      %v507 = vcombine.high %v506, %v506
      %v509 = vunpack.c.l.s4 1983009808
      %v510 = vunpack.c.0.s8 %v509
      %v511 = vlaneseq
      %v512 = vshrl.u32 %v511, 7
      %v513 = vsub.s32 %v510, %v512
      %v514 = vrot.slane %v189, %v513
      %v515 = vcombine.high %v514, %v514
      %v517 = vunpack.c.l.s4 1983009808
      %v518 = vunpack.c.0.s8 %v517
      %v519 = vlaneseq
      %v520 = vshrl.u32 %v519, 7
      %v521 = vsub.s32 %v518, %v520
      %v522 = vrot.slane %v190, %v521
      %v523 = vcombine.high %v522, %v522
      %v525 = vunpack.c.l.s4 1983009808
      %v526 = vunpack.c.0.s8 %v525
      %v527 = vlaneseq
      %v528 = vshrl.u32 %v527, 7
      %v529 = vsub.s32 %v526, %v528
      %v530 = vrot.slane %v191, %v529
      %v531 = vcombine.high %v530, %v530
      %v533 = vunpack.c.l.s4 1983009808
      %v534 = vunpack.c.0.s8 %v533
      %v535 = vlaneseq
      %v536 = vshrl.u32 %v535, 7
      %v537 = vsub.s32 %v534, %v536
      %v538 = vrot.slane %v192, %v537
      %v539 = vcombine.high %v538, %v538
      %v541 = vunpack.c.l.s4 1983009808
      %v542 = vunpack.c.0.s8 %v541
      %v543 = vlaneseq
      %v544 = vshrl.u32 %v543, 7
      %v545 = vsub.s32 %v542, %v544
      %v546 = vrot.slane %v193, %v545
      %v547 = vcombine.high %v546, %v546
      %v549 = vunpack.c.l.s4 1983009808
      %v550 = vunpack.c.0.s8 %v549
      %v551 = vlaneseq
      %v552 = vshrl.u32 %v551, 7
      %v553 = vsub.s32 %v550, %v552
      %v554 = vrot.slane %v194, %v553
      %v555 = vcombine.high %v554, %v554
      %v557 = vunpack.c.l.s4 1983009808
      %v558 = vunpack.c.0.s8 %v557
      %v559 = vlaneseq
      %v560 = vshrl.u32 %v559, 7
      %v561 = vsub.s32 %v558, %v560
      %v562 = vrot.slane %v195, %v561
      %v563 = vcombine.high %v562, %v562
      %v565 = vunpack.c.l.s4 1983009808
      %v566 = vunpack.c.0.s8 %v565
      %v567 = vlaneseq
      %v568 = vshrl.u32 %v567, 7
      %v569 = vsub.s32 %v566, %v568
      %v570 = vrot.slane %v196, %v569
      %v572 = vunpack.c.l.s4 1983009808
      %v573 = vunpack.c.0.s8 %v572
      %v574 = vlaneseq
      %v575 = vshrl.u32 %v574, 7
      %v576 = vsub.s32 %v573, %v575
      %v577 = vrot.slane %v197, %v576
      %v578 = vcombine.high %v577, %v577
      %v580 = vunpack.c.l.s4 1983009808
      %v581 = vunpack.c.0.s8 %v580
      %v582 = vlaneseq
      %v583 = vshrl.u32 %v582, 7
      %v584 = vsub.s32 %v581, %v583
      %v585 = vrot.slane %v198, %v584
      %v586 = vcombine.high %v585, %v585
      %v588 = vunpack.c.l.s4 1983009808
      %v589 = vunpack.c.0.s8 %v588
      %v590 = vlaneseq
      %v591 = vshrl.u32 %v590, 7
      %v592 = vsub.s32 %v589, %v591
      %v593 = vrot.slane %v199, %v592
      %v594 = vcombine.high %v593, %v593
      %v596 = vunpack.c.l.s4 1983009808
      %v597 = vunpack.c.0.s8 %v596
      %v598 = vlaneseq
      %v599 = vshrl.u32 %v598, 7
      %v600 = vsub.s32 %v597, %v599
      %v601 = vrot.slane %v200, %v600
      %v602 = vcombine.high %v601, %v601
      %v604 = vunpack.c.l.s4 1983009808
      %v605 = vunpack.c.0.s8 %v604
      %v606 = vlaneseq
      %v607 = vshrl.u32 %v606, 7
      %v608 = vsub.s32 %v605, %v607
      %v609 = vrot.slane %v201, %v608
      %v610 = vcombine.high %v609, %v609
      %v612 = vunpack.c.l.s4 1983009808
      %v613 = vunpack.c.0.s8 %v612
      %v614 = vlaneseq
      %v615 = vshrl.u32 %v614, 7
      %v616 = vsub.s32 %v613, %v615
      %v617 = vrot.slane %v202, %v616
      %v618 = vcombine.high %v617, %v617
      %v620 = vunpack.c.l.s4 1983009808
      %v621 = vunpack.c.0.s8 %v620
      %v622 = vlaneseq
      %v623 = vshrl.u32 %v622, 7
      %v624 = vsub.s32 %v621, %v623
      %v625 = vrot.slane %v203, %v624
      %v626 = vcombine.high %v625, %v625
      %v628 = vunpack.c.l.s4 1983009808
      %v629 = vunpack.c.0.s8 %v628
      %v630 = vlaneseq
      %v631 = vshrl.u32 %v630, 7
      %v632 = vsub.s32 %v629, %v631
      %v633 = vrot.slane %v204, %v632
      %v634 = vcombine.high %v633, %v633
      %v636 = vunpack.c.l.s4 1983009808
      %v637 = vunpack.c.0.s8 %v636
      %v638 = vlaneseq
      %v639 = vshrl.u32 %v638, 7
      %v640 = vsub.s32 %v637, %v639
      %v641 = vrot.slane %v205, %v640
      %v642 = vcombine.high %v641, %v641
      %v644 = vunpack.c.l.s4 1983009808
      %v645 = vunpack.c.0.s8 %v644
      %v646 = vlaneseq
      %v647 = vshrl.u32 %v646, 7
      %v648 = vsub.s32 %v645, %v647
      %v649 = vrot.slane %v206, %v648
      %v650 = vcombine.high %v649, %v649
      %v652 = vunpack.c.l.s4 1983009808
      %v653 = vunpack.c.0.s8 %v652
      %v654 = vlaneseq
      %v655 = vshrl.u32 %v654, 7
      %v656 = vsub.s32 %v653, %v655
      %v657 = vrot.slane %v207, %v656
      %v658 = vcombine.high %v657, %v657
      %v660 = vunpack.c.l.s4 1983009808
      %v661 = vunpack.c.0.s8 %v660
      %v662 = vlaneseq
      %v663 = vshrl.u32 %v662, 7
      %v664 = vsub.s32 %v661, %v663
      %v665 = vrot.slane %v208, %v664
      %v666 = vcombine.high %v665, %v665
      %v668 = vunpack.c.l.s4 1983009808
      %v669 = vunpack.c.0.s8 %v668
      %v670 = vlaneseq
      %v671 = vshrl.u32 %v670, 7
      %v672 = vsub.s32 %v669, %v671
      %v673 = vrot.slane %v209, %v672
      %v674 = vcombine.high %v673, %v673
      %v676 = vunpack.c.l.s4 1983009808
      %v677 = vunpack.c.0.s8 %v676
      %v678 = vlaneseq
      %v679 = vshrl.u32 %v678, 7
      %v680 = vsub.s32 %v677, %v679
      %v681 = vrot.slane %v210, %v680
      %v682 = vcombine.high %v681, %v681
      %v684 = vunpack.c.l.s4 1983009808
      %v685 = vunpack.c.0.s8 %v684
      %v686 = vlaneseq
      %v687 = vshrl.u32 %v686, 7
      %v688 = vsub.s32 %v685, %v687
      %v689 = vrot.slane %v211, %v688
      %v690 = vcombine.high %v689, %v689
      %v692 = vunpack.c.l.s4 1983009808
      %v693 = vunpack.c.0.s8 %v692
      %v694 = vlaneseq
      %v695 = vshrl.u32 %v694, 7
      %v696 = vsub.s32 %v693, %v695
      %v697 = vrot.slane %v212, %v696
      %v698 = vcombine.high %v697, %v697
      %v700 = vunpack.c.l.s4 1983009808
      %v701 = vunpack.c.0.s8 %v700
      %v702 = vlaneseq
      %v703 = vshrl.u32 %v702, 7
      %v704 = vsub.s32 %v701, %v703
      %v705 = vrot.slane %v213, %v704
      %v706 = vcombine.high %v705, %v705
      %v708 = vunpack.c.l.s4 1983009808
      %v709 = vunpack.c.0.s8 %v708
      %v710 = vlaneseq
      %v711 = vshrl.u32 %v710, 7
      %v712 = vsub.s32 %v709, %v711
      %v713 = vrot.slane %v214, %v712
      %v714 = vcombine.high %v713, %v713
      %v716 = vunpack.c.l.s4 1983009808
      %v717 = vunpack.c.0.s8 %v716
      %v718 = vlaneseq
      %v719 = vshrl.u32 %v718, 7
      %v720 = vsub.s32 %v717, %v719
      %v721 = vrot.slane %v215, %v720
      %v722 = vcombine.high %v721, %v721
      %v724 = vunpack.c.l.s4 1983009808
      %v725 = vunpack.c.0.s8 %v724
      %v726 = vlaneseq
      %v727 = vshrl.u32 %v726, 7
      %v728 = vsub.s32 %v725, %v727
      %v729 = vrot.slane %v216, %v728
      %v730 = vcombine.high %v729, %v729
      %v732 = vunpack.c.l.s4 1983009808
      %v733 = vunpack.c.0.s8 %v732
      %v734 = vlaneseq
      %v735 = vshrl.u32 %v734, 7
      %v736 = vsub.s32 %v733, %v735
      %v737 = vrot.slane %v217, %v736
      %v738 = vcombine.high %v737, %v737
      %v740 = vunpack.c.l.s4 1983009808
      %v741 = vunpack.c.0.s8 %v740
      %v742 = vlaneseq
      %v743 = vshrl.u32 %v742, 7
      %v744 = vsub.s32 %v741, %v743
      %v745 = vrot.slane %v218, %v744
      %v746 = vcombine.high %v745, %v745
      %v748 = vunpack.c.l.s4 1983009808
      %v749 = vunpack.c.0.s8 %v748
      %v750 = vlaneseq
      %v751 = vshrl.u32 %v750, 7
      %v752 = vsub.s32 %v749, %v751
      %v753 = vrot.slane %v219, %v752
      %v754 = vcombine.high %v753, %v753
      %v756 = vunpack.c.l.s4 1983009808
      %v757 = vunpack.c.0.s8 %v756
      %v758 = vlaneseq
      %v759 = vshrl.u32 %v758, 7
      %v760 = vsub.s32 %v757, %v759
      %v761 = vrot.slane %v220, %v760
      %v762 = vcombine.high %v761, %v761
      %v764 = vunpack.c.l.s4 1983009808
      %v765 = vunpack.c.0.s8 %v764
      %v766 = vlaneseq
      %v767 = vshrl.u32 %v766, 7
      %v768 = vsub.s32 %v765, %v767
      %v769 = vrot.slane %v221, %v768
      %v771 = vunpack.c.l.s4 1983009808
      %v772 = vunpack.c.0.s8 %v771
      %v773 = vlaneseq
      %v774 = vshrl.u32 %v773, 7
      %v775 = vsub.s32 %v772, %v774
      %v776 = vrot.slane %v222, %v775
      %v777 = vcombine.high %v776, %v776
      %v779 = vunpack.c.l.s4 1983009808
      %v780 = vunpack.c.0.s8 %v779
      %v781 = vlaneseq
      %v782 = vshrl.u32 %v781, 7
      %v783 = vsub.s32 %v780, %v782
      %v784 = vrot.slane %v223, %v783
      %v785 = vcombine.high %v784, %v784
      %v787 = vunpack.c.l.s4 1983009808
      %v788 = vunpack.c.0.s8 %v787
      %v789 = vlaneseq
      %v790 = vshrl.u32 %v789, 7
      %v791 = vsub.s32 %v788, %v790
      %v792 = vrot.slane %v224, %v791
      %v793 = vcombine.high %v792, %v792
      %v795 = vunpack.c.l.s4 1983009808
      %v796 = vunpack.c.0.s8 %v795
      %v797 = vlaneseq
      %v798 = vshrl.u32 %v797, 7
      %v799 = vsub.s32 %v796, %v798
      %v800 = vrot.slane %v225, %v799
      %v801 = vcombine.high %v800, %v800
      %v803 = vunpack.c.l.s4 1983009808
      %v804 = vunpack.c.0.s8 %v803
      %v805 = vlaneseq
      %v806 = vshrl.u32 %v805, 7
      %v807 = vsub.s32 %v804, %v806
      %v808 = vrot.slane %v226, %v807
      %v809 = vcombine.high %v808, %v808
      %v811 = vunpack.c.l.s4 1983009808
      %v812 = vunpack.c.0.s8 %v811
      %v813 = vlaneseq
      %v814 = vshrl.u32 %v813, 7
      %v815 = vsub.s32 %v812, %v814
      %v816 = vrot.slane %v227, %v815
      %v817 = vcombine.high %v816, %v816
      %v819 = vunpack.c.l.s4 1983009808
      %v820 = vunpack.c.0.s8 %v819
      %v821 = vlaneseq
      %v822 = vshrl.u32 %v821, 7
      %v823 = vsub.s32 %v820, %v822
      %v824 = vrot.slane %v228, %v823
      %v825 = vcombine.high %v824, %v824
      %v827 = vunpack.c.l.s4 1983009808
      %v828 = vunpack.c.0.s8 %v827
      %v829 = vlaneseq
      %v830 = vshrl.u32 %v829, 7
      %v831 = vsub.s32 %v828, %v830
      %v832 = vrot.slane %v229, %v831
      %v833 = vcombine.high %v832, %v832
      %v835 = vunpack.c.l.s4 1983009808
      %v836 = vunpack.c.0.s8 %v835
      %v837 = vlaneseq
      %v838 = vshrl.u32 %v837, 7
      %v839 = vsub.s32 %v836, %v838
      %v840 = vrot.slane %v230, %v839
      %v841 = vcombine.high %v840, %v840
      %v843 = vunpack.c.l.s4 1983009808
      %v844 = vunpack.c.0.s8 %v843
      %v845 = vlaneseq
      %v846 = vshrl.u32 %v845, 7
      %v847 = vsub.s32 %v844, %v846
      %v848 = vrot.slane %v231, %v847
      %v849 = vcombine.high %v848, %v848
      %v851 = vunpack.c.l.s4 1983009808
      %v852 = vunpack.c.0.s8 %v851
      %v853 = vlaneseq
      %v854 = vshrl.u32 %v853, 7
      %v855 = vsub.s32 %v852, %v854
      %v856 = vrot.slane %v232, %v855
      %v857 = vcombine.high %v856, %v856
      %v859 = vunpack.c.l.s4 1983009808
      %v860 = vunpack.c.0.s8 %v859
      %v861 = vlaneseq
      %v862 = vshrl.u32 %v861, 7
      %v863 = vsub.s32 %v860, %v862
      %v864 = vrot.slane %v233, %v863
      %v865 = vcombine.high %v864, %v864
      %v867 = vunpack.c.l.s4 1983009808
      %v868 = vunpack.c.0.s8 %v867
      %v869 = vlaneseq
      %v870 = vshrl.u32 %v869, 7
      %v871 = vsub.s32 %v868, %v870
      %v872 = vrot.slane %v234, %v871
      %v873 = vcombine.high %v872, %v872
      %v875 = vunpack.c.l.s4 1983009808
      %v876 = vunpack.c.0.s8 %v875
      %v877 = vlaneseq
      %v878 = vshrl.u32 %v877, 7
      %v879 = vsub.s32 %v876, %v878
      %v880 = vrot.slane %v235, %v879
      %v881 = vcombine.high %v880, %v880
      %v883 = vunpack.c.l.s4 1983009808
      %v884 = vunpack.c.0.s8 %v883
      %v885 = vlaneseq
      %v886 = vshrl.u32 %v885, 7
      %v887 = vsub.s32 %v884, %v886
      %v888 = vrot.slane %v236, %v887
      %v889 = vcombine.high %v888, %v888
      %v891 = vunpack.c.l.s4 1983009808
      %v892 = vunpack.c.0.s8 %v891
      %v893 = vlaneseq
      %v894 = vshrl.u32 %v893, 7
      %v895 = vsub.s32 %v892, %v894
      %v896 = vrot.slane %v237, %v895
      %v897 = vcombine.high %v896, %v896
      %v899 = vunpack.c.l.s4 1983009808
      %v900 = vunpack.c.0.s8 %v899
      %v901 = vlaneseq
      %v902 = vshrl.u32 %v901, 7
      %v903 = vsub.s32 %v900, %v902
      %v904 = vrot.slane %v238, %v903
      %v905 = vcombine.high %v904, %v904
      %v907 = vunpack.c.l.s4 1983009808
      %v908 = vunpack.c.0.s8 %v907
      %v909 = vlaneseq
      %v910 = vshrl.u32 %v909, 7
      %v911 = vsub.s32 %v908, %v910
      %v912 = vrot.slane %v239, %v911
      %v913 = vcombine.high %v912, %v912
      %v915 = vunpack.c.l.s4 1983009808
      %v916 = vunpack.c.0.s8 %v915
      %v917 = vlaneseq
      %v918 = vshrl.u32 %v917, 7
      %v919 = vsub.s32 %v916, %v918
      %v920 = vrot.slane %v240, %v919
      %v921 = vcombine.high %v920, %v920
      %v923 = vunpack.c.l.s4 1983009808
      %v924 = vunpack.c.0.s8 %v923
      %v925 = vlaneseq
      %v926 = vshrl.u32 %v925, 7
      %v927 = vsub.s32 %v924, %v926
      %v928 = vrot.slane %v241, %v927
      %v929 = vcombine.high %v928, %v928
      %v931 = vunpack.c.l.s4 1983009808
      %v932 = vunpack.c.0.s8 %v931
      %v933 = vlaneseq
      %v934 = vshrl.u32 %v933, 7
      %v935 = vsub.s32 %v932, %v934
      %v936 = vrot.slane %v242, %v935
      %v937 = vcombine.high %v936, %v936
      %v939 = vunpack.c.l.s4 1983009808
      %v940 = vunpack.c.0.s8 %v939
      %v941 = vlaneseq
      %v942 = vshrl.u32 %v941, 7
      %v943 = vsub.s32 %v940, %v942
      %v944 = vrot.slane %v243, %v943
      %v945 = vcombine.high %v944, %v944
      %v947 = vunpack.c.l.s4 1983009808
      %v948 = vunpack.c.0.s8 %v947
      %v949 = vlaneseq
      %v950 = vshrl.u32 %v949, 7
      %v951 = vsub.s32 %v948, %v950
      %v952 = vrot.slane %v244, %v951
      %v953 = vcombine.high %v952, %v952
      %v955 = vunpack.c.l.s4 1983009808
      %v956 = vunpack.c.0.s8 %v955
      %v957 = vlaneseq
      %v958 = vshrl.u32 %v957, 7
      %v959 = vsub.s32 %v956, %v958
      %v960 = vrot.slane %v245, %v959
      %v961 = vcombine.high %v960, %v960
      %v963 = vunpack.c.l.s4 1983009808
      %v964 = vunpack.c.0.s8 %v963
      %v965 = vlaneseq
      %v966 = vshrl.u32 %v965, 7
      %v967 = vsub.s32 %v964, %v966
      %v968 = vrot.slane %v246, %v967
      %v970 = vunpack.c.l.s4 1983009808
      %v971 = vunpack.c.0.s8 %v970
      %v972 = vlaneseq
      %v973 = vshrl.u32 %v972, 7
      %v974 = vsub.s32 %v971, %v973
      %v975 = vrot.slane %v247, %v974
      %v976 = vcombine.high %v975, %v975
      %v978 = vunpack.c.l.s4 1983009808
      %v979 = vunpack.c.0.s8 %v978
      %v980 = vlaneseq
      %v981 = vshrl.u32 %v980, 7
      %v982 = vsub.s32 %v979, %v981
      %v983 = vrot.slane %v248, %v982
      %v984 = vcombine.high %v983, %v983
      %v986 = vunpack.c.l.s4 1983009808
      %v987 = vunpack.c.0.s8 %v986
      %v988 = vlaneseq
      %v989 = vshrl.u32 %v988, 7
      %v990 = vsub.s32 %v987, %v989
      %v991 = vrot.slane %v249, %v990
      %v992 = vcombine.high %v991, %v991
      %v994 = vunpack.c.l.s4 1983009808
      %v995 = vunpack.c.0.s8 %v994
      %v996 = vlaneseq
      %v997 = vshrl.u32 %v996, 7
      %v998 = vsub.s32 %v995, %v997
      %v999 = vrot.slane %v250, %v998
      %v1000 = vcombine.high %v999, %v999
      %v1002 = vunpack.c.l.s4 1983009808
      %v1003 = vunpack.c.0.s8 %v1002
      %v1004 = vlaneseq
      %v1005 = vshrl.u32 %v1004, 7
      %v1006 = vsub.s32 %v1003, %v1005
      %v1007 = vrot.slane %v251, %v1006
      %v1008 = vcombine.high %v1007, %v1007
      %v1010 = vunpack.c.l.s4 1983009808
      %v1011 = vunpack.c.0.s8 %v1010
      %v1012 = vlaneseq
      %v1013 = vshrl.u32 %v1012, 7
      %v1014 = vsub.s32 %v1011, %v1013
      %v1015 = vrot.slane %v252, %v1014
      %v1016 = vcombine.high %v1015, %v1015
      %v1018 = vunpack.c.l.s4 1983009808
      %v1019 = vunpack.c.0.s8 %v1018
      %v1020 = vlaneseq
      %v1021 = vshrl.u32 %v1020, 7
      %v1022 = vsub.s32 %v1019, %v1021
      %v1023 = vrot.slane %v253, %v1022
      %v1024 = vcombine.high %v1023, %v1023
      %v1026 = vunpack.c.l.s4 1983009808
      %v1027 = vunpack.c.0.s8 %v1026
      %v1028 = vlaneseq
      %v1029 = vshrl.u32 %v1028, 7
      %v1030 = vsub.s32 %v1027, %v1029
      %v1031 = vrot.slane %v254, %v1030
      %v1032 = vcombine.high %v1031, %v1031
      %v1034 = vunpack.c.l.s4 1983009808
      %v1035 = vunpack.c.0.s8 %v1034
      %v1036 = vlaneseq
      %v1037 = vshrl.u32 %v1036, 7
      %v1038 = vsub.s32 %v1035, %v1037
      %v1039 = vrot.slane %v255, %v1038
      %v1040 = vcombine.high %v1039, %v1039
      %v1042 = vunpack.c.l.s4 1983009808
      %v1043 = vunpack.c.0.s8 %v1042
      %v1044 = vlaneseq
      %v1045 = vshrl.u32 %v1044, 7
      %v1046 = vsub.s32 %v1043, %v1045
      %v1047 = vrot.slane %v256, %v1046
      %v1048 = vcombine.high %v1047, %v1047
      %v1050 = vunpack.c.l.s4 1983009808
      %v1051 = vunpack.c.0.s8 %v1050
      %v1052 = vlaneseq
      %v1053 = vshrl.u32 %v1052, 7
      %v1054 = vsub.s32 %v1051, %v1053
      %v1055 = vrot.slane %v257, %v1054
      %v1056 = vcombine.high %v1055, %v1055
      %v1058 = vunpack.c.l.s4 1983009808
      %v1059 = vunpack.c.0.s8 %v1058
      %v1060 = vlaneseq
      %v1061 = vshrl.u32 %v1060, 7
      %v1062 = vsub.s32 %v1059, %v1061
      %v1063 = vrot.slane %v258, %v1062
      %v1064 = vcombine.high %v1063, %v1063
      %v1066 = vunpack.c.l.s4 1983009808
      %v1067 = vunpack.c.0.s8 %v1066
      %v1068 = vlaneseq
      %v1069 = vshrl.u32 %v1068, 7
      %v1070 = vsub.s32 %v1067, %v1069
      %v1071 = vrot.slane %v259, %v1070
      %v1072 = vcombine.high %v1071, %v1071
      %v1074 = vunpack.c.l.s4 1983009808
      %v1075 = vunpack.c.0.s8 %v1074
      %v1076 = vlaneseq
      %v1077 = vshrl.u32 %v1076, 7
      %v1078 = vsub.s32 %v1075, %v1077
      %v1079 = vrot.slane %v260, %v1078
      %v1080 = vcombine.high %v1079, %v1079
      %v1082 = vunpack.c.l.s4 1983009808
      %v1083 = vunpack.c.0.s8 %v1082
      %v1084 = vlaneseq
      %v1085 = vshrl.u32 %v1084, 7
      %v1086 = vsub.s32 %v1083, %v1085
      %v1087 = vrot.slane %v261, %v1086
      %v1088 = vcombine.high %v1087, %v1087
      %v1090 = vunpack.c.l.s4 1983009808
      %v1091 = vunpack.c.0.s8 %v1090
      %v1092 = vlaneseq
      %v1093 = vshrl.u32 %v1092, 7
      %v1094 = vsub.s32 %v1091, %v1093
      %v1095 = vrot.slane %v262, %v1094
      %v1096 = vcombine.high %v1095, %v1095
      %v1098 = vunpack.c.l.s4 1983009808
      %v1099 = vunpack.c.0.s8 %v1098
      %v1100 = vlaneseq
      %v1101 = vshrl.u32 %v1100, 7
      %v1102 = vsub.s32 %v1099, %v1101
      %v1103 = vrot.slane %v263, %v1102
      %v1104 = vcombine.high %v1103, %v1103
      %v1106 = vunpack.c.l.s4 1983009808
      %v1107 = vunpack.c.0.s8 %v1106
      %v1108 = vlaneseq
      %v1109 = vshrl.u32 %v1108, 7
      %v1110 = vsub.s32 %v1107, %v1109
      %v1111 = vrot.slane %v264, %v1110
      %v1112 = vcombine.high %v1111, %v1111
      %v1114 = vunpack.c.l.s4 1983009808
      %v1115 = vunpack.c.0.s8 %v1114
      %v1116 = vlaneseq
      %v1117 = vshrl.u32 %v1116, 7
      %v1118 = vsub.s32 %v1115, %v1117
      %v1119 = vrot.slane %v265, %v1118
      %v1120 = vcombine.high %v1119, %v1119
      %v1122 = vunpack.c.l.s4 1983009808
      %v1123 = vunpack.c.0.s8 %v1122
      %v1124 = vlaneseq
      %v1125 = vshrl.u32 %v1124, 7
      %v1126 = vsub.s32 %v1123, %v1125
      %v1127 = vrot.slane %v266, %v1126
      %v1128 = vcombine.high %v1127, %v1127
      %v1130 = vunpack.c.l.s4 1983009808
      %v1131 = vunpack.c.0.s8 %v1130
      %v1132 = vlaneseq
      %v1133 = vshrl.u32 %v1132, 7
      %v1134 = vsub.s32 %v1131, %v1133
      %v1135 = vrot.slane %v267, %v1134
      %v1136 = vcombine.high %v1135, %v1135
      %v1138 = vunpack.c.l.s4 1983009808
      %v1139 = vunpack.c.0.s8 %v1138
      %v1140 = vlaneseq
      %v1141 = vshrl.u32 %v1140, 7
      %v1142 = vsub.s32 %v1139, %v1141
      %v1143 = vrot.slane %v268, %v1142
      %v1144 = vcombine.high %v1143, %v1143
      %v1146 = vunpack.c.l.s4 1983009808
      %v1147 = vunpack.c.0.s8 %v1146
      %v1148 = vlaneseq
      %v1149 = vshrl.u32 %v1148, 7
      %v1150 = vsub.s32 %v1147, %v1149
      %v1151 = vrot.slane %v269, %v1150
      %v1152 = vcombine.high %v1151, %v1151
      %v1154 = vunpack.c.l.s4 1983009808
      %v1155 = vunpack.c.0.s8 %v1154
      %v1156 = vlaneseq
      %v1157 = vshrl.u32 %v1156, 7
      %v1158 = vsub.s32 %v1155, %v1157
      %v1159 = vrot.slane %v270, %v1158
      %v1160 = vcombine.high %v1159, %v1159
      %v1162 = vunpack.c.l.s4 1983009808
      %v1163 = vunpack.c.0.s8 %v1162
      %v1164 = vlaneseq
      %v1165 = vshrl.u32 %v1164, 7
      %v1166 = vsub.s32 %v1163, %v1165
      %v1167 = vrot.slane %v271, %v1166
      %v1168 = vld [vmem:[%s1] sm:$0xf]
      %v1169 = vld [vmem:[%s1 + $0x4] sm:$0xf]
      %v1170 = vld [vmem:[%s1 + $0x8] sm:$0xf]
      %v1171 = vld [vmem:[%s1 + $0xc] sm:$0x1]
      %v1172 = vcombine.low %v378, %v379
      %v1173 = vcombine.low %v386, %v387
      %v1175 = vunpack.c.l.s4 1983009808
      %v1176 = vunpack.c.0.s8 %v1175
      %v1177 = vlaneseq
      %v1178 = vshrl.u32 %v1177, 7
      %v1179 = vsub.s32 %v1176, %v1178
      %v1180 = vrot.slane %v1172, %v1179
      %v1182 = vunpack.c.l.s4 1983009808
      %v1183 = vunpack.c.0.s8 %v1182
      %v1184 = vlaneseq
      %v1185 = vshrl.u32 %v1184, 7
      %v1186 = vsub.s32 %v1183, %v1185
      %v1187 = vrot.slane %v1173, %v1186
      %v1188 = vcombine.low %v1180, %v1187
      %v1189 = vcombine.low %v394, %v395
      %v1190 = vcombine.low %v402, %v403
      %v1192 = vunpack.c.l.s4 1983009808
      %v1193 = vunpack.c.0.s8 %v1192
      %v1194 = vlaneseq
      %v1195 = vshrl.u32 %v1194, 7
      %v1196 = vsub.s32 %v1193, %v1195
      %v1197 = vrot.slane %v1189, %v1196
      %v1199 = vunpack.c.l.s4 1983009808
      %v1200 = vunpack.c.0.s8 %v1199
      %v1201 = vlaneseq
      %v1202 = vshrl.u32 %v1201, 7
      %v1203 = vsub.s32 %v1200, %v1202
      %v1204 = vrot.slane %v1190, %v1203
      %v1205 = vcombine.low %v1197, %v1204
      %v1206 = vcombine.low %v410, %v411
      %v1207 = vcombine.low %v418, %v419
      %v1209 = vunpack.c.l.s4 1983009808
      %v1210 = vunpack.c.0.s8 %v1209
      %v1211 = vlaneseq
      %v1212 = vshrl.u32 %v1211, 7
      %v1213 = vsub.s32 %v1210, %v1212
      %v1214 = vrot.slane %v1206, %v1213
      %v1216 = vunpack.c.l.s4 1983009808
      %v1217 = vunpack.c.0.s8 %v1216
      %v1218 = vlaneseq
      %v1219 = vshrl.u32 %v1218, 7
      %v1220 = vsub.s32 %v1217, %v1219
      %v1221 = vrot.slane %v1207, %v1220
      %v1222 = vcombine.low %v1214, %v1221
      %v1223 = vcombine.low %v426, %v427
      %v1224 = vcombine.low %v434, %v435
      %v1226 = vunpack.c.l.s4 1983009808
      %v1227 = vunpack.c.0.s8 %v1226
      %v1228 = vlaneseq
      %v1229 = vshrl.u32 %v1228, 7
      %v1230 = vsub.s32 %v1227, %v1229
      %v1231 = vrot.slane %v1223, %v1230
      %v1233 = vunpack.c.l.s4 1983009808
      %v1234 = vunpack.c.0.s8 %v1233
      %v1235 = vlaneseq
      %v1236 = vshrl.u32 %v1235, 7
      %v1237 = vsub.s32 %v1234, %v1236
      %v1238 = vrot.slane %v1224, %v1237
      %v1239 = vcombine.low %v1231, %v1238
      %v1240 = vcombine.low %v442, %v443
      %v1241 = vcombine.low %v450, %v451
      %v1243 = vunpack.c.l.s4 1983009808
      %v1244 = vunpack.c.0.s8 %v1243
      %v1245 = vlaneseq
      %v1246 = vshrl.u32 %v1245, 7
      %v1247 = vsub.s32 %v1244, %v1246
      %v1248 = vrot.slane %v1240, %v1247
      %v1250 = vunpack.c.l.s4 1983009808
      %v1251 = vunpack.c.0.s8 %v1250
      %v1252 = vlaneseq
      %v1253 = vshrl.u32 %v1252, 7
      %v1254 = vsub.s32 %v1251, %v1253
      %v1255 = vrot.slane %v1241, %v1254
      %v1256 = vcombine.low %v1248, %v1255
      %v1257 = vcombine.low %v458, %v459
      %v1258 = vcombine.low %v466, %v467
      %v1260 = vunpack.c.l.s4 1983009808
      %v1261 = vunpack.c.0.s8 %v1260
      %v1262 = vlaneseq
      %v1263 = vshrl.u32 %v1262, 7
      %v1264 = vsub.s32 %v1261, %v1263
      %v1265 = vrot.slane %v1257, %v1264
      %v1267 = vunpack.c.l.s4 1983009808
      %v1268 = vunpack.c.0.s8 %v1267
      %v1269 = vlaneseq
      %v1270 = vshrl.u32 %v1269, 7
      %v1271 = vsub.s32 %v1268, %v1270
      %v1272 = vrot.slane %v1258, %v1271
      %v1273 = vcombine.low %v1265, %v1272
      %v1274 = vcombine.low %v474, %v475
      %v1275 = vcombine.low %v482, %v483
      %v1277 = vunpack.c.l.s4 1983009808
      %v1278 = vunpack.c.0.s8 %v1277
      %v1279 = vlaneseq
      %v1280 = vshrl.u32 %v1279, 7
      %v1281 = vsub.s32 %v1278, %v1280
      %v1282 = vrot.slane %v1274, %v1281
      %v1284 = vunpack.c.l.s4 1983009808
      %v1285 = vunpack.c.0.s8 %v1284
      %v1286 = vlaneseq
      %v1287 = vshrl.u32 %v1286, 7
      %v1288 = vsub.s32 %v1285, %v1287
      %v1289 = vrot.slane %v1275, %v1288
      %v1290 = vcombine.low %v1282, %v1289
      %v1291 = vcombine.low %v490, %v491
      %v1292 = vcombine.low %v498, %v499
      %v1294 = vunpack.c.l.s4 1983009808
      %v1295 = vunpack.c.0.s8 %v1294
      %v1296 = vlaneseq
      %v1297 = vshrl.u32 %v1296, 7
      %v1298 = vsub.s32 %v1295, %v1297
      %v1299 = vrot.slane %v1291, %v1298
      %v1301 = vunpack.c.l.s4 1983009808
      %v1302 = vunpack.c.0.s8 %v1301
      %v1303 = vlaneseq
      %v1304 = vshrl.u32 %v1303, 7
      %v1305 = vsub.s32 %v1302, %v1304
      %v1306 = vrot.slane %v1292, %v1305
      %v1307 = vcombine.low %v1299, %v1306
      %v1308 = vcombine.low %v506, %v507
      %v1309 = vcombine.low %v514, %v515
      %v1311 = vunpack.c.l.s4 1983009808
      %v1312 = vunpack.c.0.s8 %v1311
      %v1313 = vlaneseq
      %v1314 = vshrl.u32 %v1313, 7
      %v1315 = vsub.s32 %v1312, %v1314
      %v1316 = vrot.slane %v1308, %v1315
      %v1318 = vunpack.c.l.s4 1983009808
      %v1319 = vunpack.c.0.s8 %v1318
      %v1320 = vlaneseq
      %v1321 = vshrl.u32 %v1320, 7
      %v1322 = vsub.s32 %v1319, %v1321
      %v1323 = vrot.slane %v1309, %v1322
      %v1324 = vcombine.low %v1316, %v1323
      %v1325 = vcombine.low %v522, %v523
      %v1326 = vcombine.low %v530, %v531
      %v1328 = vunpack.c.l.s4 1983009808
      %v1329 = vunpack.c.0.s8 %v1328
      %v1330 = vlaneseq
      %v1331 = vshrl.u32 %v1330, 7
      %v1332 = vsub.s32 %v1329, %v1331
      %v1333 = vrot.slane %v1325, %v1332
      %v1335 = vunpack.c.l.s4 1983009808
      %v1336 = vunpack.c.0.s8 %v1335
      %v1337 = vlaneseq
      %v1338 = vshrl.u32 %v1337, 7
      %v1339 = vsub.s32 %v1336, %v1338
      %v1340 = vrot.slane %v1326, %v1339
      %v1341 = vcombine.low %v1333, %v1340
      %v1342 = vcombine.low %v538, %v539
      %v1343 = vcombine.low %v546, %v547
      %v1345 = vunpack.c.l.s4 1983009808
      %v1346 = vunpack.c.0.s8 %v1345
      %v1347 = vlaneseq
      %v1348 = vshrl.u32 %v1347, 7
      %v1349 = vsub.s32 %v1346, %v1348
      %v1350 = vrot.slane %v1342, %v1349
      %v1352 = vunpack.c.l.s4 1983009808
      %v1353 = vunpack.c.0.s8 %v1352
      %v1354 = vlaneseq
      %v1355 = vshrl.u32 %v1354, 7
      %v1356 = vsub.s32 %v1353, %v1355
      %v1357 = vrot.slane %v1343, %v1356
      %v1358 = vcombine.low %v1350, %v1357
      %v1359 = vcombine.low %v554, %v555
      %v1360 = vcombine.low %v562, %v563
      %v1362 = vunpack.c.l.s4 1983009808
      %v1363 = vunpack.c.0.s8 %v1362
      %v1364 = vlaneseq
      %v1365 = vshrl.u32 %v1364, 7
      %v1366 = vsub.s32 %v1363, %v1365
      %v1367 = vrot.slane %v1359, %v1366
      %v1369 = vunpack.c.l.s4 1983009808
      %v1370 = vunpack.c.0.s8 %v1369
      %v1371 = vlaneseq
      %v1372 = vshrl.u32 %v1371, 7
      %v1373 = vsub.s32 %v1370, %v1372
      %v1374 = vrot.slane %v1360, %v1373
      %v1375 = vcombine.low %v1367, %v1374
      %v1376 = vcombine.low %v570, %v577
      %v1377 = vcombine.low %v578, %v585
      %v1379 = vunpack.c.l.s4 1983009808
      %v1380 = vunpack.c.0.s8 %v1379
      %v1381 = vlaneseq
      %v1382 = vshrl.u32 %v1381, 7
      %v1383 = vsub.s32 %v1380, %v1382
      %v1384 = vrot.slane %v1376, %v1383
      %v1386 = vunpack.c.l.s4 1983009808
      %v1387 = vunpack.c.0.s8 %v1386
      %v1388 = vlaneseq
      %v1389 = vshrl.u32 %v1388, 7
      %v1390 = vsub.s32 %v1387, %v1389
      %v1391 = vrot.slane %v1377, %v1390
      %v1392 = vcombine.low %v1384, %v1391
      %v1393 = vcombine.low %v586, %v593
      %v1394 = vcombine.low %v594, %v601
      %v1396 = vunpack.c.l.s4 1983009808
      %v1397 = vunpack.c.0.s8 %v1396
      %v1398 = vlaneseq
      %v1399 = vshrl.u32 %v1398, 7
      %v1400 = vsub.s32 %v1397, %v1399
      %v1401 = vrot.slane %v1393, %v1400
      %v1403 = vunpack.c.l.s4 1983009808
      %v1404 = vunpack.c.0.s8 %v1403
      %v1405 = vlaneseq
      %v1406 = vshrl.u32 %v1405, 7
      %v1407 = vsub.s32 %v1404, %v1406
      %v1408 = vrot.slane %v1394, %v1407
      %v1409 = vcombine.low %v1401, %v1408
      %v1410 = vcombine.low %v602, %v609
      %v1411 = vcombine.low %v610, %v617
      %v1413 = vunpack.c.l.s4 1983009808
      %v1414 = vunpack.c.0.s8 %v1413
      %v1415 = vlaneseq
      %v1416 = vshrl.u32 %v1415, 7
      %v1417 = vsub.s32 %v1414, %v1416
      %v1418 = vrot.slane %v1410, %v1417
      %v1420 = vunpack.c.l.s4 1983009808
      %v1421 = vunpack.c.0.s8 %v1420
      %v1422 = vlaneseq
      %v1423 = vshrl.u32 %v1422, 7
      %v1424 = vsub.s32 %v1421, %v1423
      %v1425 = vrot.slane %v1411, %v1424
      %v1426 = vcombine.low %v1418, %v1425
      %v1427 = vcombine.low %v618, %v625
      %v1428 = vcombine.low %v626, %v633
      %v1430 = vunpack.c.l.s4 1983009808
      %v1431 = vunpack.c.0.s8 %v1430
      %v1432 = vlaneseq
      %v1433 = vshrl.u32 %v1432, 7
      %v1434 = vsub.s32 %v1431, %v1433
      %v1435 = vrot.slane %v1427, %v1434
      %v1437 = vunpack.c.l.s4 1983009808
      %v1438 = vunpack.c.0.s8 %v1437
      %v1439 = vlaneseq
      %v1440 = vshrl.u32 %v1439, 7
      %v1441 = vsub.s32 %v1438, %v1440
      %v1442 = vrot.slane %v1428, %v1441
      %v1443 = vcombine.low %v1435, %v1442
      %v1444 = vcombine.low %v634, %v641
      %v1445 = vcombine.low %v642, %v649
      %v1447 = vunpack.c.l.s4 1983009808
      %v1448 = vunpack.c.0.s8 %v1447
      %v1449 = vlaneseq
      %v1450 = vshrl.u32 %v1449, 7
      %v1451 = vsub.s32 %v1448, %v1450
      %v1452 = vrot.slane %v1444, %v1451
      %v1454 = vunpack.c.l.s4 1983009808
      %v1455 = vunpack.c.0.s8 %v1454
      %v1456 = vlaneseq
      %v1457 = vshrl.u32 %v1456, 7
      %v1458 = vsub.s32 %v1455, %v1457
      %v1459 = vrot.slane %v1445, %v1458
      %v1460 = vcombine.low %v1452, %v1459
      %v1461 = vcombine.low %v650, %v657
      %v1462 = vcombine.low %v658, %v665
      %v1464 = vunpack.c.l.s4 1983009808
      %v1465 = vunpack.c.0.s8 %v1464
      %v1466 = vlaneseq
      %v1467 = vshrl.u32 %v1466, 7
      %v1468 = vsub.s32 %v1465, %v1467
      %v1469 = vrot.slane %v1461, %v1468
      %v1471 = vunpack.c.l.s4 1983009808
      %v1472 = vunpack.c.0.s8 %v1471
      %v1473 = vlaneseq
      %v1474 = vshrl.u32 %v1473, 7
      %v1475 = vsub.s32 %v1472, %v1474
      %v1476 = vrot.slane %v1462, %v1475
      %v1477 = vcombine.low %v1469, %v1476
      %v1478 = vcombine.low %v666, %v673
      %v1479 = vcombine.low %v674, %v681
      %v1481 = vunpack.c.l.s4 1983009808
      %v1482 = vunpack.c.0.s8 %v1481
      %v1483 = vlaneseq
      %v1484 = vshrl.u32 %v1483, 7
      %v1485 = vsub.s32 %v1482, %v1484
      %v1486 = vrot.slane %v1478, %v1485
      %v1488 = vunpack.c.l.s4 1983009808
      %v1489 = vunpack.c.0.s8 %v1488
      %v1490 = vlaneseq
      %v1491 = vshrl.u32 %v1490, 7
      %v1492 = vsub.s32 %v1489, %v1491
      %v1493 = vrot.slane %v1479, %v1492
      %v1494 = vcombine.low %v1486, %v1493
      %v1495 = vcombine.low %v682, %v689
      %v1496 = vcombine.low %v690, %v697
      %v1498 = vunpack.c.l.s4 1983009808
      %v1499 = vunpack.c.0.s8 %v1498
      %v1500 = vlaneseq
      %v1501 = vshrl.u32 %v1500, 7
      %v1502 = vsub.s32 %v1499, %v1501
      %v1503 = vrot.slane %v1495, %v1502
      %v1505 = vunpack.c.l.s4 1983009808
      %v1506 = vunpack.c.0.s8 %v1505
      %v1507 = vlaneseq
      %v1508 = vshrl.u32 %v1507, 7
      %v1509 = vsub.s32 %v1506, %v1508
      %v1510 = vrot.slane %v1496, %v1509
      %v1511 = vcombine.low %v1503, %v1510
      %v1512 = vcombine.low %v698, %v705
      %v1513 = vcombine.low %v706, %v713
      %v1515 = vunpack.c.l.s4 1983009808
      %v1516 = vunpack.c.0.s8 %v1515
      %v1517 = vlaneseq
      %v1518 = vshrl.u32 %v1517, 7
      %v1519 = vsub.s32 %v1516, %v1518
      %v1520 = vrot.slane %v1512, %v1519
      %v1522 = vunpack.c.l.s4 1983009808
      %v1523 = vunpack.c.0.s8 %v1522
      %v1524 = vlaneseq
      %v1525 = vshrl.u32 %v1524, 7
      %v1526 = vsub.s32 %v1523, %v1525
      %v1527 = vrot.slane %v1513, %v1526
      %v1528 = vcombine.low %v1520, %v1527
      %v1529 = vcombine.low %v714, %v721
      %v1530 = vcombine.low %v722, %v729
      %v1532 = vunpack.c.l.s4 1983009808
      %v1533 = vunpack.c.0.s8 %v1532
      %v1534 = vlaneseq
      %v1535 = vshrl.u32 %v1534, 7
      %v1536 = vsub.s32 %v1533, %v1535
      %v1537 = vrot.slane %v1529, %v1536
      %v1539 = vunpack.c.l.s4 1983009808
      %v1540 = vunpack.c.0.s8 %v1539
      %v1541 = vlaneseq
      %v1542 = vshrl.u32 %v1541, 7
      %v1543 = vsub.s32 %v1540, %v1542
      %v1544 = vrot.slane %v1530, %v1543
      %v1545 = vcombine.low %v1537, %v1544
      %v1546 = vcombine.low %v730, %v737
      %v1547 = vcombine.low %v738, %v745
      %v1549 = vunpack.c.l.s4 1983009808
      %v1550 = vunpack.c.0.s8 %v1549
      %v1551 = vlaneseq
      %v1552 = vshrl.u32 %v1551, 7
      %v1553 = vsub.s32 %v1550, %v1552
      %v1554 = vrot.slane %v1546, %v1553
      %v1556 = vunpack.c.l.s4 1983009808
      %v1557 = vunpack.c.0.s8 %v1556
      %v1558 = vlaneseq
      %v1559 = vshrl.u32 %v1558, 7
      %v1560 = vsub.s32 %v1557, %v1559
      %v1561 = vrot.slane %v1547, %v1560
      %v1562 = vcombine.low %v1554, %v1561
      %v1563 = vcombine.low %v746, %v753
      %v1564 = vcombine.low %v754, %v761
      %v1566 = vunpack.c.l.s4 1983009808
      %v1567 = vunpack.c.0.s8 %v1566
      %v1568 = vlaneseq
      %v1569 = vshrl.u32 %v1568, 7
      %v1570 = vsub.s32 %v1567, %v1569
      %v1571 = vrot.slane %v1563, %v1570
      %v1573 = vunpack.c.l.s4 1983009808
      %v1574 = vunpack.c.0.s8 %v1573
      %v1575 = vlaneseq
      %v1576 = vshrl.u32 %v1575, 7
      %v1577 = vsub.s32 %v1574, %v1576
      %v1578 = vrot.slane %v1564, %v1577
      %v1579 = vcombine.low %v1571, %v1578
      %v1580 = vcombine.low %v762, %v769
      %v1581 = vcombine.low %v776, %v777
      %v1583 = vunpack.c.l.s4 1983009808
      %v1584 = vunpack.c.0.s8 %v1583
      %v1585 = vlaneseq
      %v1586 = vshrl.u32 %v1585, 7
      %v1587 = vsub.s32 %v1584, %v1586
      %v1588 = vrot.slane %v1580, %v1587
      %v1590 = vunpack.c.l.s4 1983009808
      %v1591 = vunpack.c.0.s8 %v1590
      %v1592 = vlaneseq
      %v1593 = vshrl.u32 %v1592, 7
      %v1594 = vsub.s32 %v1591, %v1593
      %v1595 = vrot.slane %v1581, %v1594
      %v1596 = vcombine.low %v1588, %v1595
      %v1597 = vcombine.low %v784, %v785
      %v1598 = vcombine.low %v792, %v793
      %v1600 = vunpack.c.l.s4 1983009808
      %v1601 = vunpack.c.0.s8 %v1600
      %v1602 = vlaneseq
      %v1603 = vshrl.u32 %v1602, 7
      %v1604 = vsub.s32 %v1601, %v1603
      %v1605 = vrot.slane %v1597, %v1604
      %v1607 = vunpack.c.l.s4 1983009808
      %v1608 = vunpack.c.0.s8 %v1607
      %v1609 = vlaneseq
      %v1610 = vshrl.u32 %v1609, 7
      %v1611 = vsub.s32 %v1608, %v1610
      %v1612 = vrot.slane %v1598, %v1611
      %v1613 = vcombine.low %v1605, %v1612
      %v1614 = vcombine.low %v800, %v801
      %v1615 = vcombine.low %v808, %v809
      %v1617 = vunpack.c.l.s4 1983009808
      %v1618 = vunpack.c.0.s8 %v1617
      %v1619 = vlaneseq
      %v1620 = vshrl.u32 %v1619, 7
      %v1621 = vsub.s32 %v1618, %v1620
      %v1622 = vrot.slane %v1614, %v1621
      %v1624 = vunpack.c.l.s4 1983009808
      %v1625 = vunpack.c.0.s8 %v1624
      %v1626 = vlaneseq
      %v1627 = vshrl.u32 %v1626, 7
      %v1628 = vsub.s32 %v1625, %v1627
      %v1629 = vrot.slane %v1615, %v1628
      %v1630 = vcombine.low %v1622, %v1629
      %v1631 = vcombine.low %v816, %v817
      %v1632 = vcombine.low %v824, %v825
      %v1634 = vunpack.c.l.s4 1983009808
      %v1635 = vunpack.c.0.s8 %v1634
      %v1636 = vlaneseq
      %v1637 = vshrl.u32 %v1636, 7
      %v1638 = vsub.s32 %v1635, %v1637
      %v1639 = vrot.slane %v1631, %v1638
      %v1641 = vunpack.c.l.s4 1983009808
      %v1642 = vunpack.c.0.s8 %v1641
      %v1643 = vlaneseq
      %v1644 = vshrl.u32 %v1643, 7
      %v1645 = vsub.s32 %v1642, %v1644
      %v1646 = vrot.slane %v1632, %v1645
      %v1647 = vcombine.low %v1639, %v1646
      %v1648 = vcombine.low %v832, %v833
      %v1649 = vcombine.low %v840, %v841
      %v1651 = vunpack.c.l.s4 1983009808
      %v1652 = vunpack.c.0.s8 %v1651
      %v1653 = vlaneseq
      %v1654 = vshrl.u32 %v1653, 7
      %v1655 = vsub.s32 %v1652, %v1654
      %v1656 = vrot.slane %v1648, %v1655
      %v1658 = vunpack.c.l.s4 1983009808
      %v1659 = vunpack.c.0.s8 %v1658
      %v1660 = vlaneseq
      %v1661 = vshrl.u32 %v1660, 7
      %v1662 = vsub.s32 %v1659, %v1661
      %v1663 = vrot.slane %v1649, %v1662
      %v1664 = vcombine.low %v1656, %v1663
      %v1665 = vcombine.low %v848, %v849
      %v1666 = vcombine.low %v856, %v857
      %v1668 = vunpack.c.l.s4 1983009808
      %v1669 = vunpack.c.0.s8 %v1668
      %v1670 = vlaneseq
      %v1671 = vshrl.u32 %v1670, 7
      %v1672 = vsub.s32 %v1669, %v1671
      %v1673 = vrot.slane %v1665, %v1672
      %v1675 = vunpack.c.l.s4 1983009808
      %v1676 = vunpack.c.0.s8 %v1675
      %v1677 = vlaneseq
      %v1678 = vshrl.u32 %v1677, 7
      %v1679 = vsub.s32 %v1676, %v1678
      %v1680 = vrot.slane %v1666, %v1679
      %v1681 = vcombine.low %v1673, %v1680
      %v1682 = vcombine.low %v864, %v865
      %v1683 = vcombine.low %v872, %v873
      %v1685 = vunpack.c.l.s4 1983009808
      %v1686 = vunpack.c.0.s8 %v1685
      %v1687 = vlaneseq
      %v1688 = vshrl.u32 %v1687, 7
      %v1689 = vsub.s32 %v1686, %v1688
      %v1690 = vrot.slane %v1682, %v1689
      %v1692 = vunpack.c.l.s4 1983009808
      %v1693 = vunpack.c.0.s8 %v1692
      %v1694 = vlaneseq
      %v1695 = vshrl.u32 %v1694, 7
      %v1696 = vsub.s32 %v1693, %v1695
      %v1697 = vrot.slane %v1683, %v1696
      %v1698 = vcombine.low %v1690, %v1697
      %v1699 = vcombine.low %v880, %v881
      %v1700 = vcombine.low %v888, %v889
      %v1702 = vunpack.c.l.s4 1983009808
      %v1703 = vunpack.c.0.s8 %v1702
      %v1704 = vlaneseq
      %v1705 = vshrl.u32 %v1704, 7
      %v1706 = vsub.s32 %v1703, %v1705
      %v1707 = vrot.slane %v1699, %v1706
      %v1709 = vunpack.c.l.s4 1983009808
      %v1710 = vunpack.c.0.s8 %v1709
      %v1711 = vlaneseq
      %v1712 = vshrl.u32 %v1711, 7
      %v1713 = vsub.s32 %v1710, %v1712
      %v1714 = vrot.slane %v1700, %v1713
      %v1715 = vcombine.low %v1707, %v1714
      %v1716 = vcombine.low %v896, %v897
      %v1717 = vcombine.low %v904, %v905
      %v1719 = vunpack.c.l.s4 1983009808
      %v1720 = vunpack.c.0.s8 %v1719
      %v1721 = vlaneseq
      %v1722 = vshrl.u32 %v1721, 7
      %v1723 = vsub.s32 %v1720, %v1722
      %v1724 = vrot.slane %v1716, %v1723
      %v1726 = vunpack.c.l.s4 1983009808
      %v1727 = vunpack.c.0.s8 %v1726
      %v1728 = vlaneseq
      %v1729 = vshrl.u32 %v1728, 7
      %v1730 = vsub.s32 %v1727, %v1729
      %v1731 = vrot.slane %v1717, %v1730
      %v1732 = vcombine.low %v1724, %v1731
      %v1733 = vcombine.low %v912, %v913
      %v1734 = vcombine.low %v920, %v921
      %v1736 = vunpack.c.l.s4 1983009808
      %v1737 = vunpack.c.0.s8 %v1736
      %v1738 = vlaneseq
      %v1739 = vshrl.u32 %v1738, 7
      %v1740 = vsub.s32 %v1737, %v1739
      %v1741 = vrot.slane %v1733, %v1740
      %v1743 = vunpack.c.l.s4 1983009808
      %v1744 = vunpack.c.0.s8 %v1743
      %v1745 = vlaneseq
      %v1746 = vshrl.u32 %v1745, 7
      %v1747 = vsub.s32 %v1744, %v1746
      %v1748 = vrot.slane %v1734, %v1747
      %v1749 = vcombine.low %v1741, %v1748
      %v1750 = vcombine.low %v928, %v929
      %v1751 = vcombine.low %v936, %v937
      %v1753 = vunpack.c.l.s4 1983009808
      %v1754 = vunpack.c.0.s8 %v1753
      %v1755 = vlaneseq
      %v1756 = vshrl.u32 %v1755, 7
      %v1757 = vsub.s32 %v1754, %v1756
      %v1758 = vrot.slane %v1750, %v1757
      %v1760 = vunpack.c.l.s4 1983009808
      %v1761 = vunpack.c.0.s8 %v1760
      %v1762 = vlaneseq
      %v1763 = vshrl.u32 %v1762, 7
      %v1764 = vsub.s32 %v1761, %v1763
      %v1765 = vrot.slane %v1751, %v1764
      %v1766 = vcombine.low %v1758, %v1765
      %v1767 = vcombine.low %v944, %v945
      %v1768 = vcombine.low %v952, %v953
      %v1770 = vunpack.c.l.s4 1983009808
      %v1771 = vunpack.c.0.s8 %v1770
      %v1772 = vlaneseq
      %v1773 = vshrl.u32 %v1772, 7
      %v1774 = vsub.s32 %v1771, %v1773
      %v1775 = vrot.slane %v1767, %v1774
      %v1777 = vunpack.c.l.s4 1983009808
      %v1778 = vunpack.c.0.s8 %v1777
      %v1779 = vlaneseq
      %v1780 = vshrl.u32 %v1779, 7
      %v1781 = vsub.s32 %v1778, %v1780
      %v1782 = vrot.slane %v1768, %v1781
      %v1783 = vcombine.low %v1775, %v1782
      %v1784 = vcombine.low %v960, %v961
      %v1785 = vcombine.low %v968, %v975
      %v1787 = vunpack.c.l.s4 1983009808
      %v1788 = vunpack.c.0.s8 %v1787
      %v1789 = vlaneseq
      %v1790 = vshrl.u32 %v1789, 7
      %v1791 = vsub.s32 %v1788, %v1790
      %v1792 = vrot.slane %v1784, %v1791
      %v1794 = vunpack.c.l.s4 1983009808
      %v1795 = vunpack.c.0.s8 %v1794
      %v1796 = vlaneseq
      %v1797 = vshrl.u32 %v1796, 7
      %v1798 = vsub.s32 %v1795, %v1797
      %v1799 = vrot.slane %v1785, %v1798
      %v1800 = vcombine.low %v1792, %v1799
      %v1801 = vcombine.low %v976, %v983
      %v1802 = vcombine.low %v984, %v991
      %v1804 = vunpack.c.l.s4 1983009808
      %v1805 = vunpack.c.0.s8 %v1804
      %v1806 = vlaneseq
      %v1807 = vshrl.u32 %v1806, 7
      %v1808 = vsub.s32 %v1805, %v1807
      %v1809 = vrot.slane %v1801, %v1808
      %v1811 = vunpack.c.l.s4 1983009808
      %v1812 = vunpack.c.0.s8 %v1811
      %v1813 = vlaneseq
      %v1814 = vshrl.u32 %v1813, 7
      %v1815 = vsub.s32 %v1812, %v1814
      %v1816 = vrot.slane %v1802, %v1815
      %v1817 = vcombine.low %v1809, %v1816
      %v1818 = vcombine.low %v992, %v999
      %v1819 = vcombine.low %v1000, %v1007
      %v1821 = vunpack.c.l.s4 1983009808
      %v1822 = vunpack.c.0.s8 %v1821
      %v1823 = vlaneseq
      %v1824 = vshrl.u32 %v1823, 7
      %v1825 = vsub.s32 %v1822, %v1824
      %v1826 = vrot.slane %v1818, %v1825
      %v1828 = vunpack.c.l.s4 1983009808
      %v1829 = vunpack.c.0.s8 %v1828
      %v1830 = vlaneseq
      %v1831 = vshrl.u32 %v1830, 7
      %v1832 = vsub.s32 %v1829, %v1831
      %v1833 = vrot.slane %v1819, %v1832
      %v1834 = vcombine.low %v1826, %v1833
      %v1835 = vcombine.low %v1008, %v1015
      %v1836 = vcombine.low %v1016, %v1023
      %v1838 = vunpack.c.l.s4 1983009808
      %v1839 = vunpack.c.0.s8 %v1838
      %v1840 = vlaneseq
      %v1841 = vshrl.u32 %v1840, 7
      %v1842 = vsub.s32 %v1839, %v1841
      %v1843 = vrot.slane %v1835, %v1842
      %v1845 = vunpack.c.l.s4 1983009808
      %v1846 = vunpack.c.0.s8 %v1845
      %v1847 = vlaneseq
      %v1848 = vshrl.u32 %v1847, 7
      %v1849 = vsub.s32 %v1846, %v1848
      %v1850 = vrot.slane %v1836, %v1849
      %v1851 = vcombine.low %v1843, %v1850
      %v1852 = vcombine.low %v1024, %v1031
      %v1853 = vcombine.low %v1032, %v1039
      %v1855 = vunpack.c.l.s4 1983009808
      %v1856 = vunpack.c.0.s8 %v1855
      %v1857 = vlaneseq
      %v1858 = vshrl.u32 %v1857, 7
      %v1859 = vsub.s32 %v1856, %v1858
      %v1860 = vrot.slane %v1852, %v1859
      %v1862 = vunpack.c.l.s4 1983009808
      %v1863 = vunpack.c.0.s8 %v1862
      %v1864 = vlaneseq
      %v1865 = vshrl.u32 %v1864, 7
      %v1866 = vsub.s32 %v1863, %v1865
      %v1867 = vrot.slane %v1853, %v1866
      %v1868 = vcombine.low %v1860, %v1867
      %v1869 = vcombine.low %v1040, %v1047
      %v1870 = vcombine.low %v1048, %v1055
      %v1872 = vunpack.c.l.s4 1983009808
      %v1873 = vunpack.c.0.s8 %v1872
      %v1874 = vlaneseq
      %v1875 = vshrl.u32 %v1874, 7
      %v1876 = vsub.s32 %v1873, %v1875
      %v1877 = vrot.slane %v1869, %v1876
      %v1879 = vunpack.c.l.s4 1983009808
      %v1880 = vunpack.c.0.s8 %v1879
      %v1881 = vlaneseq
      %v1882 = vshrl.u32 %v1881, 7
      %v1883 = vsub.s32 %v1880, %v1882
      %v1884 = vrot.slane %v1870, %v1883
      %v1885 = vcombine.low %v1877, %v1884
      %v1886 = vcombine.low %v1056, %v1063
      %v1887 = vcombine.low %v1064, %v1071
      %v1889 = vunpack.c.l.s4 1983009808
      %v1890 = vunpack.c.0.s8 %v1889
      %v1891 = vlaneseq
      %v1892 = vshrl.u32 %v1891, 7
      %v1893 = vsub.s32 %v1890, %v1892
      %v1894 = vrot.slane %v1886, %v1893
      %v1896 = vunpack.c.l.s4 1983009808
      %v1897 = vunpack.c.0.s8 %v1896
      %v1898 = vlaneseq
      %v1899 = vshrl.u32 %v1898, 7
      %v1900 = vsub.s32 %v1897, %v1899
      %v1901 = vrot.slane %v1887, %v1900
      %v1902 = vcombine.low %v1894, %v1901
      %v1903 = vcombine.low %v1072, %v1079
      %v1904 = vcombine.low %v1080, %v1087
      %v1906 = vunpack.c.l.s4 1983009808
      %v1907 = vunpack.c.0.s8 %v1906
      %v1908 = vlaneseq
      %v1909 = vshrl.u32 %v1908, 7
      %v1910 = vsub.s32 %v1907, %v1909
      %v1911 = vrot.slane %v1903, %v1910
      %v1913 = vunpack.c.l.s4 1983009808
      %v1914 = vunpack.c.0.s8 %v1913
      %v1915 = vlaneseq
      %v1916 = vshrl.u32 %v1915, 7
      %v1917 = vsub.s32 %v1914, %v1916
      %v1918 = vrot.slane %v1904, %v1917
      %v1919 = vcombine.low %v1911, %v1918
      %v1920 = vcombine.low %v1088, %v1095
      %v1921 = vcombine.low %v1096, %v1103
      %v1923 = vunpack.c.l.s4 1983009808
      %v1924 = vunpack.c.0.s8 %v1923
      %v1925 = vlaneseq
      %v1926 = vshrl.u32 %v1925, 7
      %v1927 = vsub.s32 %v1924, %v1926
      %v1928 = vrot.slane %v1920, %v1927
      %v1930 = vunpack.c.l.s4 1983009808
      %v1931 = vunpack.c.0.s8 %v1930
      %v1932 = vlaneseq
      %v1933 = vshrl.u32 %v1932, 7
      %v1934 = vsub.s32 %v1931, %v1933
      %v1935 = vrot.slane %v1921, %v1934
      %v1936 = vcombine.low %v1928, %v1935
      %v1937 = vcombine.low %v1104, %v1111
      %v1938 = vcombine.low %v1112, %v1119
      %v1940 = vunpack.c.l.s4 1983009808
      %v1941 = vunpack.c.0.s8 %v1940
      %v1942 = vlaneseq
      %v1943 = vshrl.u32 %v1942, 7
      %v1944 = vsub.s32 %v1941, %v1943
      %v1945 = vrot.slane %v1937, %v1944
      %v1947 = vunpack.c.l.s4 1983009808
      %v1948 = vunpack.c.0.s8 %v1947
      %v1949 = vlaneseq
      %v1950 = vshrl.u32 %v1949, 7
      %v1951 = vsub.s32 %v1948, %v1950
      %v1952 = vrot.slane %v1938, %v1951
      %v1953 = vcombine.low %v1945, %v1952
      %v1954 = vcombine.low %v1120, %v1127
      %v1955 = vcombine.low %v1128, %v1135
      %v1957 = vunpack.c.l.s4 1983009808
      %v1958 = vunpack.c.0.s8 %v1957
      %v1959 = vlaneseq
      %v1960 = vshrl.u32 %v1959, 7
      %v1961 = vsub.s32 %v1958, %v1960
      %v1962 = vrot.slane %v1954, %v1961
      %v1964 = vunpack.c.l.s4 1983009808
      %v1965 = vunpack.c.0.s8 %v1964
      %v1966 = vlaneseq
      %v1967 = vshrl.u32 %v1966, 7
      %v1968 = vsub.s32 %v1965, %v1967
      %v1969 = vrot.slane %v1955, %v1968
      %v1970 = vcombine.low %v1962, %v1969
      %v1971 = vcombine.low %v1136, %v1143
      %v1972 = vcombine.low %v1144, %v1151
      %v1974 = vunpack.c.l.s4 1983009808
      %v1975 = vunpack.c.0.s8 %v1974
      %v1976 = vlaneseq
      %v1977 = vshrl.u32 %v1976, 7
      %v1978 = vsub.s32 %v1975, %v1977
      %v1979 = vrot.slane %v1971, %v1978
      %v1981 = vunpack.c.l.s4 1983009808
      %v1982 = vunpack.c.0.s8 %v1981
      %v1983 = vlaneseq
      %v1984 = vshrl.u32 %v1983, 7
      %v1985 = vsub.s32 %v1982, %v1984
      %v1986 = vrot.slane %v1972, %v1985
      %v1987 = vcombine.low %v1979, %v1986
      %v1988 = vcombine.low %v1152, %v1159
      %v1989 = vcombine.low %v1160, %v1167
      %v1991 = vunpack.c.l.s4 1983009808
      %v1992 = vunpack.c.0.s8 %v1991
      %v1993 = vlaneseq
      %v1994 = vshrl.u32 %v1993, 7
      %v1995 = vsub.s32 %v1992, %v1994
      %v1996 = vrot.slane %v1988, %v1995
      %v1998 = vunpack.c.l.s4 1983009808
      %v1999 = vunpack.c.0.s8 %v1998
      %v2000 = vlaneseq
      %v2001 = vshrl.u32 %v2000, 7
      %v2002 = vsub.s32 %v1999, %v2001
      %v2003 = vrot.slane %v1989, %v2002
      %v2004 = vcombine.low %v1996, %v2003
      %v2009 = vunpack.c.l.b16 %v1168
      %v2010 = vunpack.c.l.b16 %v1169
      %v2011 = vunpack.c.l.b16 %v1170
      %v2012 = vunpack.c.l.b16 %v1171
      %v2013 = vpack.c.b16 %v2010, %v2009
      %v2014 = vpack.c.b16 %v2012, %v2011
      %vm2016 = vcmask 203776
      %v2018 = vsel %vm2016, %v1188, 0
      %v2021 = vsel %vm2016, %v1205, 0
      %v2024 = vsel %vm2016, %v1222, 0
      %v2027 = vsel %vm2016, %v1239, 0
      %v2030 = vsel %vm2016, %v1256, 0
      %v2033 = vsel %vm2016, %v1273, 0
      %v2036 = vsel %vm2016, %v1290, 0
      %v2039 = vsel %vm2016, %v1307, 0
      %v2042 = vsel %vm2016, %v1324, 0
      %v2045 = vsel %vm2016, %v1341, 0
      %v2048 = vsel %vm2016, %v1358, 0
      %v2051 = vsel %vm2016, %v1375, 0
      %v2054 = vsel %vm2016, %v1392, 0
      %v2057 = vsel %vm2016, %v1409, 0
      %v2060 = vsel %vm2016, %v1426, 0
      %v2063 = vsel %vm2016, %v1443, 0
      %v2066 = vsel %vm2016, %v1460, 0
      %v2069 = vsel %vm2016, %v1477, 0
      %v2072 = vsel %vm2016, %v1494, 0
      %v2075 = vsel %vm2016, %v1511, 0
      %v2078 = vsel %vm2016, %v1528, 0
      %v2081 = vsel %vm2016, %v1545, 0
      %v2084 = vsel %vm2016, %v1562, 0
      %v2087 = vsel %vm2016, %v1579, 0
      %v2090 = vsel %vm2016, %v1596, 0
      %v2093 = vsel %vm2016, %v1613, 0
      %v2096 = vsel %vm2016, %v1630, 0
      %v2099 = vsel %vm2016, %v1647, 0
      %v2102 = vsel %vm2016, %v1664, 0
      %v2105 = vsel %vm2016, %v1681, 0
      %v2108 = vsel %vm2016, %v1698, 0
      %v2111 = vsel %vm2016, %v1715, 0
      %v2114 = vsel %vm2016, %v1732, 0
      %v2117 = vsel %vm2016, %v1749, 0
      %v2120 = vsel %vm2016, %v1766, 0
      %v2123 = vsel %vm2016, %v1783, 0
      %v2126 = vsel %vm2016, %v1800, 0
      %v2129 = vsel %vm2016, %v1817, 0
      %v2132 = vsel %vm2016, %v1834, 0
      %v2135 = vsel %vm2016, %v1851, 0
      %v2138 = vsel %vm2016, %v1868, 0
      %v2141 = vsel %vm2016, %v1885, 0
      %v2144 = vsel %vm2016, %v1902, 0
      %v2147 = vsel %vm2016, %v1919, 0
      %v2150 = vsel %vm2016, %v1936, 0
      %v2153 = vsel %vm2016, %v1953, 0
      %v2156 = vsel %vm2016, %v1970, 0
      %v2159 = vsel %vm2016, %v1987, 0
      %v2162 = vsel %vm2016, %v2004, 0
      %vm2164 = vcmask 1043456
      %vm2165 = vcmask 1044480
      %v2166 = vsel %vm2164, 4294967295, 65535
      %v2167 = vsel %vm2165, %v2166, 0
      %v2169 = vand.u32 %v2014, %v2167
      %2171 = vmatprep.subr.bf16.mxu0 0
      %2172 = vmatpush1.bf16.msra.mxu0 0
      %2173 = vmatprep.subr.bf16.mxu0 0
      %2174 = vmatpush1.bf16.msra.mxu0 0
      %2175 = vmatprep.subr.bf16.mxu0 0
      %2176 = vmatpush1.bf16.msra.mxu0 0
      %2177 = vmatprep.subr.bf16.mxu0 0
      %2178 = vmatpush1.bf16.msra.mxu0 0
      %2179 = vmatprep.subr.bf16.mxu0 0
      %2180 = vmatpush1.bf16.msra.mxu0 0
      %2181 = vmatprep.subr.bf16.mxu0 0
      %2182 = vmatpush1.bf16.msra.mxu0 0
      %2183 = vmatprep.subr.bf16.mxu0 0
      %2184 = vmatpush1.bf16.msra.mxu0 %v2169
      %2185 = vmatprep.subr.bf16.mxu0 0
      %2186 = vmatpush1.bf16.msra.mxu0 %v2013
      %2187 = vmatprep.subr.bf16.mxu0 0
      %2188 = vmatpush2.bf16.msra.mxu0 0
      %2189 = vmatprep.subr.bf16.mxu0 0
      %2190 = vmatpush2.bf16.msra.mxu0 0
      %2191 = vmatprep.subr.bf16.mxu0 0
      %2192 = vmatpush2.bf16.msra.mxu0 0
      %2193 = vmatprep.subr.bf16.mxu0 0
      %2194 = vmatpush2.bf16.msra.mxu0 0
      %2195 = vmatprep.subr.bf16.mxu0 0
      %2196 = vmatpush2.bf16.msra.mxu0 0
      %2197 = vmatprep.subr.bf16.mxu0 0
      %2198 = vmatpush2.bf16.msra.mxu0 0
      %2199 = vmatprep.subr.bf16.mxu0 0
      %2200 = vmatpush2.bf16.msra.mxu0 0
      %2201 = vmatprep.subr.bf16.mxu0 0
      %2202 = vmatpush2.bf16.msra.mxu0 0
      %2203 = vmatprep.mubr.bf16.mxu0 0
      %2204 = vmatmul.mubr.bf16.gmra.mxu0 %v2018
      %v2205 = vpop.f32.mrf.mxu0
      %v2206 = vadd.f32 0.0, %v2205
      %v2207 = vpop.f32.mrf.mxu0
      %v2208 = vpop.f32.mrf.mxu0
      %v2209 = vadd.f32 0.0, %v2208
      %v2210 = vpop.f32.mrf.mxu0
      %2211 = vmatprep.mubr.bf16.mxu0 0
      %2212 = vmatmul.mubr.bf16.gmra.mxu0 %v2021
      %v2213 = vpop.f32.mrf.mxu0
      %v2214 = vadd.f32 0.0, %v2213
      %v2215 = vpop.f32.mrf.mxu0
      %v2216 = vpop.f32.mrf.mxu0
      %v2217 = vadd.f32 0.0, %v2216
      %v2218 = vpop.f32.mrf.mxu0
      %2219 = vmatprep.mubr.bf16.mxu0 0
      %2220 = vmatmul.mubr.bf16.gmra.mxu0 %v2024
      %v2221 = vpop.f32.mrf.mxu0
      %v2222 = vadd.f32 0.0, %v2221
      %v2223 = vpop.f32.mrf.mxu0
      %v2224 = vpop.f32.mrf.mxu0
      %v2225 = vadd.f32 0.0, %v2224
      %v2226 = vpop.f32.mrf.mxu0
      %2227 = vmatprep.mubr.bf16.mxu0 0
      %2228 = vmatmul.mubr.bf16.gmra.mxu0 %v2027
      %v2229 = vpop.f32.mrf.mxu0
      %v2230 = vadd.f32 0.0, %v2229
      %v2231 = vpop.f32.mrf.mxu0
      %v2232 = vpop.f32.mrf.mxu0
      %v2233 = vadd.f32 0.0, %v2232
      %v2234 = vpop.f32.mrf.mxu0
      %2235 = vmatprep.mubr.bf16.mxu0 0
      %2236 = vmatmul.mubr.bf16.gmra.mxu0 %v2030
      %v2237 = vpop.f32.mrf.mxu0
      %v2238 = vadd.f32 0.0, %v2237
      %v2239 = vpop.f32.mrf.mxu0
      %v2240 = vpop.f32.mrf.mxu0
      %v2241 = vadd.f32 0.0, %v2240
      %v2242 = vpop.f32.mrf.mxu0
      %2243 = vmatprep.mubr.bf16.mxu0 0
      %2244 = vmatmul.mubr.bf16.gmra.mxu0 %v2033
      %v2245 = vpop.f32.mrf.mxu0
      %v2246 = vadd.f32 0.0, %v2245
      %v2247 = vpop.f32.mrf.mxu0
      %v2248 = vpop.f32.mrf.mxu0
      %v2249 = vadd.f32 0.0, %v2248
      %v2250 = vpop.f32.mrf.mxu0
      %2251 = vmatprep.mubr.bf16.mxu0 0
      %2252 = vmatmul.mubr.bf16.gmra.mxu0 %v2036
      %v2253 = vpop.f32.mrf.mxu0
      %v2254 = vadd.f32 0.0, %v2253
      %v2255 = vpop.f32.mrf.mxu0
      %v2256 = vpop.f32.mrf.mxu0
      %v2257 = vadd.f32 0.0, %v2256
      %v2258 = vpop.f32.mrf.mxu0
      %2259 = vmatprep.mubr.bf16.mxu0 0
      %2260 = vmatmul.mubr.bf16.gmra.mxu0 %v2039
      %v2261 = vpop.f32.mrf.mxu0
      %v2262 = vadd.f32 0.0, %v2261
      %v2263 = vpop.f32.mrf.mxu0
      %v2264 = vpop.f32.mrf.mxu0
      %v2265 = vadd.f32 0.0, %v2264
      %v2266 = vpop.f32.mrf.mxu0
      %2267 = vmatprep.mubr.bf16.mxu0 0
      %2268 = vmatmul.mubr.bf16.gmra.mxu0 %v2042
      %v2269 = vpop.f32.mrf.mxu0
      %v2270 = vadd.f32 0.0, %v2269
      %v2271 = vpop.f32.mrf.mxu0
      %v2272 = vpop.f32.mrf.mxu0
      %v2273 = vadd.f32 0.0, %v2272
      %v2274 = vpop.f32.mrf.mxu0
      %2275 = vmatprep.mubr.bf16.mxu0 0
      %2276 = vmatmul.mubr.bf16.gmra.mxu0 %v2045
      %v2277 = vpop.f32.mrf.mxu0
      %v2278 = vadd.f32 0.0, %v2277
      %v2279 = vpop.f32.mrf.mxu0
      %v2280 = vpop.f32.mrf.mxu0
      %v2281 = vadd.f32 0.0, %v2280
      %v2282 = vpop.f32.mrf.mxu0
      %2283 = vmatprep.mubr.bf16.mxu0 0
      %2284 = vmatmul.mubr.bf16.gmra.mxu0 %v2048
      %v2285 = vpop.f32.mrf.mxu0
      %v2286 = vadd.f32 0.0, %v2285
      %v2287 = vpop.f32.mrf.mxu0
      %v2288 = vpop.f32.mrf.mxu0
      %v2289 = vadd.f32 0.0, %v2288
      %v2290 = vpop.f32.mrf.mxu0
      %2291 = vmatprep.mubr.bf16.mxu0 0
      %2292 = vmatmul.mubr.bf16.gmra.mxu0 %v2051
      %v2293 = vpop.f32.mrf.mxu0
      %v2294 = vadd.f32 0.0, %v2293
      %v2295 = vpop.f32.mrf.mxu0
      %v2296 = vpop.f32.mrf.mxu0
      %v2297 = vadd.f32 0.0, %v2296
      %v2298 = vpop.f32.mrf.mxu0
      %2299 = vmatprep.mubr.bf16.mxu0 0
      %2300 = vmatmul.mubr.bf16.gmra.mxu0 %v2054
      %v2301 = vpop.f32.mrf.mxu0
      %v2302 = vadd.f32 0.0, %v2301
      %v2303 = vpop.f32.mrf.mxu0
      %v2304 = vpop.f32.mrf.mxu0
      %v2305 = vadd.f32 0.0, %v2304
      %v2306 = vpop.f32.mrf.mxu0
      %2307 = vmatprep.mubr.bf16.mxu0 0
      %2308 = vmatmul.mubr.bf16.gmra.mxu0 %v2057
      %v2309 = vpop.f32.mrf.mxu0
      %v2310 = vadd.f32 0.0, %v2309
      %v2311 = vpop.f32.mrf.mxu0
      %v2312 = vpop.f32.mrf.mxu0
      %v2313 = vadd.f32 0.0, %v2312
      %v2314 = vpop.f32.mrf.mxu0
      %2315 = vmatprep.mubr.bf16.mxu0 0
      %2316 = vmatmul.mubr.bf16.gmra.mxu0 %v2060
      %v2317 = vpop.f32.mrf.mxu0
      %v2318 = vadd.f32 0.0, %v2317
      %v2319 = vpop.f32.mrf.mxu0
      %v2320 = vpop.f32.mrf.mxu0
      %v2321 = vadd.f32 0.0, %v2320
      %v2322 = vpop.f32.mrf.mxu0
      %2323 = vmatprep.mubr.bf16.mxu0 0
      %2324 = vmatmul.mubr.bf16.gmra.mxu0 %v2063
      %v2325 = vpop.f32.mrf.mxu0
      %v2326 = vadd.f32 0.0, %v2325
      %v2327 = vpop.f32.mrf.mxu0
      %v2328 = vpop.f32.mrf.mxu0
      %v2329 = vadd.f32 0.0, %v2328
      %v2330 = vpop.f32.mrf.mxu0
      %2331 = vmatprep.mubr.bf16.mxu0 0
      %2332 = vmatmul.mubr.bf16.gmra.mxu0 %v2066
      %v2333 = vpop.f32.mrf.mxu0
      %v2334 = vadd.f32 0.0, %v2333
      %v2335 = vpop.f32.mrf.mxu0
      %v2336 = vpop.f32.mrf.mxu0
      %v2337 = vadd.f32 0.0, %v2336
      %v2338 = vpop.f32.mrf.mxu0
      %2339 = vmatprep.mubr.bf16.mxu0 0
      %2340 = vmatmul.mubr.bf16.gmra.mxu0 %v2069
      %v2341 = vpop.f32.mrf.mxu0
      %v2342 = vadd.f32 0.0, %v2341
      %v2343 = vpop.f32.mrf.mxu0
      %v2344 = vpop.f32.mrf.mxu0
      %v2345 = vadd.f32 0.0, %v2344
      %v2346 = vpop.f32.mrf.mxu0
      %2347 = vmatprep.mubr.bf16.mxu0 0
      %2348 = vmatmul.mubr.bf16.gmra.mxu0 %v2072
      %v2349 = vpop.f32.mrf.mxu0
      %v2350 = vadd.f32 0.0, %v2349
      %v2351 = vpop.f32.mrf.mxu0
      %v2352 = vpop.f32.mrf.mxu0
      %v2353 = vadd.f32 0.0, %v2352
      %v2354 = vpop.f32.mrf.mxu0
      %2355 = vmatprep.mubr.bf16.mxu0 0
      %2356 = vmatmul.mubr.bf16.gmra.mxu0 %v2075
      %v2357 = vpop.f32.mrf.mxu0
      %v2358 = vadd.f32 0.0, %v2357
      %v2359 = vpop.f32.mrf.mxu0
      %v2360 = vpop.f32.mrf.mxu0
      %v2361 = vadd.f32 0.0, %v2360
      %v2362 = vpop.f32.mrf.mxu0
      %2363 = vmatprep.mubr.bf16.mxu0 0
      %2364 = vmatmul.mubr.bf16.gmra.mxu0 %v2078
      %v2365 = vpop.f32.mrf.mxu0
      %v2366 = vadd.f32 0.0, %v2365
      %v2367 = vpop.f32.mrf.mxu0
      %v2368 = vpop.f32.mrf.mxu0
      %v2369 = vadd.f32 0.0, %v2368
      %v2370 = vpop.f32.mrf.mxu0
      %2371 = vmatprep.mubr.bf16.mxu0 0
      %2372 = vmatmul.mubr.bf16.gmra.mxu0 %v2081
      %v2373 = vpop.f32.mrf.mxu0
      %v2374 = vadd.f32 0.0, %v2373
      %v2375 = vpop.f32.mrf.mxu0
      %v2376 = vpop.f32.mrf.mxu0
      %v2377 = vadd.f32 0.0, %v2376
      %v2378 = vpop.f32.mrf.mxu0
      %2379 = vmatprep.mubr.bf16.mxu0 0
      %2380 = vmatmul.mubr.bf16.gmra.mxu0 %v2084
      %v2381 = vpop.f32.mrf.mxu0
      %v2382 = vadd.f32 0.0, %v2381
      %v2383 = vpop.f32.mrf.mxu0
      %v2384 = vpop.f32.mrf.mxu0
      %v2385 = vadd.f32 0.0, %v2384
      %v2386 = vpop.f32.mrf.mxu0
      %2387 = vmatprep.mubr.bf16.mxu0 0
      %2388 = vmatmul.mubr.bf16.gmra.mxu0 %v2087
      %v2389 = vpop.f32.mrf.mxu0
      %v2390 = vadd.f32 0.0, %v2389
      %v2391 = vpop.f32.mrf.mxu0
      %v2392 = vpop.f32.mrf.mxu0
      %v2393 = vadd.f32 0.0, %v2392
      %v2394 = vpop.f32.mrf.mxu0
      %2395 = vmatprep.mubr.bf16.mxu0 0
      %2396 = vmatmul.mubr.bf16.gmra.mxu0 %v2090
      %v2397 = vpop.f32.mrf.mxu0
      %v2398 = vadd.f32 0.0, %v2397
      %v2399 = vpop.f32.mrf.mxu0
      %v2400 = vpop.f32.mrf.mxu0
      %v2401 = vadd.f32 0.0, %v2400
      %v2402 = vpop.f32.mrf.mxu0
      %2403 = vmatprep.mubr.bf16.mxu0 0
      %2404 = vmatmul.mubr.bf16.gmra.mxu0 %v2093
      %v2405 = vpop.f32.mrf.mxu0
      %v2406 = vadd.f32 0.0, %v2405
      %v2407 = vpop.f32.mrf.mxu0
      %v2408 = vpop.f32.mrf.mxu0
      %v2409 = vadd.f32 0.0, %v2408
      %v2410 = vpop.f32.mrf.mxu0
      %2411 = vmatprep.mubr.bf16.mxu0 0
      %2412 = vmatmul.mubr.bf16.gmra.mxu0 %v2096
      %v2413 = vpop.f32.mrf.mxu0
      %v2414 = vadd.f32 0.0, %v2413
      %v2415 = vpop.f32.mrf.mxu0
      %v2416 = vpop.f32.mrf.mxu0
      %v2417 = vadd.f32 0.0, %v2416
      %v2418 = vpop.f32.mrf.mxu0
      %2419 = vmatprep.mubr.bf16.mxu0 0
      %2420 = vmatmul.mubr.bf16.gmra.mxu0 %v2099
      %v2421 = vpop.f32.mrf.mxu0
      %v2422 = vadd.f32 0.0, %v2421
      %v2423 = vpop.f32.mrf.mxu0
      %v2424 = vpop.f32.mrf.mxu0
      %v2425 = vadd.f32 0.0, %v2424
      %v2426 = vpop.f32.mrf.mxu0
      %2427 = vmatprep.mubr.bf16.mxu0 0
      %2428 = vmatmul.mubr.bf16.gmra.mxu0 %v2102
      %v2429 = vpop.f32.mrf.mxu0
      %v2430 = vadd.f32 0.0, %v2429
      %v2431 = vpop.f32.mrf.mxu0
      %v2432 = vpop.f32.mrf.mxu0
      %v2433 = vadd.f32 0.0, %v2432
      %v2434 = vpop.f32.mrf.mxu0
      %2435 = vmatprep.mubr.bf16.mxu0 0
      %2436 = vmatmul.mubr.bf16.gmra.mxu0 %v2105
      %v2437 = vpop.f32.mrf.mxu0
      %v2438 = vadd.f32 0.0, %v2437
      %v2439 = vpop.f32.mrf.mxu0
      %v2440 = vpop.f32.mrf.mxu0
      %v2441 = vadd.f32 0.0, %v2440
      %v2442 = vpop.f32.mrf.mxu0
      %2443 = vmatprep.mubr.bf16.mxu0 0
      %2444 = vmatmul.mubr.bf16.gmra.mxu0 %v2108
      %v2445 = vpop.f32.mrf.mxu0
      %v2446 = vadd.f32 0.0, %v2445
      %v2447 = vpop.f32.mrf.mxu0
      %v2448 = vpop.f32.mrf.mxu0
      %v2449 = vadd.f32 0.0, %v2448
      %v2450 = vpop.f32.mrf.mxu0
      %2451 = vmatprep.mubr.bf16.mxu0 0
      %2452 = vmatmul.mubr.bf16.gmra.mxu0 %v2111
      %v2453 = vpop.f32.mrf.mxu0
      %v2454 = vadd.f32 0.0, %v2453
      %v2455 = vpop.f32.mrf.mxu0
      %v2456 = vpop.f32.mrf.mxu0
      %v2457 = vadd.f32 0.0, %v2456
      %v2458 = vpop.f32.mrf.mxu0
      %2459 = vmatprep.mubr.bf16.mxu0 0
      %2460 = vmatmul.mubr.bf16.gmra.mxu0 %v2114
      %v2461 = vpop.f32.mrf.mxu0
      %v2462 = vadd.f32 0.0, %v2461
      %v2463 = vpop.f32.mrf.mxu0
      %v2464 = vpop.f32.mrf.mxu0
      %v2465 = vadd.f32 0.0, %v2464
      %v2466 = vpop.f32.mrf.mxu0
      %2467 = vmatprep.mubr.bf16.mxu0 0
      %2468 = vmatmul.mubr.bf16.gmra.mxu0 %v2117
      %v2469 = vpop.f32.mrf.mxu0
      %v2470 = vadd.f32 0.0, %v2469
      %v2471 = vpop.f32.mrf.mxu0
      %v2472 = vpop.f32.mrf.mxu0
      %v2473 = vadd.f32 0.0, %v2472
      %v2474 = vpop.f32.mrf.mxu0
      %2475 = vmatprep.mubr.bf16.mxu0 0
      %2476 = vmatmul.mubr.bf16.gmra.mxu0 %v2120
      %v2477 = vpop.f32.mrf.mxu0
      %v2478 = vadd.f32 0.0, %v2477
      %v2479 = vpop.f32.mrf.mxu0
      %v2480 = vpop.f32.mrf.mxu0
      %v2481 = vadd.f32 0.0, %v2480
      %v2482 = vpop.f32.mrf.mxu0
      %2483 = vmatprep.mubr.bf16.mxu0 0
      %2484 = vmatmul.mubr.bf16.gmra.mxu0 %v2123
      %v2485 = vpop.f32.mrf.mxu0
      %v2486 = vadd.f32 0.0, %v2485
      %v2487 = vpop.f32.mrf.mxu0
      %v2488 = vpop.f32.mrf.mxu0
      %v2489 = vadd.f32 0.0, %v2488
      %v2490 = vpop.f32.mrf.mxu0
      %2491 = vmatprep.mubr.bf16.mxu0 0
      %2492 = vmatmul.mubr.bf16.gmra.mxu0 %v2126
      %v2493 = vpop.f32.mrf.mxu0
      %v2494 = vadd.f32 0.0, %v2493
      %v2495 = vpop.f32.mrf.mxu0
      %v2496 = vpop.f32.mrf.mxu0
      %v2497 = vadd.f32 0.0, %v2496
      %v2498 = vpop.f32.mrf.mxu0
      %2499 = vmatprep.mubr.bf16.mxu0 0
      %2500 = vmatmul.mubr.bf16.gmra.mxu0 %v2129
      %v2501 = vpop.f32.mrf.mxu0
      %v2502 = vadd.f32 0.0, %v2501
      %v2503 = vpop.f32.mrf.mxu0
      %v2504 = vpop.f32.mrf.mxu0
      %v2505 = vadd.f32 0.0, %v2504
      %v2506 = vpop.f32.mrf.mxu0
      %2507 = vmatprep.mubr.bf16.mxu0 0
      %2508 = vmatmul.mubr.bf16.gmra.mxu0 %v2132
      %v2509 = vpop.f32.mrf.mxu0
      %v2510 = vadd.f32 0.0, %v2509
      %v2511 = vpop.f32.mrf.mxu0
      %v2512 = vpop.f32.mrf.mxu0
      %v2513 = vadd.f32 0.0, %v2512
      %v2514 = vpop.f32.mrf.mxu0
      %2515 = vmatprep.mubr.bf16.mxu0 0
      %2516 = vmatmul.mubr.bf16.gmra.mxu0 %v2135
      %v2517 = vpop.f32.mrf.mxu0
      %v2518 = vadd.f32 0.0, %v2517
      %v2519 = vpop.f32.mrf.mxu0
      %v2520 = vpop.f32.mrf.mxu0
      %v2521 = vadd.f32 0.0, %v2520
      %v2522 = vpop.f32.mrf.mxu0
      %2523 = vmatprep.mubr.bf16.mxu0 0
      %2524 = vmatmul.mubr.bf16.gmra.mxu0 %v2138
      %v2525 = vpop.f32.mrf.mxu0
      %v2526 = vadd.f32 0.0, %v2525
      %v2527 = vpop.f32.mrf.mxu0
      %v2528 = vpop.f32.mrf.mxu0
      %v2529 = vadd.f32 0.0, %v2528
      %v2530 = vpop.f32.mrf.mxu0
      %2531 = vmatprep.mubr.bf16.mxu0 0
      %2532 = vmatmul.mubr.bf16.gmra.mxu0 %v2141
      %v2533 = vpop.f32.mrf.mxu0
      %v2534 = vadd.f32 0.0, %v2533
      %v2535 = vpop.f32.mrf.mxu0
      %v2536 = vpop.f32.mrf.mxu0
      %v2537 = vadd.f32 0.0, %v2536
      %v2538 = vpop.f32.mrf.mxu0
      %2539 = vmatprep.mubr.bf16.mxu0 0
      %2540 = vmatmul.mubr.bf16.gmra.mxu0 %v2144
      %v2541 = vpop.f32.mrf.mxu0
      %v2542 = vadd.f32 0.0, %v2541
      %v2543 = vpop.f32.mrf.mxu0
      %v2544 = vpop.f32.mrf.mxu0
      %v2545 = vadd.f32 0.0, %v2544
      %v2546 = vpop.f32.mrf.mxu0
      %2547 = vmatprep.mubr.bf16.mxu0 0
      %2548 = vmatmul.mubr.bf16.gmra.mxu0 %v2147
      %v2549 = vpop.f32.mrf.mxu0
      %v2550 = vadd.f32 0.0, %v2549
      %v2551 = vpop.f32.mrf.mxu0
      %v2552 = vpop.f32.mrf.mxu0
      %v2553 = vadd.f32 0.0, %v2552
      %v2554 = vpop.f32.mrf.mxu0
      %2555 = vmatprep.mubr.bf16.mxu0 0
      %2556 = vmatmul.mubr.bf16.gmra.mxu0 %v2150
      %v2557 = vpop.f32.mrf.mxu0
      %v2558 = vadd.f32 0.0, %v2557
      %v2559 = vpop.f32.mrf.mxu0
      %v2560 = vpop.f32.mrf.mxu0
      %v2561 = vadd.f32 0.0, %v2560
      %v2562 = vpop.f32.mrf.mxu0
      %2563 = vmatprep.mubr.bf16.mxu0 0
      %2564 = vmatmul.mubr.bf16.gmra.mxu0 %v2153
      %v2565 = vpop.f32.mrf.mxu0
      %v2566 = vadd.f32 0.0, %v2565
      %v2567 = vpop.f32.mrf.mxu0
      %v2568 = vpop.f32.mrf.mxu0
      %v2569 = vadd.f32 0.0, %v2568
      %v2570 = vpop.f32.mrf.mxu0
      %2571 = vmatprep.mubr.bf16.mxu0 0
      %2572 = vmatmul.mubr.bf16.gmra.mxu0 %v2156
      %v2573 = vpop.f32.mrf.mxu0
      %v2574 = vadd.f32 0.0, %v2573
      %v2575 = vpop.f32.mrf.mxu0
      %v2576 = vpop.f32.mrf.mxu0
      %v2577 = vadd.f32 0.0, %v2576
      %v2578 = vpop.f32.mrf.mxu0
      %2579 = vmatprep.mubr.bf16.mxu0 0
      %2580 = vmatmul.mubr.bf16.gmra.mxu0 %v2159
      %v2581 = vpop.f32.mrf.mxu0
      %v2582 = vadd.f32 0.0, %v2581
      %v2583 = vpop.f32.mrf.mxu0
      %v2584 = vpop.f32.mrf.mxu0
      %v2585 = vadd.f32 0.0, %v2584
      %v2586 = vpop.f32.mrf.mxu0
      %2587 = vmatprep.mubr.bf16.mxu0 0
      %2588 = vmatmul.mubr.bf16.gmra.mxu0 %v2162
      %v2589 = vpop.f32.mrf.mxu0
      %v2590 = vadd.f32 0.0, %v2589
      %v2591 = vpop.f32.mrf.mxu0
      %v2592 = vpop.f32.mrf.mxu0
      %v2593 = vadd.f32 0.0, %v2592
      %v2594 = vpop.f32.mrf.mxu0
      %2595 = vdwg.mxu0
      %v2694 = vcombine.high %v2206, %v2206
      %v2695 = vcombine.high %v2209, %v2209
      %v2696 = vcombine.high %v2214, %v2214
      %v2697 = vcombine.high %v2217, %v2217
      %v2698 = vcombine.high %v2222, %v2222
      %v2699 = vcombine.high %v2225, %v2225
      %v2700 = vcombine.high %v2230, %v2230
      %v2701 = vcombine.high %v2233, %v2233
      %v2702 = vcombine.high %v2238, %v2238
      %v2703 = vcombine.high %v2241, %v2241
      %v2704 = vcombine.high %v2246, %v2246
      %v2705 = vcombine.high %v2249, %v2249
      %v2706 = vcombine.high %v2254, %v2254
      %v2707 = vcombine.high %v2257, %v2257
      %v2708 = vcombine.high %v2262, %v2262
      %v2709 = vcombine.high %v2265, %v2265
      %v2710 = vcombine.high %v2270, %v2270
      %v2711 = vcombine.high %v2273, %v2273
      %v2712 = vcombine.high %v2278, %v2278
      %v2713 = vcombine.high %v2281, %v2281
      %v2714 = vcombine.high %v2286, %v2286
      %v2715 = vcombine.high %v2289, %v2289
      %v2716 = vcombine.high %v2294, %v2294
      %v2717 = vcombine.high %v2297, %v2297
      %v2718 = vcombine.high %v2302, %v2302
      %v2719 = vcombine.high %v2305, %v2305
      %v2720 = vcombine.high %v2310, %v2310
      %v2721 = vcombine.high %v2313, %v2313
      %v2722 = vcombine.high %v2318, %v2318
      %v2723 = vcombine.high %v2321, %v2321
      %v2724 = vcombine.high %v2326, %v2326
      %v2725 = vcombine.high %v2329, %v2329
      %v2726 = vcombine.high %v2334, %v2334
      %v2727 = vcombine.high %v2337, %v2337
      %v2728 = vcombine.high %v2342, %v2342
      %v2729 = vcombine.high %v2345, %v2345
      %v2730 = vcombine.high %v2350, %v2350
      %v2731 = vcombine.high %v2353, %v2353
      %v2732 = vcombine.high %v2358, %v2358
      %v2733 = vcombine.high %v2361, %v2361
      %v2734 = vcombine.high %v2366, %v2366
      %v2735 = vcombine.high %v2369, %v2369
      %v2736 = vcombine.high %v2374, %v2374
      %v2737 = vcombine.high %v2377, %v2377
      %v2738 = vcombine.high %v2382, %v2382
      %v2739 = vcombine.high %v2385, %v2385
      %v2740 = vcombine.high %v2390, %v2390
      %v2741 = vcombine.high %v2393, %v2393
      %v2742 = vcombine.high %v2398, %v2398
      %v2743 = vcombine.high %v2401, %v2401
      %v2744 = vcombine.high %v2406, %v2406
      %v2745 = vcombine.high %v2409, %v2409
      %v2746 = vcombine.high %v2414, %v2414
      %v2747 = vcombine.high %v2417, %v2417
      %v2748 = vcombine.high %v2422, %v2422
      %v2749 = vcombine.high %v2425, %v2425
      %v2750 = vcombine.high %v2430, %v2430
      %v2751 = vcombine.high %v2433, %v2433
      %v2752 = vcombine.high %v2438, %v2438
      %v2753 = vcombine.high %v2441, %v2441
      %v2754 = vcombine.high %v2446, %v2446
      %v2755 = vcombine.high %v2449, %v2449
      %v2756 = vcombine.high %v2454, %v2454
      %v2757 = vcombine.high %v2457, %v2457
      %v2758 = vcombine.high %v2462, %v2462
      %v2759 = vcombine.high %v2465, %v2465
      %v2760 = vcombine.high %v2470, %v2470
      %v2761 = vcombine.high %v2473, %v2473
      %v2762 = vcombine.high %v2478, %v2478
      %v2763 = vcombine.high %v2481, %v2481
      %v2764 = vcombine.high %v2486, %v2486
      %v2765 = vcombine.high %v2489, %v2489
      %v2766 = vcombine.high %v2494, %v2494
      %v2767 = vcombine.high %v2497, %v2497
      %v2768 = vcombine.high %v2502, %v2502
      %v2769 = vcombine.high %v2505, %v2505
      %v2770 = vcombine.high %v2510, %v2510
      %v2771 = vcombine.high %v2513, %v2513
      %v2772 = vcombine.high %v2518, %v2518
      %v2773 = vcombine.high %v2521, %v2521
      %v2774 = vcombine.high %v2526, %v2526
      %v2775 = vcombine.high %v2529, %v2529
      %v2776 = vcombine.high %v2534, %v2534
      %v2777 = vcombine.high %v2537, %v2537
      %v2778 = vcombine.high %v2542, %v2542
      %v2779 = vcombine.high %v2545, %v2545
      %v2780 = vcombine.high %v2550, %v2550
      %v2781 = vcombine.high %v2553, %v2553
      %v2782 = vcombine.high %v2558, %v2558
      %v2783 = vcombine.high %v2561, %v2561
      %v2784 = vcombine.high %v2566, %v2566
      %v2785 = vcombine.high %v2569, %v2569
      %v2786 = vcombine.high %v2574, %v2574
      %v2787 = vcombine.high %v2577, %v2577
      %v2788 = vcombine.high %v2582, %v2582
      %v2789 = vcombine.high %v2585, %v2585
      %v2790 = vcombine.high %v2590, %v2590
      %v2791 = vcombine.high %v2593, %v2593
      %v2890 = vmax.f32 %v2206, %v2718
      %v2891 = vmax.f32 %v2694, %v2305
      %v2892 = vmax.f32 %v2209, %v2719
      %v2893 = vmax.f32 %v2695, %v2310
      %v2894 = vmax.f32 %v2214, %v2720
      %v2895 = vmax.f32 %v2696, %v2313
      %v2896 = vmax.f32 %v2217, %v2721
      %v2897 = vmax.f32 %v2697, %v2318
      %v2898 = vmax.f32 %v2222, %v2722
      %v2899 = vmax.f32 %v2698, %v2321
      %v2900 = vmax.f32 %v2225, %v2723
      %v2901 = vmax.f32 %v2699, %v2326
      %v2902 = vmax.f32 %v2230, %v2724
      %v2903 = vmax.f32 %v2700, %v2329
      %v2904 = vmax.f32 %v2233, %v2725
      %v2905 = vmax.f32 %v2701, %v2334
      %v2906 = vmax.f32 %v2238, %v2726
      %v2907 = vmax.f32 %v2702, %v2337
      %v2908 = vmax.f32 %v2241, %v2727
      %v2909 = vmax.f32 %v2703, %v2342
      %v2910 = vmax.f32 %v2246, %v2728
      %v2911 = vmax.f32 %v2704, %v2345
      %v2912 = vmax.f32 %v2249, %v2729
      %v2913 = vmax.f32 %v2705, %v2350
      %v2914 = vmax.f32 %v2254, %v2730
      %v2915 = vmax.f32 %v2706, %v2353
      %v2916 = vmax.f32 %v2257, %v2731
      %v2917 = vmax.f32 %v2707, %v2358
      %v2918 = vmax.f32 %v2262, %v2732
      %v2919 = vmax.f32 %v2708, %v2361
      %v2920 = vmax.f32 %v2265, %v2733
      %v2921 = vmax.f32 %v2709, %v2366
      %v2922 = vmax.f32 %v2270, %v2734
      %v2923 = vmax.f32 %v2710, %v2369
      %v2924 = vmax.f32 %v2273, %v2735
      %v2925 = vmax.f32 %v2711, %v2374
      %v2926 = vmax.f32 %v2278, %v2736
      %v2927 = vmax.f32 %v2712, %v2377
      %v2928 = vmax.f32 %v2281, %v2737
      %v2929 = vmax.f32 %v2713, %v2382
      %v2930 = vmax.f32 %v2286, %v2738
      %v2931 = vmax.f32 %v2714, %v2385
      %v2932 = vmax.f32 %v2289, %v2739
      %v2933 = vmax.f32 %v2715, %v2390
      %v2934 = vmax.f32 %v2294, %v2740
      %v2935 = vmax.f32 %v2716, %v2393
      %v2936 = vmax.f32 %v2297, %v2741
      %v2937 = vmax.f32 %v2717, %v2398
      %v2938 = vmax.f32 %v2302, %v2742
      %v2939 = vmax.f32 %v2401, %v2767
      %v2940 = vmax.f32 %v2743, %v2502
      %v2941 = vmax.f32 %v2406, %v2768
      %v2942 = vmax.f32 %v2744, %v2505
      %v2943 = vmax.f32 %v2409, %v2769
      %v2944 = vmax.f32 %v2745, %v2510
      %v2945 = vmax.f32 %v2414, %v2770
      %v2946 = vmax.f32 %v2746, %v2513
      %v2947 = vmax.f32 %v2417, %v2771
      %v2948 = vmax.f32 %v2747, %v2518
      %v2949 = vmax.f32 %v2422, %v2772
      %v2950 = vmax.f32 %v2748, %v2521
      %v2951 = vmax.f32 %v2425, %v2773
      %v2952 = vmax.f32 %v2749, %v2526
      %v2953 = vmax.f32 %v2430, %v2774
      %v2954 = vmax.f32 %v2750, %v2529
      %v2955 = vmax.f32 %v2433, %v2775
      %v2956 = vmax.f32 %v2751, %v2534
      %v2957 = vmax.f32 %v2438, %v2776
      %v2958 = vmax.f32 %v2752, %v2537
      %v2959 = vmax.f32 %v2441, %v2777
      %v2960 = vmax.f32 %v2753, %v2542
      %v2961 = vmax.f32 %v2446, %v2778
      %v2962 = vmax.f32 %v2754, %v2545
      %v2963 = vmax.f32 %v2449, %v2779
      %v2964 = vmax.f32 %v2755, %v2550
      %v2965 = vmax.f32 %v2454, %v2780
      %v2966 = vmax.f32 %v2756, %v2553
      %v2967 = vmax.f32 %v2457, %v2781
      %v2968 = vmax.f32 %v2757, %v2558
      %v2969 = vmax.f32 %v2462, %v2782
      %v2970 = vmax.f32 %v2758, %v2561
      %v2971 = vmax.f32 %v2465, %v2783
      %v2972 = vmax.f32 %v2759, %v2566
      %v2973 = vmax.f32 %v2470, %v2784
      %v2974 = vmax.f32 %v2760, %v2569
      %v2975 = vmax.f32 %v2473, %v2785
      %v2976 = vmax.f32 %v2761, %v2574
      %v2977 = vmax.f32 %v2478, %v2786
      %v2978 = vmax.f32 %v2762, %v2577
      %v2979 = vmax.f32 %v2481, %v2787
      %v2980 = vmax.f32 %v2763, %v2582
      %v2981 = vmax.f32 %v2486, %v2788
      %v2982 = vmax.f32 %v2764, %v2585
      %v2983 = vmax.f32 %v2489, %v2789
      %v2984 = vmax.f32 %v2765, %v2590
      %v2985 = vmax.f32 %v2494, %v2790
      %v2986 = vmax.f32 %v2766, %v2593
      %v2987 = vmax.f32 %v2497, %v2791
      %v2988 = vmax.f32 %v2890, %v2939
      %v2989 = vmax.f32 %v2891, %v2940
      %v2990 = vmax.f32 %v2892, %v2941
      %v2991 = vmax.f32 %v2893, %v2942
      %v2992 = vmax.f32 %v2894, %v2943
      %v2993 = vmax.f32 %v2895, %v2944
      %v2994 = vmax.f32 %v2896, %v2945
      %v2995 = vmax.f32 %v2897, %v2946
      %v2996 = vmax.f32 %v2898, %v2947
      %v2997 = vmax.f32 %v2899, %v2948
      %v2998 = vmax.f32 %v2900, %v2949
      %v2999 = vmax.f32 %v2901, %v2950
      %v3000 = vmax.f32 %v2902, %v2951
      %v3001 = vmax.f32 %v2903, %v2952
      %v3002 = vmax.f32 %v2904, %v2953
      %v3003 = vmax.f32 %v2905, %v2954
      %v3004 = vmax.f32 %v2906, %v2955
      %v3005 = vmax.f32 %v2907, %v2956
      %v3006 = vmax.f32 %v2908, %v2957
      %v3007 = vmax.f32 %v2909, %v2958
      %v3008 = vmax.f32 %v2910, %v2959
      %v3009 = vmax.f32 %v2911, %v2960
      %v3010 = vmax.f32 %v2912, %v2961
      %v3011 = vmax.f32 %v2913, %v2962
      %v3012 = vmax.f32 %v2914, %v2963
      %v3013 = vmax.f32 %v2915, %v2964
      %v3014 = vmax.f32 %v2916, %v2965
      %v3015 = vmax.f32 %v2917, %v2966
      %v3016 = vmax.f32 %v2918, %v2967
      %v3017 = vmax.f32 %v2919, %v2968
      %v3018 = vmax.f32 %v2920, %v2969
      %v3019 = vmax.f32 %v2921, %v2970
      %v3020 = vmax.f32 %v2922, %v2971
      %v3021 = vmax.f32 %v2923, %v2972
      %v3022 = vmax.f32 %v2924, %v2973
      %v3023 = vmax.f32 %v2925, %v2974
      %v3024 = vmax.f32 %v2926, %v2975
      %v3025 = vmax.f32 %v2927, %v2976
      %v3026 = vmax.f32 %v2928, %v2977
      %v3027 = vmax.f32 %v2929, %v2978
      %v3028 = vmax.f32 %v2930, %v2979
      %v3029 = vmax.f32 %v2931, %v2980
      %v3030 = vmax.f32 %v2932, %v2981
      %v3031 = vmax.f32 %v2933, %v2982
      %v3032 = vmax.f32 %v2934, %v2983
      %v3033 = vmax.f32 %v2935, %v2984
      %v3034 = vmax.f32 %v2936, %v2985
      %v3035 = vmax.f32 %v2937, %v2986
      %v3036 = vmax.f32 %v2938, %v2987
      %v3037 = vld [vmem:[%s2] sm:$0x1]
      %v3039 = vlaneseq
      %v3040 = vshrl.u32 %v3039, 7
      %v3041 = vsub.s32 0, %v3040
      %v3042 = vrot.slane %v3037, %v3041
      %v3044 = vcombine.high %v3042, %v3042
      %v3046 = vadd.f32 %v2988, %v3042
      %v3047 = vadd.f32 %v2989, %v3044
      %v3048 = vadd.f32 %v2990, %v3042
      %v3049 = vadd.f32 %v2991, %v3044
      %v3050 = vadd.f32 %v2992, %v3042
      %v3051 = vadd.f32 %v2993, %v3044
      %v3052 = vadd.f32 %v2994, %v3042
      %v3053 = vadd.f32 %v2995, %v3044
      %v3054 = vadd.f32 %v2996, %v3042
      %v3055 = vadd.f32 %v2997, %v3044
      %v3056 = vadd.f32 %v2998, %v3042
      %v3057 = vadd.f32 %v2999, %v3044
      %v3058 = vadd.f32 %v3000, %v3042
      %v3059 = vadd.f32 %v3001, %v3044
      %v3060 = vadd.f32 %v3002, %v3042
      %v3061 = vadd.f32 %v3003, %v3044
      %v3062 = vadd.f32 %v3004, %v3042
      %v3063 = vadd.f32 %v3005, %v3044
      %v3064 = vadd.f32 %v3006, %v3042
      %v3065 = vadd.f32 %v3007, %v3044
      %v3066 = vadd.f32 %v3008, %v3042
      %v3067 = vadd.f32 %v3009, %v3044
      %v3068 = vadd.f32 %v3010, %v3042
      %v3069 = vadd.f32 %v3011, %v3044
      %v3070 = vadd.f32 %v3012, %v3042
      %v3071 = vadd.f32 %v3013, %v3044
      %v3072 = vadd.f32 %v3014, %v3042
      %v3073 = vadd.f32 %v3015, %v3044
      %v3074 = vadd.f32 %v3016, %v3042
      %v3075 = vadd.f32 %v3017, %v3044
      %v3076 = vadd.f32 %v3018, %v3042
      %v3077 = vadd.f32 %v3019, %v3044
      %v3078 = vadd.f32 %v3020, %v3042
      %v3079 = vadd.f32 %v3021, %v3044
      %v3080 = vadd.f32 %v3022, %v3042
      %v3081 = vadd.f32 %v3023, %v3044
      %v3082 = vadd.f32 %v3024, %v3042
      %v3083 = vadd.f32 %v3025, %v3044
      %v3084 = vadd.f32 %v3026, %v3042
      %v3085 = vadd.f32 %v3027, %v3044
      %v3086 = vadd.f32 %v3028, %v3042
      %v3087 = vadd.f32 %v3029, %v3044
      %v3088 = vadd.f32 %v3030, %v3042
      %v3089 = vadd.f32 %v3031, %v3044
      %v3090 = vadd.f32 %v3032, %v3042
      %v3091 = vadd.f32 %v3033, %v3044
      %v3092 = vadd.f32 %v3034, %v3042
      %v3093 = vadd.f32 %v3035, %v3044
      %v3094 = vadd.f32 %v3036, %v3042
      %v3095 = vmax.f32 %v3046, 0.0
      %v3096 = vmax.f32 %v3047, 0.0
      %v3097 = vmax.f32 %v3048, 0.0
      %v3098 = vmax.f32 %v3049, 0.0
      %v3099 = vmax.f32 %v3050, 0.0
      %v3100 = vmax.f32 %v3051, 0.0
      %v3101 = vmax.f32 %v3052, 0.0
      %v3102 = vmax.f32 %v3053, 0.0
      %v3103 = vmax.f32 %v3054, 0.0
      %v3104 = vmax.f32 %v3055, 0.0
      %v3105 = vmax.f32 %v3056, 0.0
      %v3106 = vmax.f32 %v3057, 0.0
      %v3107 = vmax.f32 %v3058, 0.0
      %v3108 = vmax.f32 %v3059, 0.0
      %v3109 = vmax.f32 %v3060, 0.0
      %v3110 = vmax.f32 %v3061, 0.0
      %v3111 = vmax.f32 %v3062, 0.0
      %v3112 = vmax.f32 %v3063, 0.0
      %v3113 = vmax.f32 %v3064, 0.0
      %v3114 = vmax.f32 %v3065, 0.0
      %v3115 = vmax.f32 %v3066, 0.0
      %v3116 = vmax.f32 %v3067, 0.0
      %v3117 = vmax.f32 %v3068, 0.0
      %v3118 = vmax.f32 %v3069, 0.0
      %v3119 = vmax.f32 %v3070, 0.0
      %v3120 = vmax.f32 %v3071, 0.0
      %v3121 = vmax.f32 %v3072, 0.0
      %v3122 = vmax.f32 %v3073, 0.0
      %v3123 = vmax.f32 %v3074, 0.0
      %v3124 = vmax.f32 %v3075, 0.0
      %v3125 = vmax.f32 %v3076, 0.0
      %v3126 = vmax.f32 %v3077, 0.0
      %v3127 = vmax.f32 %v3078, 0.0
      %v3128 = vmax.f32 %v3079, 0.0
      %v3129 = vmax.f32 %v3080, 0.0
      %v3130 = vmax.f32 %v3081, 0.0
      %v3131 = vmax.f32 %v3082, 0.0
      %v3132 = vmax.f32 %v3083, 0.0
      %v3133 = vmax.f32 %v3084, 0.0
      %v3134 = vmax.f32 %v3085, 0.0
      %v3135 = vmax.f32 %v3086, 0.0
      %v3136 = vmax.f32 %v3087, 0.0
      %v3137 = vmax.f32 %v3088, 0.0
      %v3138 = vmax.f32 %v3089, 0.0
      %v3139 = vmax.f32 %v3090, 0.0
      %v3140 = vmax.f32 %v3091, 0.0
      %v3141 = vmax.f32 %v3092, 0.0
      %v3142 = vmax.f32 %v3093, 0.0
      %v3143 = vmax.f32 %v3094, 0.0
      %v3192 = vcombine.low %v3095, %v3096
      %v3193 = vcombine.low %v3097, %v3098
      %v3194 = vcombine.low %v3099, %v3100
      %v3195 = vcombine.low %v3101, %v3102
      %v3196 = vcombine.low %v3103, %v3104
      %v3197 = vcombine.low %v3105, %v3106
      %v3198 = vcombine.low %v3107, %v3108
      %v3199 = vcombine.low %v3109, %v3110
      %v3200 = vcombine.low %v3111, %v3112
      %v3201 = vcombine.low %v3113, %v3114
      %v3202 = vcombine.low %v3115, %v3116
      %v3203 = vcombine.low %v3117, %v3118
      %v3204 = vcombine.low %v3119, %v3120
      %v3205 = vcombine.low %v3121, %v3122
      %v3206 = vcombine.low %v3123, %v3124
      %v3207 = vcombine.low %v3125, %v3126
      %v3208 = vcombine.low %v3127, %v3128
      %v3209 = vcombine.low %v3129, %v3130
      %v3210 = vcombine.low %v3131, %v3132
      %v3211 = vcombine.low %v3133, %v3134
      %v3212 = vcombine.low %v3135, %v3136
      %v3213 = vcombine.low %v3137, %v3138
      %v3214 = vcombine.low %v3139, %v3140
      %v3215 = vcombine.low %v3141, %v3142
      %vm3240 = vcmask 130048
      %3241 = vst.msk [vmem:[%s170] sm:$0xff] %vm3240, %v3192
      %3242 = vst.msk [vmem:[%s170 + $0x8] sm:$0xff] %vm3240, %v3193
      %3243 = vst.msk [vmem:[%s170 + $0x10] sm:$0xff] %vm3240, %v3194
      %3244 = vst.msk [vmem:[%s170 + $0x18] sm:$0xff] %vm3240, %v3195
      %3245 = vst.msk [vmem:[%s170 + $0x20] sm:$0xff] %vm3240, %v3196
      %3246 = vst.msk [vmem:[%s170 + $0x28] sm:$0xff] %vm3240, %v3197
      %3247 = vst.msk [vmem:[%s170 + $0x30] sm:$0xff] %vm3240, %v3198
      %3248 = vst.msk [vmem:[%s170 + $0x38] sm:$0xff] %vm3240, %v3199
      %3249 = vst.msk [vmem:[%s170 + $0x40] sm:$0xff] %vm3240, %v3200
      %3250 = vst.msk [vmem:[%s170 + $0x48] sm:$0xff] %vm3240, %v3201
      %3251 = vst.msk [vmem:[%s170 + $0x50] sm:$0xff] %vm3240, %v3202
      %3252 = vst.msk [vmem:[%s170 + $0x58] sm:$0xff] %vm3240, %v3203
      %3253 = vst.msk [vmem:[%s170 + $0x60] sm:$0xff] %vm3240, %v3204
      %3254 = vst.msk [vmem:[%s170 + $0x68] sm:$0xff] %vm3240, %v3205
      %3255 = vst.msk [vmem:[%s170 + $0x70] sm:$0xff] %vm3240, %v3206
      %3256 = vst.msk [vmem:[%s170 + $0x78] sm:$0xff] %vm3240, %v3207
      %3257 = vst.msk [vmem:[%s170 + $0x80] sm:$0xff] %vm3240, %v3208
      %3258 = vst.msk [vmem:[%s170 + $0x88] sm:$0xff] %vm3240, %v3209
      %3259 = vst.msk [vmem:[%s170 + $0x90] sm:$0xff] %vm3240, %v3210
      %3260 = vst.msk [vmem:[%s170 + $0x98] sm:$0xff] %vm3240, %v3211
      %3261 = vst.msk [vmem:[%s170 + $0xa0] sm:$0xff] %vm3240, %v3212
      %3262 = vst.msk [vmem:[%s170 + $0xa8] sm:$0xff] %vm3240, %v3213
      %3263 = vst.msk [vmem:[%s170 + $0xb0] sm:$0xff] %vm3240, %v3214
      %3264 = vst.msk [vmem:[%s170 + $0xb8] sm:$0xff] %vm3240, %v3215
      %vm3265 = vcmask 125952
      %3266 = vst.msk [vmem:[%s170 + $0xc0] sm:$0xf] %vm3265, %v3143
      %p3267 = scmp.lt.s32.totalorder %s14, 1
      %s3268 = scalar_select %p3267, %s14, 1
      %s3269 = smul.addr %s3268, 25
      %s3270 = smul.addr %s3269, 8
      %s3271 = scalar_lea.vmem %s3, %s3270
      // Predicated region
      $region33: #{lenet_forward.3} parent=31 // pred_check
        %p3272 = pneg %p100
      $region34: #{lenet_forward.3} parent=31 // pred_check_branch
        %3274 = sbr.rel (%p3272) target = $region36
      $region35: #{lenet_forward.3} parent=31 // pred_region
        _
      $region36: #{lenet_forward.3} parent=31 // pred_fallthru
        _
    $region32: #{lenet_forward.3} parent=5 // pred_fallthru
      _
    %p3275 = scmp.le.s32.totalorder 2, %s9
    // Predicated region
    $region37: #{lenet_forward.3} parent=5 // pred_check
      %p3276 = pneg %p3275
    $region38: #{lenet_forward.3} parent=5 // pred_check_branch
      %3278 = sbr.rel (%p3276) target = $region40
    $region39: #{lenet_forward.3} parent=5 // pred_region
      %s3279 = ssub.s32 %s9, 2
      // Predicated region
      $region41: #{lenet_forward.3} parent=39 // pred_check
        %p3280 = pneg %p106
      $region42: #{lenet_forward.3} parent=39 // pred_check_branch
        %3282 = sbr.rel (%p3280) target = $region44
      $region43: #{lenet_forward.3} parent=39 // pred_region
        %p3283 = scmp.lt.s32.totalorder %s15, 1
        %s3284 = scalar_select %p3283, %s15, 1
        %s3285 = smul.addr %s3284, 25
        %s3286 = smul.addr %s3285, 8
        %s3287 = scalar_lea.vmem %s3, %s3286
      $region44: #{lenet_forward.3} parent=39 // pred_fallthru
        _
    $region40: #{lenet_forward.3} parent=5 // pred_fallthru
      _
  $region6: #{lenet_forward.3} parent=0 // loop_footer
    %s13 = sadd.s32 1, %s9
  $region7: #{lenet_forward.3} parent=0 // loop_footer_branch
    %8 = sbr.rel target = $region3
  $region8: #{lenet_forward.3} parent=0 // loop_exit
    _

// kernel: lenet_forward.4
$region0: #{lenet_forward.4}
  #allocation0 [shape = 'u32[]', space=smem, size = 0x4, offset = 0x4, fixed_abs, tag = 'smem constant byte address 0x4 - core index']
  #allocation1 [shape = 'u32[144,128]{1,0:T(1,128)}', space=vmem, size = 0x12000, scoped, tag = 'internal scratch']
  %s0 = inlined_call_operand.vmem [shape: bf16[2,4,49,400], index: 0, kind: input, shape index: {}]
  %s1 = inlined_call_operand.vmem [shape: bf16[400,32], index: 1, kind: input, shape index: {}]
  %s2 = inlined_call_operand.vmem [shape: f32[1,32], index: 2, kind: input, shape index: {}]
  %s3 = inlined_call_operand.vmem [shape: f32[2,49,32], index: 3, kind: output, shape index: {}]
  %s4 = sld [smem:[#allocation0]]
  $region45: #{lenet_forward.4} parent=0
    _
  %s6 = ssub.s32 1, %s4
  %s7 = scalar_select 0, %s6, %s4
  loop: start=0, step=1, limit=4
  $region2: #{lenet_forward.4} parent=0 // loop_pre_header
    _
  $region3: #{lenet_forward.4} parent=0 // loop_header
    %s9 = sphi 0, %s13
    %p10 = scmp.ge.s32.totalorder %s9, 4
    %s19 = sphi 0, %s21
    %s22 = sphi 0, %s19
    %s23 = sphi 0, %s22
    %s39 = sphi 0, %s23
    %s43 = sphi 0, %s43
    %s45 = sphi 0, %s43
    %s46 = sphi 0, %s45
    %s60 = sphi 0, %s46
    %s64 = sphi 0, %s64
    %s66 = sphi 0, %s64
    %s67 = sphi 0, %s66
    %s81 = sphi 0, %s67
    %s87 = sphi 0, %s89
    %s90 = sphi 0, %s87
    %s91 = sphi 0, %s90
    %s107 = sphi 0, %s91
  $region4: #{lenet_forward.4} parent=0 // loop_header_branch
    %12 = sbr.rel (%p10) target = $region8
  $region5: #{lenet_forward.4} parent=0 // loop_body
    %s14 = ssub.s32 %s9, 1
    %s15 = ssub.s32 %s9, 2
    %s16 = sadd.s32 %s9, 1
    %s17 = ssub.s32 %s9, %s16
    %p18 = scmp.eq.s32.totalorder %s17, 0
    %s20 = sadd.s32 %s19, 1
    %s21 = scalar_select %p18, %s19, %s20
    %p24 = pneg %p18
    %p25 = scmp.eq.s32.totalorder %s9, 1
    %p26 = por %p24, %p25
    %p27 = scmp.ne.s32.totalorder %s19, %s22
    %p28 = scmp.eq.s32.totalorder %s9, 0
    %p29 = por %p27, %p28
    %p30 = scmp.ne.s32.totalorder %s19, %s22
    %p31 = scmp.eq.s32.totalorder %s14, 1
    %p32 = por %p30, %p31
    %p33 = scmp.ne.s32.totalorder %s22, %s23
    %p34 = scmp.eq.s32.totalorder %s14, 0
    %p35 = por %p33, %p34
    %p36 = scmp.ne.s32.totalorder %s22, %s23
    %p37 = scmp.eq.s32.totalorder %s15, 1
    %p38 = por %p36, %p37
    %p40 = scmp.ne.s32.totalorder %s23, %s39
    %p41 = scmp.eq.s32.totalorder %s15, 0
    %p42 = por %p40, %p41
    %s44 = sadd.s32 %s43, 1
    %p47 = scmp.eq.s32.totalorder %s9, 1
    %p48 = scmp.ne.s32.totalorder %s43, %s45
    %p49 = scmp.eq.s32.totalorder %s9, 0
    %p50 = por %p48, %p49
    %p51 = scmp.ne.s32.totalorder %s43, %s45
    %p52 = scmp.eq.s32.totalorder %s14, 1
    %p53 = por %p51, %p52
    %p54 = scmp.ne.s32.totalorder %s45, %s46
    %p55 = scmp.eq.s32.totalorder %s14, 0
    %p56 = por %p54, %p55
    %p57 = scmp.ne.s32.totalorder %s45, %s46
    %p58 = scmp.eq.s32.totalorder %s15, 1
    %p59 = por %p57, %p58
    %p61 = scmp.ne.s32.totalorder %s46, %s60
    %p62 = scmp.eq.s32.totalorder %s15, 0
    %p63 = por %p61, %p62
    %s65 = sadd.s32 %s64, 1
    %p68 = scmp.eq.s32.totalorder %s9, 1
    %p69 = scmp.ne.s32.totalorder %s64, %s66
    %p70 = scmp.eq.s32.totalorder %s9, 0
    %p71 = por %p69, %p70
    %p72 = scmp.ne.s32.totalorder %s64, %s66
    %p73 = scmp.eq.s32.totalorder %s14, 1
    %p74 = por %p72, %p73
    %p75 = scmp.ne.s32.totalorder %s66, %s67
    %p76 = scmp.eq.s32.totalorder %s14, 0
    %p77 = por %p75, %p76
    %p78 = scmp.ne.s32.totalorder %s66, %s67
    %p79 = scmp.eq.s32.totalorder %s15, 1
    %p80 = por %p78, %p79
    %p82 = scmp.ne.s32.totalorder %s67, %s81
    %p83 = scmp.eq.s32.totalorder %s15, 0
    %p84 = por %p82, %p83
    %s85 = ssub.s32 %s9, %s16
    %p86 = scmp.eq.s32.totalorder %s85, 0
    %s88 = sadd.s32 %s87, 1
    %s89 = scalar_select %p86, %s87, %s88
    %p92 = pneg %p86
    %p93 = scmp.eq.s32.totalorder %s9, 1
    %p94 = por %p92, %p93
    %p95 = scmp.ne.s32.totalorder %s87, %s90
    %p96 = scmp.eq.s32.totalorder %s9, 0
    %p97 = por %p95, %p96
    %p98 = scmp.ne.s32.totalorder %s87, %s90
    %p99 = scmp.eq.s32.totalorder %s14, 1
    %p100 = por %p98, %p99
    %p101 = scmp.ne.s32.totalorder %s90, %s91
    %p102 = scmp.eq.s32.totalorder %s14, 0
    %p103 = por %p101, %p102
    %p104 = scmp.ne.s32.totalorder %s90, %s91
    %p105 = scmp.eq.s32.totalorder %s15, 1
    %p106 = por %p104, %p105
    %p108 = scmp.ne.s32.totalorder %s91, %s107
    %p109 = scmp.eq.s32.totalorder %s15, 0
    %p110 = por %p108, %p109
    %p111 = scmp.le.s32.totalorder 1, %s9
    %p112 = scmp.lt.s32.totalorder %s9, 3
    %p113 = pnand %p111, %p112
    %p114 = pneg %p113
    // Predicated region
    $region9: #{lenet_forward.4} parent=5 // pred_check
      _
    $region10: #{lenet_forward.4} parent=5 // pred_check_branch
      %116 = sbr.rel (%p113) target = $region12
    $region11: #{lenet_forward.4} parent=5 // pred_region
      %s117 = ssub.s32 %s9, 1
      // Predicated region
      $region13: #{lenet_forward.4} parent=11 // pred_check
        %p118 = pneg %p56
      $region14: #{lenet_forward.4} parent=11 // pred_check_branch
        %120 = sbr.rel (%p118) target = $region16
      $region15: #{lenet_forward.4} parent=11 // pred_region
        _
      $region16: #{lenet_forward.4} parent=11 // pred_fallthru
        _
      // Predicated region
      $region17: #{lenet_forward.4} parent=11 // pred_check
        %p121 = pneg %p77
      $region18: #{lenet_forward.4} parent=11 // pred_check_branch
        %123 = sbr.rel (%p121) target = $region20
      $region19: #{lenet_forward.4} parent=11 // pred_region
        _
      $region20: #{lenet_forward.4} parent=11 // pred_fallthru
        _
    $region12: #{lenet_forward.4} parent=5 // pred_fallthru
      _
    %p124 = scmp.lt.s32.totalorder %s9, 2
    // Predicated region
    $region21: #{lenet_forward.4} parent=5 // pred_check
      %p125 = pneg %p124
    $region22: #{lenet_forward.4} parent=5 // pred_check_branch
      %127 = sbr.rel (%p125) target = $region24
    $region23: #{lenet_forward.4} parent=5 // pred_region
      // Predicated region
      $region25: #{lenet_forward.4} parent=23 // pred_check
        %p128 = pneg %p29
      $region26: #{lenet_forward.4} parent=23 // pred_check_branch
        %130 = sbr.rel (%p128) target = $region28
      $region27: #{lenet_forward.4} parent=23 // pred_region
        %p131 = scmp.lt.s32.totalorder %s9, 1
        %s132 = scalar_select %p131, %s9, 1
        %s133 = smul.addr %s132, 112
        %s134 = smul.addr %s133, 4
        %s135 = scalar_lea.vmem %s0, %s134
      $region28: #{lenet_forward.4} parent=23 // pred_fallthru
        _
    $region24: #{lenet_forward.4} parent=5 // pred_fallthru
      _
    %p136 = scmp.le.s32.totalorder 1, %s9
    %p137 = scmp.lt.s32.totalorder %s9, 3
    %p138 = pnand %p136, %p137
    %p139 = pneg %p138
    // Predicated region
    $region29: #{lenet_forward.4} parent=5 // pred_check
      _
    $region30: #{lenet_forward.4} parent=5 // pred_check_branch
      %141 = sbr.rel (%p138) target = $region32
    $region31: #{lenet_forward.4} parent=5 // pred_region
      %s142 = ssub.s32 %s9, 1
      %p143 = scmp.lt.s32.totalorder %s14, 1
      %s144 = scalar_select %p143, %s14, 1
      %s145 = smul.addr %s144, 112
      %s146 = smul.addr %s145, 4
      %s147 = scalar_lea.vmem %s0, %s146
      %p148 = pneg %p35
      %p149 = pneg %p32
      %p150 = pneg %p56
      %p151 = pneg %p53
      %p152 = pneg %p77
      %p153 = pneg %p74
      %p154 = pneg %p103
      %p155 = pneg %p100
      %p156 = scmp.lt.s32.totalorder %s14, 1
      %s157 = scalar_select %p156, %s14, 1
      %s158 = smul.addr %s157, 7
      %s159 = smul.addr %s158, 8
      %s160 = scalar_lea.vmem %s3, %s159
      %p161 = scmp.lt.s32.totalorder %s14, 1
      %s162 = scalar_select %p161, %s14, 1
      %s163 = smul.addr %s162, 112
      %s164 = smul.addr %s163, 4
      %s165 = scalar_lea.vmem %s0, %s164
      %p166 = scmp.lt.s32.totalorder %s14, 1
      %s167 = scalar_select %p166, %s14, 1
      %s168 = smul.addr %s167, 7
      %s169 = smul.addr %s168, 8
      %s170 = scalar_lea.vmem %s3, %s169
      %v172 = vld [vmem:[%s165] sm:$0xff]
      %v173 = vld [vmem:[%s165 + $0x8] sm:$0xff]
      %v174 = vld [vmem:[%s165 + $0x10] sm:$0xff]
      %v175 = vld [vmem:[%s165 + $0x18] sm:$0xff]
      %v176 = vld [vmem:[%s165 + $0x20] sm:$0xff]
      %v177 = vld [vmem:[%s165 + $0x28] sm:$0xff]
      %v178 = vld [vmem:[%s165 + $0x30] sm:$0xff]
      %v179 = vld [vmem:[%s165 + $0x38] sm:$0xff]
      %v180 = vld [vmem:[%s165 + $0x40] sm:$0xff]
      %v181 = vld [vmem:[%s165 + $0x48] sm:$0xff]
      %v182 = vld [vmem:[%s165 + $0x50] sm:$0xff]
      %v183 = vld [vmem:[%s165 + $0x58] sm:$0xff]
      %v184 = vld [vmem:[%s165 + $0x60] sm:$0x11]
      %v185 = vld [vmem:[%s165 + $0x68] sm:$0x11]
      %v186 = vld [vmem:[%s165 + $0x70] sm:$0xff]
      %v187 = vld [vmem:[%s165 + $0x78] sm:$0xff]
      %v188 = vld [vmem:[%s165 + $0x80] sm:$0xff]
      %v189 = vld [vmem:[%s165 + $0x88] sm:$0xff]
      %v190 = vld [vmem:[%s165 + $0x90] sm:$0xff]
      %v191 = vld [vmem:[%s165 + $0x98] sm:$0xff]
      %v192 = vld [vmem:[%s165 + $0xa0] sm:$0xff]
      %v193 = vld [vmem:[%s165 + $0xa8] sm:$0xff]
      %v194 = vld [vmem:[%s165 + $0xb0] sm:$0xff]
      %v195 = vld [vmem:[%s165 + $0xb8] sm:$0xff]
      %v196 = vld [vmem:[%s165 + $0xc0] sm:$0xff]
      %v197 = vld [vmem:[%s165 + $0xc8] sm:$0xff]
      %v198 = vld [vmem:[%s165 + $0xd0] sm:$0x11]
      %v199 = vld [vmem:[%s165 + $0xd8] sm:$0x11]
      %v200 = vld [vmem:[%s165 + $0xe0] sm:$0xff]
      %v201 = vld [vmem:[%s165 + $0xe8] sm:$0xff]
      %v202 = vld [vmem:[%s165 + $0xf0] sm:$0xff]
      %v203 = vld [vmem:[%s165 + $0xf8] sm:$0xff]
      %v204 = vld [vmem:[%s165 + $0x100] sm:$0xff]
      %v205 = vld [vmem:[%s165 + $0x108] sm:$0xff]
      %v206 = vld [vmem:[%s165 + $0x110] sm:$0xff]
      %v207 = vld [vmem:[%s165 + $0x118] sm:$0xff]
      %v208 = vld [vmem:[%s165 + $0x120] sm:$0xff]
      %v209 = vld [vmem:[%s165 + $0x128] sm:$0xff]
      %v210 = vld [vmem:[%s165 + $0x130] sm:$0xff]
      %v211 = vld [vmem:[%s165 + $0x138] sm:$0xff]
      %v212 = vld [vmem:[%s165 + $0x140] sm:$0x11]
      %v213 = vld [vmem:[%s165 + $0x148] sm:$0x11]
      %v214 = vld [vmem:[%s165 + $0x150] sm:$0xff]
      %v215 = vld [vmem:[%s165 + $0x158] sm:$0xff]
      %v216 = vld [vmem:[%s165 + $0x160] sm:$0xff]
      %v217 = vld [vmem:[%s165 + $0x168] sm:$0xff]
      %v218 = vld [vmem:[%s165 + $0x170] sm:$0xff]
      %v219 = vld [vmem:[%s165 + $0x178] sm:$0xff]
      %v220 = vld [vmem:[%s165 + $0x180] sm:$0xff]
      %v221 = vld [vmem:[%s165 + $0x188] sm:$0xff]
      %v222 = vld [vmem:[%s165 + $0x190] sm:$0xff]
      %v223 = vld [vmem:[%s165 + $0x198] sm:$0xff]
      %v224 = vld [vmem:[%s165 + $0x1a0] sm:$0xff]
      %v225 = vld [vmem:[%s165 + $0x1a8] sm:$0xff]
      %v226 = vld [vmem:[%s165 + $0x1b0] sm:$0x11]
      %v227 = vld [vmem:[%s165 + $0x1b8] sm:$0x11]
      %v285 = vunpack.c.l.s4 1966171168
      %v286 = vunpack.c.0.s8 %v285
      %v287 = vlaneseq
      %v288 = vshrl.u32 %v287, 7
      %v289 = vsub.s32 %v286, %v288
      %v290 = vrot.slane %v172, %v289
      %v292 = vunpack.c.l.s4 1966171168
      %v293 = vunpack.c.0.s8 %v292
      %v294 = vlaneseq
      %v295 = vshrl.u32 %v294, 7
      %v296 = vsub.s32 %v293, %v295
      %v297 = vrot.slane %v173, %v296
      %v298 = vcombine.low %v290, %v297
      %v299 = vcombine.high %v290, %v297
      %v301 = vunpack.c.l.s4 1966171168
      %v302 = vunpack.c.0.s8 %v301
      %v303 = vlaneseq
      %v304 = vshrl.u32 %v303, 7
      %v305 = vsub.s32 %v302, %v304
      %v306 = vrot.slane %v298, %v305
      %v308 = vunpack.c.l.s4 1966171168
      %v309 = vunpack.c.0.s8 %v308
      %v310 = vlaneseq
      %v311 = vshrl.u32 %v310, 7
      %v312 = vsub.s32 %v309, %v311
      %v313 = vrot.slane %v299, %v312
      %v314 = vcombine.high %v306, %v306
      %v315 = vcombine.high %v313, %v313
      %v317 = vunpack.c.l.s4 1966171168
      %v318 = vunpack.c.0.s8 %v317
      %v319 = vlaneseq
      %v320 = vshrl.u32 %v319, 7
      %v321 = vsub.s32 %v318, %v320
      %v322 = vrot.slane %v174, %v321
      %v324 = vunpack.c.l.s4 1966171168
      %v325 = vunpack.c.0.s8 %v324
      %v326 = vlaneseq
      %v327 = vshrl.u32 %v326, 7
      %v328 = vsub.s32 %v325, %v327
      %v329 = vrot.slane %v175, %v328
      %v330 = vcombine.low %v322, %v329
      %v331 = vcombine.high %v322, %v329
      %v333 = vunpack.c.l.s4 1966171168
      %v334 = vunpack.c.0.s8 %v333
      %v335 = vlaneseq
      %v336 = vshrl.u32 %v335, 7
      %v337 = vsub.s32 %v334, %v336
      %v338 = vrot.slane %v330, %v337
      %v340 = vunpack.c.l.s4 1966171168
      %v341 = vunpack.c.0.s8 %v340
      %v342 = vlaneseq
      %v343 = vshrl.u32 %v342, 7
      %v344 = vsub.s32 %v341, %v343
      %v345 = vrot.slane %v331, %v344
      %v346 = vcombine.high %v338, %v338
      %v347 = vcombine.high %v345, %v345
      %v349 = vunpack.c.l.s4 1966171168
      %v350 = vunpack.c.0.s8 %v349
      %v351 = vlaneseq
      %v352 = vshrl.u32 %v351, 7
      %v353 = vsub.s32 %v350, %v352
      %v354 = vrot.slane %v176, %v353
      %v356 = vunpack.c.l.s4 1966171168
      %v357 = vunpack.c.0.s8 %v356
      %v358 = vlaneseq
      %v359 = vshrl.u32 %v358, 7
      %v360 = vsub.s32 %v357, %v359
      %v361 = vrot.slane %v177, %v360
      %v362 = vcombine.low %v354, %v361
      %v363 = vcombine.high %v354, %v361
      %v365 = vunpack.c.l.s4 1966171168
      %v366 = vunpack.c.0.s8 %v365
      %v367 = vlaneseq
      %v368 = vshrl.u32 %v367, 7
      %v369 = vsub.s32 %v366, %v368
      %v370 = vrot.slane %v362, %v369
      %v372 = vunpack.c.l.s4 1966171168
      %v373 = vunpack.c.0.s8 %v372
      %v374 = vlaneseq
      %v375 = vshrl.u32 %v374, 7
      %v376 = vsub.s32 %v373, %v375
      %v377 = vrot.slane %v363, %v376
      %v378 = vcombine.high %v370, %v370
      %v379 = vcombine.high %v377, %v377
      %v381 = vunpack.c.l.s4 1966171168
      %v382 = vunpack.c.0.s8 %v381
      %v383 = vlaneseq
      %v384 = vshrl.u32 %v383, 7
      %v385 = vsub.s32 %v382, %v384
      %v386 = vrot.slane %v178, %v385
      %v388 = vunpack.c.l.s4 1966171168
      %v389 = vunpack.c.0.s8 %v388
      %v390 = vlaneseq
      %v391 = vshrl.u32 %v390, 7
      %v392 = vsub.s32 %v389, %v391
      %v393 = vrot.slane %v179, %v392
      %v394 = vcombine.low %v386, %v393
      %v395 = vcombine.high %v386, %v393
      %v397 = vunpack.c.l.s4 1966171168
      %v398 = vunpack.c.0.s8 %v397
      %v399 = vlaneseq
      %v400 = vshrl.u32 %v399, 7
      %v401 = vsub.s32 %v398, %v400
      %v402 = vrot.slane %v394, %v401
      %v404 = vunpack.c.l.s4 1966171168
      %v405 = vunpack.c.0.s8 %v404
      %v406 = vlaneseq
      %v407 = vshrl.u32 %v406, 7
      %v408 = vsub.s32 %v405, %v407
      %v409 = vrot.slane %v395, %v408
      %v410 = vcombine.high %v402, %v402
      %v411 = vcombine.high %v409, %v409
      %v413 = vunpack.c.l.s4 1966171168
      %v414 = vunpack.c.0.s8 %v413
      %v415 = vlaneseq
      %v416 = vshrl.u32 %v415, 7
      %v417 = vsub.s32 %v414, %v416
      %v418 = vrot.slane %v180, %v417
      %v420 = vunpack.c.l.s4 1966171168
      %v421 = vunpack.c.0.s8 %v420
      %v422 = vlaneseq
      %v423 = vshrl.u32 %v422, 7
      %v424 = vsub.s32 %v421, %v423
      %v425 = vrot.slane %v181, %v424
      %v426 = vcombine.low %v418, %v425
      %v427 = vcombine.high %v418, %v425
      %v429 = vunpack.c.l.s4 1966171168
      %v430 = vunpack.c.0.s8 %v429
      %v431 = vlaneseq
      %v432 = vshrl.u32 %v431, 7
      %v433 = vsub.s32 %v430, %v432
      %v434 = vrot.slane %v426, %v433
      %v436 = vunpack.c.l.s4 1966171168
      %v437 = vunpack.c.0.s8 %v436
      %v438 = vlaneseq
      %v439 = vshrl.u32 %v438, 7
      %v440 = vsub.s32 %v437, %v439
      %v441 = vrot.slane %v427, %v440
      %v442 = vcombine.high %v434, %v434
      %v443 = vcombine.high %v441, %v441
      %v445 = vunpack.c.l.s4 1966171168
      %v446 = vunpack.c.0.s8 %v445
      %v447 = vlaneseq
      %v448 = vshrl.u32 %v447, 7
      %v449 = vsub.s32 %v446, %v448
      %v450 = vrot.slane %v182, %v449
      %v452 = vunpack.c.l.s4 1966171168
      %v453 = vunpack.c.0.s8 %v452
      %v454 = vlaneseq
      %v455 = vshrl.u32 %v454, 7
      %v456 = vsub.s32 %v453, %v455
      %v457 = vrot.slane %v183, %v456
      %v458 = vcombine.low %v450, %v457
      %v459 = vcombine.high %v450, %v457
      %v461 = vunpack.c.l.s4 1966171168
      %v462 = vunpack.c.0.s8 %v461
      %v463 = vlaneseq
      %v464 = vshrl.u32 %v463, 7
      %v465 = vsub.s32 %v462, %v464
      %v466 = vrot.slane %v458, %v465
      %v468 = vunpack.c.l.s4 1966171168
      %v469 = vunpack.c.0.s8 %v468
      %v470 = vlaneseq
      %v471 = vshrl.u32 %v470, 7
      %v472 = vsub.s32 %v469, %v471
      %v473 = vrot.slane %v459, %v472
      %v474 = vcombine.high %v466, %v466
      %v475 = vcombine.high %v473, %v473
      %v477 = vunpack.c.l.s4 1966171168
      %v478 = vunpack.c.0.s8 %v477
      %v479 = vlaneseq
      %v480 = vshrl.u32 %v479, 7
      %v481 = vsub.s32 %v478, %v480
      %v482 = vrot.slane %v184, %v481
      %v484 = vunpack.c.l.s4 1966171168
      %v485 = vunpack.c.0.s8 %v484
      %v486 = vlaneseq
      %v487 = vshrl.u32 %v486, 7
      %v488 = vsub.s32 %v485, %v487
      %v489 = vrot.slane %v185, %v488
      %v490 = vcombine.low %v482, %v489
      %v492 = vunpack.c.l.s4 1966171168
      %v493 = vunpack.c.0.s8 %v492
      %v494 = vlaneseq
      %v495 = vshrl.u32 %v494, 7
      %v496 = vsub.s32 %v493, %v495
      %v497 = vrot.slane %v490, %v496
      %v499 = vunpack.c.l.s4 1966171168
      %v500 = vunpack.c.0.s8 %v499
      %v501 = vlaneseq
      %v502 = vshrl.u32 %v501, 7
      %v503 = vsub.s32 %v500, %v502
      %v504 = vrot.slane %v186, %v503
      %v506 = vunpack.c.l.s4 1966171168
      %v507 = vunpack.c.0.s8 %v506
      %v508 = vlaneseq
      %v509 = vshrl.u32 %v508, 7
      %v510 = vsub.s32 %v507, %v509
      %v511 = vrot.slane %v187, %v510
      %v512 = vcombine.low %v504, %v511
      %v513 = vcombine.high %v504, %v511
      %v515 = vunpack.c.l.s4 1966171168
      %v516 = vunpack.c.0.s8 %v515
      %v517 = vlaneseq
      %v518 = vshrl.u32 %v517, 7
      %v519 = vsub.s32 %v516, %v518
      %v520 = vrot.slane %v512, %v519
      %v522 = vunpack.c.l.s4 1966171168
      %v523 = vunpack.c.0.s8 %v522
      %v524 = vlaneseq
      %v525 = vshrl.u32 %v524, 7
      %v526 = vsub.s32 %v523, %v525
      %v527 = vrot.slane %v513, %v526
      %v528 = vcombine.high %v520, %v520
      %v529 = vcombine.high %v527, %v527
      %v531 = vunpack.c.l.s4 1966171168
      %v532 = vunpack.c.0.s8 %v531
      %v533 = vlaneseq
      %v534 = vshrl.u32 %v533, 7
      %v535 = vsub.s32 %v532, %v534
      %v536 = vrot.slane %v188, %v535
      %v538 = vunpack.c.l.s4 1966171168
      %v539 = vunpack.c.0.s8 %v538
      %v540 = vlaneseq
      %v541 = vshrl.u32 %v540, 7
      %v542 = vsub.s32 %v539, %v541
      %v543 = vrot.slane %v189, %v542
      %v544 = vcombine.low %v536, %v543
      %v545 = vcombine.high %v536, %v543
      %v547 = vunpack.c.l.s4 1966171168
      %v548 = vunpack.c.0.s8 %v547
      %v549 = vlaneseq
      %v550 = vshrl.u32 %v549, 7
      %v551 = vsub.s32 %v548, %v550
      %v552 = vrot.slane %v544, %v551
      %v554 = vunpack.c.l.s4 1966171168
      %v555 = vunpack.c.0.s8 %v554
      %v556 = vlaneseq
      %v557 = vshrl.u32 %v556, 7
      %v558 = vsub.s32 %v555, %v557
      %v559 = vrot.slane %v545, %v558
      %v560 = vcombine.high %v552, %v552
      %v561 = vcombine.high %v559, %v559
      %v563 = vunpack.c.l.s4 1966171168
      %v564 = vunpack.c.0.s8 %v563
      %v565 = vlaneseq
      %v566 = vshrl.u32 %v565, 7
      %v567 = vsub.s32 %v564, %v566
      %v568 = vrot.slane %v190, %v567
      %v570 = vunpack.c.l.s4 1966171168
      %v571 = vunpack.c.0.s8 %v570
      %v572 = vlaneseq
      %v573 = vshrl.u32 %v572, 7
      %v574 = vsub.s32 %v571, %v573
      %v575 = vrot.slane %v191, %v574
      %v576 = vcombine.low %v568, %v575
      %v577 = vcombine.high %v568, %v575
      %v579 = vunpack.c.l.s4 1966171168
      %v580 = vunpack.c.0.s8 %v579
      %v581 = vlaneseq
      %v582 = vshrl.u32 %v581, 7
      %v583 = vsub.s32 %v580, %v582
      %v584 = vrot.slane %v576, %v583
      %v586 = vunpack.c.l.s4 1966171168
      %v587 = vunpack.c.0.s8 %v586
      %v588 = vlaneseq
      %v589 = vshrl.u32 %v588, 7
      %v590 = vsub.s32 %v587, %v589
      %v591 = vrot.slane %v577, %v590
      %v592 = vcombine.high %v584, %v584
      %v593 = vcombine.high %v591, %v591
      %v595 = vunpack.c.l.s4 1966171168
      %v596 = vunpack.c.0.s8 %v595
      %v597 = vlaneseq
      %v598 = vshrl.u32 %v597, 7
      %v599 = vsub.s32 %v596, %v598
      %v600 = vrot.slane %v192, %v599
      %v602 = vunpack.c.l.s4 1966171168
      %v603 = vunpack.c.0.s8 %v602
      %v604 = vlaneseq
      %v605 = vshrl.u32 %v604, 7
      %v606 = vsub.s32 %v603, %v605
      %v607 = vrot.slane %v193, %v606
      %v608 = vcombine.low %v600, %v607
      %v609 = vcombine.high %v600, %v607
      %v611 = vunpack.c.l.s4 1966171168
      %v612 = vunpack.c.0.s8 %v611
      %v613 = vlaneseq
      %v614 = vshrl.u32 %v613, 7
      %v615 = vsub.s32 %v612, %v614
      %v616 = vrot.slane %v608, %v615
      %v618 = vunpack.c.l.s4 1966171168
      %v619 = vunpack.c.0.s8 %v618
      %v620 = vlaneseq
      %v621 = vshrl.u32 %v620, 7
      %v622 = vsub.s32 %v619, %v621
      %v623 = vrot.slane %v609, %v622
      %v624 = vcombine.high %v616, %v616
      %v625 = vcombine.high %v623, %v623
      %v627 = vunpack.c.l.s4 1966171168
      %v628 = vunpack.c.0.s8 %v627
      %v629 = vlaneseq
      %v630 = vshrl.u32 %v629, 7
      %v631 = vsub.s32 %v628, %v630
      %v632 = vrot.slane %v194, %v631
      %v634 = vunpack.c.l.s4 1966171168
      %v635 = vunpack.c.0.s8 %v634
      %v636 = vlaneseq
      %v637 = vshrl.u32 %v636, 7
      %v638 = vsub.s32 %v635, %v637
      %v639 = vrot.slane %v195, %v638
      %v640 = vcombine.low %v632, %v639
      %v641 = vcombine.high %v632, %v639
      %v643 = vunpack.c.l.s4 1966171168
      %v644 = vunpack.c.0.s8 %v643
      %v645 = vlaneseq
      %v646 = vshrl.u32 %v645, 7
      %v647 = vsub.s32 %v644, %v646
      %v648 = vrot.slane %v640, %v647
      %v650 = vunpack.c.l.s4 1966171168
      %v651 = vunpack.c.0.s8 %v650
      %v652 = vlaneseq
      %v653 = vshrl.u32 %v652, 7
      %v654 = vsub.s32 %v651, %v653
      %v655 = vrot.slane %v641, %v654
      %v656 = vcombine.high %v648, %v648
      %v657 = vcombine.high %v655, %v655
      %v659 = vunpack.c.l.s4 1966171168
      %v660 = vunpack.c.0.s8 %v659
      %v661 = vlaneseq
      %v662 = vshrl.u32 %v661, 7
      %v663 = vsub.s32 %v660, %v662
      %v664 = vrot.slane %v196, %v663
      %v666 = vunpack.c.l.s4 1966171168
      %v667 = vunpack.c.0.s8 %v666
      %v668 = vlaneseq
      %v669 = vshrl.u32 %v668, 7
      %v670 = vsub.s32 %v667, %v669
      %v671 = vrot.slane %v197, %v670
      %v672 = vcombine.low %v664, %v671
      %v673 = vcombine.high %v664, %v671
      %v675 = vunpack.c.l.s4 1966171168
      %v676 = vunpack.c.0.s8 %v675
      %v677 = vlaneseq
      %v678 = vshrl.u32 %v677, 7
      %v679 = vsub.s32 %v676, %v678
      %v680 = vrot.slane %v672, %v679
      %v682 = vunpack.c.l.s4 1966171168
      %v683 = vunpack.c.0.s8 %v682
      %v684 = vlaneseq
      %v685 = vshrl.u32 %v684, 7
      %v686 = vsub.s32 %v683, %v685
      %v687 = vrot.slane %v673, %v686
      %v688 = vcombine.high %v680, %v680
      %v689 = vcombine.high %v687, %v687
      %v691 = vunpack.c.l.s4 1966171168
      %v692 = vunpack.c.0.s8 %v691
      %v693 = vlaneseq
      %v694 = vshrl.u32 %v693, 7
      %v695 = vsub.s32 %v692, %v694
      %v696 = vrot.slane %v198, %v695
      %v698 = vunpack.c.l.s4 1966171168
      %v699 = vunpack.c.0.s8 %v698
      %v700 = vlaneseq
      %v701 = vshrl.u32 %v700, 7
      %v702 = vsub.s32 %v699, %v701
      %v703 = vrot.slane %v199, %v702
      %v704 = vcombine.low %v696, %v703
      %v706 = vunpack.c.l.s4 1966171168
      %v707 = vunpack.c.0.s8 %v706
      %v708 = vlaneseq
      %v709 = vshrl.u32 %v708, 7
      %v710 = vsub.s32 %v707, %v709
      %v711 = vrot.slane %v704, %v710
      %v713 = vunpack.c.l.s4 1966171168
      %v714 = vunpack.c.0.s8 %v713
      %v715 = vlaneseq
      %v716 = vshrl.u32 %v715, 7
      %v717 = vsub.s32 %v714, %v716
      %v718 = vrot.slane %v200, %v717
      %v720 = vunpack.c.l.s4 1966171168
      %v721 = vunpack.c.0.s8 %v720
      %v722 = vlaneseq
      %v723 = vshrl.u32 %v722, 7
      %v724 = vsub.s32 %v721, %v723
      %v725 = vrot.slane %v201, %v724
      %v726 = vcombine.low %v718, %v725
      %v727 = vcombine.high %v718, %v725
      %v729 = vunpack.c.l.s4 1966171168
      %v730 = vunpack.c.0.s8 %v729
      %v731 = vlaneseq
      %v732 = vshrl.u32 %v731, 7
      %v733 = vsub.s32 %v730, %v732
      %v734 = vrot.slane %v726, %v733
      %v736 = vunpack.c.l.s4 1966171168
      %v737 = vunpack.c.0.s8 %v736
      %v738 = vlaneseq
      %v739 = vshrl.u32 %v738, 7
      %v740 = vsub.s32 %v737, %v739
      %v741 = vrot.slane %v727, %v740
      %v742 = vcombine.high %v734, %v734
      %v743 = vcombine.high %v741, %v741
      %v745 = vunpack.c.l.s4 1966171168
      %v746 = vunpack.c.0.s8 %v745
      %v747 = vlaneseq
      %v748 = vshrl.u32 %v747, 7
      %v749 = vsub.s32 %v746, %v748
      %v750 = vrot.slane %v202, %v749
      %v752 = vunpack.c.l.s4 1966171168
      %v753 = vunpack.c.0.s8 %v752
      %v754 = vlaneseq
      %v755 = vshrl.u32 %v754, 7
      %v756 = vsub.s32 %v753, %v755
      %v757 = vrot.slane %v203, %v756
      %v758 = vcombine.low %v750, %v757
      %v759 = vcombine.high %v750, %v757
      %v761 = vunpack.c.l.s4 1966171168
      %v762 = vunpack.c.0.s8 %v761
      %v763 = vlaneseq
      %v764 = vshrl.u32 %v763, 7
      %v765 = vsub.s32 %v762, %v764
      %v766 = vrot.slane %v758, %v765
      %v768 = vunpack.c.l.s4 1966171168
      %v769 = vunpack.c.0.s8 %v768
      %v770 = vlaneseq
      %v771 = vshrl.u32 %v770, 7
      %v772 = vsub.s32 %v769, %v771
      %v773 = vrot.slane %v759, %v772
      %v774 = vcombine.high %v766, %v766
      %v775 = vcombine.high %v773, %v773
      %v777 = vunpack.c.l.s4 1966171168
      %v778 = vunpack.c.0.s8 %v777
      %v779 = vlaneseq
      %v780 = vshrl.u32 %v779, 7
      %v781 = vsub.s32 %v778, %v780
      %v782 = vrot.slane %v204, %v781
      %v784 = vunpack.c.l.s4 1966171168
      %v785 = vunpack.c.0.s8 %v784
      %v786 = vlaneseq
      %v787 = vshrl.u32 %v786, 7
      %v788 = vsub.s32 %v785, %v787
      %v789 = vrot.slane %v205, %v788
      %v790 = vcombine.low %v782, %v789
      %v791 = vcombine.high %v782, %v789
      %v793 = vunpack.c.l.s4 1966171168
      %v794 = vunpack.c.0.s8 %v793
      %v795 = vlaneseq
      %v796 = vshrl.u32 %v795, 7
      %v797 = vsub.s32 %v794, %v796
      %v798 = vrot.slane %v790, %v797
      %v800 = vunpack.c.l.s4 1966171168
      %v801 = vunpack.c.0.s8 %v800
      %v802 = vlaneseq
      %v803 = vshrl.u32 %v802, 7
      %v804 = vsub.s32 %v801, %v803
      %v805 = vrot.slane %v791, %v804
      %v806 = vcombine.high %v798, %v798
      %v807 = vcombine.high %v805, %v805
      %v809 = vunpack.c.l.s4 1966171168
      %v810 = vunpack.c.0.s8 %v809
      %v811 = vlaneseq
      %v812 = vshrl.u32 %v811, 7
      %v813 = vsub.s32 %v810, %v812
      %v814 = vrot.slane %v206, %v813
      %v816 = vunpack.c.l.s4 1966171168
      %v817 = vunpack.c.0.s8 %v816
      %v818 = vlaneseq
      %v819 = vshrl.u32 %v818, 7
      %v820 = vsub.s32 %v817, %v819
      %v821 = vrot.slane %v207, %v820
      %v822 = vcombine.low %v814, %v821
      %v823 = vcombine.high %v814, %v821
      %v825 = vunpack.c.l.s4 1966171168
      %v826 = vunpack.c.0.s8 %v825
      %v827 = vlaneseq
      %v828 = vshrl.u32 %v827, 7
      %v829 = vsub.s32 %v826, %v828
      %v830 = vrot.slane %v822, %v829
      %v832 = vunpack.c.l.s4 1966171168
      %v833 = vunpack.c.0.s8 %v832
      %v834 = vlaneseq
      %v835 = vshrl.u32 %v834, 7
      %v836 = vsub.s32 %v833, %v835
      %v837 = vrot.slane %v823, %v836
      %v838 = vcombine.high %v830, %v830
      %v839 = vcombine.high %v837, %v837
      %v841 = vunpack.c.l.s4 1966171168
      %v842 = vunpack.c.0.s8 %v841
      %v843 = vlaneseq
      %v844 = vshrl.u32 %v843, 7
      %v845 = vsub.s32 %v842, %v844
      %v846 = vrot.slane %v208, %v845
      %v848 = vunpack.c.l.s4 1966171168
      %v849 = vunpack.c.0.s8 %v848
      %v850 = vlaneseq
      %v851 = vshrl.u32 %v850, 7
      %v852 = vsub.s32 %v849, %v851
      %v853 = vrot.slane %v209, %v852
      %v854 = vcombine.low %v846, %v853
      %v855 = vcombine.high %v846, %v853
      %v857 = vunpack.c.l.s4 1966171168
      %v858 = vunpack.c.0.s8 %v857
      %v859 = vlaneseq
      %v860 = vshrl.u32 %v859, 7
      %v861 = vsub.s32 %v858, %v860
      %v862 = vrot.slane %v854, %v861
      %v864 = vunpack.c.l.s4 1966171168
      %v865 = vunpack.c.0.s8 %v864
      %v866 = vlaneseq
      %v867 = vshrl.u32 %v866, 7
      %v868 = vsub.s32 %v865, %v867
      %v869 = vrot.slane %v855, %v868
      %v870 = vcombine.high %v862, %v862
      %v871 = vcombine.high %v869, %v869
      %v873 = vunpack.c.l.s4 1966171168
      %v874 = vunpack.c.0.s8 %v873
      %v875 = vlaneseq
      %v876 = vshrl.u32 %v875, 7
      %v877 = vsub.s32 %v874, %v876
      %v878 = vrot.slane %v210, %v877
      %v880 = vunpack.c.l.s4 1966171168
      %v881 = vunpack.c.0.s8 %v880
      %v882 = vlaneseq
      %v883 = vshrl.u32 %v882, 7
      %v884 = vsub.s32 %v881, %v883
      %v885 = vrot.slane %v211, %v884
      %v886 = vcombine.low %v878, %v885
      %v887 = vcombine.high %v878, %v885
      %v889 = vunpack.c.l.s4 1966171168
      %v890 = vunpack.c.0.s8 %v889
      %v891 = vlaneseq
      %v892 = vshrl.u32 %v891, 7
      %v893 = vsub.s32 %v890, %v892
      %v894 = vrot.slane %v886, %v893
      %v896 = vunpack.c.l.s4 1966171168
      %v897 = vunpack.c.0.s8 %v896
      %v898 = vlaneseq
      %v899 = vshrl.u32 %v898, 7
      %v900 = vsub.s32 %v897, %v899
      %v901 = vrot.slane %v887, %v900
      %v902 = vcombine.high %v894, %v894
      %v903 = vcombine.high %v901, %v901
      %v905 = vunpack.c.l.s4 1966171168
      %v906 = vunpack.c.0.s8 %v905
      %v907 = vlaneseq
      %v908 = vshrl.u32 %v907, 7
      %v909 = vsub.s32 %v906, %v908
      %v910 = vrot.slane %v212, %v909
      %v912 = vunpack.c.l.s4 1966171168
      %v913 = vunpack.c.0.s8 %v912
      %v914 = vlaneseq
      %v915 = vshrl.u32 %v914, 7
      %v916 = vsub.s32 %v913, %v915
      %v917 = vrot.slane %v213, %v916
      %v918 = vcombine.low %v910, %v917
      %v920 = vunpack.c.l.s4 1966171168
      %v921 = vunpack.c.0.s8 %v920
      %v922 = vlaneseq
      %v923 = vshrl.u32 %v922, 7
      %v924 = vsub.s32 %v921, %v923
      %v925 = vrot.slane %v918, %v924
      %v927 = vunpack.c.l.s4 1966171168
      %v928 = vunpack.c.0.s8 %v927
      %v929 = vlaneseq
      %v930 = vshrl.u32 %v929, 7
      %v931 = vsub.s32 %v928, %v930
      %v932 = vrot.slane %v214, %v931
      %v934 = vunpack.c.l.s4 1966171168
      %v935 = vunpack.c.0.s8 %v934
      %v936 = vlaneseq
      %v937 = vshrl.u32 %v936, 7
      %v938 = vsub.s32 %v935, %v937
      %v939 = vrot.slane %v215, %v938
      %v940 = vcombine.low %v932, %v939
      %v941 = vcombine.high %v932, %v939
      %v943 = vunpack.c.l.s4 1966171168
      %v944 = vunpack.c.0.s8 %v943
      %v945 = vlaneseq
      %v946 = vshrl.u32 %v945, 7
      %v947 = vsub.s32 %v944, %v946
      %v948 = vrot.slane %v940, %v947
      %v950 = vunpack.c.l.s4 1966171168
      %v951 = vunpack.c.0.s8 %v950
      %v952 = vlaneseq
      %v953 = vshrl.u32 %v952, 7
      %v954 = vsub.s32 %v951, %v953
      %v955 = vrot.slane %v941, %v954
      %v956 = vcombine.high %v948, %v948
      %v957 = vcombine.high %v955, %v955
      %v959 = vunpack.c.l.s4 1966171168
      %v960 = vunpack.c.0.s8 %v959
      %v961 = vlaneseq
      %v962 = vshrl.u32 %v961, 7
      %v963 = vsub.s32 %v960, %v962
      %v964 = vrot.slane %v216, %v963
      %v966 = vunpack.c.l.s4 1966171168
      %v967 = vunpack.c.0.s8 %v966
      %v968 = vlaneseq
      %v969 = vshrl.u32 %v968, 7
      %v970 = vsub.s32 %v967, %v969
      %v971 = vrot.slane %v217, %v970
      %v972 = vcombine.low %v964, %v971
      %v973 = vcombine.high %v964, %v971
      %v975 = vunpack.c.l.s4 1966171168
      %v976 = vunpack.c.0.s8 %v975
      %v977 = vlaneseq
      %v978 = vshrl.u32 %v977, 7
      %v979 = vsub.s32 %v976, %v978
      %v980 = vrot.slane %v972, %v979
      %v982 = vunpack.c.l.s4 1966171168
      %v983 = vunpack.c.0.s8 %v982
      %v984 = vlaneseq
      %v985 = vshrl.u32 %v984, 7
      %v986 = vsub.s32 %v983, %v985
      %v987 = vrot.slane %v973, %v986
      %v988 = vcombine.high %v980, %v980
      %v989 = vcombine.high %v987, %v987
      %v991 = vunpack.c.l.s4 1966171168
      %v992 = vunpack.c.0.s8 %v991
      %v993 = vlaneseq
      %v994 = vshrl.u32 %v993, 7
      %v995 = vsub.s32 %v992, %v994
      %v996 = vrot.slane %v218, %v995
      %v998 = vunpack.c.l.s4 1966171168
      %v999 = vunpack.c.0.s8 %v998
      %v1000 = vlaneseq
      %v1001 = vshrl.u32 %v1000, 7
      %v1002 = vsub.s32 %v999, %v1001
      %v1003 = vrot.slane %v219, %v1002
      %v1004 = vcombine.low %v996, %v1003
      %v1005 = vcombine.high %v996, %v1003
      %v1007 = vunpack.c.l.s4 1966171168
      %v1008 = vunpack.c.0.s8 %v1007
      %v1009 = vlaneseq
      %v1010 = vshrl.u32 %v1009, 7
      %v1011 = vsub.s32 %v1008, %v1010
      %v1012 = vrot.slane %v1004, %v1011
      %v1014 = vunpack.c.l.s4 1966171168
      %v1015 = vunpack.c.0.s8 %v1014
      %v1016 = vlaneseq
      %v1017 = vshrl.u32 %v1016, 7
      %v1018 = vsub.s32 %v1015, %v1017
      %v1019 = vrot.slane %v1005, %v1018
      %v1020 = vcombine.high %v1012, %v1012
      %v1021 = vcombine.high %v1019, %v1019
      %v1023 = vunpack.c.l.s4 1966171168
      %v1024 = vunpack.c.0.s8 %v1023
      %v1025 = vlaneseq
      %v1026 = vshrl.u32 %v1025, 7
      %v1027 = vsub.s32 %v1024, %v1026
      %v1028 = vrot.slane %v220, %v1027
      %v1030 = vunpack.c.l.s4 1966171168
      %v1031 = vunpack.c.0.s8 %v1030
      %v1032 = vlaneseq
      %v1033 = vshrl.u32 %v1032, 7
      %v1034 = vsub.s32 %v1031, %v1033
      %v1035 = vrot.slane %v221, %v1034
      %v1036 = vcombine.low %v1028, %v1035
      %v1037 = vcombine.high %v1028, %v1035
      %v1039 = vunpack.c.l.s4 1966171168
      %v1040 = vunpack.c.0.s8 %v1039
      %v1041 = vlaneseq
      %v1042 = vshrl.u32 %v1041, 7
      %v1043 = vsub.s32 %v1040, %v1042
      %v1044 = vrot.slane %v1036, %v1043
      %v1046 = vunpack.c.l.s4 1966171168
      %v1047 = vunpack.c.0.s8 %v1046
      %v1048 = vlaneseq
      %v1049 = vshrl.u32 %v1048, 7
      %v1050 = vsub.s32 %v1047, %v1049
      %v1051 = vrot.slane %v1037, %v1050
      %v1052 = vcombine.high %v1044, %v1044
      %v1053 = vcombine.high %v1051, %v1051
      %v1055 = vunpack.c.l.s4 1966171168
      %v1056 = vunpack.c.0.s8 %v1055
      %v1057 = vlaneseq
      %v1058 = vshrl.u32 %v1057, 7
      %v1059 = vsub.s32 %v1056, %v1058
      %v1060 = vrot.slane %v222, %v1059
      %v1062 = vunpack.c.l.s4 1966171168
      %v1063 = vunpack.c.0.s8 %v1062
      %v1064 = vlaneseq
      %v1065 = vshrl.u32 %v1064, 7
      %v1066 = vsub.s32 %v1063, %v1065
      %v1067 = vrot.slane %v223, %v1066
      %v1068 = vcombine.low %v1060, %v1067
      %v1069 = vcombine.high %v1060, %v1067
      %v1071 = vunpack.c.l.s4 1966171168
      %v1072 = vunpack.c.0.s8 %v1071
      %v1073 = vlaneseq
      %v1074 = vshrl.u32 %v1073, 7
      %v1075 = vsub.s32 %v1072, %v1074
      %v1076 = vrot.slane %v1068, %v1075
      %v1078 = vunpack.c.l.s4 1966171168
      %v1079 = vunpack.c.0.s8 %v1078
      %v1080 = vlaneseq
      %v1081 = vshrl.u32 %v1080, 7
      %v1082 = vsub.s32 %v1079, %v1081
      %v1083 = vrot.slane %v1069, %v1082
      %v1084 = vcombine.high %v1076, %v1076
      %v1085 = vcombine.high %v1083, %v1083
      %v1087 = vunpack.c.l.s4 1966171168
      %v1088 = vunpack.c.0.s8 %v1087
      %v1089 = vlaneseq
      %v1090 = vshrl.u32 %v1089, 7
      %v1091 = vsub.s32 %v1088, %v1090
      %v1092 = vrot.slane %v224, %v1091
      %v1094 = vunpack.c.l.s4 1966171168
      %v1095 = vunpack.c.0.s8 %v1094
      %v1096 = vlaneseq
      %v1097 = vshrl.u32 %v1096, 7
      %v1098 = vsub.s32 %v1095, %v1097
      %v1099 = vrot.slane %v225, %v1098
      %v1100 = vcombine.low %v1092, %v1099
      %v1101 = vcombine.high %v1092, %v1099
      %v1103 = vunpack.c.l.s4 1966171168
      %v1104 = vunpack.c.0.s8 %v1103
      %v1105 = vlaneseq
      %v1106 = vshrl.u32 %v1105, 7
      %v1107 = vsub.s32 %v1104, %v1106
      %v1108 = vrot.slane %v1100, %v1107
      %v1110 = vunpack.c.l.s4 1966171168
      %v1111 = vunpack.c.0.s8 %v1110
      %v1112 = vlaneseq
      %v1113 = vshrl.u32 %v1112, 7
      %v1114 = vsub.s32 %v1111, %v1113
      %v1115 = vrot.slane %v1101, %v1114
      %v1116 = vcombine.high %v1108, %v1108
      %v1117 = vcombine.high %v1115, %v1115
      %v1119 = vunpack.c.l.s4 1966171168
      %v1120 = vunpack.c.0.s8 %v1119
      %v1121 = vlaneseq
      %v1122 = vshrl.u32 %v1121, 7
      %v1123 = vsub.s32 %v1120, %v1122
      %v1124 = vrot.slane %v226, %v1123
      %v1126 = vunpack.c.l.s4 1966171168
      %v1127 = vunpack.c.0.s8 %v1126
      %v1128 = vlaneseq
      %v1129 = vshrl.u32 %v1128, 7
      %v1130 = vsub.s32 %v1127, %v1129
      %v1131 = vrot.slane %v227, %v1130
      %v1132 = vcombine.low %v1124, %v1131
      %v1134 = vunpack.c.l.s4 1966171168
      %v1135 = vunpack.c.0.s8 %v1134
      %v1136 = vlaneseq
      %v1137 = vshrl.u32 %v1136, 7
      %v1138 = vsub.s32 %v1135, %v1137
      %v1139 = vrot.slane %v1132, %v1138
      %v1140 = vunpack.i.l.s16 %v306
      %v1141 = vunpack.i.h.s16 %v306
      %v1142 = vunpack.i.l.s16 %v313
      %v1143 = vunpack.i.h.s16 %v313
      %v1144 = vunpack.i.l.s16 %v314
      %v1145 = vunpack.i.h.s16 %v314
      %v1146 = vunpack.i.l.s16 %v315
      %v1147 = vunpack.i.h.s16 %v315
      %v1148 = vunpack.i.l.s16 %v338
      %v1149 = vunpack.i.h.s16 %v338
      %v1150 = vunpack.i.l.s16 %v345
      %v1151 = vunpack.i.h.s16 %v345
      %v1152 = vunpack.i.l.s16 %v346
      %v1153 = vunpack.i.h.s16 %v346
      %v1154 = vunpack.i.l.s16 %v347
      %v1155 = vunpack.i.h.s16 %v347
      %v1156 = vunpack.i.l.s16 %v370
      %v1157 = vunpack.i.h.s16 %v370
      %v1158 = vunpack.i.l.s16 %v377
      %v1159 = vunpack.i.h.s16 %v377
      %v1160 = vunpack.i.l.s16 %v378
      %v1161 = vunpack.i.h.s16 %v378
      %v1162 = vunpack.i.l.s16 %v379
      %v1163 = vunpack.i.h.s16 %v379
      %v1164 = vunpack.i.l.s16 %v402
      %v1165 = vunpack.i.h.s16 %v402
      %v1166 = vunpack.i.l.s16 %v409
      %v1167 = vunpack.i.h.s16 %v409
      %v1168 = vunpack.i.l.s16 %v410
      %v1169 = vunpack.i.h.s16 %v410
      %v1170 = vunpack.i.l.s16 %v411
      %v1171 = vunpack.i.h.s16 %v411
      %v1172 = vunpack.i.l.s16 %v434
      %v1173 = vunpack.i.h.s16 %v434
      %v1174 = vunpack.i.l.s16 %v441
      %v1175 = vunpack.i.h.s16 %v441
      %v1176 = vunpack.i.l.s16 %v442
      %v1177 = vunpack.i.h.s16 %v442
      %v1178 = vunpack.i.l.s16 %v443
      %v1179 = vunpack.i.h.s16 %v443
      %v1180 = vunpack.i.l.s16 %v466
      %v1181 = vunpack.i.h.s16 %v466
      %v1182 = vunpack.i.l.s16 %v473
      %v1183 = vunpack.i.h.s16 %v473
      %v1184 = vunpack.i.l.s16 %v474
      %v1185 = vunpack.i.h.s16 %v474
      %v1186 = vunpack.i.l.s16 %v475
      %v1187 = vunpack.i.h.s16 %v475
      %v1188 = vunpack.i.l.s16 %v497
      %v1189 = vunpack.i.l.s16 %v520
      %v1190 = vunpack.i.h.s16 %v520
      %v1191 = vunpack.i.l.s16 %v527
      %v1192 = vunpack.i.h.s16 %v527
      %v1193 = vunpack.i.l.s16 %v528
      %v1194 = vunpack.i.h.s16 %v528
      %v1195 = vunpack.i.l.s16 %v529
      %v1196 = vunpack.i.h.s16 %v529
      %v1197 = vunpack.i.l.s16 %v552
      %v1198 = vunpack.i.h.s16 %v552
      %v1199 = vunpack.i.l.s16 %v559
      %v1200 = vunpack.i.h.s16 %v559
      %v1201 = vunpack.i.l.s16 %v560
      %v1202 = vunpack.i.h.s16 %v560
      %v1203 = vunpack.i.l.s16 %v561
      %v1204 = vunpack.i.h.s16 %v561
      %v1205 = vunpack.i.l.s16 %v584
      %v1206 = vunpack.i.h.s16 %v584
      %v1207 = vunpack.i.l.s16 %v591
      %v1208 = vunpack.i.h.s16 %v591
      %v1209 = vunpack.i.l.s16 %v592
      %v1210 = vunpack.i.h.s16 %v592
      %v1211 = vunpack.i.l.s16 %v593
      %v1212 = vunpack.i.h.s16 %v593
      %v1213 = vunpack.i.l.s16 %v616
      %v1214 = vunpack.i.h.s16 %v616
      %v1215 = vunpack.i.l.s16 %v623
      %v1216 = vunpack.i.h.s16 %v623
      %v1217 = vunpack.i.l.s16 %v624
      %v1218 = vunpack.i.h.s16 %v624
      %v1219 = vunpack.i.l.s16 %v625
      %v1220 = vunpack.i.h.s16 %v625
      %v1221 = vunpack.i.l.s16 %v648
      %v1222 = vunpack.i.h.s16 %v648
      %v1223 = vunpack.i.l.s16 %v655
      %v1224 = vunpack.i.h.s16 %v655
      %v1225 = vunpack.i.l.s16 %v656
      %v1226 = vunpack.i.h.s16 %v656
      %v1227 = vunpack.i.l.s16 %v657
      %v1228 = vunpack.i.h.s16 %v657
      %v1229 = vunpack.i.l.s16 %v680
      %v1230 = vunpack.i.h.s16 %v680
      %v1231 = vunpack.i.l.s16 %v687
      %v1232 = vunpack.i.h.s16 %v687
      %v1233 = vunpack.i.l.s16 %v688
      %v1234 = vunpack.i.h.s16 %v688
      %v1235 = vunpack.i.l.s16 %v689
      %v1236 = vunpack.i.h.s16 %v689
      %v1237 = vunpack.i.l.s16 %v711
      %v1238 = vunpack.i.l.s16 %v734
      %v1239 = vunpack.i.h.s16 %v734
      %v1240 = vunpack.i.l.s16 %v741
      %v1241 = vunpack.i.h.s16 %v741
      %v1242 = vunpack.i.l.s16 %v742
      %v1243 = vunpack.i.h.s16 %v742
      %v1244 = vunpack.i.l.s16 %v743
      %v1245 = vunpack.i.h.s16 %v743
      %v1246 = vunpack.i.l.s16 %v766
      %v1247 = vunpack.i.h.s16 %v766
      %v1248 = vunpack.i.l.s16 %v773
      %v1249 = vunpack.i.h.s16 %v773
      %v1250 = vunpack.i.l.s16 %v774
      %v1251 = vunpack.i.h.s16 %v774
      %v1252 = vunpack.i.l.s16 %v775
      %v1253 = vunpack.i.h.s16 %v775
      %v1254 = vunpack.i.l.s16 %v798
      %v1255 = vunpack.i.h.s16 %v798
      %v1256 = vunpack.i.l.s16 %v805
      %v1257 = vunpack.i.h.s16 %v805
      %v1258 = vunpack.i.l.s16 %v806
      %v1259 = vunpack.i.h.s16 %v806
      %v1260 = vunpack.i.l.s16 %v807
      %v1261 = vunpack.i.h.s16 %v807
      %v1262 = vunpack.i.l.s16 %v830
      %v1263 = vunpack.i.h.s16 %v830
      %v1264 = vunpack.i.l.s16 %v837
      %v1265 = vunpack.i.h.s16 %v837
      %v1266 = vunpack.i.l.s16 %v838
      %v1267 = vunpack.i.h.s16 %v838
      %v1268 = vunpack.i.l.s16 %v839
      %v1269 = vunpack.i.h.s16 %v839
      %v1270 = vunpack.i.l.s16 %v862
      %v1271 = vunpack.i.h.s16 %v862
      %v1272 = vunpack.i.l.s16 %v869
      %v1273 = vunpack.i.h.s16 %v869
      %v1274 = vunpack.i.l.s16 %v870
      %v1275 = vunpack.i.h.s16 %v870
      %v1276 = vunpack.i.l.s16 %v871
      %v1277 = vunpack.i.h.s16 %v871
      %v1278 = vunpack.i.l.s16 %v894
      %v1279 = vunpack.i.h.s16 %v894
      %v1280 = vunpack.i.l.s16 %v901
      %v1281 = vunpack.i.h.s16 %v901
      %v1282 = vunpack.i.l.s16 %v902
      %v1283 = vunpack.i.h.s16 %v902
      %v1284 = vunpack.i.l.s16 %v903
      %v1285 = vunpack.i.h.s16 %v903
      %v1286 = vunpack.i.l.s16 %v925
      %v1287 = vunpack.i.l.s16 %v948
      %v1288 = vunpack.i.h.s16 %v948
      %v1289 = vunpack.i.l.s16 %v955
      %v1290 = vunpack.i.h.s16 %v955
      %v1291 = vunpack.i.l.s16 %v956
      %v1292 = vunpack.i.h.s16 %v956
      %v1293 = vunpack.i.l.s16 %v957
      %v1294 = vunpack.i.h.s16 %v957
      %v1295 = vunpack.i.l.s16 %v980
      %v1296 = vunpack.i.h.s16 %v980
      %v1297 = vunpack.i.l.s16 %v987
      %v1298 = vunpack.i.h.s16 %v987
      %v1299 = vunpack.i.l.s16 %v988
      %v1300 = vunpack.i.h.s16 %v988
      %v1301 = vunpack.i.l.s16 %v989
      %v1302 = vunpack.i.h.s16 %v989
      %v1303 = vunpack.i.l.s16 %v1012
      %v1304 = vunpack.i.h.s16 %v1012
      %v1305 = vunpack.i.l.s16 %v1019
      %v1306 = vunpack.i.h.s16 %v1019
      %v1307 = vunpack.i.l.s16 %v1020
      %v1308 = vunpack.i.h.s16 %v1020
      %v1309 = vunpack.i.l.s16 %v1021
      %v1310 = vunpack.i.h.s16 %v1021
      %v1311 = vunpack.i.l.s16 %v1044
      %v1312 = vunpack.i.h.s16 %v1044
      %v1313 = vunpack.i.l.s16 %v1051
      %v1314 = vunpack.i.h.s16 %v1051
      %v1315 = vunpack.i.l.s16 %v1052
      %v1316 = vunpack.i.h.s16 %v1052
      %v1317 = vunpack.i.l.s16 %v1053
      %v1318 = vunpack.i.h.s16 %v1053
      %v1319 = vunpack.i.l.s16 %v1076
      %v1320 = vunpack.i.h.s16 %v1076
      %v1321 = vunpack.i.l.s16 %v1083
      %v1322 = vunpack.i.h.s16 %v1083
      %v1323 = vunpack.i.l.s16 %v1084
      %v1324 = vunpack.i.h.s16 %v1084
      %v1325 = vunpack.i.l.s16 %v1085
      %v1326 = vunpack.i.h.s16 %v1085
      %v1327 = vunpack.i.l.s16 %v1108
      %v1328 = vunpack.i.h.s16 %v1108
      %v1329 = vunpack.i.l.s16 %v1115
      %v1330 = vunpack.i.h.s16 %v1115
      %v1331 = vunpack.i.l.s16 %v1116
      %v1332 = vunpack.i.h.s16 %v1116
      %v1333 = vunpack.i.l.s16 %v1117
      %v1334 = vunpack.i.h.s16 %v1117
      %v1335 = vunpack.i.l.s16 %v1139
      %v1336 = vld [vmem:[%s1] sm:$0xf]
      %v1337 = vld [vmem:[%s1 + $0x4] sm:$0xf]
      %v1338 = vld [vmem:[%s1 + $0x8] sm:$0xf]
      %v1339 = vld [vmem:[%s1 + $0xc] sm:$0xf]
      %v1340 = vld [vmem:[%s1 + $0x10] sm:$0xf]
      %v1341 = vld [vmem:[%s1 + $0x14] sm:$0xf]
      %v1342 = vld [vmem:[%s1 + $0x18] sm:$0xf]
      %v1343 = vld [vmem:[%s1 + $0x1c] sm:$0xf]
      %v1344 = vld [vmem:[%s1 + $0x20] sm:$0xf]
      %v1345 = vld [vmem:[%s1 + $0x24] sm:$0xf]
      %v1346 = vld [vmem:[%s1 + $0x28] sm:$0xf]
      %v1347 = vld [vmem:[%s1 + $0x2c] sm:$0xf]
      %v1348 = vld [vmem:[%s1 + $0x30] sm:$0xf]
      %v1349 = vld [vmem:[%s1 + $0x34] sm:$0xf]
      %v1350 = vld [vmem:[%s1 + $0x38] sm:$0xf]
      %v1351 = vld [vmem:[%s1 + $0x3c] sm:$0xf]
      %v1352 = vld [vmem:[%s1 + $0x40] sm:$0xf]
      %v1353 = vld [vmem:[%s1 + $0x44] sm:$0xf]
      %v1354 = vld [vmem:[%s1 + $0x48] sm:$0xf]
      %v1355 = vld [vmem:[%s1 + $0x4c] sm:$0xf]
      %v1356 = vld [vmem:[%s1 + $0x50] sm:$0xf]
      %v1357 = vld [vmem:[%s1 + $0x54] sm:$0xf]
      %v1358 = vld [vmem:[%s1 + $0x58] sm:$0xf]
      %v1359 = vld [vmem:[%s1 + $0x5c] sm:$0xf]
      %v1360 = vld [vmem:[%s1 + $0x60] sm:$0xf]
      %v1361 = vld [vmem:[%s1 + $0x64] sm:$0xf]
      %v1362 = vld [vmem:[%s1 + $0x68] sm:$0xf]
      %v1363 = vld [vmem:[%s1 + $0x6c] sm:$0xf]
      %v1364 = vld [vmem:[%s1 + $0x70] sm:$0xf]
      %v1365 = vld [vmem:[%s1 + $0x74] sm:$0xf]
      %v1366 = vld [vmem:[%s1 + $0x78] sm:$0xf]
      %v1367 = vld [vmem:[%s1 + $0x7c] sm:$0xf]
      %v1368 = vld [vmem:[%s1 + $0x80] sm:$0xf]
      %v1369 = vld [vmem:[%s1 + $0x84] sm:$0xf]
      %v1370 = vld [vmem:[%s1 + $0x88] sm:$0xf]
      %v1371 = vld [vmem:[%s1 + $0x8c] sm:$0xf]
      %v1372 = vld [vmem:[%s1 + $0x90] sm:$0xf]
      %v1373 = vld [vmem:[%s1 + $0x94] sm:$0xf]
      %v1374 = vld [vmem:[%s1 + $0x98] sm:$0xf]
      %v1375 = vld [vmem:[%s1 + $0x9c] sm:$0xf]
      %v1376 = vld [vmem:[%s1 + $0xa0] sm:$0xf]
      %v1377 = vld [vmem:[%s1 + $0xa4] sm:$0xf]
      %v1378 = vld [vmem:[%s1 + $0xa8] sm:$0xf]
      %v1379 = vld [vmem:[%s1 + $0xac] sm:$0xf]
      %v1380 = vld [vmem:[%s1 + $0xb0] sm:$0xf]
      %v1381 = vld [vmem:[%s1 + $0xb4] sm:$0xf]
      %v1382 = vld [vmem:[%s1 + $0xb8] sm:$0xf]
      %v1383 = vld [vmem:[%s1 + $0xbc] sm:$0xf]
      %v1384 = vld [vmem:[%s1 + $0xc0] sm:$0xf]
      %v1385 = vld [vmem:[%s1 + $0xc4] sm:$0xf]
      %v1386 = vpack.i.b16 %v1141, %v1140
      %v1387 = vpack.i.b16 %v1143, %v1142
      %v1388 = vpack.i.b16 %v1145, %v1144
      %v1389 = vpack.i.b16 %v1147, %v1146
      %v1390 = vpack.i.b16 %v1149, %v1148
      %v1391 = vpack.i.b16 %v1151, %v1150
      %v1392 = vpack.i.b16 %v1153, %v1152
      %v1393 = vpack.i.b16 %v1155, %v1154
      %v1394 = vpack.i.b16 %v1157, %v1156
      %v1395 = vpack.i.b16 %v1159, %v1158
      %v1396 = vpack.i.b16 %v1161, %v1160
      %v1397 = vpack.i.b16 %v1163, %v1162
      %v1398 = vpack.i.b16 %v1165, %v1164
      %v1399 = vpack.i.b16 %v1167, %v1166
      %v1400 = vpack.i.b16 %v1169, %v1168
      %v1401 = vpack.i.b16 %v1171, %v1170
      %v1402 = vpack.i.b16 %v1173, %v1172
      %v1403 = vpack.i.b16 %v1175, %v1174
      %v1404 = vpack.i.b16 %v1177, %v1176
      %v1405 = vpack.i.b16 %v1179, %v1178
      %v1406 = vpack.i.b16 %v1181, %v1180
      %v1407 = vpack.i.b16 %v1183, %v1182
      %v1408 = vpack.i.b16 %v1185, %v1184
      %v1409 = vpack.i.b16 %v1187, %v1186
      %v1410 = vpack.i.b16 %v1189, %v1188
      %v1411 = vpack.i.b16 %v1191, %v1190
      %v1412 = vpack.i.b16 %v1193, %v1192
      %v1413 = vpack.i.b16 %v1195, %v1194
      %v1414 = vpack.i.b16 %v1197, %v1196
      %v1415 = vpack.i.b16 %v1199, %v1198
      %v1416 = vpack.i.b16 %v1201, %v1200
      %v1417 = vpack.i.b16 %v1203, %v1202
      %v1418 = vpack.i.b16 %v1205, %v1204
      %v1419 = vpack.i.b16 %v1207, %v1206
      %v1420 = vpack.i.b16 %v1209, %v1208
      %v1421 = vpack.i.b16 %v1211, %v1210
      %v1422 = vpack.i.b16 %v1213, %v1212
      %v1423 = vpack.i.b16 %v1215, %v1214
      %v1424 = vpack.i.b16 %v1217, %v1216
      %v1425 = vpack.i.b16 %v1219, %v1218
      %v1426 = vpack.i.b16 %v1221, %v1220
      %v1427 = vpack.i.b16 %v1223, %v1222
      %v1428 = vpack.i.b16 %v1225, %v1224
      %v1429 = vpack.i.b16 %v1227, %v1226
      %v1430 = vpack.i.b16 %v1229, %v1228
      %v1431 = vpack.i.b16 %v1231, %v1230
      %v1432 = vpack.i.b16 %v1233, %v1232
      %v1433 = vpack.i.b16 %v1235, %v1234
      %v1434 = vpack.i.b16 %v1237, %v1236
      %v1435 = vpack.i.b16 %v1239, %v1238
      %v1436 = vpack.i.b16 %v1241, %v1240
      %v1437 = vpack.i.b16 %v1243, %v1242
      %v1438 = vpack.i.b16 %v1245, %v1244
      %v1439 = vpack.i.b16 %v1247, %v1246
      %v1440 = vpack.i.b16 %v1249, %v1248
      %v1441 = vpack.i.b16 %v1251, %v1250
      %v1442 = vpack.i.b16 %v1253, %v1252
      %v1443 = vpack.i.b16 %v1255, %v1254
      %v1444 = vpack.i.b16 %v1257, %v1256
      %v1445 = vpack.i.b16 %v1259, %v1258
      %v1446 = vpack.i.b16 %v1261, %v1260
      %v1447 = vpack.i.b16 %v1263, %v1262
      %v1448 = vpack.i.b16 %v1265, %v1264
      %v1449 = vpack.i.b16 %v1267, %v1266
      %v1450 = vpack.i.b16 %v1269, %v1268
      %v1451 = vpack.i.b16 %v1271, %v1270
      %v1452 = vpack.i.b16 %v1273, %v1272
      %v1453 = vpack.i.b16 %v1275, %v1274
      %v1454 = vpack.i.b16 %v1277, %v1276
      %v1455 = vpack.i.b16 %v1279, %v1278
      %v1456 = vpack.i.b16 %v1281, %v1280
      %v1457 = vpack.i.b16 %v1283, %v1282
      %v1458 = vpack.i.b16 %v1285, %v1284
      %v1459 = vpack.i.b16 %v1287, %v1286
      %v1460 = vpack.i.b16 %v1289, %v1288
      %v1461 = vpack.i.b16 %v1291, %v1290
      %v1462 = vpack.i.b16 %v1293, %v1292
      %v1463 = vpack.i.b16 %v1295, %v1294
      %v1464 = vpack.i.b16 %v1297, %v1296
      %v1465 = vpack.i.b16 %v1299, %v1298
      %v1466 = vpack.i.b16 %v1301, %v1300
      %v1467 = vpack.i.b16 %v1303, %v1302
      %v1468 = vpack.i.b16 %v1305, %v1304
      %v1469 = vpack.i.b16 %v1307, %v1306
      %v1470 = vpack.i.b16 %v1309, %v1308
      %v1471 = vpack.i.b16 %v1311, %v1310
      %v1472 = vpack.i.b16 %v1313, %v1312
      %v1473 = vpack.i.b16 %v1315, %v1314
      %v1474 = vpack.i.b16 %v1317, %v1316
      %v1475 = vpack.i.b16 %v1319, %v1318
      %v1476 = vpack.i.b16 %v1321, %v1320
      %v1477 = vpack.i.b16 %v1323, %v1322
      %v1478 = vpack.i.b16 %v1325, %v1324
      %v1479 = vpack.i.b16 %v1327, %v1326
      %v1480 = vpack.i.b16 %v1329, %v1328
      %v1481 = vpack.i.b16 %v1331, %v1330
      %v1482 = vpack.i.b16 %v1333, %v1332
      %v1483 = vpack.i.b16 %v1335, %v1334
      %v1484 = vcombine.low %v1386, %v1387
      %v1485 = vcombine.low %v1388, %v1389
      %v1486 = vcombine.low %v1390, %v1391
      %v1487 = vcombine.low %v1392, %v1393
      %v1489 = vunpack.c.l.s4 1966171168
      %v1490 = vunpack.c.0.s8 %v1489
      %v1491 = vlaneseq
      %v1492 = vshrl.u32 %v1491, 7
      %v1493 = vsub.s32 %v1490, %v1492
      %v1494 = vrot.slane %v1484, %v1493
      %v1496 = vunpack.c.l.s4 1966171168
      %v1497 = vunpack.c.0.s8 %v1496
      %v1498 = vlaneseq
      %v1499 = vshrl.u32 %v1498, 7
      %v1500 = vsub.s32 %v1497, %v1499
      %v1501 = vrot.slane %v1485, %v1500
      %v1503 = vunpack.c.l.s4 1966171168
      %v1504 = vunpack.c.0.s8 %v1503
      %v1505 = vlaneseq
      %v1506 = vshrl.u32 %v1505, 7
      %v1507 = vsub.s32 %v1504, %v1506
      %v1508 = vrot.slane %v1486, %v1507
      %v1510 = vunpack.c.l.s4 1966171168
      %v1511 = vunpack.c.0.s8 %v1510
      %v1512 = vlaneseq
      %v1513 = vshrl.u32 %v1512, 7
      %v1514 = vsub.s32 %v1511, %v1513
      %v1515 = vrot.slane %v1487, %v1514
      %v1516 = vcombine.low %v1494, %v1501
      %v1517 = vcombine.high %v1494, %v1501
      %v1518 = vcombine.low %v1508, %v1515
      %v1519 = vcombine.high %v1508, %v1515
      %v1521 = vunpack.c.l.s4 1966171168
      %v1522 = vunpack.c.0.s8 %v1521
      %v1523 = vlaneseq
      %v1524 = vshrl.u32 %v1523, 7
      %v1525 = vsub.s32 %v1522, %v1524
      %v1526 = vrot.slane %v1516, %v1525
      %v1528 = vunpack.c.l.s4 1966171168
      %v1529 = vunpack.c.0.s8 %v1528
      %v1530 = vlaneseq
      %v1531 = vshrl.u32 %v1530, 7
      %v1532 = vsub.s32 %v1529, %v1531
      %v1533 = vrot.slane %v1517, %v1532
      %v1535 = vunpack.c.l.s4 1966171168
      %v1536 = vunpack.c.0.s8 %v1535
      %v1537 = vlaneseq
      %v1538 = vshrl.u32 %v1537, 7
      %v1539 = vsub.s32 %v1536, %v1538
      %v1540 = vrot.slane %v1518, %v1539
      %v1542 = vunpack.c.l.s4 1966171168
      %v1543 = vunpack.c.0.s8 %v1542
      %v1544 = vlaneseq
      %v1545 = vshrl.u32 %v1544, 7
      %v1546 = vsub.s32 %v1543, %v1545
      %v1547 = vrot.slane %v1519, %v1546
      %v1548 = vcombine.low %v1526, %v1540
      %v1549 = vcombine.high %v1526, %v1540
      %v1550 = vcombine.low %v1533, %v1547
      %v1551 = vcombine.high %v1533, %v1547
      %v1552 = vcombine.low %v1394, %v1395
      %v1553 = vcombine.low %v1396, %v1397
      %v1554 = vcombine.low %v1398, %v1399
      %v1555 = vcombine.low %v1400, %v1401
      %v1557 = vunpack.c.l.s4 1966171168
      %v1558 = vunpack.c.0.s8 %v1557
      %v1559 = vlaneseq
      %v1560 = vshrl.u32 %v1559, 7
      %v1561 = vsub.s32 %v1558, %v1560
      %v1562 = vrot.slane %v1552, %v1561
      %v1564 = vunpack.c.l.s4 1966171168
      %v1565 = vunpack.c.0.s8 %v1564
      %v1566 = vlaneseq
      %v1567 = vshrl.u32 %v1566, 7
      %v1568 = vsub.s32 %v1565, %v1567
      %v1569 = vrot.slane %v1553, %v1568
      %v1571 = vunpack.c.l.s4 1966171168
      %v1572 = vunpack.c.0.s8 %v1571
      %v1573 = vlaneseq
      %v1574 = vshrl.u32 %v1573, 7
      %v1575 = vsub.s32 %v1572, %v1574
      %v1576 = vrot.slane %v1554, %v1575
      %v1578 = vunpack.c.l.s4 1966171168
      %v1579 = vunpack.c.0.s8 %v1578
      %v1580 = vlaneseq
      %v1581 = vshrl.u32 %v1580, 7
      %v1582 = vsub.s32 %v1579, %v1581
      %v1583 = vrot.slane %v1555, %v1582
      %v1584 = vcombine.low %v1562, %v1569
      %v1585 = vcombine.high %v1562, %v1569
      %v1586 = vcombine.low %v1576, %v1583
      %v1587 = vcombine.high %v1576, %v1583
      %v1589 = vunpack.c.l.s4 1966171168
      %v1590 = vunpack.c.0.s8 %v1589
      %v1591 = vlaneseq
      %v1592 = vshrl.u32 %v1591, 7
      %v1593 = vsub.s32 %v1590, %v1592
      %v1594 = vrot.slane %v1584, %v1593
      %v1596 = vunpack.c.l.s4 1966171168
      %v1597 = vunpack.c.0.s8 %v1596
      %v1598 = vlaneseq
      %v1599 = vshrl.u32 %v1598, 7
      %v1600 = vsub.s32 %v1597, %v1599
      %v1601 = vrot.slane %v1585, %v1600
      %v1603 = vunpack.c.l.s4 1966171168
      %v1604 = vunpack.c.0.s8 %v1603
      %v1605 = vlaneseq
      %v1606 = vshrl.u32 %v1605, 7
      %v1607 = vsub.s32 %v1604, %v1606
      %v1608 = vrot.slane %v1586, %v1607
      %v1610 = vunpack.c.l.s4 1966171168
      %v1611 = vunpack.c.0.s8 %v1610
      %v1612 = vlaneseq
      %v1613 = vshrl.u32 %v1612, 7
      %v1614 = vsub.s32 %v1611, %v1613
      %v1615 = vrot.slane %v1587, %v1614
      %v1616 = vcombine.low %v1594, %v1608
      %v1617 = vcombine.high %v1594, %v1608
      %v1618 = vcombine.low %v1601, %v1615
      %v1619 = vcombine.high %v1601, %v1615
      %v1620 = vcombine.low %v1402, %v1403
      %v1621 = vcombine.low %v1404, %v1405
      %v1622 = vcombine.low %v1406, %v1407
      %v1623 = vcombine.low %v1408, %v1409
      %v1625 = vunpack.c.l.s4 1966171168
      %v1626 = vunpack.c.0.s8 %v1625
      %v1627 = vlaneseq
      %v1628 = vshrl.u32 %v1627, 7
      %v1629 = vsub.s32 %v1626, %v1628
      %v1630 = vrot.slane %v1620, %v1629
      %v1632 = vunpack.c.l.s4 1966171168
      %v1633 = vunpack.c.0.s8 %v1632
      %v1634 = vlaneseq
      %v1635 = vshrl.u32 %v1634, 7
      %v1636 = vsub.s32 %v1633, %v1635
      %v1637 = vrot.slane %v1621, %v1636
      %v1639 = vunpack.c.l.s4 1966171168
      %v1640 = vunpack.c.0.s8 %v1639
      %v1641 = vlaneseq
      %v1642 = vshrl.u32 %v1641, 7
      %v1643 = vsub.s32 %v1640, %v1642
      %v1644 = vrot.slane %v1622, %v1643
      %v1646 = vunpack.c.l.s4 1966171168
      %v1647 = vunpack.c.0.s8 %v1646
      %v1648 = vlaneseq
      %v1649 = vshrl.u32 %v1648, 7
      %v1650 = vsub.s32 %v1647, %v1649
      %v1651 = vrot.slane %v1623, %v1650
      %v1652 = vcombine.low %v1630, %v1637
      %v1653 = vcombine.high %v1630, %v1637
      %v1654 = vcombine.low %v1644, %v1651
      %v1655 = vcombine.high %v1644, %v1651
      %v1657 = vunpack.c.l.s4 1966171168
      %v1658 = vunpack.c.0.s8 %v1657
      %v1659 = vlaneseq
      %v1660 = vshrl.u32 %v1659, 7
      %v1661 = vsub.s32 %v1658, %v1660
      %v1662 = vrot.slane %v1652, %v1661
      %v1664 = vunpack.c.l.s4 1966171168
      %v1665 = vunpack.c.0.s8 %v1664
      %v1666 = vlaneseq
      %v1667 = vshrl.u32 %v1666, 7
      %v1668 = vsub.s32 %v1665, %v1667
      %v1669 = vrot.slane %v1653, %v1668
      %v1671 = vunpack.c.l.s4 1966171168
      %v1672 = vunpack.c.0.s8 %v1671
      %v1673 = vlaneseq
      %v1674 = vshrl.u32 %v1673, 7
      %v1675 = vsub.s32 %v1672, %v1674
      %v1676 = vrot.slane %v1654, %v1675
      %v1678 = vunpack.c.l.s4 1966171168
      %v1679 = vunpack.c.0.s8 %v1678
      %v1680 = vlaneseq
      %v1681 = vshrl.u32 %v1680, 7
      %v1682 = vsub.s32 %v1679, %v1681
      %v1683 = vrot.slane %v1655, %v1682
      %v1684 = vcombine.low %v1662, %v1676
      %v1685 = vcombine.high %v1662, %v1676
      %v1686 = vcombine.low %v1669, %v1683
      %v1687 = vcombine.high %v1669, %v1683
      %v1688 = vcombine.low %v1410, %v1411
      %v1689 = vcombine.low %v1412, %v1413
      %v1690 = vcombine.low %v1414, %v1415
      %v1691 = vcombine.low %v1416, %v1417
      %v1693 = vunpack.c.l.s4 1966171168
      %v1694 = vunpack.c.0.s8 %v1693
      %v1695 = vlaneseq
      %v1696 = vshrl.u32 %v1695, 7
      %v1697 = vsub.s32 %v1694, %v1696
      %v1698 = vrot.slane %v1688, %v1697
      %v1700 = vunpack.c.l.s4 1966171168
      %v1701 = vunpack.c.0.s8 %v1700
      %v1702 = vlaneseq
      %v1703 = vshrl.u32 %v1702, 7
      %v1704 = vsub.s32 %v1701, %v1703
      %v1705 = vrot.slane %v1689, %v1704
      %v1707 = vunpack.c.l.s4 1966171168
      %v1708 = vunpack.c.0.s8 %v1707
      %v1709 = vlaneseq
      %v1710 = vshrl.u32 %v1709, 7
      %v1711 = vsub.s32 %v1708, %v1710
      %v1712 = vrot.slane %v1690, %v1711
      %v1714 = vunpack.c.l.s4 1966171168
      %v1715 = vunpack.c.0.s8 %v1714
      %v1716 = vlaneseq
      %v1717 = vshrl.u32 %v1716, 7
      %v1718 = vsub.s32 %v1715, %v1717
      %v1719 = vrot.slane %v1691, %v1718
      %v1720 = vcombine.low %v1698, %v1705
      %v1721 = vcombine.high %v1698, %v1705
      %v1722 = vcombine.low %v1712, %v1719
      %v1723 = vcombine.high %v1712, %v1719
      %v1725 = vunpack.c.l.s4 1966171168
      %v1726 = vunpack.c.0.s8 %v1725
      %v1727 = vlaneseq
      %v1728 = vshrl.u32 %v1727, 7
      %v1729 = vsub.s32 %v1726, %v1728
      %v1730 = vrot.slane %v1720, %v1729
      %v1732 = vunpack.c.l.s4 1966171168
      %v1733 = vunpack.c.0.s8 %v1732
      %v1734 = vlaneseq
      %v1735 = vshrl.u32 %v1734, 7
      %v1736 = vsub.s32 %v1733, %v1735
      %v1737 = vrot.slane %v1721, %v1736
      %v1739 = vunpack.c.l.s4 1966171168
      %v1740 = vunpack.c.0.s8 %v1739
      %v1741 = vlaneseq
      %v1742 = vshrl.u32 %v1741, 7
      %v1743 = vsub.s32 %v1740, %v1742
      %v1744 = vrot.slane %v1722, %v1743
      %v1746 = vunpack.c.l.s4 1966171168
      %v1747 = vunpack.c.0.s8 %v1746
      %v1748 = vlaneseq
      %v1749 = vshrl.u32 %v1748, 7
      %v1750 = vsub.s32 %v1747, %v1749
      %v1751 = vrot.slane %v1723, %v1750
      %v1752 = vcombine.low %v1730, %v1744
      %v1753 = vcombine.high %v1730, %v1744
      %v1754 = vcombine.low %v1737, %v1751
      %v1755 = vcombine.high %v1737, %v1751
      %v1756 = vcombine.low %v1418, %v1419
      %v1757 = vcombine.low %v1420, %v1421
      %v1758 = vcombine.low %v1422, %v1423
      %v1759 = vcombine.low %v1424, %v1425
      %v1761 = vunpack.c.l.s4 1966171168
      %v1762 = vunpack.c.0.s8 %v1761
      %v1763 = vlaneseq
      %v1764 = vshrl.u32 %v1763, 7
      %v1765 = vsub.s32 %v1762, %v1764
      %v1766 = vrot.slane %v1756, %v1765
      %v1768 = vunpack.c.l.s4 1966171168
      %v1769 = vunpack.c.0.s8 %v1768
      %v1770 = vlaneseq
      %v1771 = vshrl.u32 %v1770, 7
      %v1772 = vsub.s32 %v1769, %v1771
      %v1773 = vrot.slane %v1757, %v1772
      %v1775 = vunpack.c.l.s4 1966171168
      %v1776 = vunpack.c.0.s8 %v1775
      %v1777 = vlaneseq
      %v1778 = vshrl.u32 %v1777, 7
      %v1779 = vsub.s32 %v1776, %v1778
      %v1780 = vrot.slane %v1758, %v1779
      %v1782 = vunpack.c.l.s4 1966171168
      %v1783 = vunpack.c.0.s8 %v1782
      %v1784 = vlaneseq
      %v1785 = vshrl.u32 %v1784, 7
      %v1786 = vsub.s32 %v1783, %v1785
      %v1787 = vrot.slane %v1759, %v1786
      %v1788 = vcombine.low %v1766, %v1773
      %v1789 = vcombine.high %v1766, %v1773
      %v1790 = vcombine.low %v1780, %v1787
      %v1791 = vcombine.high %v1780, %v1787
      %v1793 = vunpack.c.l.s4 1966171168
      %v1794 = vunpack.c.0.s8 %v1793
      %v1795 = vlaneseq
      %v1796 = vshrl.u32 %v1795, 7
      %v1797 = vsub.s32 %v1794, %v1796
      %v1798 = vrot.slane %v1788, %v1797
      %v1800 = vunpack.c.l.s4 1966171168
      %v1801 = vunpack.c.0.s8 %v1800
      %v1802 = vlaneseq
      %v1803 = vshrl.u32 %v1802, 7
      %v1804 = vsub.s32 %v1801, %v1803
      %v1805 = vrot.slane %v1789, %v1804
      %v1807 = vunpack.c.l.s4 1966171168
      %v1808 = vunpack.c.0.s8 %v1807
      %v1809 = vlaneseq
      %v1810 = vshrl.u32 %v1809, 7
      %v1811 = vsub.s32 %v1808, %v1810
      %v1812 = vrot.slane %v1790, %v1811
      %v1814 = vunpack.c.l.s4 1966171168
      %v1815 = vunpack.c.0.s8 %v1814
      %v1816 = vlaneseq
      %v1817 = vshrl.u32 %v1816, 7
      %v1818 = vsub.s32 %v1815, %v1817
      %v1819 = vrot.slane %v1791, %v1818
      %v1820 = vcombine.low %v1798, %v1812
      %v1821 = vcombine.high %v1798, %v1812
      %v1822 = vcombine.low %v1805, %v1819
      %v1823 = vcombine.high %v1805, %v1819
      %v1824 = vcombine.low %v1426, %v1427
      %v1825 = vcombine.low %v1428, %v1429
      %v1826 = vcombine.low %v1430, %v1431
      %v1827 = vcombine.low %v1432, %v1433
      %v1829 = vunpack.c.l.s4 1966171168
      %v1830 = vunpack.c.0.s8 %v1829
      %v1831 = vlaneseq
      %v1832 = vshrl.u32 %v1831, 7
      %v1833 = vsub.s32 %v1830, %v1832
      %v1834 = vrot.slane %v1824, %v1833
      %v1836 = vunpack.c.l.s4 1966171168
      %v1837 = vunpack.c.0.s8 %v1836
      %v1838 = vlaneseq
      %v1839 = vshrl.u32 %v1838, 7
      %v1840 = vsub.s32 %v1837, %v1839
      %v1841 = vrot.slane %v1825, %v1840
      %v1843 = vunpack.c.l.s4 1966171168
      %v1844 = vunpack.c.0.s8 %v1843
      %v1845 = vlaneseq
      %v1846 = vshrl.u32 %v1845, 7
      %v1847 = vsub.s32 %v1844, %v1846
      %v1848 = vrot.slane %v1826, %v1847
      %v1850 = vunpack.c.l.s4 1966171168
      %v1851 = vunpack.c.0.s8 %v1850
      %v1852 = vlaneseq
      %v1853 = vshrl.u32 %v1852, 7
      %v1854 = vsub.s32 %v1851, %v1853
      %v1855 = vrot.slane %v1827, %v1854
      %v1856 = vcombine.low %v1834, %v1841
      %v1857 = vcombine.high %v1834, %v1841
      %v1858 = vcombine.low %v1848, %v1855
      %v1859 = vcombine.high %v1848, %v1855
      %v1861 = vunpack.c.l.s4 1966171168
      %v1862 = vunpack.c.0.s8 %v1861
      %v1863 = vlaneseq
      %v1864 = vshrl.u32 %v1863, 7
      %v1865 = vsub.s32 %v1862, %v1864
      %v1866 = vrot.slane %v1856, %v1865
      %v1868 = vunpack.c.l.s4 1966171168
      %v1869 = vunpack.c.0.s8 %v1868
      %v1870 = vlaneseq
      %v1871 = vshrl.u32 %v1870, 7
      %v1872 = vsub.s32 %v1869, %v1871
      %v1873 = vrot.slane %v1857, %v1872
      %v1875 = vunpack.c.l.s4 1966171168
      %v1876 = vunpack.c.0.s8 %v1875
      %v1877 = vlaneseq
      %v1878 = vshrl.u32 %v1877, 7
      %v1879 = vsub.s32 %v1876, %v1878
      %v1880 = vrot.slane %v1858, %v1879
      %v1882 = vunpack.c.l.s4 1966171168
      %v1883 = vunpack.c.0.s8 %v1882
      %v1884 = vlaneseq
      %v1885 = vshrl.u32 %v1884, 7
      %v1886 = vsub.s32 %v1883, %v1885
      %v1887 = vrot.slane %v1859, %v1886
      %v1888 = vcombine.low %v1866, %v1880
      %v1889 = vcombine.high %v1866, %v1880
      %v1890 = vcombine.low %v1873, %v1887
      %v1891 = vcombine.high %v1873, %v1887
      %v1892 = vcombine.low %v1434, %v1435
      %v1893 = vcombine.low %v1436, %v1437
      %v1894 = vcombine.low %v1438, %v1439
      %v1895 = vcombine.low %v1440, %v1441
      %v1897 = vunpack.c.l.s4 1966171168
      %v1898 = vunpack.c.0.s8 %v1897
      %v1899 = vlaneseq
      %v1900 = vshrl.u32 %v1899, 7
      %v1901 = vsub.s32 %v1898, %v1900
      %v1902 = vrot.slane %v1892, %v1901
      %v1904 = vunpack.c.l.s4 1966171168
      %v1905 = vunpack.c.0.s8 %v1904
      %v1906 = vlaneseq
      %v1907 = vshrl.u32 %v1906, 7
      %v1908 = vsub.s32 %v1905, %v1907
      %v1909 = vrot.slane %v1893, %v1908
      %v1911 = vunpack.c.l.s4 1966171168
      %v1912 = vunpack.c.0.s8 %v1911
      %v1913 = vlaneseq
      %v1914 = vshrl.u32 %v1913, 7
      %v1915 = vsub.s32 %v1912, %v1914
      %v1916 = vrot.slane %v1894, %v1915
      %v1918 = vunpack.c.l.s4 1966171168
      %v1919 = vunpack.c.0.s8 %v1918
      %v1920 = vlaneseq
      %v1921 = vshrl.u32 %v1920, 7
      %v1922 = vsub.s32 %v1919, %v1921
      %v1923 = vrot.slane %v1895, %v1922
      %v1924 = vcombine.low %v1902, %v1909
      %v1925 = vcombine.high %v1902, %v1909
      %v1926 = vcombine.low %v1916, %v1923
      %v1927 = vcombine.high %v1916, %v1923
      %v1929 = vunpack.c.l.s4 1966171168
      %v1930 = vunpack.c.0.s8 %v1929
      %v1931 = vlaneseq
      %v1932 = vshrl.u32 %v1931, 7
      %v1933 = vsub.s32 %v1930, %v1932
      %v1934 = vrot.slane %v1924, %v1933
      %v1936 = vunpack.c.l.s4 1966171168
      %v1937 = vunpack.c.0.s8 %v1936
      %v1938 = vlaneseq
      %v1939 = vshrl.u32 %v1938, 7
      %v1940 = vsub.s32 %v1937, %v1939
      %v1941 = vrot.slane %v1925, %v1940
      %v1943 = vunpack.c.l.s4 1966171168
      %v1944 = vunpack.c.0.s8 %v1943
      %v1945 = vlaneseq
      %v1946 = vshrl.u32 %v1945, 7
      %v1947 = vsub.s32 %v1944, %v1946
      %v1948 = vrot.slane %v1926, %v1947
      %v1950 = vunpack.c.l.s4 1966171168
      %v1951 = vunpack.c.0.s8 %v1950
      %v1952 = vlaneseq
      %v1953 = vshrl.u32 %v1952, 7
      %v1954 = vsub.s32 %v1951, %v1953
      %v1955 = vrot.slane %v1927, %v1954
      %v1956 = vcombine.low %v1934, %v1948
      %v1957 = vcombine.high %v1934, %v1948
      %v1958 = vcombine.low %v1941, %v1955
      %v1959 = vcombine.high %v1941, %v1955
      %v1960 = vcombine.low %v1442, %v1443
      %v1961 = vcombine.low %v1444, %v1445
      %v1962 = vcombine.low %v1446, %v1447
      %v1963 = vcombine.low %v1448, %v1449
      %v1965 = vunpack.c.l.s4 1966171168
      %v1966 = vunpack.c.0.s8 %v1965
      %v1967 = vlaneseq
      %v1968 = vshrl.u32 %v1967, 7
      %v1969 = vsub.s32 %v1966, %v1968
      %v1970 = vrot.slane %v1960, %v1969
      %v1972 = vunpack.c.l.s4 1966171168
      %v1973 = vunpack.c.0.s8 %v1972
      %v1974 = vlaneseq
      %v1975 = vshrl.u32 %v1974, 7
      %v1976 = vsub.s32 %v1973, %v1975
      %v1977 = vrot.slane %v1961, %v1976
      %v1979 = vunpack.c.l.s4 1966171168
      %v1980 = vunpack.c.0.s8 %v1979
      %v1981 = vlaneseq
      %v1982 = vshrl.u32 %v1981, 7
      %v1983 = vsub.s32 %v1980, %v1982
      %v1984 = vrot.slane %v1962, %v1983
      %v1986 = vunpack.c.l.s4 1966171168
      %v1987 = vunpack.c.0.s8 %v1986
      %v1988 = vlaneseq
      %v1989 = vshrl.u32 %v1988, 7
      %v1990 = vsub.s32 %v1987, %v1989
      %v1991 = vrot.slane %v1963, %v1990
      %v1992 = vcombine.low %v1970, %v1977
      %v1993 = vcombine.high %v1970, %v1977
      %v1994 = vcombine.low %v1984, %v1991
      %v1995 = vcombine.high %v1984, %v1991
      %v1997 = vunpack.c.l.s4 1966171168
      %v1998 = vunpack.c.0.s8 %v1997
      %v1999 = vlaneseq
      %v2000 = vshrl.u32 %v1999, 7
      %v2001 = vsub.s32 %v1998, %v2000
      %v2002 = vrot.slane %v1992, %v2001
      %v2004 = vunpack.c.l.s4 1966171168
      %v2005 = vunpack.c.0.s8 %v2004
      %v2006 = vlaneseq
      %v2007 = vshrl.u32 %v2006, 7
      %v2008 = vsub.s32 %v2005, %v2007
      %v2009 = vrot.slane %v1993, %v2008
      %v2011 = vunpack.c.l.s4 1966171168
      %v2012 = vunpack.c.0.s8 %v2011
      %v2013 = vlaneseq
      %v2014 = vshrl.u32 %v2013, 7
      %v2015 = vsub.s32 %v2012, %v2014
      %v2016 = vrot.slane %v1994, %v2015
      %v2018 = vunpack.c.l.s4 1966171168
      %v2019 = vunpack.c.0.s8 %v2018
      %v2020 = vlaneseq
      %v2021 = vshrl.u32 %v2020, 7
      %v2022 = vsub.s32 %v2019, %v2021
      %v2023 = vrot.slane %v1995, %v2022
      %v2024 = vcombine.low %v2002, %v2016
      %v2025 = vcombine.high %v2002, %v2016
      %v2026 = vcombine.low %v2009, %v2023
      %v2027 = vcombine.high %v2009, %v2023
      %v2028 = vcombine.low %v1450, %v1451
      %v2029 = vcombine.low %v1452, %v1453
      %v2030 = vcombine.low %v1454, %v1455
      %v2031 = vcombine.low %v1456, %v1457
      %v2033 = vunpack.c.l.s4 1966171168
      %v2034 = vunpack.c.0.s8 %v2033
      %v2035 = vlaneseq
      %v2036 = vshrl.u32 %v2035, 7
      %v2037 = vsub.s32 %v2034, %v2036
      %v2038 = vrot.slane %v2028, %v2037
      %v2040 = vunpack.c.l.s4 1966171168
      %v2041 = vunpack.c.0.s8 %v2040
      %v2042 = vlaneseq
      %v2043 = vshrl.u32 %v2042, 7
      %v2044 = vsub.s32 %v2041, %v2043
      %v2045 = vrot.slane %v2029, %v2044
      %v2047 = vunpack.c.l.s4 1966171168
      %v2048 = vunpack.c.0.s8 %v2047
      %v2049 = vlaneseq
      %v2050 = vshrl.u32 %v2049, 7
      %v2051 = vsub.s32 %v2048, %v2050
      %v2052 = vrot.slane %v2030, %v2051
      %v2054 = vunpack.c.l.s4 1966171168
      %v2055 = vunpack.c.0.s8 %v2054
      %v2056 = vlaneseq
      %v2057 = vshrl.u32 %v2056, 7
      %v2058 = vsub.s32 %v2055, %v2057
      %v2059 = vrot.slane %v2031, %v2058
      %v2060 = vcombine.low %v2038, %v2045
      %v2061 = vcombine.high %v2038, %v2045
      %v2062 = vcombine.low %v2052, %v2059
      %v2063 = vcombine.high %v2052, %v2059
      %v2065 = vunpack.c.l.s4 1966171168
      %v2066 = vunpack.c.0.s8 %v2065
      %v2067 = vlaneseq
      %v2068 = vshrl.u32 %v2067, 7
      %v2069 = vsub.s32 %v2066, %v2068
      %v2070 = vrot.slane %v2060, %v2069
      %v2072 = vunpack.c.l.s4 1966171168
      %v2073 = vunpack.c.0.s8 %v2072
      %v2074 = vlaneseq
      %v2075 = vshrl.u32 %v2074, 7
      %v2076 = vsub.s32 %v2073, %v2075
      %v2077 = vrot.slane %v2061, %v2076
      %v2079 = vunpack.c.l.s4 1966171168
      %v2080 = vunpack.c.0.s8 %v2079
      %v2081 = vlaneseq
      %v2082 = vshrl.u32 %v2081, 7
      %v2083 = vsub.s32 %v2080, %v2082
      %v2084 = vrot.slane %v2062, %v2083
      %v2086 = vunpack.c.l.s4 1966171168
      %v2087 = vunpack.c.0.s8 %v2086
      %v2088 = vlaneseq
      %v2089 = vshrl.u32 %v2088, 7
      %v2090 = vsub.s32 %v2087, %v2089
      %v2091 = vrot.slane %v2063, %v2090
      %v2092 = vcombine.low %v2070, %v2084
      %v2093 = vcombine.high %v2070, %v2084
      %v2094 = vcombine.low %v2077, %v2091
      %v2095 = vcombine.high %v2077, %v2091
      %v2096 = vcombine.low %v1458, %v1459
      %v2097 = vcombine.low %v1460, %v1461
      %v2098 = vcombine.low %v1462, %v1463
      %v2099 = vcombine.low %v1464, %v1465
      %v2101 = vunpack.c.l.s4 1966171168
      %v2102 = vunpack.c.0.s8 %v2101
      %v2103 = vlaneseq
      %v2104 = vshrl.u32 %v2103, 7
      %v2105 = vsub.s32 %v2102, %v2104
      %v2106 = vrot.slane %v2096, %v2105
      %v2108 = vunpack.c.l.s4 1966171168
      %v2109 = vunpack.c.0.s8 %v2108
      %v2110 = vlaneseq
      %v2111 = vshrl.u32 %v2110, 7
      %v2112 = vsub.s32 %v2109, %v2111
      %v2113 = vrot.slane %v2097, %v2112
      %v2115 = vunpack.c.l.s4 1966171168
      %v2116 = vunpack.c.0.s8 %v2115
      %v2117 = vlaneseq
      %v2118 = vshrl.u32 %v2117, 7
      %v2119 = vsub.s32 %v2116, %v2118
      %v2120 = vrot.slane %v2098, %v2119
      %v2122 = vunpack.c.l.s4 1966171168
      %v2123 = vunpack.c.0.s8 %v2122
      %v2124 = vlaneseq
      %v2125 = vshrl.u32 %v2124, 7
      %v2126 = vsub.s32 %v2123, %v2125
      %v2127 = vrot.slane %v2099, %v2126
      %v2128 = vcombine.low %v2106, %v2113
      %v2129 = vcombine.high %v2106, %v2113
      %v2130 = vcombine.low %v2120, %v2127
      %v2131 = vcombine.high %v2120, %v2127
      %v2133 = vunpack.c.l.s4 1966171168
      %v2134 = vunpack.c.0.s8 %v2133
      %v2135 = vlaneseq
      %v2136 = vshrl.u32 %v2135, 7
      %v2137 = vsub.s32 %v2134, %v2136
      %v2138 = vrot.slane %v2128, %v2137
      %v2140 = vunpack.c.l.s4 1966171168
      %v2141 = vunpack.c.0.s8 %v2140
      %v2142 = vlaneseq
      %v2143 = vshrl.u32 %v2142, 7
      %v2144 = vsub.s32 %v2141, %v2143
      %v2145 = vrot.slane %v2129, %v2144
      %v2147 = vunpack.c.l.s4 1966171168
      %v2148 = vunpack.c.0.s8 %v2147
      %v2149 = vlaneseq
      %v2150 = vshrl.u32 %v2149, 7
      %v2151 = vsub.s32 %v2148, %v2150
      %v2152 = vrot.slane %v2130, %v2151
      %v2154 = vunpack.c.l.s4 1966171168
      %v2155 = vunpack.c.0.s8 %v2154
      %v2156 = vlaneseq
      %v2157 = vshrl.u32 %v2156, 7
      %v2158 = vsub.s32 %v2155, %v2157
      %v2159 = vrot.slane %v2131, %v2158
      %v2160 = vcombine.low %v2138, %v2152
      %v2161 = vcombine.high %v2138, %v2152
      %v2162 = vcombine.low %v2145, %v2159
      %v2163 = vcombine.high %v2145, %v2159
      %v2164 = vcombine.low %v1466, %v1467
      %v2165 = vcombine.low %v1468, %v1469
      %v2166 = vcombine.low %v1470, %v1471
      %v2167 = vcombine.low %v1472, %v1473
      %v2169 = vunpack.c.l.s4 1966171168
      %v2170 = vunpack.c.0.s8 %v2169
      %v2171 = vlaneseq
      %v2172 = vshrl.u32 %v2171, 7
      %v2173 = vsub.s32 %v2170, %v2172
      %v2174 = vrot.slane %v2164, %v2173
      %v2176 = vunpack.c.l.s4 1966171168
      %v2177 = vunpack.c.0.s8 %v2176
      %v2178 = vlaneseq
      %v2179 = vshrl.u32 %v2178, 7
      %v2180 = vsub.s32 %v2177, %v2179
      %v2181 = vrot.slane %v2165, %v2180
      %v2183 = vunpack.c.l.s4 1966171168
      %v2184 = vunpack.c.0.s8 %v2183
      %v2185 = vlaneseq
      %v2186 = vshrl.u32 %v2185, 7
      %v2187 = vsub.s32 %v2184, %v2186
      %v2188 = vrot.slane %v2166, %v2187
      %v2190 = vunpack.c.l.s4 1966171168
      %v2191 = vunpack.c.0.s8 %v2190
      %v2192 = vlaneseq
      %v2193 = vshrl.u32 %v2192, 7
      %v2194 = vsub.s32 %v2191, %v2193
      %v2195 = vrot.slane %v2167, %v2194
      %v2196 = vcombine.low %v2174, %v2181
      %v2197 = vcombine.high %v2174, %v2181
      %v2198 = vcombine.low %v2188, %v2195
      %v2199 = vcombine.high %v2188, %v2195
      %v2201 = vunpack.c.l.s4 1966171168
      %v2202 = vunpack.c.0.s8 %v2201
      %v2203 = vlaneseq
      %v2204 = vshrl.u32 %v2203, 7
      %v2205 = vsub.s32 %v2202, %v2204
      %v2206 = vrot.slane %v2196, %v2205
      %v2208 = vunpack.c.l.s4 1966171168
      %v2209 = vunpack.c.0.s8 %v2208
      %v2210 = vlaneseq
      %v2211 = vshrl.u32 %v2210, 7
      %v2212 = vsub.s32 %v2209, %v2211
      %v2213 = vrot.slane %v2197, %v2212
      %v2215 = vunpack.c.l.s4 1966171168
      %v2216 = vunpack.c.0.s8 %v2215
      %v2217 = vlaneseq
      %v2218 = vshrl.u32 %v2217, 7
      %v2219 = vsub.s32 %v2216, %v2218
      %v2220 = vrot.slane %v2198, %v2219
      %v2222 = vunpack.c.l.s4 1966171168
      %v2223 = vunpack.c.0.s8 %v2222
      %v2224 = vlaneseq
      %v2225 = vshrl.u32 %v2224, 7
      %v2226 = vsub.s32 %v2223, %v2225
      %v2227 = vrot.slane %v2199, %v2226
      %v2228 = vcombine.low %v2206, %v2220
      %v2229 = vcombine.high %v2206, %v2220
      %v2230 = vcombine.low %v2213, %v2227
      %v2231 = vcombine.high %v2213, %v2227
      %v2232 = vcombine.low %v1474, %v1475
      %v2233 = vcombine.low %v1476, %v1477
      %v2234 = vcombine.low %v1478, %v1479
      %v2235 = vcombine.low %v1480, %v1481
      %v2237 = vunpack.c.l.s4 1966171168
      %v2238 = vunpack.c.0.s8 %v2237
      %v2239 = vlaneseq
      %v2240 = vshrl.u32 %v2239, 7
      %v2241 = vsub.s32 %v2238, %v2240
      %v2242 = vrot.slane %v2232, %v2241
      %v2244 = vunpack.c.l.s4 1966171168
      %v2245 = vunpack.c.0.s8 %v2244
      %v2246 = vlaneseq
      %v2247 = vshrl.u32 %v2246, 7
      %v2248 = vsub.s32 %v2245, %v2247
      %v2249 = vrot.slane %v2233, %v2248
      %v2251 = vunpack.c.l.s4 1966171168
      %v2252 = vunpack.c.0.s8 %v2251
      %v2253 = vlaneseq
      %v2254 = vshrl.u32 %v2253, 7
      %v2255 = vsub.s32 %v2252, %v2254
      %v2256 = vrot.slane %v2234, %v2255
      %v2258 = vunpack.c.l.s4 1966171168
      %v2259 = vunpack.c.0.s8 %v2258
      %v2260 = vlaneseq
      %v2261 = vshrl.u32 %v2260, 7
      %v2262 = vsub.s32 %v2259, %v2261
      %v2263 = vrot.slane %v2235, %v2262
      %v2264 = vcombine.low %v2242, %v2249
      %v2265 = vcombine.high %v2242, %v2249
      %v2266 = vcombine.low %v2256, %v2263
      %v2267 = vcombine.high %v2256, %v2263
      %v2269 = vunpack.c.l.s4 1966171168
      %v2270 = vunpack.c.0.s8 %v2269
      %v2271 = vlaneseq
      %v2272 = vshrl.u32 %v2271, 7
      %v2273 = vsub.s32 %v2270, %v2272
      %v2274 = vrot.slane %v2264, %v2273
      %v2276 = vunpack.c.l.s4 1966171168
      %v2277 = vunpack.c.0.s8 %v2276
      %v2278 = vlaneseq
      %v2279 = vshrl.u32 %v2278, 7
      %v2280 = vsub.s32 %v2277, %v2279
      %v2281 = vrot.slane %v2265, %v2280
      %v2283 = vunpack.c.l.s4 1966171168
      %v2284 = vunpack.c.0.s8 %v2283
      %v2285 = vlaneseq
      %v2286 = vshrl.u32 %v2285, 7
      %v2287 = vsub.s32 %v2284, %v2286
      %v2288 = vrot.slane %v2266, %v2287
      %v2290 = vunpack.c.l.s4 1966171168
      %v2291 = vunpack.c.0.s8 %v2290
      %v2292 = vlaneseq
      %v2293 = vshrl.u32 %v2292, 7
      %v2294 = vsub.s32 %v2291, %v2293
      %v2295 = vrot.slane %v2267, %v2294
      %v2296 = vcombine.low %v2274, %v2288
      %v2297 = vcombine.high %v2274, %v2288
      %v2298 = vcombine.low %v2281, %v2295
      %v2299 = vcombine.high %v2281, %v2295
      %v2300 = vcombine.low %v1482, %v1483
      %v2302 = vunpack.c.l.s4 1966171168
      %v2303 = vunpack.c.0.s8 %v2302
      %v2304 = vlaneseq
      %v2305 = vshrl.u32 %v2304, 7
      %v2306 = vsub.s32 %v2303, %v2305
      %v2307 = vrot.slane %v2300, %v2306
      %v2308 = vcombine.high %v2307, %v2307
      %v2310 = vunpack.c.l.s4 1966171168
      %v2311 = vunpack.c.0.s8 %v2310
      %v2312 = vlaneseq
      %v2313 = vshrl.u32 %v2312, 7
      %v2314 = vsub.s32 %v2311, %v2313
      %v2315 = vrot.slane %v2307, %v2314
      %v2317 = vunpack.c.l.s4 1966171168
      %v2318 = vunpack.c.0.s8 %v2317
      %v2319 = vlaneseq
      %v2320 = vshrl.u32 %v2319, 7
      %v2321 = vsub.s32 %v2318, %v2320
      %v2322 = vrot.slane %v2308, %v2321
      %v2323 = vcombine.high %v2315, %v2315
      %v2324 = vcombine.high %v2322, %v2322
      %v2414 = vunpack.c.l.b16 %v1336
      %v2415 = vunpack.c.l.b16 %v1337
      %v2416 = vunpack.c.l.b16 %v1338
      %v2417 = vunpack.c.l.b16 %v1339
      %v2418 = vunpack.c.l.b16 %v1340
      %v2419 = vunpack.c.l.b16 %v1341
      %v2420 = vunpack.c.l.b16 %v1342
      %v2421 = vunpack.c.l.b16 %v1343
      %v2422 = vunpack.c.l.b16 %v1344
      %v2423 = vunpack.c.l.b16 %v1345
      %v2424 = vunpack.c.l.b16 %v1346
      %v2425 = vunpack.c.l.b16 %v1347
      %v2426 = vunpack.c.l.b16 %v1348
      %v2427 = vunpack.c.l.b16 %v1349
      %v2428 = vunpack.c.l.b16 %v1350
      %v2429 = vunpack.c.l.b16 %v1351
      %v2430 = vunpack.c.l.b16 %v1352
      %v2431 = vunpack.c.l.b16 %v1353
      %v2432 = vunpack.c.l.b16 %v1354
      %v2433 = vunpack.c.l.b16 %v1355
      %v2434 = vunpack.c.l.b16 %v1356
      %v2435 = vunpack.c.l.b16 %v1357
      %v2436 = vunpack.c.l.b16 %v1358
      %v2437 = vunpack.c.l.b16 %v1359
      %v2438 = vunpack.c.l.b16 %v1360
      %v2439 = vunpack.c.l.b16 %v1361
      %v2440 = vunpack.c.l.b16 %v1362
      %v2441 = vunpack.c.l.b16 %v1363
      %v2442 = vunpack.c.l.b16 %v1364
      %v2443 = vunpack.c.l.b16 %v1365
      %v2444 = vunpack.c.l.b16 %v1366
      %v2445 = vunpack.c.l.b16 %v1367
      %v2446 = vunpack.c.l.b16 %v1368
      %v2447 = vunpack.c.l.b16 %v1369
      %v2448 = vunpack.c.l.b16 %v1370
      %v2449 = vunpack.c.l.b16 %v1371
      %v2450 = vunpack.c.l.b16 %v1372
      %v2451 = vunpack.c.l.b16 %v1373
      %v2452 = vunpack.c.l.b16 %v1374
      %v2453 = vunpack.c.l.b16 %v1375
      %v2454 = vunpack.c.l.b16 %v1376
      %v2455 = vunpack.c.l.b16 %v1377
      %v2456 = vunpack.c.l.b16 %v1378
      %v2457 = vunpack.c.l.b16 %v1379
      %v2458 = vunpack.c.l.b16 %v1380
      %v2459 = vunpack.c.l.b16 %v1381
      %v2460 = vunpack.c.l.b16 %v1382
      %v2461 = vunpack.c.l.b16 %v1383
      %v2462 = vunpack.c.l.b16 %v1384
      %v2463 = vunpack.c.l.b16 %v1385
      %v2464 = vpack.c.b16 %v2415, %v2414
      %v2465 = vpack.c.b16 %v2417, %v2416
      %v2466 = vpack.c.b16 %v2419, %v2418
      %v2467 = vpack.c.b16 %v2421, %v2420
      %v2468 = vpack.c.b16 %v2423, %v2422
      %v2469 = vpack.c.b16 %v2425, %v2424
      %v2470 = vpack.c.b16 %v2427, %v2426
      %v2471 = vpack.c.b16 %v2429, %v2428
      %v2472 = vpack.c.b16 %v2431, %v2430
      %v2473 = vpack.c.b16 %v2433, %v2432
      %v2474 = vpack.c.b16 %v2435, %v2434
      %v2475 = vpack.c.b16 %v2437, %v2436
      %v2476 = vpack.c.b16 %v2439, %v2438
      %v2477 = vpack.c.b16 %v2441, %v2440
      %v2478 = vpack.c.b16 %v2443, %v2442
      %v2479 = vpack.c.b16 %v2445, %v2444
      %v2480 = vpack.c.b16 %v2447, %v2446
      %v2481 = vpack.c.b16 %v2449, %v2448
      %v2482 = vpack.c.b16 %v2451, %v2450
      %v2483 = vpack.c.b16 %v2453, %v2452
      %v2484 = vpack.c.b16 %v2455, %v2454
      %v2485 = vpack.c.b16 %v2457, %v2456
      %v2486 = vpack.c.b16 %v2459, %v2458
      %v2487 = vpack.c.b16 %v2461, %v2460
      %v2488 = vpack.c.b16 %v2463, %v2462
      %vm2514 = vcmask 130048
      %v2516 = vsel %vm2514, %v1551, 0
      %v2519 = vsel %vm2514, %v1619, 0
      %v2522 = vsel %vm2514, %v1687, 0
      %v2525 = vsel %vm2514, %v1755, 0
      %v2528 = vsel %vm2514, %v1823, 0
      %v2531 = vsel %vm2514, %v1891, 0
      %v2534 = vsel %vm2514, %v1959, 0
      %v2537 = vsel %vm2514, %v2027, 0
      %v2540 = vsel %vm2514, %v2095, 0
      %v2543 = vsel %vm2514, %v2163, 0
      %v2546 = vsel %vm2514, %v2231, 0
      %v2549 = vsel %vm2514, %v2299, 0
      %v2552 = vsel %vm2514, %v2324, 0
      %2554 = vmatprep.subr.bf16.mxu0 0
      %2555 = vmatpush1.bf16.msra.mxu0 %v2471
      %2556 = vmatprep.subr.bf16.mxu0 0
      %2557 = vmatpush1.bf16.msra.mxu0 %v2470
      %2558 = vmatprep.subr.bf16.mxu0 0
      %2559 = vmatpush1.bf16.msra.mxu0 %v2469
      %2560 = vmatprep.subr.bf16.mxu0 0
      %2561 = vmatpush1.bf16.msra.mxu0 %v2468
      %2562 = vmatprep.subr.bf16.mxu0 0
      %2563 = vmatpush1.bf16.msra.mxu0 %v2467
      %2564 = vmatprep.subr.bf16.mxu0 0
      %2565 = vmatpush1.bf16.msra.mxu0 %v2466
      %2566 = vmatprep.subr.bf16.mxu0 0
      %2567 = vmatpush1.bf16.msra.mxu0 %v2465
      %2568 = vmatprep.subr.bf16.mxu0 0
      %2569 = vmatpush1.bf16.msra.mxu0 %v2464
      %2570 = vmatprep.subr.bf16.mxu0 0
      %2571 = vmatpush2.bf16.msra.mxu0 %v2479
      %2572 = vmatprep.subr.bf16.mxu0 0
      %2573 = vmatpush2.bf16.msra.mxu0 %v2478
      %2574 = vmatprep.subr.bf16.mxu0 0
      %2575 = vmatpush2.bf16.msra.mxu0 %v2477
      %2576 = vmatprep.subr.bf16.mxu0 0
      %2577 = vmatpush2.bf16.msra.mxu0 %v2476
      %2578 = vmatprep.subr.bf16.mxu0 0
      %2579 = vmatpush2.bf16.msra.mxu0 %v2475
      %2580 = vmatprep.subr.bf16.mxu0 0
      %2581 = vmatpush2.bf16.msra.mxu0 %v2474
      %2582 = vmatprep.subr.bf16.mxu0 0
      %2583 = vmatpush2.bf16.msra.mxu0 %v2473
      %2584 = vmatprep.subr.bf16.mxu0 0
      %2585 = vmatpush2.bf16.msra.mxu0 %v2472
      %2586 = vmatprep.mubr.bf16.mxu0 %v1550
      %2587 = vmatmul.mubr.bf16.gmra.mxu0 %v1548
      %v2588 = vpop.f32.mrf.mxu0
      %v2589 = vadd.f32 0.0, %v2588
      %v2590 = vpop.f32.mrf.mxu0
      %v2591 = vpop.f32.mrf.mxu0
      %v2592 = vadd.f32 0.0, %v2591
      %v2593 = vpop.f32.mrf.mxu0
      %2594 = vmatprep.mubr.bf16.mxu0 %v1618
      %2595 = vmatmul.mubr.bf16.gmra.mxu0 %v1616
      %v2596 = vpop.f32.mrf.mxu0
      %v2597 = vadd.f32 0.0, %v2596
      %v2598 = vpop.f32.mrf.mxu0
      %v2599 = vpop.f32.mrf.mxu0
      %v2600 = vadd.f32 0.0, %v2599
      %v2601 = vpop.f32.mrf.mxu0
      %2602 = vmatprep.mubr.bf16.mxu0 %v1686
      %2603 = vmatmul.mubr.bf16.gmra.mxu0 %v1684
      %v2604 = vpop.f32.mrf.mxu0
      %v2605 = vadd.f32 0.0, %v2604
      %v2606 = vpop.f32.mrf.mxu0
      %v2607 = vpop.f32.mrf.mxu0
      %v2608 = vadd.f32 0.0, %v2607
      %v2609 = vpop.f32.mrf.mxu0
      %2610 = vmatprep.mubr.bf16.mxu0 %v1754
      %2611 = vmatmul.mubr.bf16.gmra.mxu0 %v1752
      %v2612 = vpop.f32.mrf.mxu0
      %v2613 = vadd.f32 0.0, %v2612
      %v2614 = vpop.f32.mrf.mxu0
      %v2615 = vpop.f32.mrf.mxu0
      %v2616 = vadd.f32 0.0, %v2615
      %v2617 = vpop.f32.mrf.mxu0
      %2618 = vmatprep.mubr.bf16.mxu0 %v1822
      %2619 = vmatmul.mubr.bf16.gmra.mxu0 %v1820
      %v2620 = vpop.f32.mrf.mxu0
      %v2621 = vadd.f32 0.0, %v2620
      %v2622 = vpop.f32.mrf.mxu0
      %v2623 = vpop.f32.mrf.mxu0
      %v2624 = vadd.f32 0.0, %v2623
      %v2625 = vpop.f32.mrf.mxu0
      %2626 = vmatprep.mubr.bf16.mxu0 %v1890
      %2627 = vmatmul.mubr.bf16.gmra.mxu0 %v1888
      %v2628 = vpop.f32.mrf.mxu0
      %v2629 = vadd.f32 0.0, %v2628
      %v2630 = vpop.f32.mrf.mxu0
      %v2631 = vpop.f32.mrf.mxu0
      %v2632 = vadd.f32 0.0, %v2631
      %v2633 = vpop.f32.mrf.mxu0
      %2634 = vmatprep.mubr.bf16.mxu0 %v1958
      %2635 = vmatmul.mubr.bf16.gmra.mxu0 %v1956
      %v2636 = vpop.f32.mrf.mxu0
      %v2637 = vadd.f32 0.0, %v2636
      %v2638 = vpop.f32.mrf.mxu0
      %v2639 = vpop.f32.mrf.mxu0
      %v2640 = vadd.f32 0.0, %v2639
      %v2641 = vpop.f32.mrf.mxu0
      %2642 = vmatprep.mubr.bf16.mxu0 %v2026
      %2643 = vmatmul.mubr.bf16.gmra.mxu0 %v2024
      %v2644 = vpop.f32.mrf.mxu0
      %v2645 = vadd.f32 0.0, %v2644
      %v2646 = vpop.f32.mrf.mxu0
      %v2647 = vpop.f32.mrf.mxu0
      %v2648 = vadd.f32 0.0, %v2647
      %v2649 = vpop.f32.mrf.mxu0
      %2650 = vmatprep.mubr.bf16.mxu0 %v2094
      %2651 = vmatmul.mubr.bf16.gmra.mxu0 %v2092
      %v2652 = vpop.f32.mrf.mxu0
      %v2653 = vadd.f32 0.0, %v2652
      %v2654 = vpop.f32.mrf.mxu0
      %v2655 = vpop.f32.mrf.mxu0
      %v2656 = vadd.f32 0.0, %v2655
      %v2657 = vpop.f32.mrf.mxu0
      %2658 = vmatprep.mubr.bf16.mxu0 %v2162
      %2659 = vmatmul.mubr.bf16.gmra.mxu0 %v2160
      %v2660 = vpop.f32.mrf.mxu0
      %v2661 = vadd.f32 0.0, %v2660
      %v2662 = vpop.f32.mrf.mxu0
      %v2663 = vpop.f32.mrf.mxu0
      %v2664 = vadd.f32 0.0, %v2663
      %v2665 = vpop.f32.mrf.mxu0
      %2666 = vmatprep.mubr.bf16.mxu0 %v2230
      %2667 = vmatmul.mubr.bf16.gmra.mxu0 %v2228
      %v2668 = vpop.f32.mrf.mxu0
      %v2669 = vadd.f32 0.0, %v2668
      %v2670 = vpop.f32.mrf.mxu0
      %v2671 = vpop.f32.mrf.mxu0
      %v2672 = vadd.f32 0.0, %v2671
      %v2673 = vpop.f32.mrf.mxu0
      %2674 = vmatprep.mubr.bf16.mxu0 %v2298
      %2675 = vmatmul.mubr.bf16.gmra.mxu0 %v2296
      %v2676 = vpop.f32.mrf.mxu0
      %v2677 = vadd.f32 0.0, %v2676
      %v2678 = vpop.f32.mrf.mxu0
      %v2679 = vpop.f32.mrf.mxu0
      %v2680 = vadd.f32 0.0, %v2679
      %v2681 = vpop.f32.mrf.mxu0
      %2682 = vmatprep.mubr.bf16.mxu0 %v2322
      %2683 = vmatmul.mubr.bf16.gmra.mxu0 %v2315
      %v2684 = vpop.f32.mrf.mxu0
      %v2685 = vadd.f32 0.0, %v2684
      %v2686 = vpop.f32.mrf.mxu0
      %v2687 = vpop.f32.mrf.mxu0
      %v2688 = vpop.f32.mrf.mxu0
      %2689 = vdwg.mxu0
      %2690 = vmatprep.subr.bf16.mxu0 0
      %2691 = vmatpush1.bf16.msra.mxu0 %v2487
      %2692 = vmatprep.subr.bf16.mxu0 0
      %2693 = vmatpush1.bf16.msra.mxu0 %v2486
      %2694 = vmatprep.subr.bf16.mxu0 0
      %2695 = vmatpush1.bf16.msra.mxu0 %v2485
      %2696 = vmatprep.subr.bf16.mxu0 0
      %2697 = vmatpush1.bf16.msra.mxu0 %v2484
      %2698 = vmatprep.subr.bf16.mxu0 0
      %2699 = vmatpush1.bf16.msra.mxu0 %v2483
      %2700 = vmatprep.subr.bf16.mxu0 0
      %2701 = vmatpush1.bf16.msra.mxu0 %v2482
      %2702 = vmatprep.subr.bf16.mxu0 0
      %2703 = vmatpush1.bf16.msra.mxu0 %v2481
      %2704 = vmatprep.subr.bf16.mxu0 0
      %2705 = vmatpush1.bf16.msra.mxu0 %v2480
      %2706 = vmatprep.subr.bf16.mxu0 0
      %2707 = vmatpush2.bf16.msra.mxu0 0
      %2708 = vmatprep.subr.bf16.mxu0 0
      %2709 = vmatpush2.bf16.msra.mxu0 0
      %2710 = vmatprep.subr.bf16.mxu0 0
      %2711 = vmatpush2.bf16.msra.mxu0 0
      %2712 = vmatprep.subr.bf16.mxu0 0
      %2713 = vmatpush2.bf16.msra.mxu0 0
      %2714 = vmatprep.subr.bf16.mxu0 0
      %2715 = vmatpush2.bf16.msra.mxu0 0
      %2716 = vmatprep.subr.bf16.mxu0 0
      %2717 = vmatpush2.bf16.msra.mxu0 0
      %2718 = vmatprep.subr.bf16.mxu0 0
      %2719 = vmatpush2.bf16.msra.mxu0 0
      %2720 = vmatprep.subr.bf16.mxu0 0
      %2721 = vmatpush2.bf16.msra.mxu0 %v2488
      %2722 = vmatprep.mubr.bf16.mxu0 %v2516
      %2723 = vmatmul.mubr.bf16.gmra.mxu0 %v1549
      %v2724 = vpop.f32.mrf.mxu0
      %v2725 = vadd.f32 %v2589, %v2724
      %v2726 = vpop.f32.mrf.mxu0
      %v2727 = vpop.f32.mrf.mxu0
      %v2728 = vadd.f32 %v2592, %v2727
      %v2729 = vpop.f32.mrf.mxu0
      %2730 = vmatprep.mubr.bf16.mxu0 %v2519
      %2731 = vmatmul.mubr.bf16.gmra.mxu0 %v1617
      %v2732 = vpop.f32.mrf.mxu0
      %v2733 = vadd.f32 %v2597, %v2732
      %v2734 = vpop.f32.mrf.mxu0
      %v2735 = vpop.f32.mrf.mxu0
      %v2736 = vadd.f32 %v2600, %v2735
      %v2737 = vpop.f32.mrf.mxu0
      %2738 = vmatprep.mubr.bf16.mxu0 %v2522
      %2739 = vmatmul.mubr.bf16.gmra.mxu0 %v1685
      %v2740 = vpop.f32.mrf.mxu0
      %v2741 = vadd.f32 %v2605, %v2740
      %v2742 = vpop.f32.mrf.mxu0
      %v2743 = vpop.f32.mrf.mxu0
      %v2744 = vadd.f32 %v2608, %v2743
      %v2745 = vpop.f32.mrf.mxu0
      %2746 = vmatprep.mubr.bf16.mxu0 %v2525
      %2747 = vmatmul.mubr.bf16.gmra.mxu0 %v1753
      %v2748 = vpop.f32.mrf.mxu0
      %v2749 = vadd.f32 %v2613, %v2748
      %v2750 = vpop.f32.mrf.mxu0
      %v2751 = vpop.f32.mrf.mxu0
      %v2752 = vadd.f32 %v2616, %v2751
      %v2753 = vpop.f32.mrf.mxu0
      %2754 = vmatprep.mubr.bf16.mxu0 %v2528
      %2755 = vmatmul.mubr.bf16.gmra.mxu0 %v1821
      %v2756 = vpop.f32.mrf.mxu0
      %v2757 = vadd.f32 %v2621, %v2756
      %v2758 = vpop.f32.mrf.mxu0
      %v2759 = vpop.f32.mrf.mxu0
      %v2760 = vadd.f32 %v2624, %v2759
      %v2761 = vpop.f32.mrf.mxu0
      %2762 = vmatprep.mubr.bf16.mxu0 %v2531
      %2763 = vmatmul.mubr.bf16.gmra.mxu0 %v1889
      %v2764 = vpop.f32.mrf.mxu0
      %v2765 = vadd.f32 %v2629, %v2764
      %v2766 = vpop.f32.mrf.mxu0
      %v2767 = vpop.f32.mrf.mxu0
      %v2768 = vadd.f32 %v2632, %v2767
      %v2769 = vpop.f32.mrf.mxu0
      %2770 = vmatprep.mubr.bf16.mxu0 %v2534
      %2771 = vmatmul.mubr.bf16.gmra.mxu0 %v1957
      %v2772 = vpop.f32.mrf.mxu0
      %v2773 = vadd.f32 %v2637, %v2772
      %v2774 = vpop.f32.mrf.mxu0
      %v2775 = vpop.f32.mrf.mxu0
      %v2776 = vadd.f32 %v2640, %v2775
      %v2777 = vpop.f32.mrf.mxu0
      %2778 = vmatprep.mubr.bf16.mxu0 %v2537
      %2779 = vmatmul.mubr.bf16.gmra.mxu0 %v2025
      %v2780 = vpop.f32.mrf.mxu0
      %v2781 = vadd.f32 %v2645, %v2780
      %v2782 = vpop.f32.mrf.mxu0
      %v2783 = vpop.f32.mrf.mxu0
      %v2784 = vadd.f32 %v2648, %v2783
      %v2785 = vpop.f32.mrf.mxu0
      %2786 = vmatprep.mubr.bf16.mxu0 %v2540
      %2787 = vmatmul.mubr.bf16.gmra.mxu0 %v2093
      %v2788 = vpop.f32.mrf.mxu0
      %v2789 = vadd.f32 %v2653, %v2788
      %v2790 = vpop.f32.mrf.mxu0
      %v2791 = vpop.f32.mrf.mxu0
      %v2792 = vadd.f32 %v2656, %v2791
      %v2793 = vpop.f32.mrf.mxu0
      %2794 = vmatprep.mubr.bf16.mxu0 %v2543
      %2795 = vmatmul.mubr.bf16.gmra.mxu0 %v2161
      %v2796 = vpop.f32.mrf.mxu0
      %v2797 = vadd.f32 %v2661, %v2796
      %v2798 = vpop.f32.mrf.mxu0
      %v2799 = vpop.f32.mrf.mxu0
      %v2800 = vadd.f32 %v2664, %v2799
      %v2801 = vpop.f32.mrf.mxu0
      %2802 = vmatprep.mubr.bf16.mxu0 %v2546
      %2803 = vmatmul.mubr.bf16.gmra.mxu0 %v2229
      %v2804 = vpop.f32.mrf.mxu0
      %v2805 = vadd.f32 %v2669, %v2804
      %v2806 = vpop.f32.mrf.mxu0
      %v2807 = vpop.f32.mrf.mxu0
      %v2808 = vadd.f32 %v2672, %v2807
      %v2809 = vpop.f32.mrf.mxu0
      %2810 = vmatprep.mubr.bf16.mxu0 %v2549
      %2811 = vmatmul.mubr.bf16.gmra.mxu0 %v2297
      %v2812 = vpop.f32.mrf.mxu0
      %v2813 = vadd.f32 %v2677, %v2812
      %v2814 = vpop.f32.mrf.mxu0
      %v2815 = vpop.f32.mrf.mxu0
      %v2816 = vadd.f32 %v2680, %v2815
      %v2817 = vpop.f32.mrf.mxu0
      %2818 = vmatprep.mubr.bf16.mxu0 %v2552
      %2819 = vmatmul.mubr.bf16.gmra.mxu0 %v2323
      %v2820 = vpop.f32.mrf.mxu0
      %v2821 = vadd.f32 %v2685, %v2820
      %v2822 = vpop.f32.mrf.mxu0
      %v2823 = vpop.f32.mrf.mxu0
      %v2824 = vpop.f32.mrf.mxu0
      %2825 = vdwg.mxu0
      %v2851 = vcombine.high %v2725, %v2725
      %v2853 = vunpack.c.l.s4 1966171168
      %v2854 = vunpack.c.0.s8 %v2853
      %v2855 = vlaneseq
      %v2856 = vshrl.u32 %v2855, 7
      %v2857 = vsub.s32 %v2854, %v2856
      %v2858 = vrot.slane %v2725, %v2857
      %v2860 = vunpack.c.l.s4 1966171168
      %v2861 = vunpack.c.0.s8 %v2860
      %v2862 = vlaneseq
      %v2863 = vshrl.u32 %v2862, 7
      %v2864 = vsub.s32 %v2861, %v2863
      %v2865 = vrot.slane %v2851, %v2864
      %v2866 = vcombine.high %v2858, %v2858
      %v2867 = vcombine.high %v2865, %v2865
      %v2869 = vunpack.c.l.s4 1966171168
      %v2870 = vunpack.c.0.s8 %v2869
      %v2871 = vlaneseq
      %v2872 = vshrl.u32 %v2871, 7
      %v2873 = vsub.s32 %v2870, %v2872
      %v2874 = vrot.slane %v2858, %v2873
      %v2876 = vunpack.c.l.s4 1966171168
      %v2877 = vunpack.c.0.s8 %v2876
      %v2878 = vlaneseq
      %v2879 = vshrl.u32 %v2878, 7
      %v2880 = vsub.s32 %v2877, %v2879
      %v2881 = vrot.slane %v2865, %v2880
      %v2883 = vunpack.c.l.s4 1966171168
      %v2884 = vunpack.c.0.s8 %v2883
      %v2885 = vlaneseq
      %v2886 = vshrl.u32 %v2885, 7
      %v2887 = vsub.s32 %v2884, %v2886
      %v2888 = vrot.slane %v2866, %v2887
      %v2890 = vunpack.c.l.s4 1966171168
      %v2891 = vunpack.c.0.s8 %v2890
      %v2892 = vlaneseq
      %v2893 = vshrl.u32 %v2892, 7
      %v2894 = vsub.s32 %v2891, %v2893
      %v2895 = vrot.slane %v2867, %v2894
      %v2896 = vcombine.high %v2874, %v2874
      %v2897 = vcombine.high %v2881, %v2881
      %v2898 = vcombine.high %v2888, %v2888
      %v2899 = vcombine.high %v2895, %v2895
      %v2900 = vcombine.high %v2728, %v2728
      %v2902 = vunpack.c.l.s4 1966171168
      %v2903 = vunpack.c.0.s8 %v2902
      %v2904 = vlaneseq
      %v2905 = vshrl.u32 %v2904, 7
      %v2906 = vsub.s32 %v2903, %v2905
      %v2907 = vrot.slane %v2728, %v2906
      %v2909 = vunpack.c.l.s4 1966171168
      %v2910 = vunpack.c.0.s8 %v2909
      %v2911 = vlaneseq
      %v2912 = vshrl.u32 %v2911, 7
      %v2913 = vsub.s32 %v2910, %v2912
      %v2914 = vrot.slane %v2900, %v2913
      %v2915 = vcombine.high %v2907, %v2907
      %v2916 = vcombine.high %v2914, %v2914
      %v2918 = vunpack.c.l.s4 1966171168
      %v2919 = vunpack.c.0.s8 %v2918
      %v2920 = vlaneseq
      %v2921 = vshrl.u32 %v2920, 7
      %v2922 = vsub.s32 %v2919, %v2921
      %v2923 = vrot.slane %v2907, %v2922
      %v2925 = vunpack.c.l.s4 1966171168
      %v2926 = vunpack.c.0.s8 %v2925
      %v2927 = vlaneseq
      %v2928 = vshrl.u32 %v2927, 7
      %v2929 = vsub.s32 %v2926, %v2928
      %v2930 = vrot.slane %v2914, %v2929
      %v2932 = vunpack.c.l.s4 1966171168
      %v2933 = vunpack.c.0.s8 %v2932
      %v2934 = vlaneseq
      %v2935 = vshrl.u32 %v2934, 7
      %v2936 = vsub.s32 %v2933, %v2935
      %v2937 = vrot.slane %v2915, %v2936
      %v2939 = vunpack.c.l.s4 1966171168
      %v2940 = vunpack.c.0.s8 %v2939
      %v2941 = vlaneseq
      %v2942 = vshrl.u32 %v2941, 7
      %v2943 = vsub.s32 %v2940, %v2942
      %v2944 = vrot.slane %v2916, %v2943
      %v2945 = vcombine.high %v2923, %v2923
      %v2946 = vcombine.high %v2930, %v2930
      %v2947 = vcombine.high %v2937, %v2937
      %v2948 = vcombine.high %v2944, %v2944
      %v2949 = vcombine.high %v2733, %v2733
      %v2951 = vunpack.c.l.s4 1966171168
      %v2952 = vunpack.c.0.s8 %v2951
      %v2953 = vlaneseq
      %v2954 = vshrl.u32 %v2953, 7
      %v2955 = vsub.s32 %v2952, %v2954
      %v2956 = vrot.slane %v2733, %v2955
      %v2958 = vunpack.c.l.s4 1966171168
      %v2959 = vunpack.c.0.s8 %v2958
      %v2960 = vlaneseq
      %v2961 = vshrl.u32 %v2960, 7
      %v2962 = vsub.s32 %v2959, %v2961
      %v2963 = vrot.slane %v2949, %v2962
      %v2964 = vcombine.high %v2956, %v2956
      %v2965 = vcombine.high %v2963, %v2963
      %v2967 = vunpack.c.l.s4 1966171168
      %v2968 = vunpack.c.0.s8 %v2967
      %v2969 = vlaneseq
      %v2970 = vshrl.u32 %v2969, 7
      %v2971 = vsub.s32 %v2968, %v2970
      %v2972 = vrot.slane %v2956, %v2971
      %v2974 = vunpack.c.l.s4 1966171168
      %v2975 = vunpack.c.0.s8 %v2974
      %v2976 = vlaneseq
      %v2977 = vshrl.u32 %v2976, 7
      %v2978 = vsub.s32 %v2975, %v2977
      %v2979 = vrot.slane %v2963, %v2978
      %v2981 = vunpack.c.l.s4 1966171168
      %v2982 = vunpack.c.0.s8 %v2981
      %v2983 = vlaneseq
      %v2984 = vshrl.u32 %v2983, 7
      %v2985 = vsub.s32 %v2982, %v2984
      %v2986 = vrot.slane %v2964, %v2985
      %v2988 = vunpack.c.l.s4 1966171168
      %v2989 = vunpack.c.0.s8 %v2988
      %v2990 = vlaneseq
      %v2991 = vshrl.u32 %v2990, 7
      %v2992 = vsub.s32 %v2989, %v2991
      %v2993 = vrot.slane %v2965, %v2992
      %v2994 = vcombine.high %v2972, %v2972
      %v2995 = vcombine.high %v2979, %v2979
      %v2996 = vcombine.high %v2986, %v2986
      %v2997 = vcombine.high %v2993, %v2993
      %v2998 = vcombine.high %v2736, %v2736
      %v3000 = vunpack.c.l.s4 1966171168
      %v3001 = vunpack.c.0.s8 %v3000
      %v3002 = vlaneseq
      %v3003 = vshrl.u32 %v3002, 7
      %v3004 = vsub.s32 %v3001, %v3003
      %v3005 = vrot.slane %v2736, %v3004
      %v3007 = vunpack.c.l.s4 1966171168
      %v3008 = vunpack.c.0.s8 %v3007
      %v3009 = vlaneseq
      %v3010 = vshrl.u32 %v3009, 7
      %v3011 = vsub.s32 %v3008, %v3010
      %v3012 = vrot.slane %v2998, %v3011
      %v3013 = vcombine.high %v3005, %v3005
      %v3014 = vcombine.high %v3012, %v3012
      %v3016 = vunpack.c.l.s4 1966171168
      %v3017 = vunpack.c.0.s8 %v3016
      %v3018 = vlaneseq
      %v3019 = vshrl.u32 %v3018, 7
      %v3020 = vsub.s32 %v3017, %v3019
      %v3021 = vrot.slane %v3005, %v3020
      %v3023 = vunpack.c.l.s4 1966171168
      %v3024 = vunpack.c.0.s8 %v3023
      %v3025 = vlaneseq
      %v3026 = vshrl.u32 %v3025, 7
      %v3027 = vsub.s32 %v3024, %v3026
      %v3028 = vrot.slane %v3012, %v3027
      %v3030 = vunpack.c.l.s4 1966171168
      %v3031 = vunpack.c.0.s8 %v3030
      %v3032 = vlaneseq
      %v3033 = vshrl.u32 %v3032, 7
      %v3034 = vsub.s32 %v3031, %v3033
      %v3035 = vrot.slane %v3013, %v3034
      %v3037 = vunpack.c.l.s4 1966171168
      %v3038 = vunpack.c.0.s8 %v3037
      %v3039 = vlaneseq
      %v3040 = vshrl.u32 %v3039, 7
      %v3041 = vsub.s32 %v3038, %v3040
      %v3042 = vrot.slane %v3014, %v3041
      %v3043 = vcombine.high %v3021, %v3021
      %v3044 = vcombine.high %v3028, %v3028
      %v3045 = vcombine.high %v3035, %v3035
      %v3046 = vcombine.high %v3042, %v3042
      %v3047 = vcombine.high %v2741, %v2741
      %v3049 = vunpack.c.l.s4 1966171168
      %v3050 = vunpack.c.0.s8 %v3049
      %v3051 = vlaneseq
      %v3052 = vshrl.u32 %v3051, 7
      %v3053 = vsub.s32 %v3050, %v3052
      %v3054 = vrot.slane %v2741, %v3053
      %v3056 = vunpack.c.l.s4 1966171168
      %v3057 = vunpack.c.0.s8 %v3056
      %v3058 = vlaneseq
      %v3059 = vshrl.u32 %v3058, 7
      %v3060 = vsub.s32 %v3057, %v3059
      %v3061 = vrot.slane %v3047, %v3060
      %v3062 = vcombine.high %v3054, %v3054
      %v3063 = vcombine.high %v3061, %v3061
      %v3065 = vunpack.c.l.s4 1966171168
      %v3066 = vunpack.c.0.s8 %v3065
      %v3067 = vlaneseq
      %v3068 = vshrl.u32 %v3067, 7
      %v3069 = vsub.s32 %v3066, %v3068
      %v3070 = vrot.slane %v3054, %v3069
      %v3072 = vunpack.c.l.s4 1966171168
      %v3073 = vunpack.c.0.s8 %v3072
      %v3074 = vlaneseq
      %v3075 = vshrl.u32 %v3074, 7
      %v3076 = vsub.s32 %v3073, %v3075
      %v3077 = vrot.slane %v3061, %v3076
      %v3079 = vunpack.c.l.s4 1966171168
      %v3080 = vunpack.c.0.s8 %v3079
      %v3081 = vlaneseq
      %v3082 = vshrl.u32 %v3081, 7
      %v3083 = vsub.s32 %v3080, %v3082
      %v3084 = vrot.slane %v3062, %v3083
      %v3086 = vunpack.c.l.s4 1966171168
      %v3087 = vunpack.c.0.s8 %v3086
      %v3088 = vlaneseq
      %v3089 = vshrl.u32 %v3088, 7
      %v3090 = vsub.s32 %v3087, %v3089
      %v3091 = vrot.slane %v3063, %v3090
      %v3092 = vcombine.high %v3070, %v3070
      %v3093 = vcombine.high %v3077, %v3077
      %v3094 = vcombine.high %v3084, %v3084
      %v3095 = vcombine.high %v3091, %v3091
      %v3096 = vcombine.high %v2744, %v2744
      %v3098 = vunpack.c.l.s4 1966171168
      %v3099 = vunpack.c.0.s8 %v3098
      %v3100 = vlaneseq
      %v3101 = vshrl.u32 %v3100, 7
      %v3102 = vsub.s32 %v3099, %v3101
      %v3103 = vrot.slane %v2744, %v3102
      %v3105 = vunpack.c.l.s4 1966171168
      %v3106 = vunpack.c.0.s8 %v3105
      %v3107 = vlaneseq
      %v3108 = vshrl.u32 %v3107, 7
      %v3109 = vsub.s32 %v3106, %v3108
      %v3110 = vrot.slane %v3096, %v3109
      %v3111 = vcombine.high %v3103, %v3103
      %v3112 = vcombine.high %v3110, %v3110
      %v3114 = vunpack.c.l.s4 1966171168
      %v3115 = vunpack.c.0.s8 %v3114
      %v3116 = vlaneseq
      %v3117 = vshrl.u32 %v3116, 7
      %v3118 = vsub.s32 %v3115, %v3117
      %v3119 = vrot.slane %v3103, %v3118
      %v3121 = vunpack.c.l.s4 1966171168
      %v3122 = vunpack.c.0.s8 %v3121
      %v3123 = vlaneseq
      %v3124 = vshrl.u32 %v3123, 7
      %v3125 = vsub.s32 %v3122, %v3124
      %v3126 = vrot.slane %v3110, %v3125
      %v3128 = vunpack.c.l.s4 1966171168
      %v3129 = vunpack.c.0.s8 %v3128
      %v3130 = vlaneseq
      %v3131 = vshrl.u32 %v3130, 7
      %v3132 = vsub.s32 %v3129, %v3131
      %v3133 = vrot.slane %v3111, %v3132
      %v3135 = vunpack.c.l.s4 1966171168
      %v3136 = vunpack.c.0.s8 %v3135
      %v3137 = vlaneseq
      %v3138 = vshrl.u32 %v3137, 7
      %v3139 = vsub.s32 %v3136, %v3138
      %v3140 = vrot.slane %v3112, %v3139
      %v3141 = vcombine.high %v3119, %v3119
      %v3142 = vcombine.high %v3126, %v3126
      %v3143 = vcombine.high %v3133, %v3133
      %v3144 = vcombine.high %v3140, %v3140
      %v3145 = vcombine.high %v2749, %v2749
      %v3147 = vunpack.c.l.s4 1966171168
      %v3148 = vunpack.c.0.s8 %v3147
      %v3149 = vlaneseq
      %v3150 = vshrl.u32 %v3149, 7
      %v3151 = vsub.s32 %v3148, %v3150
      %v3152 = vrot.slane %v2749, %v3151
      %v3154 = vunpack.c.l.s4 1966171168
      %v3155 = vunpack.c.0.s8 %v3154
      %v3156 = vlaneseq
      %v3157 = vshrl.u32 %v3156, 7
      %v3158 = vsub.s32 %v3155, %v3157
      %v3159 = vrot.slane %v3145, %v3158
      %v3160 = vcombine.high %v3152, %v3152
      %v3161 = vcombine.high %v3159, %v3159
      %v3163 = vunpack.c.l.s4 1966171168
      %v3164 = vunpack.c.0.s8 %v3163
      %v3165 = vlaneseq
      %v3166 = vshrl.u32 %v3165, 7
      %v3167 = vsub.s32 %v3164, %v3166
      %v3168 = vrot.slane %v3152, %v3167
      %v3170 = vunpack.c.l.s4 1966171168
      %v3171 = vunpack.c.0.s8 %v3170
      %v3172 = vlaneseq
      %v3173 = vshrl.u32 %v3172, 7
      %v3174 = vsub.s32 %v3171, %v3173
      %v3175 = vrot.slane %v3159, %v3174
      %v3177 = vunpack.c.l.s4 1966171168
      %v3178 = vunpack.c.0.s8 %v3177
      %v3179 = vlaneseq
      %v3180 = vshrl.u32 %v3179, 7
      %v3181 = vsub.s32 %v3178, %v3180
      %v3182 = vrot.slane %v3160, %v3181
      %v3184 = vunpack.c.l.s4 1966171168
      %v3185 = vunpack.c.0.s8 %v3184
      %v3186 = vlaneseq
      %v3187 = vshrl.u32 %v3186, 7
      %v3188 = vsub.s32 %v3185, %v3187
      %v3189 = vrot.slane %v3161, %v3188
      %v3190 = vcombine.high %v3168, %v3168
      %v3191 = vcombine.high %v3175, %v3175
      %v3192 = vcombine.high %v3182, %v3182
      %v3193 = vcombine.high %v3189, %v3189
      %v3194 = vcombine.high %v2752, %v2752
      %v3196 = vunpack.c.l.s4 1966171168
      %v3197 = vunpack.c.0.s8 %v3196
      %v3198 = vlaneseq
      %v3199 = vshrl.u32 %v3198, 7
      %v3200 = vsub.s32 %v3197, %v3199
      %v3201 = vrot.slane %v2752, %v3200
      %v3203 = vunpack.c.l.s4 1966171168
      %v3204 = vunpack.c.0.s8 %v3203
      %v3205 = vlaneseq
      %v3206 = vshrl.u32 %v3205, 7
      %v3207 = vsub.s32 %v3204, %v3206
      %v3208 = vrot.slane %v3194, %v3207
      %v3209 = vcombine.high %v3201, %v3201
      %v3210 = vcombine.high %v3208, %v3208
      %v3212 = vunpack.c.l.s4 1966171168
      %v3213 = vunpack.c.0.s8 %v3212
      %v3214 = vlaneseq
      %v3215 = vshrl.u32 %v3214, 7
      %v3216 = vsub.s32 %v3213, %v3215
      %v3217 = vrot.slane %v3201, %v3216
      %v3219 = vunpack.c.l.s4 1966171168
      %v3220 = vunpack.c.0.s8 %v3219
      %v3221 = vlaneseq
      %v3222 = vshrl.u32 %v3221, 7
      %v3223 = vsub.s32 %v3220, %v3222
      %v3224 = vrot.slane %v3208, %v3223
      %v3226 = vunpack.c.l.s4 1966171168
      %v3227 = vunpack.c.0.s8 %v3226
      %v3228 = vlaneseq
      %v3229 = vshrl.u32 %v3228, 7
      %v3230 = vsub.s32 %v3227, %v3229
      %v3231 = vrot.slane %v3209, %v3230
      %v3233 = vunpack.c.l.s4 1966171168
      %v3234 = vunpack.c.0.s8 %v3233
      %v3235 = vlaneseq
      %v3236 = vshrl.u32 %v3235, 7
      %v3237 = vsub.s32 %v3234, %v3236
      %v3238 = vrot.slane %v3210, %v3237
      %v3239 = vcombine.high %v3217, %v3217
      %v3240 = vcombine.high %v3224, %v3224
      %v3241 = vcombine.high %v3231, %v3231
      %v3242 = vcombine.high %v3238, %v3238
      %v3243 = vcombine.high %v2757, %v2757
      %v3245 = vunpack.c.l.s4 1966171168
      %v3246 = vunpack.c.0.s8 %v3245
      %v3247 = vlaneseq
      %v3248 = vshrl.u32 %v3247, 7
      %v3249 = vsub.s32 %v3246, %v3248
      %v3250 = vrot.slane %v2757, %v3249
      %v3252 = vunpack.c.l.s4 1966171168
      %v3253 = vunpack.c.0.s8 %v3252
      %v3254 = vlaneseq
      %v3255 = vshrl.u32 %v3254, 7
      %v3256 = vsub.s32 %v3253, %v3255
      %v3257 = vrot.slane %v3243, %v3256
      %v3258 = vcombine.high %v3250, %v3250
      %v3259 = vcombine.high %v3257, %v3257
      %v3261 = vunpack.c.l.s4 1966171168
      %v3262 = vunpack.c.0.s8 %v3261
      %v3263 = vlaneseq
      %v3264 = vshrl.u32 %v3263, 7
      %v3265 = vsub.s32 %v3262, %v3264
      %v3266 = vrot.slane %v3250, %v3265
      %v3268 = vunpack.c.l.s4 1966171168
      %v3269 = vunpack.c.0.s8 %v3268
      %v3270 = vlaneseq
      %v3271 = vshrl.u32 %v3270, 7
      %v3272 = vsub.s32 %v3269, %v3271
      %v3273 = vrot.slane %v3257, %v3272
      %v3275 = vunpack.c.l.s4 1966171168
      %v3276 = vunpack.c.0.s8 %v3275
      %v3277 = vlaneseq
      %v3278 = vshrl.u32 %v3277, 7
      %v3279 = vsub.s32 %v3276, %v3278
      %v3280 = vrot.slane %v3258, %v3279
      %v3282 = vunpack.c.l.s4 1966171168
      %v3283 = vunpack.c.0.s8 %v3282
      %v3284 = vlaneseq
      %v3285 = vshrl.u32 %v3284, 7
      %v3286 = vsub.s32 %v3283, %v3285
      %v3287 = vrot.slane %v3259, %v3286
      %v3288 = vcombine.high %v3266, %v3266
      %v3289 = vcombine.high %v3273, %v3273
      %v3290 = vcombine.high %v3280, %v3280
      %v3291 = vcombine.high %v3287, %v3287
      %v3292 = vcombine.high %v2760, %v2760
      %v3294 = vunpack.c.l.s4 1966171168
      %v3295 = vunpack.c.0.s8 %v3294
      %v3296 = vlaneseq
      %v3297 = vshrl.u32 %v3296, 7
      %v3298 = vsub.s32 %v3295, %v3297
      %v3299 = vrot.slane %v2760, %v3298
      %v3301 = vunpack.c.l.s4 1966171168
      %v3302 = vunpack.c.0.s8 %v3301
      %v3303 = vlaneseq
      %v3304 = vshrl.u32 %v3303, 7
      %v3305 = vsub.s32 %v3302, %v3304
      %v3306 = vrot.slane %v3292, %v3305
      %v3307 = vcombine.high %v3299, %v3299
      %v3308 = vcombine.high %v3306, %v3306
      %v3310 = vunpack.c.l.s4 1966171168
      %v3311 = vunpack.c.0.s8 %v3310
      %v3312 = vlaneseq
      %v3313 = vshrl.u32 %v3312, 7
      %v3314 = vsub.s32 %v3311, %v3313
      %v3315 = vrot.slane %v3299, %v3314
      %v3317 = vunpack.c.l.s4 1966171168
      %v3318 = vunpack.c.0.s8 %v3317
      %v3319 = vlaneseq
      %v3320 = vshrl.u32 %v3319, 7
      %v3321 = vsub.s32 %v3318, %v3320
      %v3322 = vrot.slane %v3306, %v3321
      %v3324 = vunpack.c.l.s4 1966171168
      %v3325 = vunpack.c.0.s8 %v3324
      %v3326 = vlaneseq
      %v3327 = vshrl.u32 %v3326, 7
      %v3328 = vsub.s32 %v3325, %v3327
      %v3329 = vrot.slane %v3307, %v3328
      %v3331 = vunpack.c.l.s4 1966171168
      %v3332 = vunpack.c.0.s8 %v3331
      %v3333 = vlaneseq
      %v3334 = vshrl.u32 %v3333, 7
      %v3335 = vsub.s32 %v3332, %v3334
      %v3336 = vrot.slane %v3308, %v3335
      %v3337 = vcombine.high %v3315, %v3315
      %v3338 = vcombine.high %v3322, %v3322
      %v3339 = vcombine.high %v3329, %v3329
      %v3340 = vcombine.high %v3336, %v3336
      %v3341 = vcombine.high %v2765, %v2765
      %v3343 = vunpack.c.l.s4 1966171168
      %v3344 = vunpack.c.0.s8 %v3343
      %v3345 = vlaneseq
      %v3346 = vshrl.u32 %v3345, 7
      %v3347 = vsub.s32 %v3344, %v3346
      %v3348 = vrot.slane %v2765, %v3347
      %v3350 = vunpack.c.l.s4 1966171168
      %v3351 = vunpack.c.0.s8 %v3350
      %v3352 = vlaneseq
      %v3353 = vshrl.u32 %v3352, 7
      %v3354 = vsub.s32 %v3351, %v3353
      %v3355 = vrot.slane %v3341, %v3354
      %v3356 = vcombine.high %v3348, %v3348
      %v3357 = vcombine.high %v3355, %v3355
      %v3359 = vunpack.c.l.s4 1966171168
      %v3360 = vunpack.c.0.s8 %v3359
      %v3361 = vlaneseq
      %v3362 = vshrl.u32 %v3361, 7
      %v3363 = vsub.s32 %v3360, %v3362
      %v3364 = vrot.slane %v3348, %v3363
      %v3366 = vunpack.c.l.s4 1966171168
      %v3367 = vunpack.c.0.s8 %v3366
      %v3368 = vlaneseq
      %v3369 = vshrl.u32 %v3368, 7
      %v3370 = vsub.s32 %v3367, %v3369
      %v3371 = vrot.slane %v3355, %v3370
      %v3373 = vunpack.c.l.s4 1966171168
      %v3374 = vunpack.c.0.s8 %v3373
      %v3375 = vlaneseq
      %v3376 = vshrl.u32 %v3375, 7
      %v3377 = vsub.s32 %v3374, %v3376
      %v3378 = vrot.slane %v3356, %v3377
      %v3380 = vunpack.c.l.s4 1966171168
      %v3381 = vunpack.c.0.s8 %v3380
      %v3382 = vlaneseq
      %v3383 = vshrl.u32 %v3382, 7
      %v3384 = vsub.s32 %v3381, %v3383
      %v3385 = vrot.slane %v3357, %v3384
      %v3386 = vcombine.high %v3364, %v3364
      %v3387 = vcombine.high %v3371, %v3371
      %v3388 = vcombine.high %v3378, %v3378
      %v3389 = vcombine.high %v3385, %v3385
      %v3390 = vcombine.high %v2768, %v2768
      %v3392 = vunpack.c.l.s4 1966171168
      %v3393 = vunpack.c.0.s8 %v3392
      %v3394 = vlaneseq
      %v3395 = vshrl.u32 %v3394, 7
      %v3396 = vsub.s32 %v3393, %v3395
      %v3397 = vrot.slane %v2768, %v3396
      %v3399 = vunpack.c.l.s4 1966171168
      %v3400 = vunpack.c.0.s8 %v3399
      %v3401 = vlaneseq
      %v3402 = vshrl.u32 %v3401, 7
      %v3403 = vsub.s32 %v3400, %v3402
      %v3404 = vrot.slane %v3390, %v3403
      %v3405 = vcombine.high %v3397, %v3397
      %v3406 = vcombine.high %v3404, %v3404
      %v3408 = vunpack.c.l.s4 1966171168
      %v3409 = vunpack.c.0.s8 %v3408
      %v3410 = vlaneseq
      %v3411 = vshrl.u32 %v3410, 7
      %v3412 = vsub.s32 %v3409, %v3411
      %v3413 = vrot.slane %v3397, %v3412
      %v3415 = vunpack.c.l.s4 1966171168
      %v3416 = vunpack.c.0.s8 %v3415
      %v3417 = vlaneseq
      %v3418 = vshrl.u32 %v3417, 7
      %v3419 = vsub.s32 %v3416, %v3418
      %v3420 = vrot.slane %v3404, %v3419
      %v3422 = vunpack.c.l.s4 1966171168
      %v3423 = vunpack.c.0.s8 %v3422
      %v3424 = vlaneseq
      %v3425 = vshrl.u32 %v3424, 7
      %v3426 = vsub.s32 %v3423, %v3425
      %v3427 = vrot.slane %v3405, %v3426
      %v3429 = vunpack.c.l.s4 1966171168
      %v3430 = vunpack.c.0.s8 %v3429
      %v3431 = vlaneseq
      %v3432 = vshrl.u32 %v3431, 7
      %v3433 = vsub.s32 %v3430, %v3432
      %v3434 = vrot.slane %v3406, %v3433
      %v3435 = vcombine.high %v3413, %v3413
      %v3436 = vcombine.high %v3420, %v3420
      %v3437 = vcombine.high %v3427, %v3427
      %v3438 = vcombine.high %v3434, %v3434
      %v3439 = vcombine.high %v2773, %v2773
      %v3441 = vunpack.c.l.s4 1966171168
      %v3442 = vunpack.c.0.s8 %v3441
      %v3443 = vlaneseq
      %v3444 = vshrl.u32 %v3443, 7
      %v3445 = vsub.s32 %v3442, %v3444
      %v3446 = vrot.slane %v2773, %v3445
      %v3448 = vunpack.c.l.s4 1966171168
      %v3449 = vunpack.c.0.s8 %v3448
      %v3450 = vlaneseq
      %v3451 = vshrl.u32 %v3450, 7
      %v3452 = vsub.s32 %v3449, %v3451
      %v3453 = vrot.slane %v3439, %v3452
      %v3454 = vcombine.high %v3446, %v3446
      %v3455 = vcombine.high %v3453, %v3453
      %v3457 = vunpack.c.l.s4 1966171168
      %v3458 = vunpack.c.0.s8 %v3457
      %v3459 = vlaneseq
      %v3460 = vshrl.u32 %v3459, 7
      %v3461 = vsub.s32 %v3458, %v3460
      %v3462 = vrot.slane %v3446, %v3461
      %v3464 = vunpack.c.l.s4 1966171168
      %v3465 = vunpack.c.0.s8 %v3464
      %v3466 = vlaneseq
      %v3467 = vshrl.u32 %v3466, 7
      %v3468 = vsub.s32 %v3465, %v3467
      %v3469 = vrot.slane %v3453, %v3468
      %v3471 = vunpack.c.l.s4 1966171168
      %v3472 = vunpack.c.0.s8 %v3471
      %v3473 = vlaneseq
      %v3474 = vshrl.u32 %v3473, 7
      %v3475 = vsub.s32 %v3472, %v3474
      %v3476 = vrot.slane %v3454, %v3475
      %v3478 = vunpack.c.l.s4 1966171168
      %v3479 = vunpack.c.0.s8 %v3478
      %v3480 = vlaneseq
      %v3481 = vshrl.u32 %v3480, 7
      %v3482 = vsub.s32 %v3479, %v3481
      %v3483 = vrot.slane %v3455, %v3482
      %v3484 = vcombine.high %v3462, %v3462
      %v3485 = vcombine.high %v3469, %v3469
      %v3486 = vcombine.high %v3476, %v3476
      %v3487 = vcombine.high %v3483, %v3483
      %v3488 = vcombine.high %v2776, %v2776
      %v3490 = vunpack.c.l.s4 1966171168
      %v3491 = vunpack.c.0.s8 %v3490
      %v3492 = vlaneseq
      %v3493 = vshrl.u32 %v3492, 7
      %v3494 = vsub.s32 %v3491, %v3493
      %v3495 = vrot.slane %v2776, %v3494
      %v3497 = vunpack.c.l.s4 1966171168
      %v3498 = vunpack.c.0.s8 %v3497
      %v3499 = vlaneseq
      %v3500 = vshrl.u32 %v3499, 7
      %v3501 = vsub.s32 %v3498, %v3500
      %v3502 = vrot.slane %v3488, %v3501
      %v3503 = vcombine.high %v3495, %v3495
      %v3504 = vcombine.high %v3502, %v3502
      %v3506 = vunpack.c.l.s4 1966171168
      %v3507 = vunpack.c.0.s8 %v3506
      %v3508 = vlaneseq
      %v3509 = vshrl.u32 %v3508, 7
      %v3510 = vsub.s32 %v3507, %v3509
      %v3511 = vrot.slane %v3495, %v3510
      %v3513 = vunpack.c.l.s4 1966171168
      %v3514 = vunpack.c.0.s8 %v3513
      %v3515 = vlaneseq
      %v3516 = vshrl.u32 %v3515, 7
      %v3517 = vsub.s32 %v3514, %v3516
      %v3518 = vrot.slane %v3502, %v3517
      %v3520 = vunpack.c.l.s4 1966171168
      %v3521 = vunpack.c.0.s8 %v3520
      %v3522 = vlaneseq
      %v3523 = vshrl.u32 %v3522, 7
      %v3524 = vsub.s32 %v3521, %v3523
      %v3525 = vrot.slane %v3503, %v3524
      %v3527 = vunpack.c.l.s4 1966171168
      %v3528 = vunpack.c.0.s8 %v3527
      %v3529 = vlaneseq
      %v3530 = vshrl.u32 %v3529, 7
      %v3531 = vsub.s32 %v3528, %v3530
      %v3532 = vrot.slane %v3504, %v3531
      %v3533 = vcombine.high %v3511, %v3511
      %v3534 = vcombine.high %v3518, %v3518
      %v3535 = vcombine.high %v3525, %v3525
      %v3536 = vcombine.high %v3532, %v3532
      %v3537 = vcombine.high %v2781, %v2781
      %v3539 = vunpack.c.l.s4 1966171168
      %v3540 = vunpack.c.0.s8 %v3539
      %v3541 = vlaneseq
      %v3542 = vshrl.u32 %v3541, 7
      %v3543 = vsub.s32 %v3540, %v3542
      %v3544 = vrot.slane %v2781, %v3543
      %v3546 = vunpack.c.l.s4 1966171168
      %v3547 = vunpack.c.0.s8 %v3546
      %v3548 = vlaneseq
      %v3549 = vshrl.u32 %v3548, 7
      %v3550 = vsub.s32 %v3547, %v3549
      %v3551 = vrot.slane %v3537, %v3550
      %v3552 = vcombine.high %v3544, %v3544
      %v3553 = vcombine.high %v3551, %v3551
      %v3555 = vunpack.c.l.s4 1966171168
      %v3556 = vunpack.c.0.s8 %v3555
      %v3557 = vlaneseq
      %v3558 = vshrl.u32 %v3557, 7
      %v3559 = vsub.s32 %v3556, %v3558
      %v3560 = vrot.slane %v3544, %v3559
      %v3562 = vunpack.c.l.s4 1966171168
      %v3563 = vunpack.c.0.s8 %v3562
      %v3564 = vlaneseq
      %v3565 = vshrl.u32 %v3564, 7
      %v3566 = vsub.s32 %v3563, %v3565
      %v3567 = vrot.slane %v3551, %v3566
      %v3569 = vunpack.c.l.s4 1966171168
      %v3570 = vunpack.c.0.s8 %v3569
      %v3571 = vlaneseq
      %v3572 = vshrl.u32 %v3571, 7
      %v3573 = vsub.s32 %v3570, %v3572
      %v3574 = vrot.slane %v3552, %v3573
      %v3576 = vunpack.c.l.s4 1966171168
      %v3577 = vunpack.c.0.s8 %v3576
      %v3578 = vlaneseq
      %v3579 = vshrl.u32 %v3578, 7
      %v3580 = vsub.s32 %v3577, %v3579
      %v3581 = vrot.slane %v3553, %v3580
      %v3582 = vcombine.high %v3560, %v3560
      %v3583 = vcombine.high %v3567, %v3567
      %v3584 = vcombine.high %v3574, %v3574
      %v3585 = vcombine.high %v3581, %v3581
      %v3586 = vcombine.high %v2784, %v2784
      %v3588 = vunpack.c.l.s4 1966171168
      %v3589 = vunpack.c.0.s8 %v3588
      %v3590 = vlaneseq
      %v3591 = vshrl.u32 %v3590, 7
      %v3592 = vsub.s32 %v3589, %v3591
      %v3593 = vrot.slane %v2784, %v3592
      %v3595 = vunpack.c.l.s4 1966171168
      %v3596 = vunpack.c.0.s8 %v3595
      %v3597 = vlaneseq
      %v3598 = vshrl.u32 %v3597, 7
      %v3599 = vsub.s32 %v3596, %v3598
      %v3600 = vrot.slane %v3586, %v3599
      %v3601 = vcombine.high %v3593, %v3593
      %v3602 = vcombine.high %v3600, %v3600
      %v3604 = vunpack.c.l.s4 1966171168
      %v3605 = vunpack.c.0.s8 %v3604
      %v3606 = vlaneseq
      %v3607 = vshrl.u32 %v3606, 7
      %v3608 = vsub.s32 %v3605, %v3607
      %v3609 = vrot.slane %v3593, %v3608
      %v3611 = vunpack.c.l.s4 1966171168
      %v3612 = vunpack.c.0.s8 %v3611
      %v3613 = vlaneseq
      %v3614 = vshrl.u32 %v3613, 7
      %v3615 = vsub.s32 %v3612, %v3614
      %v3616 = vrot.slane %v3600, %v3615
      %v3618 = vunpack.c.l.s4 1966171168
      %v3619 = vunpack.c.0.s8 %v3618
      %v3620 = vlaneseq
      %v3621 = vshrl.u32 %v3620, 7
      %v3622 = vsub.s32 %v3619, %v3621
      %v3623 = vrot.slane %v3601, %v3622
      %v3625 = vunpack.c.l.s4 1966171168
      %v3626 = vunpack.c.0.s8 %v3625
      %v3627 = vlaneseq
      %v3628 = vshrl.u32 %v3627, 7
      %v3629 = vsub.s32 %v3626, %v3628
      %v3630 = vrot.slane %v3602, %v3629
      %v3631 = vcombine.high %v3609, %v3609
      %v3632 = vcombine.high %v3616, %v3616
      %v3633 = vcombine.high %v3623, %v3623
      %v3634 = vcombine.high %v3630, %v3630
      %v3635 = vcombine.high %v2789, %v2789
      %v3637 = vunpack.c.l.s4 1966171168
      %v3638 = vunpack.c.0.s8 %v3637
      %v3639 = vlaneseq
      %v3640 = vshrl.u32 %v3639, 7
      %v3641 = vsub.s32 %v3638, %v3640
      %v3642 = vrot.slane %v2789, %v3641
      %v3644 = vunpack.c.l.s4 1966171168
      %v3645 = vunpack.c.0.s8 %v3644
      %v3646 = vlaneseq
      %v3647 = vshrl.u32 %v3646, 7
      %v3648 = vsub.s32 %v3645, %v3647
      %v3649 = vrot.slane %v3635, %v3648
      %v3650 = vcombine.high %v3642, %v3642
      %v3651 = vcombine.high %v3649, %v3649
      %v3653 = vunpack.c.l.s4 1966171168
      %v3654 = vunpack.c.0.s8 %v3653
      %v3655 = vlaneseq
      %v3656 = vshrl.u32 %v3655, 7
      %v3657 = vsub.s32 %v3654, %v3656
      %v3658 = vrot.slane %v3642, %v3657
      %v3660 = vunpack.c.l.s4 1966171168
      %v3661 = vunpack.c.0.s8 %v3660
      %v3662 = vlaneseq
      %v3663 = vshrl.u32 %v3662, 7
      %v3664 = vsub.s32 %v3661, %v3663
      %v3665 = vrot.slane %v3649, %v3664
      %v3667 = vunpack.c.l.s4 1966171168
      %v3668 = vunpack.c.0.s8 %v3667
      %v3669 = vlaneseq
      %v3670 = vshrl.u32 %v3669, 7
      %v3671 = vsub.s32 %v3668, %v3670
      %v3672 = vrot.slane %v3650, %v3671
      %v3674 = vunpack.c.l.s4 1966171168
      %v3675 = vunpack.c.0.s8 %v3674
      %v3676 = vlaneseq
      %v3677 = vshrl.u32 %v3676, 7
      %v3678 = vsub.s32 %v3675, %v3677
      %v3679 = vrot.slane %v3651, %v3678
      %v3680 = vcombine.high %v3658, %v3658
      %v3681 = vcombine.high %v3665, %v3665
      %v3682 = vcombine.high %v3672, %v3672
      %v3683 = vcombine.high %v3679, %v3679
      %v3684 = vcombine.high %v2792, %v2792
      %v3686 = vunpack.c.l.s4 1966171168
      %v3687 = vunpack.c.0.s8 %v3686
      %v3688 = vlaneseq
      %v3689 = vshrl.u32 %v3688, 7
      %v3690 = vsub.s32 %v3687, %v3689
      %v3691 = vrot.slane %v2792, %v3690
      %v3693 = vunpack.c.l.s4 1966171168
      %v3694 = vunpack.c.0.s8 %v3693
      %v3695 = vlaneseq
      %v3696 = vshrl.u32 %v3695, 7
      %v3697 = vsub.s32 %v3694, %v3696
      %v3698 = vrot.slane %v3684, %v3697
      %v3699 = vcombine.high %v3691, %v3691
      %v3700 = vcombine.high %v3698, %v3698
      %v3702 = vunpack.c.l.s4 1966171168
      %v3703 = vunpack.c.0.s8 %v3702
      %v3704 = vlaneseq
      %v3705 = vshrl.u32 %v3704, 7
      %v3706 = vsub.s32 %v3703, %v3705
      %v3707 = vrot.slane %v3691, %v3706
      %v3709 = vunpack.c.l.s4 1966171168
      %v3710 = vunpack.c.0.s8 %v3709
      %v3711 = vlaneseq
      %v3712 = vshrl.u32 %v3711, 7
      %v3713 = vsub.s32 %v3710, %v3712
      %v3714 = vrot.slane %v3698, %v3713
      %v3716 = vunpack.c.l.s4 1966171168
      %v3717 = vunpack.c.0.s8 %v3716
      %v3718 = vlaneseq
      %v3719 = vshrl.u32 %v3718, 7
      %v3720 = vsub.s32 %v3717, %v3719
      %v3721 = vrot.slane %v3699, %v3720
      %v3723 = vunpack.c.l.s4 1966171168
      %v3724 = vunpack.c.0.s8 %v3723
      %v3725 = vlaneseq
      %v3726 = vshrl.u32 %v3725, 7
      %v3727 = vsub.s32 %v3724, %v3726
      %v3728 = vrot.slane %v3700, %v3727
      %v3729 = vcombine.high %v3707, %v3707
      %v3730 = vcombine.high %v3714, %v3714
      %v3731 = vcombine.high %v3721, %v3721
      %v3732 = vcombine.high %v3728, %v3728
      %v3733 = vcombine.high %v2797, %v2797
      %v3735 = vunpack.c.l.s4 1966171168
      %v3736 = vunpack.c.0.s8 %v3735
      %v3737 = vlaneseq
      %v3738 = vshrl.u32 %v3737, 7
      %v3739 = vsub.s32 %v3736, %v3738
      %v3740 = vrot.slane %v2797, %v3739
      %v3742 = vunpack.c.l.s4 1966171168
      %v3743 = vunpack.c.0.s8 %v3742
      %v3744 = vlaneseq
      %v3745 = vshrl.u32 %v3744, 7
      %v3746 = vsub.s32 %v3743, %v3745
      %v3747 = vrot.slane %v3733, %v3746
      %v3748 = vcombine.high %v3740, %v3740
      %v3749 = vcombine.high %v3747, %v3747
      %v3751 = vunpack.c.l.s4 1966171168
      %v3752 = vunpack.c.0.s8 %v3751
      %v3753 = vlaneseq
      %v3754 = vshrl.u32 %v3753, 7
      %v3755 = vsub.s32 %v3752, %v3754
      %v3756 = vrot.slane %v3740, %v3755
      %v3758 = vunpack.c.l.s4 1966171168
      %v3759 = vunpack.c.0.s8 %v3758
      %v3760 = vlaneseq
      %v3761 = vshrl.u32 %v3760, 7
      %v3762 = vsub.s32 %v3759, %v3761
      %v3763 = vrot.slane %v3747, %v3762
      %v3765 = vunpack.c.l.s4 1966171168
      %v3766 = vunpack.c.0.s8 %v3765
      %v3767 = vlaneseq
      %v3768 = vshrl.u32 %v3767, 7
      %v3769 = vsub.s32 %v3766, %v3768
      %v3770 = vrot.slane %v3748, %v3769
      %v3772 = vunpack.c.l.s4 1966171168
      %v3773 = vunpack.c.0.s8 %v3772
      %v3774 = vlaneseq
      %v3775 = vshrl.u32 %v3774, 7
      %v3776 = vsub.s32 %v3773, %v3775
      %v3777 = vrot.slane %v3749, %v3776
      %v3778 = vcombine.high %v3756, %v3756
      %v3779 = vcombine.high %v3763, %v3763
      %v3780 = vcombine.high %v3770, %v3770
      %v3781 = vcombine.high %v3777, %v3777
      %v3782 = vcombine.high %v2800, %v2800
      %v3784 = vunpack.c.l.s4 1966171168
      %v3785 = vunpack.c.0.s8 %v3784
      %v3786 = vlaneseq
      %v3787 = vshrl.u32 %v3786, 7
      %v3788 = vsub.s32 %v3785, %v3787
      %v3789 = vrot.slane %v2800, %v3788
      %v3791 = vunpack.c.l.s4 1966171168
      %v3792 = vunpack.c.0.s8 %v3791
      %v3793 = vlaneseq
      %v3794 = vshrl.u32 %v3793, 7
      %v3795 = vsub.s32 %v3792, %v3794
      %v3796 = vrot.slane %v3782, %v3795
      %v3797 = vcombine.high %v3789, %v3789
      %v3798 = vcombine.high %v3796, %v3796
      %v3800 = vunpack.c.l.s4 1966171168
      %v3801 = vunpack.c.0.s8 %v3800
      %v3802 = vlaneseq
      %v3803 = vshrl.u32 %v3802, 7
      %v3804 = vsub.s32 %v3801, %v3803
      %v3805 = vrot.slane %v3789, %v3804
      %v3807 = vunpack.c.l.s4 1966171168
      %v3808 = vunpack.c.0.s8 %v3807
      %v3809 = vlaneseq
      %v3810 = vshrl.u32 %v3809, 7
      %v3811 = vsub.s32 %v3808, %v3810
      %v3812 = vrot.slane %v3796, %v3811
      %v3814 = vunpack.c.l.s4 1966171168
      %v3815 = vunpack.c.0.s8 %v3814
      %v3816 = vlaneseq
      %v3817 = vshrl.u32 %v3816, 7
      %v3818 = vsub.s32 %v3815, %v3817
      %v3819 = vrot.slane %v3797, %v3818
      %v3821 = vunpack.c.l.s4 1966171168
      %v3822 = vunpack.c.0.s8 %v3821
      %v3823 = vlaneseq
      %v3824 = vshrl.u32 %v3823, 7
      %v3825 = vsub.s32 %v3822, %v3824
      %v3826 = vrot.slane %v3798, %v3825
      %v3827 = vcombine.high %v3805, %v3805
      %v3828 = vcombine.high %v3812, %v3812
      %v3829 = vcombine.high %v3819, %v3819
      %v3830 = vcombine.high %v3826, %v3826
      %v3831 = vcombine.high %v2805, %v2805
      %v3833 = vunpack.c.l.s4 1966171168
      %v3834 = vunpack.c.0.s8 %v3833
      %v3835 = vlaneseq
      %v3836 = vshrl.u32 %v3835, 7
      %v3837 = vsub.s32 %v3834, %v3836
      %v3838 = vrot.slane %v2805, %v3837
      %v3840 = vunpack.c.l.s4 1966171168
      %v3841 = vunpack.c.0.s8 %v3840
      %v3842 = vlaneseq
      %v3843 = vshrl.u32 %v3842, 7
      %v3844 = vsub.s32 %v3841, %v3843
      %v3845 = vrot.slane %v3831, %v3844
      %v3846 = vcombine.high %v3838, %v3838
      %v3847 = vcombine.high %v3845, %v3845
      %v3849 = vunpack.c.l.s4 1966171168
      %v3850 = vunpack.c.0.s8 %v3849
      %v3851 = vlaneseq
      %v3852 = vshrl.u32 %v3851, 7
      %v3853 = vsub.s32 %v3850, %v3852
      %v3854 = vrot.slane %v3838, %v3853
      %v3856 = vunpack.c.l.s4 1966171168
      %v3857 = vunpack.c.0.s8 %v3856
      %v3858 = vlaneseq
      %v3859 = vshrl.u32 %v3858, 7
      %v3860 = vsub.s32 %v3857, %v3859
      %v3861 = vrot.slane %v3845, %v3860
      %v3863 = vunpack.c.l.s4 1966171168
      %v3864 = vunpack.c.0.s8 %v3863
      %v3865 = vlaneseq
      %v3866 = vshrl.u32 %v3865, 7
      %v3867 = vsub.s32 %v3864, %v3866
      %v3868 = vrot.slane %v3846, %v3867
      %v3870 = vunpack.c.l.s4 1966171168
      %v3871 = vunpack.c.0.s8 %v3870
      %v3872 = vlaneseq
      %v3873 = vshrl.u32 %v3872, 7
      %v3874 = vsub.s32 %v3871, %v3873
      %v3875 = vrot.slane %v3847, %v3874
      %v3876 = vcombine.high %v3854, %v3854
      %v3877 = vcombine.high %v3861, %v3861
      %v3878 = vcombine.high %v3868, %v3868
      %v3879 = vcombine.high %v3875, %v3875
      %v3880 = vcombine.high %v2808, %v2808
      %v3882 = vunpack.c.l.s4 1966171168
      %v3883 = vunpack.c.0.s8 %v3882
      %v3884 = vlaneseq
      %v3885 = vshrl.u32 %v3884, 7
      %v3886 = vsub.s32 %v3883, %v3885
      %v3887 = vrot.slane %v2808, %v3886
      %v3889 = vunpack.c.l.s4 1966171168
      %v3890 = vunpack.c.0.s8 %v3889
      %v3891 = vlaneseq
      %v3892 = vshrl.u32 %v3891, 7
      %v3893 = vsub.s32 %v3890, %v3892
      %v3894 = vrot.slane %v3880, %v3893
      %v3895 = vcombine.high %v3887, %v3887
      %v3896 = vcombine.high %v3894, %v3894
      %v3898 = vunpack.c.l.s4 1966171168
      %v3899 = vunpack.c.0.s8 %v3898
      %v3900 = vlaneseq
      %v3901 = vshrl.u32 %v3900, 7
      %v3902 = vsub.s32 %v3899, %v3901
      %v3903 = vrot.slane %v3887, %v3902
      %v3905 = vunpack.c.l.s4 1966171168
      %v3906 = vunpack.c.0.s8 %v3905
      %v3907 = vlaneseq
      %v3908 = vshrl.u32 %v3907, 7
      %v3909 = vsub.s32 %v3906, %v3908
      %v3910 = vrot.slane %v3894, %v3909
      %v3912 = vunpack.c.l.s4 1966171168
      %v3913 = vunpack.c.0.s8 %v3912
      %v3914 = vlaneseq
      %v3915 = vshrl.u32 %v3914, 7
      %v3916 = vsub.s32 %v3913, %v3915
      %v3917 = vrot.slane %v3895, %v3916
      %v3919 = vunpack.c.l.s4 1966171168
      %v3920 = vunpack.c.0.s8 %v3919
      %v3921 = vlaneseq
      %v3922 = vshrl.u32 %v3921, 7
      %v3923 = vsub.s32 %v3920, %v3922
      %v3924 = vrot.slane %v3896, %v3923
      %v3925 = vcombine.high %v3903, %v3903
      %v3926 = vcombine.high %v3910, %v3910
      %v3927 = vcombine.high %v3917, %v3917
      %v3928 = vcombine.high %v3924, %v3924
      %v3929 = vcombine.high %v2813, %v2813
      %v3931 = vunpack.c.l.s4 1966171168
      %v3932 = vunpack.c.0.s8 %v3931
      %v3933 = vlaneseq
      %v3934 = vshrl.u32 %v3933, 7
      %v3935 = vsub.s32 %v3932, %v3934
      %v3936 = vrot.slane %v2813, %v3935
      %v3938 = vunpack.c.l.s4 1966171168
      %v3939 = vunpack.c.0.s8 %v3938
      %v3940 = vlaneseq
      %v3941 = vshrl.u32 %v3940, 7
      %v3942 = vsub.s32 %v3939, %v3941
      %v3943 = vrot.slane %v3929, %v3942
      %v3944 = vcombine.high %v3936, %v3936
      %v3945 = vcombine.high %v3943, %v3943
      %v3947 = vunpack.c.l.s4 1966171168
      %v3948 = vunpack.c.0.s8 %v3947
      %v3949 = vlaneseq
      %v3950 = vshrl.u32 %v3949, 7
      %v3951 = vsub.s32 %v3948, %v3950
      %v3952 = vrot.slane %v3936, %v3951
      %v3954 = vunpack.c.l.s4 1966171168
      %v3955 = vunpack.c.0.s8 %v3954
      %v3956 = vlaneseq
      %v3957 = vshrl.u32 %v3956, 7
      %v3958 = vsub.s32 %v3955, %v3957
      %v3959 = vrot.slane %v3943, %v3958
      %v3961 = vunpack.c.l.s4 1966171168
      %v3962 = vunpack.c.0.s8 %v3961
      %v3963 = vlaneseq
      %v3964 = vshrl.u32 %v3963, 7
      %v3965 = vsub.s32 %v3962, %v3964
      %v3966 = vrot.slane %v3944, %v3965
      %v3968 = vunpack.c.l.s4 1966171168
      %v3969 = vunpack.c.0.s8 %v3968
      %v3970 = vlaneseq
      %v3971 = vshrl.u32 %v3970, 7
      %v3972 = vsub.s32 %v3969, %v3971
      %v3973 = vrot.slane %v3945, %v3972
      %v3974 = vcombine.high %v3952, %v3952
      %v3975 = vcombine.high %v3959, %v3959
      %v3976 = vcombine.high %v3966, %v3966
      %v3977 = vcombine.high %v3973, %v3973
      %v3978 = vcombine.high %v2816, %v2816
      %v3980 = vunpack.c.l.s4 1966171168
      %v3981 = vunpack.c.0.s8 %v3980
      %v3982 = vlaneseq
      %v3983 = vshrl.u32 %v3982, 7
      %v3984 = vsub.s32 %v3981, %v3983
      %v3985 = vrot.slane %v2816, %v3984
      %v3987 = vunpack.c.l.s4 1966171168
      %v3988 = vunpack.c.0.s8 %v3987
      %v3989 = vlaneseq
      %v3990 = vshrl.u32 %v3989, 7
      %v3991 = vsub.s32 %v3988, %v3990
      %v3992 = vrot.slane %v3978, %v3991
      %v3993 = vcombine.high %v3985, %v3985
      %v3994 = vcombine.high %v3992, %v3992
      %v3996 = vunpack.c.l.s4 1966171168
      %v3997 = vunpack.c.0.s8 %v3996
      %v3998 = vlaneseq
      %v3999 = vshrl.u32 %v3998, 7
      %v4000 = vsub.s32 %v3997, %v3999
      %v4001 = vrot.slane %v3985, %v4000
      %v4003 = vunpack.c.l.s4 1966171168
      %v4004 = vunpack.c.0.s8 %v4003
      %v4005 = vlaneseq
      %v4006 = vshrl.u32 %v4005, 7
      %v4007 = vsub.s32 %v4004, %v4006
      %v4008 = vrot.slane %v3992, %v4007
      %v4010 = vunpack.c.l.s4 1966171168
      %v4011 = vunpack.c.0.s8 %v4010
      %v4012 = vlaneseq
      %v4013 = vshrl.u32 %v4012, 7
      %v4014 = vsub.s32 %v4011, %v4013
      %v4015 = vrot.slane %v3993, %v4014
      %v4017 = vunpack.c.l.s4 1966171168
      %v4018 = vunpack.c.0.s8 %v4017
      %v4019 = vlaneseq
      %v4020 = vshrl.u32 %v4019, 7
      %v4021 = vsub.s32 %v4018, %v4020
      %v4022 = vrot.slane %v3994, %v4021
      %v4023 = vcombine.high %v4001, %v4001
      %v4024 = vcombine.high %v4008, %v4008
      %v4025 = vcombine.high %v4015, %v4015
      %v4026 = vcombine.high %v4022, %v4022
      %v4028 = vunpack.c.l.s4 1966171168
      %v4029 = vunpack.c.0.s8 %v4028
      %v4030 = vlaneseq
      %v4031 = vshrl.u32 %v4030, 7
      %v4032 = vsub.s32 %v4029, %v4031
      %v4033 = vrot.slane %v2821, %v4032
      %v4034 = vcombine.high %v4033, %v4033
      %v4036 = vunpack.c.l.s4 1966171168
      %v4037 = vunpack.c.0.s8 %v4036
      %v4038 = vlaneseq
      %v4039 = vshrl.u32 %v4038, 7
      %v4040 = vsub.s32 %v4037, %v4039
      %v4041 = vrot.slane %v4033, %v4040
      %v4043 = vunpack.c.l.s4 1966171168
      %v4044 = vunpack.c.0.s8 %v4043
      %v4045 = vlaneseq
      %v4046 = vshrl.u32 %v4045, 7
      %v4047 = vsub.s32 %v4044, %v4046
      %v4048 = vrot.slane %v4034, %v4047
      %v4049 = vcombine.high %v4041, %v4041
      %v4050 = vcombine.high %v4048, %v4048
      %v4247 = vmax.f32 %v2874, %v3182
      %v4248 = vmax.f32 %v2888, %v3190
      %v4249 = vmax.f32 %v2896, %v3192
      %v4250 = vmax.f32 %v2898, %v3175
      %v4251 = vmax.f32 %v2881, %v3189
      %v4252 = vmax.f32 %v2895, %v3191
      %v4253 = vmax.f32 %v2897, %v3193
      %v4254 = vmax.f32 %v2899, %v3217
      %v4255 = vmax.f32 %v2923, %v3231
      %v4256 = vmax.f32 %v2937, %v3239
      %v4257 = vmax.f32 %v2945, %v3241
      %v4258 = vmax.f32 %v2947, %v3224
      %v4259 = vmax.f32 %v2930, %v3238
      %v4260 = vmax.f32 %v2944, %v3240
      %v4261 = vmax.f32 %v2946, %v3242
      %v4262 = vmax.f32 %v2948, %v3266
      %v4263 = vmax.f32 %v2972, %v3280
      %v4264 = vmax.f32 %v2986, %v3288
      %v4265 = vmax.f32 %v2994, %v3290
      %v4266 = vmax.f32 %v2996, %v3273
      %v4267 = vmax.f32 %v2979, %v3287
      %v4268 = vmax.f32 %v2993, %v3289
      %v4269 = vmax.f32 %v2995, %v3291
      %v4270 = vmax.f32 %v2997, %v3315
      %v4271 = vmax.f32 %v3021, %v3329
      %v4272 = vmax.f32 %v3035, %v3337
      %v4273 = vmax.f32 %v3043, %v3339
      %v4274 = vmax.f32 %v3045, %v3322
      %v4275 = vmax.f32 %v3028, %v3336
      %v4276 = vmax.f32 %v3042, %v3338
      %v4277 = vmax.f32 %v3044, %v3340
      %v4278 = vmax.f32 %v3046, %v3364
      %v4279 = vmax.f32 %v3070, %v3378
      %v4280 = vmax.f32 %v3084, %v3386
      %v4281 = vmax.f32 %v3092, %v3388
      %v4282 = vmax.f32 %v3094, %v3371
      %v4283 = vmax.f32 %v3077, %v3385
      %v4284 = vmax.f32 %v3091, %v3387
      %v4285 = vmax.f32 %v3093, %v3389
      %v4286 = vmax.f32 %v3095, %v3413
      %v4287 = vmax.f32 %v3119, %v3427
      %v4288 = vmax.f32 %v3133, %v3435
      %v4289 = vmax.f32 %v3141, %v3437
      %v4290 = vmax.f32 %v3143, %v3420
      %v4291 = vmax.f32 %v3126, %v3434
      %v4292 = vmax.f32 %v3140, %v3436
      %v4293 = vmax.f32 %v3142, %v3438
      %v4294 = vmax.f32 %v3144, %v3462
      %v4295 = vmax.f32 %v3168, %v3476
      %v4296 = vmax.f32 %v3484, %v3780
      %v4297 = vmax.f32 %v3486, %v3763
      %v4298 = vmax.f32 %v3469, %v3777
      %v4299 = vmax.f32 %v3483, %v3779
      %v4300 = vmax.f32 %v3485, %v3781
      %v4301 = vmax.f32 %v3487, %v3805
      %v4302 = vmax.f32 %v3511, %v3819
      %v4303 = vmax.f32 %v3525, %v3827
      %v4304 = vmax.f32 %v3533, %v3829
      %v4305 = vmax.f32 %v3535, %v3812
      %v4306 = vmax.f32 %v3518, %v3826
      %v4307 = vmax.f32 %v3532, %v3828
      %v4308 = vmax.f32 %v3534, %v3830
      %v4309 = vmax.f32 %v3536, %v3854
      %v4310 = vmax.f32 %v3560, %v3868
      %v4311 = vmax.f32 %v3574, %v3876
      %v4312 = vmax.f32 %v3582, %v3878
      %v4313 = vmax.f32 %v3584, %v3861
      %v4314 = vmax.f32 %v3567, %v3875
      %v4315 = vmax.f32 %v3581, %v3877
      %v4316 = vmax.f32 %v3583, %v3879
      %v4317 = vmax.f32 %v3585, %v3903
      %v4318 = vmax.f32 %v3609, %v3917
      %v4319 = vmax.f32 %v3623, %v3925
      %v4320 = vmax.f32 %v3631, %v3927
      %v4321 = vmax.f32 %v3633, %v3910
      %v4322 = vmax.f32 %v3616, %v3924
      %v4323 = vmax.f32 %v3630, %v3926
      %v4324 = vmax.f32 %v3632, %v3928
      %v4325 = vmax.f32 %v3634, %v3952
      %v4326 = vmax.f32 %v3658, %v3966
      %v4327 = vmax.f32 %v3672, %v3974
      %v4328 = vmax.f32 %v3680, %v3976
      %v4329 = vmax.f32 %v3682, %v3959
      %v4330 = vmax.f32 %v3665, %v3973
      %v4331 = vmax.f32 %v3679, %v3975
      %v4332 = vmax.f32 %v3681, %v3977
      %v4333 = vmax.f32 %v3683, %v4001
      %v4334 = vmax.f32 %v3707, %v4015
      %v4335 = vmax.f32 %v3721, %v4023
      %v4336 = vmax.f32 %v3729, %v4025
      %v4337 = vmax.f32 %v3731, %v4008
      %v4338 = vmax.f32 %v3714, %v4022
      %v4339 = vmax.f32 %v3728, %v4024
      %v4340 = vmax.f32 %v3730, %v4026
      %v4341 = vmax.f32 %v3732, %v4041
      %v4342 = vmax.f32 %v3756, %v4048
      %v4343 = vmax.f32 %v3770, %v4049
      %v4344 = vmax.f32 %v3778, %v4050
      %v4345 = vmax.f32 %v4247, %v4296
      %v4346 = vmax.f32 %v4248, %v4297
      %v4347 = vmax.f32 %v4249, %v4298
      %v4348 = vmax.f32 %v4250, %v4299
      %v4349 = vmax.f32 %v4251, %v4300
      %v4350 = vmax.f32 %v4252, %v4301
      %v4351 = vmax.f32 %v4253, %v4302
      %v4352 = vmax.f32 %v4254, %v4303
      %v4353 = vmax.f32 %v4255, %v4304
      %v4354 = vmax.f32 %v4256, %v4305
      %v4355 = vmax.f32 %v4257, %v4306
      %v4356 = vmax.f32 %v4258, %v4307
      %v4357 = vmax.f32 %v4259, %v4308
      %v4358 = vmax.f32 %v4260, %v4309
      %v4359 = vmax.f32 %v4261, %v4310
      %v4360 = vmax.f32 %v4262, %v4311
      %v4361 = vmax.f32 %v4263, %v4312
      %v4362 = vmax.f32 %v4264, %v4313
      %v4363 = vmax.f32 %v4265, %v4314
      %v4364 = vmax.f32 %v4266, %v4315
      %v4365 = vmax.f32 %v4267, %v4316
      %v4366 = vmax.f32 %v4268, %v4317
      %v4367 = vmax.f32 %v4269, %v4318
      %v4368 = vmax.f32 %v4270, %v4319
      %v4369 = vmax.f32 %v4271, %v4320
      %v4370 = vmax.f32 %v4272, %v4321
      %v4371 = vmax.f32 %v4273, %v4322
      %v4372 = vmax.f32 %v4274, %v4323
      %v4373 = vmax.f32 %v4275, %v4324
      %v4374 = vmax.f32 %v4276, %v4325
      %v4375 = vmax.f32 %v4277, %v4326
      %v4376 = vmax.f32 %v4278, %v4327
      %v4377 = vmax.f32 %v4279, %v4328
      %v4378 = vmax.f32 %v4280, %v4329
      %v4379 = vmax.f32 %v4281, %v4330
      %v4380 = vmax.f32 %v4282, %v4331
      %v4381 = vmax.f32 %v4283, %v4332
      %v4382 = vmax.f32 %v4284, %v4333
      %v4383 = vmax.f32 %v4285, %v4334
      %v4384 = vmax.f32 %v4286, %v4335
      %v4385 = vmax.f32 %v4287, %v4336
      %v4386 = vmax.f32 %v4288, %v4337
      %v4387 = vmax.f32 %v4289, %v4338
      %v4388 = vmax.f32 %v4290, %v4339
      %v4389 = vmax.f32 %v4291, %v4340
      %v4390 = vmax.f32 %v4292, %v4341
      %v4391 = vmax.f32 %v4293, %v4342
      %v4392 = vmax.f32 %v4294, %v4343
      %v4393 = vmax.f32 %v4295, %v4344
      %v4394 = vld [vmem:[%s2] sm:$0x1]
      %v4396 = vlaneseq
      %v4397 = vshrl.u32 %v4396, 7
      %v4398 = vsub.s32 0, %v4397
      %v4399 = vrot.slane %v4394, %v4398
      %v4400 = vcombine.high %v4399, %v4399
      %v4402 = vunpack.c.l.s4 1966171168
      %v4403 = vunpack.c.0.s8 %v4402
      %v4404 = vlaneseq
      %v4405 = vshrl.u32 %v4404, 7
      %v4406 = vsub.s32 %v4403, %v4405
      %v4407 = vrot.slane %v4399, %v4406
      %v4409 = vunpack.c.l.s4 1966171168
      %v4410 = vunpack.c.0.s8 %v4409
      %v4411 = vlaneseq
      %v4412 = vshrl.u32 %v4411, 7
      %v4413 = vsub.s32 %v4410, %v4412
      %v4414 = vrot.slane %v4400, %v4413
      %v4415 = vcombine.high %v4407, %v4407
      %v4416 = vcombine.high %v4414, %v4414
      %v4418 = vunpack.c.l.s4 1966171168
      %v4419 = vunpack.c.0.s8 %v4418
      %v4420 = vlaneseq
      %v4421 = vshrl.u32 %v4420, 7
      %v4422 = vsub.s32 %v4419, %v4421
      %v4423 = vrot.slane %v4407, %v4422
      %v4425 = vunpack.c.l.s4 1966171168
      %v4426 = vunpack.c.0.s8 %v4425
      %v4427 = vlaneseq
      %v4428 = vshrl.u32 %v4427, 7
      %v4429 = vsub.s32 %v4426, %v4428
      %v4430 = vrot.slane %v4414, %v4429
      %v4432 = vunpack.c.l.s4 1966171168
      %v4433 = vunpack.c.0.s8 %v4432
      %v4434 = vlaneseq
      %v4435 = vshrl.u32 %v4434, 7
      %v4436 = vsub.s32 %v4433, %v4435
      %v4437 = vrot.slane %v4415, %v4436
      %v4439 = vunpack.c.l.s4 1966171168
      %v4440 = vunpack.c.0.s8 %v4439
      %v4441 = vlaneseq
      %v4442 = vshrl.u32 %v4441, 7
      %v4443 = vsub.s32 %v4440, %v4442
      %v4444 = vrot.slane %v4416, %v4443
      %v4445 = vcombine.high %v4423, %v4423
      %v4446 = vcombine.high %v4430, %v4430
      %v4447 = vcombine.high %v4437, %v4437
      %v4448 = vcombine.high %v4444, %v4444
      %v4457 = vadd.f32 %v4345, %v4423
      %v4458 = vadd.f32 %v4346, %v4437
      %v4459 = vadd.f32 %v4347, %v4445
      %v4460 = vadd.f32 %v4348, %v4447
      %v4461 = vadd.f32 %v4349, %v4430
      %v4462 = vadd.f32 %v4350, %v4444
      %v4463 = vadd.f32 %v4351, %v4446
      %v4464 = vadd.f32 %v4352, %v4448
      %v4465 = vadd.f32 %v4353, %v4423
      %v4466 = vadd.f32 %v4354, %v4437
      %v4467 = vadd.f32 %v4355, %v4445
      %v4468 = vadd.f32 %v4356, %v4447
      %v4469 = vadd.f32 %v4357, %v4430
      %v4470 = vadd.f32 %v4358, %v4444
      %v4471 = vadd.f32 %v4359, %v4446
      %v4472 = vadd.f32 %v4360, %v4448
      %v4473 = vadd.f32 %v4361, %v4423
      %v4474 = vadd.f32 %v4362, %v4437
      %v4475 = vadd.f32 %v4363, %v4445
      %v4476 = vadd.f32 %v4364, %v4447
      %v4477 = vadd.f32 %v4365, %v4430
      %v4478 = vadd.f32 %v4366, %v4444
      %v4479 = vadd.f32 %v4367, %v4446
      %v4480 = vadd.f32 %v4368, %v4448
      %v4481 = vadd.f32 %v4369, %v4423
      %v4482 = vadd.f32 %v4370, %v4437
      %v4483 = vadd.f32 %v4371, %v4445
      %v4484 = vadd.f32 %v4372, %v4447
      %v4485 = vadd.f32 %v4373, %v4430
      %v4486 = vadd.f32 %v4374, %v4444
      %v4487 = vadd.f32 %v4375, %v4446
      %v4488 = vadd.f32 %v4376, %v4448
      %v4489 = vadd.f32 %v4377, %v4423
      %v4490 = vadd.f32 %v4378, %v4437
      %v4491 = vadd.f32 %v4379, %v4445
      %v4492 = vadd.f32 %v4380, %v4447
      %v4493 = vadd.f32 %v4381, %v4430
      %v4494 = vadd.f32 %v4382, %v4444
      %v4495 = vadd.f32 %v4383, %v4446
      %v4496 = vadd.f32 %v4384, %v4448
      %v4497 = vadd.f32 %v4385, %v4423
      %v4498 = vadd.f32 %v4386, %v4437
      %v4499 = vadd.f32 %v4387, %v4445
      %v4500 = vadd.f32 %v4388, %v4447
      %v4501 = vadd.f32 %v4389, %v4430
      %v4502 = vadd.f32 %v4390, %v4444
      %v4503 = vadd.f32 %v4391, %v4446
      %v4504 = vadd.f32 %v4392, %v4448
      %v4505 = vadd.f32 %v4393, %v4423
      %v4506 = vmax.f32 %v4457, 0.0
      %v4507 = vmax.f32 %v4458, 0.0
      %v4508 = vmax.f32 %v4459, 0.0
      %v4509 = vmax.f32 %v4460, 0.0
      %v4510 = vmax.f32 %v4461, 0.0
      %v4511 = vmax.f32 %v4462, 0.0
      %v4512 = vmax.f32 %v4463, 0.0
      %v4513 = vmax.f32 %v4464, 0.0
      %v4514 = vmax.f32 %v4465, 0.0
      %v4515 = vmax.f32 %v4466, 0.0
      %v4516 = vmax.f32 %v4467, 0.0
      %v4517 = vmax.f32 %v4468, 0.0
      %v4518 = vmax.f32 %v4469, 0.0
      %v4519 = vmax.f32 %v4470, 0.0
      %v4520 = vmax.f32 %v4471, 0.0
      %v4521 = vmax.f32 %v4472, 0.0
      %v4522 = vmax.f32 %v4473, 0.0
      %v4523 = vmax.f32 %v4474, 0.0
      %v4524 = vmax.f32 %v4475, 0.0
      %v4525 = vmax.f32 %v4476, 0.0
      %v4526 = vmax.f32 %v4477, 0.0
      %v4527 = vmax.f32 %v4478, 0.0
      %v4528 = vmax.f32 %v4479, 0.0
      %v4529 = vmax.f32 %v4480, 0.0
      %v4530 = vmax.f32 %v4481, 0.0
      %v4531 = vmax.f32 %v4482, 0.0
      %v4532 = vmax.f32 %v4483, 0.0
      %v4533 = vmax.f32 %v4484, 0.0
      %v4534 = vmax.f32 %v4485, 0.0
      %v4535 = vmax.f32 %v4486, 0.0
      %v4536 = vmax.f32 %v4487, 0.0
      %v4537 = vmax.f32 %v4488, 0.0
      %v4538 = vmax.f32 %v4489, 0.0
      %v4539 = vmax.f32 %v4490, 0.0
      %v4540 = vmax.f32 %v4491, 0.0
      %v4541 = vmax.f32 %v4492, 0.0
      %v4542 = vmax.f32 %v4493, 0.0
      %v4543 = vmax.f32 %v4494, 0.0
      %v4544 = vmax.f32 %v4495, 0.0
      %v4545 = vmax.f32 %v4496, 0.0
      %v4546 = vmax.f32 %v4497, 0.0
      %v4547 = vmax.f32 %v4498, 0.0
      %v4548 = vmax.f32 %v4499, 0.0
      %v4549 = vmax.f32 %v4500, 0.0
      %v4550 = vmax.f32 %v4501, 0.0
      %v4551 = vmax.f32 %v4502, 0.0
      %v4552 = vmax.f32 %v4503, 0.0
      %v4553 = vmax.f32 %v4504, 0.0
      %v4554 = vmax.f32 %v4505, 0.0
      %v4604 = vcombine.low %v4506, %v4507
      %v4605 = vcombine.low %v4508, %v4509
      %v4606 = vcombine.low %v4510, %v4511
      %v4607 = vcombine.low %v4512, %v4513
      %v4609 = vunpack.c.l.s4 1966171168
      %v4610 = vunpack.c.0.s8 %v4609
      %v4611 = vlaneseq
      %v4612 = vshrl.u32 %v4611, 7
      %v4613 = vsub.s32 %v4610, %v4612
      %v4614 = vrot.slane %v4604, %v4613
      %v4616 = vunpack.c.l.s4 1966171168
      %v4617 = vunpack.c.0.s8 %v4616
      %v4618 = vlaneseq
      %v4619 = vshrl.u32 %v4618, 7
      %v4620 = vsub.s32 %v4617, %v4619
      %v4621 = vrot.slane %v4605, %v4620
      %v4623 = vunpack.c.l.s4 1966171168
      %v4624 = vunpack.c.0.s8 %v4623
      %v4625 = vlaneseq
      %v4626 = vshrl.u32 %v4625, 7
      %v4627 = vsub.s32 %v4624, %v4626
      %v4628 = vrot.slane %v4606, %v4627
      %v4630 = vunpack.c.l.s4 1966171168
      %v4631 = vunpack.c.0.s8 %v4630
      %v4632 = vlaneseq
      %v4633 = vshrl.u32 %v4632, 7
      %v4634 = vsub.s32 %v4631, %v4633
      %v4635 = vrot.slane %v4607, %v4634
      %v4636 = vcombine.low %v4614, %v4621
      %v4637 = vcombine.low %v4628, %v4635
      %v4639 = vunpack.c.l.s4 1966171168
      %v4640 = vunpack.c.0.s8 %v4639
      %v4641 = vlaneseq
      %v4642 = vshrl.u32 %v4641, 7
      %v4643 = vsub.s32 %v4640, %v4642
      %v4644 = vrot.slane %v4636, %v4643
      %v4646 = vunpack.c.l.s4 1966171168
      %v4647 = vunpack.c.0.s8 %v4646
      %v4648 = vlaneseq
      %v4649 = vshrl.u32 %v4648, 7
      %v4650 = vsub.s32 %v4647, %v4649
      %v4651 = vrot.slane %v4637, %v4650
      %v4652 = vcombine.low %v4644, %v4651
      %v4653 = vcombine.low %v4514, %v4515
      %v4654 = vcombine.low %v4516, %v4517
      %v4655 = vcombine.low %v4518, %v4519
      %v4656 = vcombine.low %v4520, %v4521
      %v4658 = vunpack.c.l.s4 1966171168
      %v4659 = vunpack.c.0.s8 %v4658
      %v4660 = vlaneseq
      %v4661 = vshrl.u32 %v4660, 7
      %v4662 = vsub.s32 %v4659, %v4661
      %v4663 = vrot.slane %v4653, %v4662
      %v4665 = vunpack.c.l.s4 1966171168
      %v4666 = vunpack.c.0.s8 %v4665
      %v4667 = vlaneseq
      %v4668 = vshrl.u32 %v4667, 7
      %v4669 = vsub.s32 %v4666, %v4668
      %v4670 = vrot.slane %v4654, %v4669
      %v4672 = vunpack.c.l.s4 1966171168
      %v4673 = vunpack.c.0.s8 %v4672
      %v4674 = vlaneseq
      %v4675 = vshrl.u32 %v4674, 7
      %v4676 = vsub.s32 %v4673, %v4675
      %v4677 = vrot.slane %v4655, %v4676
      %v4679 = vunpack.c.l.s4 1966171168
      %v4680 = vunpack.c.0.s8 %v4679
      %v4681 = vlaneseq
      %v4682 = vshrl.u32 %v4681, 7
      %v4683 = vsub.s32 %v4680, %v4682
      %v4684 = vrot.slane %v4656, %v4683
      %v4685 = vcombine.low %v4663, %v4670
      %v4686 = vcombine.low %v4677, %v4684
      %v4688 = vunpack.c.l.s4 1966171168
      %v4689 = vunpack.c.0.s8 %v4688
      %v4690 = vlaneseq
      %v4691 = vshrl.u32 %v4690, 7
      %v4692 = vsub.s32 %v4689, %v4691
      %v4693 = vrot.slane %v4685, %v4692
      %v4695 = vunpack.c.l.s4 1966171168
      %v4696 = vunpack.c.0.s8 %v4695
      %v4697 = vlaneseq
      %v4698 = vshrl.u32 %v4697, 7
      %v4699 = vsub.s32 %v4696, %v4698
      %v4700 = vrot.slane %v4686, %v4699
      %v4701 = vcombine.low %v4693, %v4700
      %v4702 = vcombine.low %v4522, %v4523
      %v4703 = vcombine.low %v4524, %v4525
      %v4704 = vcombine.low %v4526, %v4527
      %v4705 = vcombine.low %v4528, %v4529
      %v4707 = vunpack.c.l.s4 1966171168
      %v4708 = vunpack.c.0.s8 %v4707
      %v4709 = vlaneseq
      %v4710 = vshrl.u32 %v4709, 7
      %v4711 = vsub.s32 %v4708, %v4710
      %v4712 = vrot.slane %v4702, %v4711
      %v4714 = vunpack.c.l.s4 1966171168
      %v4715 = vunpack.c.0.s8 %v4714
      %v4716 = vlaneseq
      %v4717 = vshrl.u32 %v4716, 7
      %v4718 = vsub.s32 %v4715, %v4717
      %v4719 = vrot.slane %v4703, %v4718
      %v4721 = vunpack.c.l.s4 1966171168
      %v4722 = vunpack.c.0.s8 %v4721
      %v4723 = vlaneseq
      %v4724 = vshrl.u32 %v4723, 7
      %v4725 = vsub.s32 %v4722, %v4724
      %v4726 = vrot.slane %v4704, %v4725
      %v4728 = vunpack.c.l.s4 1966171168
      %v4729 = vunpack.c.0.s8 %v4728
      %v4730 = vlaneseq
      %v4731 = vshrl.u32 %v4730, 7
      %v4732 = vsub.s32 %v4729, %v4731
      %v4733 = vrot.slane %v4705, %v4732
      %v4734 = vcombine.low %v4712, %v4719
      %v4735 = vcombine.low %v4726, %v4733
      %v4737 = vunpack.c.l.s4 1966171168
      %v4738 = vunpack.c.0.s8 %v4737
      %v4739 = vlaneseq
      %v4740 = vshrl.u32 %v4739, 7
      %v4741 = vsub.s32 %v4738, %v4740
      %v4742 = vrot.slane %v4734, %v4741
      %v4744 = vunpack.c.l.s4 1966171168
      %v4745 = vunpack.c.0.s8 %v4744
      %v4746 = vlaneseq
      %v4747 = vshrl.u32 %v4746, 7
      %v4748 = vsub.s32 %v4745, %v4747
      %v4749 = vrot.slane %v4735, %v4748
      %v4750 = vcombine.low %v4742, %v4749
      %v4751 = vcombine.low %v4530, %v4531
      %v4752 = vcombine.low %v4532, %v4533
      %v4753 = vcombine.low %v4534, %v4535
      %v4754 = vcombine.low %v4536, %v4537
      %v4756 = vunpack.c.l.s4 1966171168
      %v4757 = vunpack.c.0.s8 %v4756
      %v4758 = vlaneseq
      %v4759 = vshrl.u32 %v4758, 7
      %v4760 = vsub.s32 %v4757, %v4759
      %v4761 = vrot.slane %v4751, %v4760
      %v4763 = vunpack.c.l.s4 1966171168
      %v4764 = vunpack.c.0.s8 %v4763
      %v4765 = vlaneseq
      %v4766 = vshrl.u32 %v4765, 7
      %v4767 = vsub.s32 %v4764, %v4766
      %v4768 = vrot.slane %v4752, %v4767
      %v4770 = vunpack.c.l.s4 1966171168
      %v4771 = vunpack.c.0.s8 %v4770
      %v4772 = vlaneseq
      %v4773 = vshrl.u32 %v4772, 7
      %v4774 = vsub.s32 %v4771, %v4773
      %v4775 = vrot.slane %v4753, %v4774
      %v4777 = vunpack.c.l.s4 1966171168
      %v4778 = vunpack.c.0.s8 %v4777
      %v4779 = vlaneseq
      %v4780 = vshrl.u32 %v4779, 7
      %v4781 = vsub.s32 %v4778, %v4780
      %v4782 = vrot.slane %v4754, %v4781
      %v4783 = vcombine.low %v4761, %v4768
      %v4784 = vcombine.low %v4775, %v4782
      %v4786 = vunpack.c.l.s4 1966171168
      %v4787 = vunpack.c.0.s8 %v4786
      %v4788 = vlaneseq
      %v4789 = vshrl.u32 %v4788, 7
      %v4790 = vsub.s32 %v4787, %v4789
      %v4791 = vrot.slane %v4783, %v4790
      %v4793 = vunpack.c.l.s4 1966171168
      %v4794 = vunpack.c.0.s8 %v4793
      %v4795 = vlaneseq
      %v4796 = vshrl.u32 %v4795, 7
      %v4797 = vsub.s32 %v4794, %v4796
      %v4798 = vrot.slane %v4784, %v4797
      %v4799 = vcombine.low %v4791, %v4798
      %v4800 = vcombine.low %v4538, %v4539
      %v4801 = vcombine.low %v4540, %v4541
      %v4802 = vcombine.low %v4542, %v4543
      %v4803 = vcombine.low %v4544, %v4545
      %v4805 = vunpack.c.l.s4 1966171168
      %v4806 = vunpack.c.0.s8 %v4805
      %v4807 = vlaneseq
      %v4808 = vshrl.u32 %v4807, 7
      %v4809 = vsub.s32 %v4806, %v4808
      %v4810 = vrot.slane %v4800, %v4809
      %v4812 = vunpack.c.l.s4 1966171168
      %v4813 = vunpack.c.0.s8 %v4812
      %v4814 = vlaneseq
      %v4815 = vshrl.u32 %v4814, 7
      %v4816 = vsub.s32 %v4813, %v4815
      %v4817 = vrot.slane %v4801, %v4816
      %v4819 = vunpack.c.l.s4 1966171168
      %v4820 = vunpack.c.0.s8 %v4819
      %v4821 = vlaneseq
      %v4822 = vshrl.u32 %v4821, 7
      %v4823 = vsub.s32 %v4820, %v4822
      %v4824 = vrot.slane %v4802, %v4823
      %v4826 = vunpack.c.l.s4 1966171168
      %v4827 = vunpack.c.0.s8 %v4826
      %v4828 = vlaneseq
      %v4829 = vshrl.u32 %v4828, 7
      %v4830 = vsub.s32 %v4827, %v4829
      %v4831 = vrot.slane %v4803, %v4830
      %v4832 = vcombine.low %v4810, %v4817
      %v4833 = vcombine.low %v4824, %v4831
      %v4835 = vunpack.c.l.s4 1966171168
      %v4836 = vunpack.c.0.s8 %v4835
      %v4837 = vlaneseq
      %v4838 = vshrl.u32 %v4837, 7
      %v4839 = vsub.s32 %v4836, %v4838
      %v4840 = vrot.slane %v4832, %v4839
      %v4842 = vunpack.c.l.s4 1966171168
      %v4843 = vunpack.c.0.s8 %v4842
      %v4844 = vlaneseq
      %v4845 = vshrl.u32 %v4844, 7
      %v4846 = vsub.s32 %v4843, %v4845
      %v4847 = vrot.slane %v4833, %v4846
      %v4848 = vcombine.low %v4840, %v4847
      %v4849 = vcombine.low %v4546, %v4547
      %v4850 = vcombine.low %v4548, %v4549
      %v4851 = vcombine.low %v4550, %v4551
      %v4852 = vcombine.low %v4552, %v4553
      %v4854 = vunpack.c.l.s4 1966171168
      %v4855 = vunpack.c.0.s8 %v4854
      %v4856 = vlaneseq
      %v4857 = vshrl.u32 %v4856, 7
      %v4858 = vsub.s32 %v4855, %v4857
      %v4859 = vrot.slane %v4849, %v4858
      %v4861 = vunpack.c.l.s4 1966171168
      %v4862 = vunpack.c.0.s8 %v4861
      %v4863 = vlaneseq
      %v4864 = vshrl.u32 %v4863, 7
      %v4865 = vsub.s32 %v4862, %v4864
      %v4866 = vrot.slane %v4850, %v4865
      %v4868 = vunpack.c.l.s4 1966171168
      %v4869 = vunpack.c.0.s8 %v4868
      %v4870 = vlaneseq
      %v4871 = vshrl.u32 %v4870, 7
      %v4872 = vsub.s32 %v4869, %v4871
      %v4873 = vrot.slane %v4851, %v4872
      %v4875 = vunpack.c.l.s4 1966171168
      %v4876 = vunpack.c.0.s8 %v4875
      %v4877 = vlaneseq
      %v4878 = vshrl.u32 %v4877, 7
      %v4879 = vsub.s32 %v4876, %v4878
      %v4880 = vrot.slane %v4852, %v4879
      %v4881 = vcombine.low %v4859, %v4866
      %v4882 = vcombine.low %v4873, %v4880
      %v4884 = vunpack.c.l.s4 1966171168
      %v4885 = vunpack.c.0.s8 %v4884
      %v4886 = vlaneseq
      %v4887 = vshrl.u32 %v4886, 7
      %v4888 = vsub.s32 %v4885, %v4887
      %v4889 = vrot.slane %v4881, %v4888
      %v4891 = vunpack.c.l.s4 1966171168
      %v4892 = vunpack.c.0.s8 %v4891
      %v4893 = vlaneseq
      %v4894 = vshrl.u32 %v4893, 7
      %v4895 = vsub.s32 %v4892, %v4894
      %v4896 = vrot.slane %v4882, %v4895
      %v4897 = vcombine.low %v4889, %v4896
      %v4899 = vunpack.c.l.s4 1966171168
      %v4900 = vunpack.c.0.s8 %v4899
      %v4901 = vlaneseq
      %v4902 = vshrl.u32 %v4901, 7
      %v4903 = vsub.s32 %v4900, %v4902
      %v4904 = vrot.slane %v4554, %v4903
      %v4906 = vunpack.c.l.s4 1966171168
      %v4907 = vunpack.c.0.s8 %v4906
      %v4908 = vlaneseq
      %v4909 = vshrl.u32 %v4908, 7
      %v4910 = vsub.s32 %v4907, %v4909
      %v4911 = vrot.slane %v4904, %v4910
      %vm4919 = vcmask 261120
      %4920 = vst.msk [vmem:[%s170] sm:$0xff] %vm4919, %v4652
      %4921 = vst.msk [vmem:[%s170 + $0x8] sm:$0xff] %vm4919, %v4701
      %4922 = vst.msk [vmem:[%s170 + $0x10] sm:$0xff] %vm4919, %v4750
      %4923 = vst.msk [vmem:[%s170 + $0x18] sm:$0xff] %vm4919, %v4799
      %4924 = vst.msk [vmem:[%s170 + $0x20] sm:$0xff] %vm4919, %v4848
      %4925 = vst.msk [vmem:[%s170 + $0x28] sm:$0xff] %vm4919, %v4897
      %vm4926 = vcmask 253952
      %4927 = vst.msk [vmem:[%s170 + $0x30] sm:$0x1] %vm4926, %v4911
      %p4928 = scmp.lt.s32.totalorder %s14, 1
      %s4929 = scalar_select %p4928, %s14, 1
      %s4930 = smul.addr %s4929, 7
      %s4931 = smul.addr %s4930, 8
      %s4932 = scalar_lea.vmem %s3, %s4931
      // Predicated region
      $region33: #{lenet_forward.4} parent=31 // pred_check
        %p4933 = pneg %p100
      $region34: #{lenet_forward.4} parent=31 // pred_check_branch
        %4935 = sbr.rel (%p4933) target = $region36
      $region35: #{lenet_forward.4} parent=31 // pred_region
        _
      $region36: #{lenet_forward.4} parent=31 // pred_fallthru
        _
    $region32: #{lenet_forward.4} parent=5 // pred_fallthru
      _
    %p4936 = scmp.le.s32.totalorder 2, %s9
    // Predicated region
    $region37: #{lenet_forward.4} parent=5 // pred_check
      %p4937 = pneg %p4936
    $region38: #{lenet_forward.4} parent=5 // pred_check_branch
      %4939 = sbr.rel (%p4937) target = $region40
    $region39: #{lenet_forward.4} parent=5 // pred_region
      %s4940 = ssub.s32 %s9, 2
      // Predicated region
      $region41: #{lenet_forward.4} parent=39 // pred_check
        %p4941 = pneg %p106
      $region42: #{lenet_forward.4} parent=39 // pred_check_branch
        %4943 = sbr.rel (%p4941) target = $region44
      $region43: #{lenet_forward.4} parent=39 // pred_region
        %p4944 = scmp.lt.s32.totalorder %s15, 1
        %s4945 = scalar_select %p4944, %s15, 1
        %s4946 = smul.addr %s4945, 7
        %s4947 = smul.addr %s4946, 8
        %s4948 = scalar_lea.vmem %s3, %s4947
      $region44: #{lenet_forward.4} parent=39 // pred_fallthru
        _
    $region40: #{lenet_forward.4} parent=5 // pred_fallthru
      _
  $region6: #{lenet_forward.4} parent=0 // loop_footer
    %s13 = sadd.s32 1, %s9
  $region7: #{lenet_forward.4} parent=0 // loop_footer_branch
    %8 = sbr.rel target = $region3
  $region8: #{lenet_forward.4} parent=0 // loop_exit
    _

// kernel: lenet_forward.5
$region0: #{lenet_forward.5}
  #allocation0 [shape = 'u32[]', space=smem, size = 0x4, offset = 0x4, fixed_abs, tag = 'smem constant byte address 0x4 - core index']
  #allocation1 [shape = 'u32[144,128]{1,0:T(1,128)}', space=vmem, size = 0x12000, scoped, tag = 'internal scratch']
  %s0 = inlined_call_operand.vmem [shape: bf16[8,1568], index: 0, kind: input, shape index: {}]
  %s1 = inlined_call_operand.vmem [shape: bf16[1568,10], index: 1, kind: input, shape index: {}]
  %s2 = inlined_call_operand.vmem [shape: f32[1,10], index: 2, kind: input, shape index: {}]
  %s3 = inlined_call_operand.vmem [shape: f32[8,10], index: 3, kind: output, shape index: {}]
  %s4 = sld [smem:[#allocation0]]
  $region22: #{lenet_forward.5} parent=0
    _
  %s6 = ssub.s32 1, %s4
  %s7 = scalar_select 0, %s6, %s4
  // Predicated region
  $region2: #{lenet_forward.5} parent=0 // pred_check
    _
  $region3: #{lenet_forward.5} parent=0 // pred_check_branch
    %9 = sbr.rel (0) target = $region5
  $region4: #{lenet_forward.5} parent=0 // pred_region
    _
  $region5: #{lenet_forward.5} parent=0 // pred_fallthru
    _
  // Predicated region
  $region6: #{lenet_forward.5} parent=0 // pred_check
    _
  $region7: #{lenet_forward.5} parent=0 // pred_check_branch
    %11 = sbr.rel (0) target = $region9
  $region8: #{lenet_forward.5} parent=0 // pred_region
    _
  $region9: #{lenet_forward.5} parent=0 // pred_fallthru
    _
  // Predicated region
  $region10: #{lenet_forward.5} parent=0 // pred_check
    _
  $region11: #{lenet_forward.5} parent=0 // pred_check_branch
    %13 = sbr.rel (0) target = $region13
  $region12: #{lenet_forward.5} parent=0 // pred_region
    _
  $region13: #{lenet_forward.5} parent=0 // pred_fallthru
    _
  %v15 = vld [vmem:[%s0] sm:$0xff]
  %v16 = vld [vmem:[%s0 + $0x8] sm:$0xff]
  %v17 = vld [vmem:[%s0 + $0x10] sm:$0xff]
  %v18 = vld [vmem:[%s0 + $0x18] sm:$0xff]
  %v19 = vld [vmem:[%s0 + $0x20] sm:$0xff]
  %v20 = vld [vmem:[%s0 + $0x28] sm:$0xff]
  %v21 = vld [vmem:[%s0 + $0x30] sm:$0xf]
  %v22 = vld [vmem:[%s1] sm:$0xf]
  %v23 = vld [vmem:[%s1 + $0x4] sm:$0xf]
  %v24 = vld [vmem:[%s1 + $0x8] sm:$0xf]
  %v25 = vld [vmem:[%s1 + $0xc] sm:$0xf]
  %v26 = vld [vmem:[%s1 + $0x10] sm:$0xf]
  %v27 = vld [vmem:[%s1 + $0x14] sm:$0xf]
  %v28 = vld [vmem:[%s1 + $0x18] sm:$0xf]
  %v29 = vld [vmem:[%s1 + $0x1c] sm:$0xf]
  %v30 = vld [vmem:[%s1 + $0x20] sm:$0xf]
  %v31 = vld [vmem:[%s1 + $0x24] sm:$0xf]
  %v32 = vld [vmem:[%s1 + $0x28] sm:$0xf]
  %v33 = vld [vmem:[%s1 + $0x2c] sm:$0xf]
  %v34 = vld [vmem:[%s1 + $0x30] sm:$0xf]
  %v35 = vld [vmem:[%s1 + $0x34] sm:$0xf]
  %v36 = vld [vmem:[%s1 + $0x38] sm:$0xf]
  %v37 = vld [vmem:[%s1 + $0x3c] sm:$0xf]
  %v38 = vld [vmem:[%s1 + $0x40] sm:$0xf]
  %v39 = vld [vmem:[%s1 + $0x44] sm:$0xf]
  %v40 = vld [vmem:[%s1 + $0x48] sm:$0xf]
  %v41 = vld [vmem:[%s1 + $0x4c] sm:$0xf]
  %v42 = vld [vmem:[%s1 + $0x50] sm:$0xf]
  %v43 = vld [vmem:[%s1 + $0x54] sm:$0xf]
  %v44 = vld [vmem:[%s1 + $0x58] sm:$0xf]
  %v45 = vld [vmem:[%s1 + $0x5c] sm:$0xf]
  %v46 = vld [vmem:[%s1 + $0x60] sm:$0xf]
  %v47 = vld [vmem:[%s1 + $0x64] sm:$0xf]
  %v48 = vld [vmem:[%s1 + $0x68] sm:$0xf]
  %v49 = vld [vmem:[%s1 + $0x6c] sm:$0xf]
  %v50 = vld [vmem:[%s1 + $0x70] sm:$0xf]
  %v51 = vld [vmem:[%s1 + $0x74] sm:$0xf]
  %v52 = vld [vmem:[%s1 + $0x78] sm:$0xf]
  %v53 = vld [vmem:[%s1 + $0x7c] sm:$0xf]
  %v54 = vld [vmem:[%s1 + $0x80] sm:$0xf]
  %v55 = vld [vmem:[%s1 + $0x84] sm:$0xf]
  %v56 = vld [vmem:[%s1 + $0x88] sm:$0xf]
  %v57 = vld [vmem:[%s1 + $0x8c] sm:$0xf]
  %v58 = vld [vmem:[%s1 + $0x90] sm:$0xf]
  %v59 = vld [vmem:[%s1 + $0x94] sm:$0xf]
  %v60 = vld [vmem:[%s1 + $0x98] sm:$0xf]
  %v61 = vld [vmem:[%s1 + $0x9c] sm:$0xf]
  %v62 = vld [vmem:[%s1 + $0xa0] sm:$0xf]
  %v63 = vld [vmem:[%s1 + $0xa4] sm:$0xf]
  %v64 = vld [vmem:[%s1 + $0xa8] sm:$0xf]
  %v65 = vld [vmem:[%s1 + $0xac] sm:$0xf]
  %v66 = vld [vmem:[%s1 + $0xb0] sm:$0xf]
  %v67 = vld [vmem:[%s1 + $0xb4] sm:$0xf]
  %v68 = vld [vmem:[%s1 + $0xb8] sm:$0xf]
  %v69 = vld [vmem:[%s1 + $0xbc] sm:$0xf]
  %v70 = vld [vmem:[%s1 + $0xc0] sm:$0xf]
  %v71 = vld [vmem:[%s1 + $0xc4] sm:$0xf]
  %v72 = vld [vmem:[%s1 + $0xc8] sm:$0xf]
  %v73 = vld [vmem:[%s1 + $0xcc] sm:$0xf]
  %v74 = vld [vmem:[%s1 + $0xd0] sm:$0xf]
  %v75 = vld [vmem:[%s1 + $0xd4] sm:$0xf]
  %v76 = vld [vmem:[%s1 + $0xd8] sm:$0xf]
  %v77 = vld [vmem:[%s1 + $0xdc] sm:$0xf]
  %v78 = vld [vmem:[%s1 + $0xe0] sm:$0xf]
  %v79 = vld [vmem:[%s1 + $0xe4] sm:$0xf]
  %v80 = vld [vmem:[%s1 + $0xe8] sm:$0xf]
  %v81 = vld [vmem:[%s1 + $0xec] sm:$0xf]
  %v82 = vld [vmem:[%s1 + $0xf0] sm:$0xf]
  %v83 = vld [vmem:[%s1 + $0xf4] sm:$0xf]
  %v84 = vld [vmem:[%s1 + $0xf8] sm:$0xf]
  %v85 = vld [vmem:[%s1 + $0xfc] sm:$0xf]
  %v86 = vld [vmem:[%s1 + $0x100] sm:$0xf]
  %v87 = vld [vmem:[%s1 + $0x104] sm:$0xf]
  %v88 = vld [vmem:[%s1 + $0x108] sm:$0xf]
  %v89 = vld [vmem:[%s1 + $0x10c] sm:$0xf]
  %v90 = vld [vmem:[%s1 + $0x110] sm:$0xf]
  %v91 = vld [vmem:[%s1 + $0x114] sm:$0xf]
  %v92 = vld [vmem:[%s1 + $0x118] sm:$0xf]
  %v93 = vld [vmem:[%s1 + $0x11c] sm:$0xf]
  %v94 = vld [vmem:[%s1 + $0x120] sm:$0xf]
  %v95 = vld [vmem:[%s1 + $0x124] sm:$0xf]
  %v96 = vld [vmem:[%s1 + $0x128] sm:$0xf]
  %v97 = vld [vmem:[%s1 + $0x12c] sm:$0xf]
  %v98 = vld [vmem:[%s1 + $0x130] sm:$0xf]
  %v99 = vld [vmem:[%s1 + $0x134] sm:$0xf]
  %v100 = vld [vmem:[%s1 + $0x138] sm:$0xf]
  %v101 = vld [vmem:[%s1 + $0x13c] sm:$0xf]
  %v102 = vld [vmem:[%s1 + $0x140] sm:$0xf]
  %v103 = vld [vmem:[%s1 + $0x144] sm:$0xf]
  %v104 = vld [vmem:[%s1 + $0x148] sm:$0xf]
  %v105 = vld [vmem:[%s1 + $0x14c] sm:$0xf]
  %v106 = vld [vmem:[%s1 + $0x150] sm:$0xf]
  %v107 = vld [vmem:[%s1 + $0x154] sm:$0xf]
  %v108 = vld [vmem:[%s1 + $0x158] sm:$0xf]
  %v109 = vld [vmem:[%s1 + $0x15c] sm:$0xf]
  %v110 = vld [vmem:[%s1 + $0x160] sm:$0xf]
  %v111 = vld [vmem:[%s1 + $0x164] sm:$0xf]
  %v112 = vld [vmem:[%s1 + $0x168] sm:$0xf]
  %v113 = vld [vmem:[%s1 + $0x16c] sm:$0xf]
  %v114 = vld [vmem:[%s1 + $0x170] sm:$0xf]
  %v115 = vld [vmem:[%s1 + $0x174] sm:$0xf]
  %v116 = vld [vmem:[%s1 + $0x178] sm:$0xf]
  %v117 = vld [vmem:[%s1 + $0x17c] sm:$0xf]
  %v118 = vld [vmem:[%s1 + $0x180] sm:$0xf]
  %v119 = vld [vmem:[%s1 + $0x184] sm:$0xf]
  %v120 = vld [vmem:[%s1 + $0x188] sm:$0xf]
  %v121 = vld [vmem:[%s1 + $0x18c] sm:$0xf]
  %v122 = vld [vmem:[%s1 + $0x190] sm:$0xf]
  %v123 = vld [vmem:[%s1 + $0x194] sm:$0xf]
  %v124 = vld [vmem:[%s1 + $0x198] sm:$0xf]
  %v125 = vld [vmem:[%s1 + $0x19c] sm:$0xf]
  %v126 = vld [vmem:[%s1 + $0x1a0] sm:$0xf]
  %v127 = vld [vmem:[%s1 + $0x1a4] sm:$0xf]
  %v128 = vld [vmem:[%s1 + $0x1a8] sm:$0xf]
  %v129 = vld [vmem:[%s1 + $0x1ac] sm:$0xf]
  %v130 = vld [vmem:[%s1 + $0x1b0] sm:$0xf]
  %v131 = vld [vmem:[%s1 + $0x1b4] sm:$0xf]
  %v132 = vld [vmem:[%s1 + $0x1b8] sm:$0xf]
  %v133 = vld [vmem:[%s1 + $0x1bc] sm:$0xf]
  %v134 = vld [vmem:[%s1 + $0x1c0] sm:$0xf]
  %v135 = vld [vmem:[%s1 + $0x1c4] sm:$0xf]
  %v136 = vld [vmem:[%s1 + $0x1c8] sm:$0xf]
  %v137 = vld [vmem:[%s1 + $0x1cc] sm:$0xf]
  %v138 = vld [vmem:[%s1 + $0x1d0] sm:$0xf]
  %v139 = vld [vmem:[%s1 + $0x1d4] sm:$0xf]
  %v140 = vld [vmem:[%s1 + $0x1d8] sm:$0xf]
  %v141 = vld [vmem:[%s1 + $0x1dc] sm:$0xf]
  %v142 = vld [vmem:[%s1 + $0x1e0] sm:$0xf]
  %v143 = vld [vmem:[%s1 + $0x1e4] sm:$0xf]
  %v144 = vld [vmem:[%s1 + $0x1e8] sm:$0xf]
  %v145 = vld [vmem:[%s1 + $0x1ec] sm:$0xf]
  %v146 = vld [vmem:[%s1 + $0x1f0] sm:$0xf]
  %v147 = vld [vmem:[%s1 + $0x1f4] sm:$0xf]
  %v148 = vld [vmem:[%s1 + $0x1f8] sm:$0xf]
  %v149 = vld [vmem:[%s1 + $0x1fc] sm:$0xf]
  %v150 = vld [vmem:[%s1 + $0x200] sm:$0xf]
  %v151 = vld [vmem:[%s1 + $0x204] sm:$0xf]
  %v152 = vld [vmem:[%s1 + $0x208] sm:$0xf]
  %v153 = vld [vmem:[%s1 + $0x20c] sm:$0xf]
  %v154 = vld [vmem:[%s1 + $0x210] sm:$0xf]
  %v155 = vld [vmem:[%s1 + $0x214] sm:$0xf]
  %v156 = vld [vmem:[%s1 + $0x218] sm:$0xf]
  %v157 = vld [vmem:[%s1 + $0x21c] sm:$0xf]
  %v158 = vld [vmem:[%s1 + $0x220] sm:$0xf]
  %v159 = vld [vmem:[%s1 + $0x224] sm:$0xf]
  %v160 = vld [vmem:[%s1 + $0x228] sm:$0xf]
  %v161 = vld [vmem:[%s1 + $0x22c] sm:$0xf]
  %v162 = vld [vmem:[%s1 + $0x230] sm:$0xf]
  %v163 = vld [vmem:[%s1 + $0x234] sm:$0xf]
  %v164 = vld [vmem:[%s1 + $0x238] sm:$0xf]
  %v165 = vld [vmem:[%s1 + $0x23c] sm:$0xf]
  %v166 = vld [vmem:[%s1 + $0x240] sm:$0xf]
  %v167 = vld [vmem:[%s1 + $0x244] sm:$0xf]
  %v168 = vld [vmem:[%s1 + $0x248] sm:$0xf]
  %v169 = vld [vmem:[%s1 + $0x24c] sm:$0xf]
  %v170 = vld [vmem:[%s1 + $0x250] sm:$0xf]
  %v171 = vld [vmem:[%s1 + $0x254] sm:$0xf]
  %v172 = vld [vmem:[%s1 + $0x258] sm:$0xf]
  %v173 = vld [vmem:[%s1 + $0x25c] sm:$0xf]
  %v174 = vld [vmem:[%s1 + $0x260] sm:$0xf]
  %v175 = vld [vmem:[%s1 + $0x264] sm:$0xf]
  %v176 = vld [vmem:[%s1 + $0x268] sm:$0xf]
  %v177 = vld [vmem:[%s1 + $0x26c] sm:$0xf]
  %v178 = vld [vmem:[%s1 + $0x270] sm:$0xf]
  %v179 = vld [vmem:[%s1 + $0x274] sm:$0xf]
  %v180 = vld [vmem:[%s1 + $0x278] sm:$0xf]
  %v181 = vld [vmem:[%s1 + $0x27c] sm:$0xf]
  %v182 = vld [vmem:[%s1 + $0x280] sm:$0xf]
  %v183 = vld [vmem:[%s1 + $0x284] sm:$0xf]
  %v184 = vld [vmem:[%s1 + $0x288] sm:$0xf]
  %v185 = vld [vmem:[%s1 + $0x28c] sm:$0xf]
  %v186 = vld [vmem:[%s1 + $0x290] sm:$0xf]
  %v187 = vld [vmem:[%s1 + $0x294] sm:$0xf]
  %v188 = vld [vmem:[%s1 + $0x298] sm:$0xf]
  %v189 = vld [vmem:[%s1 + $0x29c] sm:$0xf]
  %v190 = vld [vmem:[%s1 + $0x2a0] sm:$0xf]
  %v191 = vld [vmem:[%s1 + $0x2a4] sm:$0xf]
  %v192 = vld [vmem:[%s1 + $0x2a8] sm:$0xf]
  %v193 = vld [vmem:[%s1 + $0x2ac] sm:$0xf]
  %v194 = vld [vmem:[%s1 + $0x2b0] sm:$0xf]
  %v195 = vld [vmem:[%s1 + $0x2b4] sm:$0xf]
  %v196 = vld [vmem:[%s1 + $0x2b8] sm:$0xf]
  %v197 = vld [vmem:[%s1 + $0x2bc] sm:$0xf]
  %v198 = vld [vmem:[%s1 + $0x2c0] sm:$0xf]
  %v199 = vld [vmem:[%s1 + $0x2c4] sm:$0xf]
  %v200 = vld [vmem:[%s1 + $0x2c8] sm:$0xf]
  %v201 = vld [vmem:[%s1 + $0x2cc] sm:$0xf]
  %v202 = vld [vmem:[%s1 + $0x2d0] sm:$0xf]
  %v203 = vld [vmem:[%s1 + $0x2d4] sm:$0xf]
  %v204 = vld [vmem:[%s1 + $0x2d8] sm:$0xf]
  %v205 = vld [vmem:[%s1 + $0x2dc] sm:$0xf]
  %v206 = vld [vmem:[%s1 + $0x2e0] sm:$0xf]
  %v207 = vld [vmem:[%s1 + $0x2e4] sm:$0xf]
  %v208 = vld [vmem:[%s1 + $0x2e8] sm:$0xf]
  %v209 = vld [vmem:[%s1 + $0x2ec] sm:$0xf]
  %v210 = vld [vmem:[%s1 + $0x2f0] sm:$0xf]
  %v211 = vld [vmem:[%s1 + $0x2f4] sm:$0xf]
  %v212 = vld [vmem:[%s1 + $0x2f8] sm:$0xf]
  %v213 = vld [vmem:[%s1 + $0x2fc] sm:$0xf]
  %v214 = vld [vmem:[%s1 + $0x300] sm:$0xf]
  %v215 = vld [vmem:[%s1 + $0x304] sm:$0xf]
  %v216 = vld [vmem:[%s1 + $0x308] sm:$0xf]
  %v217 = vld [vmem:[%s1 + $0x30c] sm:$0xf]
  %v218 = vld [vmem:[%s2] sm:$0x1]
  %v220 = vlaneseq
  %v221 = vshrl.u32 %v220, 7
  %v222 = vsub.s32 0, %v221
  %v223 = vrot.slane %v218, %v222
  %v232 = vunpack.c.l.b16 %v15
  %v233 = vunpack.c.h.b16 %v15
  %v234 = vunpack.c.l.b16 %v16
  %v235 = vunpack.c.h.b16 %v16
  %v236 = vunpack.c.l.b16 %v17
  %v237 = vunpack.c.h.b16 %v17
  %v238 = vunpack.c.l.b16 %v18
  %v239 = vunpack.c.h.b16 %v18
  %v240 = vunpack.c.l.b16 %v19
  %v241 = vunpack.c.h.b16 %v19
  %v242 = vunpack.c.l.b16 %v20
  %v243 = vunpack.c.h.b16 %v20
  %v244 = vunpack.c.l.b16 %v21
  %v245 = vpack.c.b16 %v232, %v232
  %v246 = vpack.c.b16 %v233, %v233
  %v247 = vpack.c.b16 %v234, %v234
  %v248 = vpack.c.b16 %v235, %v235
  %v249 = vpack.c.b16 %v236, %v236
  %v250 = vpack.c.b16 %v237, %v237
  %v251 = vpack.c.b16 %v238, %v238
  %v252 = vpack.c.b16 %v239, %v239
  %v253 = vpack.c.b16 %v240, %v240
  %v254 = vpack.c.b16 %v241, %v241
  %v255 = vpack.c.b16 %v242, %v242
  %v256 = vpack.c.b16 %v243, %v243
  %v257 = vpack.c.b16 %v244, %v244
  %v466 = vunpack.c.l.b16 %v22
  %v467 = vunpack.c.l.b16 %v23
  %v468 = vunpack.c.l.b16 %v24
  %v469 = vunpack.c.l.b16 %v25
  %v470 = vunpack.c.l.b16 %v26
  %v471 = vunpack.c.l.b16 %v27
  %v472 = vunpack.c.l.b16 %v28
  %v473 = vunpack.c.l.b16 %v29
  %v474 = vunpack.c.l.b16 %v30
  %v475 = vunpack.c.l.b16 %v31
  %v476 = vunpack.c.l.b16 %v32
  %v477 = vunpack.c.l.b16 %v33
  %v478 = vunpack.c.l.b16 %v34
  %v479 = vunpack.c.l.b16 %v35
  %v480 = vunpack.c.l.b16 %v36
  %v481 = vunpack.c.l.b16 %v37
  %v482 = vunpack.c.l.b16 %v38
  %v483 = vunpack.c.l.b16 %v39
  %v484 = vunpack.c.l.b16 %v40
  %v485 = vunpack.c.l.b16 %v41
  %v486 = vunpack.c.l.b16 %v42
  %v487 = vunpack.c.l.b16 %v43
  %v488 = vunpack.c.l.b16 %v44
  %v489 = vunpack.c.l.b16 %v45
  %v490 = vunpack.c.l.b16 %v46
  %v491 = vunpack.c.l.b16 %v47
  %v492 = vunpack.c.l.b16 %v48
  %v493 = vunpack.c.l.b16 %v49
  %v494 = vunpack.c.l.b16 %v50
  %v495 = vunpack.c.l.b16 %v51
  %v496 = vunpack.c.l.b16 %v52
  %v497 = vunpack.c.l.b16 %v53
  %v498 = vunpack.c.l.b16 %v54
  %v499 = vunpack.c.l.b16 %v55
  %v500 = vunpack.c.l.b16 %v56
  %v501 = vunpack.c.l.b16 %v57
  %v502 = vunpack.c.l.b16 %v58
  %v503 = vunpack.c.l.b16 %v59
  %v504 = vunpack.c.l.b16 %v60
  %v505 = vunpack.c.l.b16 %v61
  %v506 = vunpack.c.l.b16 %v62
  %v507 = vunpack.c.l.b16 %v63
  %v508 = vunpack.c.l.b16 %v64
  %v509 = vunpack.c.l.b16 %v65
  %v510 = vunpack.c.l.b16 %v66
  %v511 = vunpack.c.l.b16 %v67
  %v512 = vunpack.c.l.b16 %v68
  %v513 = vunpack.c.l.b16 %v69
  %v514 = vunpack.c.l.b16 %v70
  %v515 = vunpack.c.l.b16 %v71
  %v516 = vunpack.c.l.b16 %v72
  %v517 = vunpack.c.l.b16 %v73
  %v518 = vunpack.c.l.b16 %v74
  %v519 = vunpack.c.l.b16 %v75
  %v520 = vunpack.c.l.b16 %v76
  %v521 = vunpack.c.l.b16 %v77
  %v522 = vunpack.c.l.b16 %v78
  %v523 = vunpack.c.l.b16 %v79
  %v524 = vunpack.c.l.b16 %v80
  %v525 = vunpack.c.l.b16 %v81
  %v526 = vunpack.c.l.b16 %v82
  %v527 = vunpack.c.l.b16 %v83
  %v528 = vunpack.c.l.b16 %v84
  %v529 = vunpack.c.l.b16 %v85
  %v530 = vunpack.c.l.b16 %v86
  %v531 = vunpack.c.l.b16 %v87
  %v532 = vunpack.c.l.b16 %v88
  %v533 = vunpack.c.l.b16 %v89
  %v534 = vunpack.c.l.b16 %v90
  %v535 = vunpack.c.l.b16 %v91
  %v536 = vunpack.c.l.b16 %v92
  %v537 = vunpack.c.l.b16 %v93
  %v538 = vunpack.c.l.b16 %v94
  %v539 = vunpack.c.l.b16 %v95
  %v540 = vunpack.c.l.b16 %v96
  %v541 = vunpack.c.l.b16 %v97
  %v542 = vunpack.c.l.b16 %v98
  %v543 = vunpack.c.l.b16 %v99
  %v544 = vunpack.c.l.b16 %v100
  %v545 = vunpack.c.l.b16 %v101
  %v546 = vunpack.c.l.b16 %v102
  %v547 = vunpack.c.l.b16 %v103
  %v548 = vunpack.c.l.b16 %v104
  %v549 = vunpack.c.l.b16 %v105
  %v550 = vunpack.c.l.b16 %v106
  %v551 = vunpack.c.l.b16 %v107
  %v552 = vunpack.c.l.b16 %v108
  %v553 = vunpack.c.l.b16 %v109
  %v554 = vunpack.c.l.b16 %v110
  %v555 = vunpack.c.l.b16 %v111
  %v556 = vunpack.c.l.b16 %v112
  %v557 = vunpack.c.l.b16 %v113
  %v558 = vunpack.c.l.b16 %v114
  %v559 = vunpack.c.l.b16 %v115
  %v560 = vunpack.c.l.b16 %v116
  %v561 = vunpack.c.l.b16 %v117
  %v562 = vunpack.c.l.b16 %v118
  %v563 = vunpack.c.l.b16 %v119
  %v564 = vunpack.c.l.b16 %v120
  %v565 = vunpack.c.l.b16 %v121
  %v566 = vunpack.c.l.b16 %v122
  %v567 = vunpack.c.l.b16 %v123
  %v568 = vunpack.c.l.b16 %v124
  %v569 = vunpack.c.l.b16 %v125
  %v570 = vunpack.c.l.b16 %v126
  %v571 = vunpack.c.l.b16 %v127
  %v572 = vunpack.c.l.b16 %v128
  %v573 = vunpack.c.l.b16 %v129
  %v574 = vunpack.c.l.b16 %v130
  %v575 = vunpack.c.l.b16 %v131
  %v576 = vunpack.c.l.b16 %v132
  %v577 = vunpack.c.l.b16 %v133
  %v578 = vunpack.c.l.b16 %v134
  %v579 = vunpack.c.l.b16 %v135
  %v580 = vunpack.c.l.b16 %v136
  %v581 = vunpack.c.l.b16 %v137
  %v582 = vunpack.c.l.b16 %v138
  %v583 = vunpack.c.l.b16 %v139
  %v584 = vunpack.c.l.b16 %v140
  %v585 = vunpack.c.l.b16 %v141
  %v586 = vunpack.c.l.b16 %v142
  %v587 = vunpack.c.l.b16 %v143
  %v588 = vunpack.c.l.b16 %v144
  %v589 = vunpack.c.l.b16 %v145
  %v590 = vunpack.c.l.b16 %v146
  %v591 = vunpack.c.l.b16 %v147
  %v592 = vunpack.c.l.b16 %v148
  %v593 = vunpack.c.l.b16 %v149
  %v594 = vunpack.c.l.b16 %v150
  %v595 = vunpack.c.l.b16 %v151
  %v596 = vunpack.c.l.b16 %v152
  %v597 = vunpack.c.l.b16 %v153
  %v598 = vunpack.c.l.b16 %v154
  %v599 = vunpack.c.l.b16 %v155
  %v600 = vunpack.c.l.b16 %v156
  %v601 = vunpack.c.l.b16 %v157
  %v602 = vunpack.c.l.b16 %v158
  %v603 = vunpack.c.l.b16 %v159
  %v604 = vunpack.c.l.b16 %v160
  %v605 = vunpack.c.l.b16 %v161
  %v606 = vunpack.c.l.b16 %v162
  %v607 = vunpack.c.l.b16 %v163
  %v608 = vunpack.c.l.b16 %v164
  %v609 = vunpack.c.l.b16 %v165
  %v610 = vunpack.c.l.b16 %v166
  %v611 = vunpack.c.l.b16 %v167
  %v612 = vunpack.c.l.b16 %v168
  %v613 = vunpack.c.l.b16 %v169
  %v614 = vunpack.c.l.b16 %v170
  %v615 = vunpack.c.l.b16 %v171
  %v616 = vunpack.c.l.b16 %v172
  %v617 = vunpack.c.l.b16 %v173
  %v618 = vunpack.c.l.b16 %v174
  %v619 = vunpack.c.l.b16 %v175
  %v620 = vunpack.c.l.b16 %v176
  %v621 = vunpack.c.l.b16 %v177
  %v622 = vunpack.c.l.b16 %v178
  %v623 = vunpack.c.l.b16 %v179
  %v624 = vunpack.c.l.b16 %v180
  %v625 = vunpack.c.l.b16 %v181
  %v626 = vunpack.c.l.b16 %v182
  %v627 = vunpack.c.l.b16 %v183
  %v628 = vunpack.c.l.b16 %v184
  %v629 = vunpack.c.l.b16 %v185
  %v630 = vunpack.c.l.b16 %v186
  %v631 = vunpack.c.l.b16 %v187
  %v632 = vunpack.c.l.b16 %v188
  %v633 = vunpack.c.l.b16 %v189
  %v634 = vunpack.c.l.b16 %v190
  %v635 = vunpack.c.l.b16 %v191
  %v636 = vunpack.c.l.b16 %v192
  %v637 = vunpack.c.l.b16 %v193
  %v638 = vunpack.c.l.b16 %v194
  %v639 = vunpack.c.l.b16 %v195
  %v640 = vunpack.c.l.b16 %v196
  %v641 = vunpack.c.l.b16 %v197
  %v642 = vunpack.c.l.b16 %v198
  %v643 = vunpack.c.l.b16 %v199
  %v644 = vunpack.c.l.b16 %v200
  %v645 = vunpack.c.l.b16 %v201
  %v646 = vunpack.c.l.b16 %v202
  %v647 = vunpack.c.l.b16 %v203
  %v648 = vunpack.c.l.b16 %v204
  %v649 = vunpack.c.l.b16 %v205
  %v650 = vunpack.c.l.b16 %v206
  %v651 = vunpack.c.l.b16 %v207
  %v652 = vunpack.c.l.b16 %v208
  %v653 = vunpack.c.l.b16 %v209
  %v654 = vunpack.c.l.b16 %v210
  %v655 = vunpack.c.l.b16 %v211
  %v656 = vunpack.c.l.b16 %v212
  %v657 = vunpack.c.l.b16 %v213
  %v658 = vunpack.c.l.b16 %v214
  %v659 = vunpack.c.l.b16 %v215
  %v660 = vunpack.c.l.b16 %v216
  %v661 = vunpack.c.l.b16 %v217
  %v662 = vpack.c.b16 %v467, %v466
  %v663 = vpack.c.b16 %v469, %v468
  %v664 = vpack.c.b16 %v471, %v470
  %v665 = vpack.c.b16 %v473, %v472
  %v666 = vpack.c.b16 %v475, %v474
  %v667 = vpack.c.b16 %v477, %v476
  %v668 = vpack.c.b16 %v479, %v478
  %v669 = vpack.c.b16 %v481, %v480
  %v670 = vpack.c.b16 %v483, %v482
  %v671 = vpack.c.b16 %v485, %v484
  %v672 = vpack.c.b16 %v487, %v486
  %v673 = vpack.c.b16 %v489, %v488
  %v674 = vpack.c.b16 %v491, %v490
  %v675 = vpack.c.b16 %v493, %v492
  %v676 = vpack.c.b16 %v495, %v494
  %v677 = vpack.c.b16 %v497, %v496
  %v678 = vpack.c.b16 %v499, %v498
  %v679 = vpack.c.b16 %v501, %v500
  %v680 = vpack.c.b16 %v503, %v502
  %v681 = vpack.c.b16 %v505, %v504
  %v682 = vpack.c.b16 %v507, %v506
  %v683 = vpack.c.b16 %v509, %v508
  %v684 = vpack.c.b16 %v511, %v510
  %v685 = vpack.c.b16 %v513, %v512
  %v686 = vpack.c.b16 %v515, %v514
  %v687 = vpack.c.b16 %v517, %v516
  %v688 = vpack.c.b16 %v519, %v518
  %v689 = vpack.c.b16 %v521, %v520
  %v690 = vpack.c.b16 %v523, %v522
  %v691 = vpack.c.b16 %v525, %v524
  %v692 = vpack.c.b16 %v527, %v526
  %v693 = vpack.c.b16 %v529, %v528
  %v694 = vpack.c.b16 %v531, %v530
  %v695 = vpack.c.b16 %v533, %v532
  %v696 = vpack.c.b16 %v535, %v534
  %v697 = vpack.c.b16 %v537, %v536
  %v698 = vpack.c.b16 %v539, %v538
  %v699 = vpack.c.b16 %v541, %v540
  %v700 = vpack.c.b16 %v543, %v542
  %v701 = vpack.c.b16 %v545, %v544
  %v702 = vpack.c.b16 %v547, %v546
  %v703 = vpack.c.b16 %v549, %v548
  %v704 = vpack.c.b16 %v551, %v550
  %v705 = vpack.c.b16 %v553, %v552
  %v706 = vpack.c.b16 %v555, %v554
  %v707 = vpack.c.b16 %v557, %v556
  %v708 = vpack.c.b16 %v559, %v558
  %v709 = vpack.c.b16 %v561, %v560
  %v710 = vpack.c.b16 %v563, %v562
  %v711 = vpack.c.b16 %v565, %v564
  %v712 = vpack.c.b16 %v567, %v566
  %v713 = vpack.c.b16 %v569, %v568
  %v714 = vpack.c.b16 %v571, %v570
  %v715 = vpack.c.b16 %v573, %v572
  %v716 = vpack.c.b16 %v575, %v574
  %v717 = vpack.c.b16 %v577, %v576
  %v718 = vpack.c.b16 %v579, %v578
  %v719 = vpack.c.b16 %v581, %v580
  %v720 = vpack.c.b16 %v583, %v582
  %v721 = vpack.c.b16 %v585, %v584
  %v722 = vpack.c.b16 %v587, %v586
  %v723 = vpack.c.b16 %v589, %v588
  %v724 = vpack.c.b16 %v591, %v590
  %v725 = vpack.c.b16 %v593, %v592
  %v726 = vpack.c.b16 %v595, %v594
  %v727 = vpack.c.b16 %v597, %v596
  %v728 = vpack.c.b16 %v599, %v598
  %v729 = vpack.c.b16 %v601, %v600
  %v730 = vpack.c.b16 %v603, %v602
  %v731 = vpack.c.b16 %v605, %v604
  %v732 = vpack.c.b16 %v607, %v606
  %v733 = vpack.c.b16 %v609, %v608
  %v734 = vpack.c.b16 %v611, %v610
  %v735 = vpack.c.b16 %v613, %v612
  %v736 = vpack.c.b16 %v615, %v614
  %v737 = vpack.c.b16 %v617, %v616
  %v738 = vpack.c.b16 %v619, %v618
  %v739 = vpack.c.b16 %v621, %v620
  %v740 = vpack.c.b16 %v623, %v622
  %v741 = vpack.c.b16 %v625, %v624
  %v742 = vpack.c.b16 %v627, %v626
  %v743 = vpack.c.b16 %v629, %v628
  %v744 = vpack.c.b16 %v631, %v630
  %v745 = vpack.c.b16 %v633, %v632
  %v746 = vpack.c.b16 %v635, %v634
  %v747 = vpack.c.b16 %v637, %v636
  %v748 = vpack.c.b16 %v639, %v638
  %v749 = vpack.c.b16 %v641, %v640
  %v750 = vpack.c.b16 %v643, %v642
  %v751 = vpack.c.b16 %v645, %v644
  %v752 = vpack.c.b16 %v647, %v646
  %v753 = vpack.c.b16 %v649, %v648
  %v754 = vpack.c.b16 %v651, %v650
  %v755 = vpack.c.b16 %v653, %v652
  %v756 = vpack.c.b16 %v655, %v654
  %v757 = vpack.c.b16 %v657, %v656
  %v758 = vpack.c.b16 %v659, %v658
  %v759 = vpack.c.b16 %v661, %v660
  %vm858 = vcmask 261120
  %v860 = vsel %vm858, %v257, 0
  %862 = vmatprep.subr.bf16.mxu0 0
  %863 = vmatpush1.bf16.msra.mxu0 %v669
  %864 = vmatprep.subr.bf16.mxu0 0
  %865 = vmatpush1.bf16.msra.mxu0 %v668
  %866 = vmatprep.subr.bf16.mxu0 0
  %867 = vmatpush1.bf16.msra.mxu0 %v667
  %868 = vmatprep.subr.bf16.mxu0 0
  %869 = vmatpush1.bf16.msra.mxu0 %v666
  %870 = vmatprep.subr.bf16.mxu0 0
  %871 = vmatpush1.bf16.msra.mxu0 %v665
  %872 = vmatprep.subr.bf16.mxu0 0
  %873 = vmatpush1.bf16.msra.mxu0 %v664
  %874 = vmatprep.subr.bf16.mxu0 0
  %875 = vmatpush1.bf16.msra.mxu0 %v663
  %876 = vmatprep.subr.bf16.mxu0 0
  %877 = vmatpush1.bf16.msra.mxu0 %v662
  %878 = vmatprep.subr.bf16.mxu0 0
  %879 = vmatpush2.bf16.msra.mxu0 %v677
  %880 = vmatprep.subr.bf16.mxu0 0
  %881 = vmatpush2.bf16.msra.mxu0 %v676
  %882 = vmatprep.subr.bf16.mxu0 0
  %883 = vmatpush2.bf16.msra.mxu0 %v675
  %884 = vmatprep.subr.bf16.mxu0 0
  %885 = vmatpush2.bf16.msra.mxu0 %v674
  %886 = vmatprep.subr.bf16.mxu0 0
  %887 = vmatpush2.bf16.msra.mxu0 %v673
  %888 = vmatprep.subr.bf16.mxu0 0
  %889 = vmatpush2.bf16.msra.mxu0 %v672
  %890 = vmatprep.subr.bf16.mxu0 0
  %891 = vmatpush2.bf16.msra.mxu0 %v671
  %892 = vmatprep.subr.bf16.mxu0 0
  %893 = vmatpush2.bf16.msra.mxu0 %v670
  %894 = vmatprep.mubr.bf16.mxu0 %v246
  %895 = vmatmul.mubr.bf16.gmra.mxu0 %v245
  %v896 = vpop.f32.mrf.mxu0
  %v897 = vadd.f32 %v223, %v896
  %v898 = vpop.f32.mrf.mxu0
  %v899 = vpop.f32.mrf.mxu0
  %v900 = vpop.f32.mrf.mxu0
  %901 = vdwg.mxu0
  %902 = vmatprep.subr.bf16.mxu0 0
  %903 = vmatpush1.bf16.msra.mxu0 %v685
  %904 = vmatprep.subr.bf16.mxu0 0
  %905 = vmatpush1.bf16.msra.mxu0 %v684
  %906 = vmatprep.subr.bf16.mxu0 0
  %907 = vmatpush1.bf16.msra.mxu0 %v683
  %908 = vmatprep.subr.bf16.mxu0 0
  %909 = vmatpush1.bf16.msra.mxu0 %v682
  %910 = vmatprep.subr.bf16.mxu0 0
  %911 = vmatpush1.bf16.msra.mxu0 %v681
  %912 = vmatprep.subr.bf16.mxu0 0
  %913 = vmatpush1.bf16.msra.mxu0 %v680
  %914 = vmatprep.subr.bf16.mxu0 0
  %915 = vmatpush1.bf16.msra.mxu0 %v679
  %916 = vmatprep.subr.bf16.mxu0 0
  %917 = vmatpush1.bf16.msra.mxu0 %v678
  %918 = vmatprep.subr.bf16.mxu0 0
  %919 = vmatpush2.bf16.msra.mxu0 %v693
  %920 = vmatprep.subr.bf16.mxu0 0
  %921 = vmatpush2.bf16.msra.mxu0 %v692
  %922 = vmatprep.subr.bf16.mxu0 0
  %923 = vmatpush2.bf16.msra.mxu0 %v691
  %924 = vmatprep.subr.bf16.mxu0 0
  %925 = vmatpush2.bf16.msra.mxu0 %v690
  %926 = vmatprep.subr.bf16.mxu0 0
  %927 = vmatpush2.bf16.msra.mxu0 %v689
  %928 = vmatprep.subr.bf16.mxu0 0
  %929 = vmatpush2.bf16.msra.mxu0 %v688
  %930 = vmatprep.subr.bf16.mxu0 0
  %931 = vmatpush2.bf16.msra.mxu0 %v687
  %932 = vmatprep.subr.bf16.mxu0 0
  %933 = vmatpush2.bf16.msra.mxu0 %v686
  %934 = vmatprep.mubr.bf16.mxu0 %v248
  %935 = vmatmul.mubr.bf16.gmra.mxu0 %v247
  %v936 = vpop.f32.mrf.mxu0
  %v937 = vadd.f32 %v897, %v936
  %v938 = vpop.f32.mrf.mxu0
  %v939 = vpop.f32.mrf.mxu0
  %v940 = vpop.f32.mrf.mxu0
  %941 = vdwg.mxu0
  %942 = vmatprep.subr.bf16.mxu0 0
  %943 = vmatpush1.bf16.msra.mxu0 %v701
  %944 = vmatprep.subr.bf16.mxu0 0
  %945 = vmatpush1.bf16.msra.mxu0 %v700
  %946 = vmatprep.subr.bf16.mxu0 0
  %947 = vmatpush1.bf16.msra.mxu0 %v699
  %948 = vmatprep.subr.bf16.mxu0 0
  %949 = vmatpush1.bf16.msra.mxu0 %v698
  %950 = vmatprep.subr.bf16.mxu0 0
  %951 = vmatpush1.bf16.msra.mxu0 %v697
  %952 = vmatprep.subr.bf16.mxu0 0
  %953 = vmatpush1.bf16.msra.mxu0 %v696
  %954 = vmatprep.subr.bf16.mxu0 0
  %955 = vmatpush1.bf16.msra.mxu0 %v695
  %956 = vmatprep.subr.bf16.mxu0 0
  %957 = vmatpush1.bf16.msra.mxu0 %v694
  %958 = vmatprep.subr.bf16.mxu0 0
  %959 = vmatpush2.bf16.msra.mxu0 %v709
  %960 = vmatprep.subr.bf16.mxu0 0
  %961 = vmatpush2.bf16.msra.mxu0 %v708
  %962 = vmatprep.subr.bf16.mxu0 0
  %963 = vmatpush2.bf16.msra.mxu0 %v707
  %964 = vmatprep.subr.bf16.mxu0 0
  %965 = vmatpush2.bf16.msra.mxu0 %v706
  %966 = vmatprep.subr.bf16.mxu0 0
  %967 = vmatpush2.bf16.msra.mxu0 %v705
  %968 = vmatprep.subr.bf16.mxu0 0
  %969 = vmatpush2.bf16.msra.mxu0 %v704
  %970 = vmatprep.subr.bf16.mxu0 0
  %971 = vmatpush2.bf16.msra.mxu0 %v703
  %972 = vmatprep.subr.bf16.mxu0 0
  %973 = vmatpush2.bf16.msra.mxu0 %v702
  %974 = vmatprep.mubr.bf16.mxu0 %v250
  %975 = vmatmul.mubr.bf16.gmra.mxu0 %v249
  %v976 = vpop.f32.mrf.mxu0
  %v977 = vadd.f32 %v937, %v976
  %v978 = vpop.f32.mrf.mxu0
  %v979 = vpop.f32.mrf.mxu0
  %v980 = vpop.f32.mrf.mxu0
  %981 = vdwg.mxu0
  %982 = vmatprep.subr.bf16.mxu0 0
  %983 = vmatpush1.bf16.msra.mxu0 %v717
  %984 = vmatprep.subr.bf16.mxu0 0
  %985 = vmatpush1.bf16.msra.mxu0 %v716
  %986 = vmatprep.subr.bf16.mxu0 0
  %987 = vmatpush1.bf16.msra.mxu0 %v715
  %988 = vmatprep.subr.bf16.mxu0 0
  %989 = vmatpush1.bf16.msra.mxu0 %v714
  %990 = vmatprep.subr.bf16.mxu0 0
  %991 = vmatpush1.bf16.msra.mxu0 %v713
  %992 = vmatprep.subr.bf16.mxu0 0
  %993 = vmatpush1.bf16.msra.mxu0 %v712
  %994 = vmatprep.subr.bf16.mxu0 0
  %995 = vmatpush1.bf16.msra.mxu0 %v711
  %996 = vmatprep.subr.bf16.mxu0 0
  %997 = vmatpush1.bf16.msra.mxu0 %v710
  %998 = vmatprep.subr.bf16.mxu0 0
  %999 = vmatpush2.bf16.msra.mxu0 %v725
  %1000 = vmatprep.subr.bf16.mxu0 0
  %1001 = vmatpush2.bf16.msra.mxu0 %v724
  %1002 = vmatprep.subr.bf16.mxu0 0
  %1003 = vmatpush2.bf16.msra.mxu0 %v723
  %1004 = vmatprep.subr.bf16.mxu0 0
  %1005 = vmatpush2.bf16.msra.mxu0 %v722
  %1006 = vmatprep.subr.bf16.mxu0 0
  %1007 = vmatpush2.bf16.msra.mxu0 %v721
  %1008 = vmatprep.subr.bf16.mxu0 0
  %1009 = vmatpush2.bf16.msra.mxu0 %v720
  %1010 = vmatprep.subr.bf16.mxu0 0
  %1011 = vmatpush2.bf16.msra.mxu0 %v719
  %1012 = vmatprep.subr.bf16.mxu0 0
  %1013 = vmatpush2.bf16.msra.mxu0 %v718
  %1014 = vmatprep.mubr.bf16.mxu0 %v252
  %1015 = vmatmul.mubr.bf16.gmra.mxu0 %v251
  %v1016 = vpop.f32.mrf.mxu0
  %v1017 = vadd.f32 %v977, %v1016
  %v1018 = vpop.f32.mrf.mxu0
  %v1019 = vpop.f32.mrf.mxu0
  %v1020 = vpop.f32.mrf.mxu0
  %1021 = vdwg.mxu0
  %1022 = vmatprep.subr.bf16.mxu0 0
  %1023 = vmatpush1.bf16.msra.mxu0 %v733
  %1024 = vmatprep.subr.bf16.mxu0 0
  %1025 = vmatpush1.bf16.msra.mxu0 %v732
  %1026 = vmatprep.subr.bf16.mxu0 0
  %1027 = vmatpush1.bf16.msra.mxu0 %v731
  %1028 = vmatprep.subr.bf16.mxu0 0
  %1029 = vmatpush1.bf16.msra.mxu0 %v730
  %1030 = vmatprep.subr.bf16.mxu0 0
  %1031 = vmatpush1.bf16.msra.mxu0 %v729
  %1032 = vmatprep.subr.bf16.mxu0 0
  %1033 = vmatpush1.bf16.msra.mxu0 %v728
  %1034 = vmatprep.subr.bf16.mxu0 0
  %1035 = vmatpush1.bf16.msra.mxu0 %v727
  %1036 = vmatprep.subr.bf16.mxu0 0
  %1037 = vmatpush1.bf16.msra.mxu0 %v726
  %1038 = vmatprep.subr.bf16.mxu0 0
  %1039 = vmatpush2.bf16.msra.mxu0 %v741
  %1040 = vmatprep.subr.bf16.mxu0 0
  %1041 = vmatpush2.bf16.msra.mxu0 %v740
  %1042 = vmatprep.subr.bf16.mxu0 0
  %1043 = vmatpush2.bf16.msra.mxu0 %v739
  %1044 = vmatprep.subr.bf16.mxu0 0
  %1045 = vmatpush2.bf16.msra.mxu0 %v738
  %1046 = vmatprep.subr.bf16.mxu0 0
  %1047 = vmatpush2.bf16.msra.mxu0 %v737
  %1048 = vmatprep.subr.bf16.mxu0 0
  %1049 = vmatpush2.bf16.msra.mxu0 %v736
  %1050 = vmatprep.subr.bf16.mxu0 0
  %1051 = vmatpush2.bf16.msra.mxu0 %v735
  %1052 = vmatprep.subr.bf16.mxu0 0
  %1053 = vmatpush2.bf16.msra.mxu0 %v734
  %1054 = vmatprep.mubr.bf16.mxu0 %v254
  %1055 = vmatmul.mubr.bf16.gmra.mxu0 %v253
  %v1056 = vpop.f32.mrf.mxu0
  %v1057 = vadd.f32 %v1017, %v1056
  %v1058 = vpop.f32.mrf.mxu0
  %v1059 = vpop.f32.mrf.mxu0
  %v1060 = vpop.f32.mrf.mxu0
  %1061 = vdwg.mxu0
  %1062 = vmatprep.subr.bf16.mxu0 0
  %1063 = vmatpush1.bf16.msra.mxu0 %v749
  %1064 = vmatprep.subr.bf16.mxu0 0
  %1065 = vmatpush1.bf16.msra.mxu0 %v748
  %1066 = vmatprep.subr.bf16.mxu0 0
  %1067 = vmatpush1.bf16.msra.mxu0 %v747
  %1068 = vmatprep.subr.bf16.mxu0 0
  %1069 = vmatpush1.bf16.msra.mxu0 %v746
  %1070 = vmatprep.subr.bf16.mxu0 0
  %1071 = vmatpush1.bf16.msra.mxu0 %v745
  %1072 = vmatprep.subr.bf16.mxu0 0
  %1073 = vmatpush1.bf16.msra.mxu0 %v744
  %1074 = vmatprep.subr.bf16.mxu0 0
  %1075 = vmatpush1.bf16.msra.mxu0 %v743
  %1076 = vmatprep.subr.bf16.mxu0 0
  %1077 = vmatpush1.bf16.msra.mxu0 %v742
  %1078 = vmatprep.subr.bf16.mxu0 0
  %1079 = vmatpush2.bf16.msra.mxu0 %v757
  %1080 = vmatprep.subr.bf16.mxu0 0
  %1081 = vmatpush2.bf16.msra.mxu0 %v756
  %1082 = vmatprep.subr.bf16.mxu0 0
  %1083 = vmatpush2.bf16.msra.mxu0 %v755
  %1084 = vmatprep.subr.bf16.mxu0 0
  %1085 = vmatpush2.bf16.msra.mxu0 %v754
  %1086 = vmatprep.subr.bf16.mxu0 0
  %1087 = vmatpush2.bf16.msra.mxu0 %v753
  %1088 = vmatprep.subr.bf16.mxu0 0
  %1089 = vmatpush2.bf16.msra.mxu0 %v752
  %1090 = vmatprep.subr.bf16.mxu0 0
  %1091 = vmatpush2.bf16.msra.mxu0 %v751
  %1092 = vmatprep.subr.bf16.mxu0 0
  %1093 = vmatpush2.bf16.msra.mxu0 %v750
  %1094 = vmatprep.mubr.bf16.mxu0 %v256
  %1095 = vmatmul.mubr.bf16.gmra.mxu0 %v255
  %v1096 = vpop.f32.mrf.mxu0
  %v1097 = vadd.f32 %v1057, %v1096
  %v1098 = vpop.f32.mrf.mxu0
  %v1099 = vpop.f32.mrf.mxu0
  %v1100 = vpop.f32.mrf.mxu0
  %1101 = vdwg.mxu0
  %1102 = vmatprep.subr.bf16.mxu0 0
  %1103 = vmatpush1.bf16.msra.mxu0 0
  %1104 = vmatprep.subr.bf16.mxu0 0
  %1105 = vmatpush1.bf16.msra.mxu0 0
  %1106 = vmatprep.subr.bf16.mxu0 0
  %1107 = vmatpush1.bf16.msra.mxu0 0
  %1108 = vmatprep.subr.bf16.mxu0 0
  %1109 = vmatpush1.bf16.msra.mxu0 0
  %1110 = vmatprep.subr.bf16.mxu0 0
  %1111 = vmatpush1.bf16.msra.mxu0 0
  %1112 = vmatprep.subr.bf16.mxu0 0
  %1113 = vmatpush1.bf16.msra.mxu0 0
  %1114 = vmatprep.subr.bf16.mxu0 0
  %1115 = vmatpush1.bf16.msra.mxu0 %v759
  %1116 = vmatprep.subr.bf16.mxu0 0
  %1117 = vmatpush1.bf16.msra.mxu0 %v758
  %1118 = vmatprep.subr.bf16.mxu0 0
  %1119 = vmatpush2.bf16.msra.mxu0 0
  %1120 = vmatprep.subr.bf16.mxu0 0
  %1121 = vmatpush2.bf16.msra.mxu0 0
  %1122 = vmatprep.subr.bf16.mxu0 0
  %1123 = vmatpush2.bf16.msra.mxu0 0
  %1124 = vmatprep.subr.bf16.mxu0 0
  %1125 = vmatpush2.bf16.msra.mxu0 0
  %1126 = vmatprep.subr.bf16.mxu0 0
  %1127 = vmatpush2.bf16.msra.mxu0 0
  %1128 = vmatprep.subr.bf16.mxu0 0
  %1129 = vmatpush2.bf16.msra.mxu0 0
  %1130 = vmatprep.subr.bf16.mxu0 0
  %1131 = vmatpush2.bf16.msra.mxu0 0
  %1132 = vmatprep.subr.bf16.mxu0 0
  %1133 = vmatpush2.bf16.msra.mxu0 0
  %1134 = vmatprep.mubr.bf16.mxu0 0
  %1135 = vmatmul.mubr.bf16.gmra.mxu0 %v860
  %v1136 = vpop.f32.mrf.mxu0
  %v1137 = vadd.f32 %v1097, %v1136
  %v1138 = vpop.f32.mrf.mxu0
  %v1139 = vpop.f32.mrf.mxu0
  %v1140 = vpop.f32.mrf.mxu0
  %1141 = vdwg.mxu0
  %vm1142 = vcmask 80896
  %1143 = vst.msk [vmem:[%s3] sm:$0xff] %vm1142, %v1137
  // Predicated region
  $region14: #{lenet_forward.5} parent=0 // pred_check
    _
  $region15: #{lenet_forward.5} parent=0 // pred_check_branch
    %1145 = sbr.rel (0) target = $region17
  $region16: #{lenet_forward.5} parent=0 // pred_region
    _
  $region17: #{lenet_forward.5} parent=0 // pred_fallthru
    _
  // Predicated region
  $region18: #{lenet_forward.5} parent=0 // pred_check
    _
  $region19: #{lenet_forward.5} parent=0 // pred_check_branch
    %1147 = sbr.rel (0) target = $region21
  $region20: #{lenet_forward.5} parent=0 // pred_region
    _
  $region21: #{lenet_forward.5} parent=0 // pred_fallthru
    _

</llo_original>
